<compile_context>
chip_gen: v7x
topology: tpu7x:2x2x1
jax: 0.10.0
libtpu: 0.0.40
codegen_flags: <defaults>
</compile_context>

<pallas_src>
import functools
import math

import jax
import jax.numpy as jnp
from jax.experimental import pallas as pl
from jax.experimental.pallas import tpu as pltpu


# -----------------------------------------------------------------------------
# Fused kernel: 25 shifted lane-dense GEMMs over a resident padded-image slab.
# -----------------------------------------------------------------------------
def _aspp_kernel(plan, pad, tr, w_out, xs_ref, wf_ref, ib_ref, o_ref):
    # xs_ref : (Hp, Wp, C)   bf16  padded image of this batch (VMEM resident)
    # wf_ref : (n_off, C, C) bf16  fused per-offset weights
    # ib_ref : (1, C)        f32   per-batch image-pool term + total folded bias
    # o_ref  : (tr, W, C)    f32   output row tile
    c = o_ref.shape[-1]
    row0 = pl.program_id(1) * tr

    acc = jnp.zeros((tr * w_out, c), jnp.float32)
    k = 0
    for dy, dxs in plan:                                   # static Python loop
        rows = xs_ref[pl.ds(row0 + pad + dy, tr), :, :]    # (tr, Wp, C)
        for dx in dxs:
            tap = rows[:, pad + dx:pad + dx + w_out, :]    # (tr, W, C) bf16
            acc = acc + jnp.dot(tap.reshape(tr * w_out, c), wf_ref[k],
                                preferred_element_type=jnp.float32)
            k += 1

    acc = acc + ib_ref[...]                                # (1, C) broadcast, f32
    o_ref[...] = acc.reshape(tr, w_out, c).astype(o_ref.dtype)


# -----------------------------------------------------------------------------
# ASPP forward
# -----------------------------------------------------------------------------
def aspp_forward(params, x_nchw, *, row_tile=8):
    B, C, H, W = x_nchw.shape
    d = params["conv"][0].shape[0]
    pad = 3                                    # max dilation of the 3x3 branches

    # ---- fold the d=3 bottleneck out (constant-folded under jit) -------------
    wcat = params["conv_1x1_output"][0][:, :, 0, 0].T          # (5d, d)
    bcat = params["conv_1x1_output"][1]                        # (d,)
    wout = params["outconv"][0][:, :, 0, 0].T                  # (d, C)
    bout = params["outconv"][1]                                # (C,)

    def mcat(i):                               # rows of wcat for concat branch i
        return wcat[i * d:(i + 1) * d, :]

    tap_w = {}                                 # (dy, dx) -> fused (C, C) weight

    def add_tap(dy, dx, m):
        key = (dy, dx)
        tap_w[key] = (tap_w[key] + m) if key in tap_w else m

    # 1x1 branch == centre tap
    w1 = params["atrous_block1"][0][:, :, 0, 0].T              # (C, d)
    add_tap(0, 0, w1 @ (mcat(1) @ wout))
    bias_total = params["atrous_block1"][1] @ (mcat(1) @ wout)

    for name, dil, bidx in (("atrous_block6", 1, 2),
                            ("atrous_block12", 2, 3),
                            ("atrous_block18", 3, 4)):
        wb, bb = params[name]                                  # (d, C, 3, 3), (d,)
        proj = mcat(bidx) @ wout                               # (d, C)
        bias_total = bias_total + bb @ proj
        for ky in range(3):
            for kx in range(3):
                add_tap((ky - 1) * dil, (kx - 1) * dil, wb[:, :, ky, kx].T @ proj)

    bias_total = bias_total + bcat @ wout + bout               # (C,)

    # group taps by row offset so each row slab is loaded once inside the kernel
    by_dy = {}
    for (dy, dx) in tap_w:
        by_dy.setdefault(dy, []).append(dx)
    plan = tuple((dy, tuple(sorted(by_dy[dy]))) for dy in sorted(by_dy))
    w_stack = [tap_w[(dy, dx)] for dy, dxs in plan for dx in dxs]
    n_off = len(w_stack)                                       # 25
    wf = jnp.stack(w_stack).astype(jnp.bfloat16)               # (n_off, C, C)

    # image-pool branch (AdaptiveAvgPool2d((1,1)) -> 1x1 conv -> bilinear from a
    # 1x1 source == per-batch constant) folded together with all biases.
    wm = params["conv"][0][:, :, 0, 0].T                       # (C, d)
    bm = params["conv"][1]
    img_feat = jnp.mean(x_nchw, axis=(2, 3)) @ wm + bm          # (B, d)
    img_bias = (img_feat @ mcat(0) @ wout + bias_total)         # (B, C)
    img_bias = img_bias.reshape(B, 1, C).astype(jnp.float32)

    # ---- channels-last, zero-padded by the max dilation; bf16 MXU operands ----
    x = jnp.transpose(x_nchw, (0, 2, 3, 1)).astype(jnp.bfloat16)
    xp = jnp.pad(x, ((0, 0), (pad, pad), (pad, pad), (0, 0)))
    Hp, Wp = H + 2 * pad, W + 2 * pad

    tr = row_tile if H % row_tile == 0 else H
    kernel = functools.partial(_aspp_kernel, plan, pad, tr, W)

    flops = 2 * B * H * W * n_off * C * C
    bytes_accessed = (B * Hp * Wp * C * 2 + n_off * C * C * 2
                      + B * C * 4 + B * H * W * C * 4)

    out = pl.pallas_call(
        kernel,
        out_shape=jax.ShapeDtypeStruct((B, H, W, C), jnp.float32),
        grid=(B, H // tr),
        in_specs=[
            # Whole padded image of batch b; block index is constant across the
            # row axis -> fetched from HBM once per batch, resident in VMEM.
            pl.BlockSpec((None, Hp, Wp, C), lambda b, r: (b, 0, 0, 0)),
            pl.BlockSpec((n_off, C, C), lambda b, r: (0, 0, 0)),
            pl.BlockSpec((None, 1, C), lambda b, r: (b, 0, 0)),
        ],
        out_specs=pl.BlockSpec((None, tr, W, C), lambda b, r: (b, r, 0, 0)),
        compiler_params=pltpu.CompilerParams(
            dimension_semantics=("parallel", "arbitrary"),
            vmem_limit_bytes=32 * 1024 * 1024),
        cost_estimate=pl.CostEstimate(flops=flops, transcendentals=0,
                                      bytes_accessed=bytes_accessed),
    )(xp, wf, img_bias)

    return jnp.transpose(out, (0, 3, 1, 2))                    # back to NCHW


# -----------------------------------------------------------------------------
# Pure-JAX reference (mirrors the PyTorch forward) — for correctness check
# -----------------------------------------------------------------------------
def aspp_reference(params, x):
    def conv2d(inp, w, b, dil=1, pad=0):
        y = jax.lax.conv_general_dilated(
            inp, w, window_strides=(1, 1),
            padding=((pad, pad), (pad, pad)),
            rhs_dilation=(dil, dil),
            dimension_numbers=("NCHW", "OIHW", "NCHW"))
        return y + b.reshape(1, -1, 1, 1)

    B, C, H, W = x.shape
    img = jnp.mean(x, axis=(2, 3), keepdims=True)        # AdaptiveAvgPool2d((1,1))
    img = conv2d(img, *params["conv"])
    img = jnp.broadcast_to(img, (B, img.shape[1], H, W))  # bilinear from 1x1 == const
    a1 = conv2d(x, *params["atrous_block1"])
    a6 = conv2d(x, *params["atrous_block6"], dil=1, pad=1)
    a12 = conv2d(x, *params["atrous_block12"], dil=2, pad=2)
    a18 = conv2d(x, *params["atrous_block18"], dil=3, pad=3)
    y = jnp.concatenate([img, a1, a6, a12, a18], axis=1)
    y = conv2d(y, *params["conv_1x1_output"])
    return conv2d(y, *params["outconv"])


# -----------------------------------------------------------------------------
# Deterministic parameter initialization
# -----------------------------------------------------------------------------
def _init_conv(key, in_ch, out_ch, k):
    kw, kb = jax.random.split(key)
    fan_in = in_ch * k * k
    w = jax.random.normal(kw, (out_ch, in_ch, k, k), jnp.float32) / math.sqrt(fan_in)
    b = 0.1 * jax.random.normal(kb, (out_ch,), jnp.float32)
    return w, b


def init_aspp_params(key, in_channel, depth=3):
    keys = jax.random.split(key, 7)
    return {
        "conv": _init_conv(keys[0], in_channel, depth, 1),
        "atrous_block1": _init_conv(keys[1], in_channel, depth, 1),
        "atrous_block6": _init_conv(keys[2], in_channel, depth, 3),
        "atrous_block12": _init_conv(keys[3], in_channel, depth, 3),
        "atrous_block18": _init_conv(keys[4], in_channel, depth, 3),
        "conv_1x1_output": _init_conv(keys[5], depth * 5, depth, 1),
        "outconv": _init_conv(keys[6], depth, in_channel, 1),
    }


# -----------------------------------------------------------------------------
if __name__ == "__main__":
    key = jax.random.PRNGKey(0)
    kp, kx = jax.random.split(key)

    B, C, H, W = 2, 128, 16, 16          # C=128 keeps the fused GEMM lane-dense
    depth = 3
    params = init_aspp_params(kp, C, depth)
    x = jax.random.normal(kx, (B, C, H, W), jnp.float32)

    fwd = jax.jit(functools.partial(aspp_forward, params))
    out = fwd(x)
    jax.block_until_ready(out)

    assert out.shape == (B, C, H, W), out.shape
    assert bool(jnp.all(jnp.isfinite(out)))

    ref = aspp_reference(params, x)
    max_err = float(jnp.max(jnp.abs(out - ref)))
    assert max_err < 1e-1, f"max abs error vs reference: {max_err}"

    print("KERNEL_OK")
</pallas_src>

<mosaic_0001>
module attributes {stable_mosaic.version = 11 : i64} {
  func.func @_aspp_kernel(%arg0: i32, %arg1: i32, %arg2: memref<1x22x22x128xbf16, #tpu.memory_space<vmem>>, %arg3: memref<25x128x128xbf16, #tpu.memory_space<vmem>>, %arg4: memref<1x1x128xf32, #tpu.memory_space<vmem>>, %arg5: memref<1x8x16x128xf32, #tpu.memory_space<vmem>>) attributes {dimension_semantics = [#tpu.dimension_semantics<parallel>, #tpu.dimension_semantics<arbitrary>], iteration_bounds = array<i64: 2, 2>, scalar_prefetch = 0 : i64, scratch_operands = 0 : i64, tpu.core_type = #tpu.core_type<tc>, window_params = [{transform_indices = @transform_0, window_bounds = array<i64: 1, 22, 22, 128>}, {pipeline_mode = #tpu.pipeline_mode<synchronous>, transform_indices = @transform_1, window_bounds = array<i64: 25, 128, 128>}, {transform_indices = @transform_2, window_bounds = array<i64: 1, 1, 128>}, {transform_indices = @transform_3, window_bounds = array<i64: 1, 8, 16, 128>}]} {
    %c8_i32 = arith.constant 8 : i32
    %0 = arith.muli %arg1, %c8_i32 : i32
    %cst = arith.constant 0.000000e+00 : f32
    %1 = vector.broadcast %cst : f32 to vector<128x128xf32>
    %c3_i32 = arith.constant 3 : i32
    %2 = arith.addi %0, %c3_i32 : i32
    %c-3_i32 = arith.constant -3 : i32
    %3 = arith.addi %2, %c-3_i32 : i32
    %c0 = arith.constant 0 : index
    %4 = arith.index_cast %3 : i32 to index
    %c0_0 = arith.constant 0 : index
    %c0_1 = arith.constant 0 : index
    %5 = vector.load %arg2[%c0, %4, %c0_0, %c0_1] : memref<1x22x22x128xbf16, #tpu.memory_space<vmem>>, vector<1x8x22x128xbf16>
    %6 = vector.shape_cast %5 : vector<1x8x22x128xbf16> to vector<8x22x128xbf16>
    %7 = vector.extract_strided_slice %6 {offsets = [0, 0, 0], sizes = [8, 16, 128], strides = [1, 1, 1]} : vector<8x22x128xbf16> to vector<8x16x128xbf16>
    %8 = vector.shape_cast %7 : vector<8x16x128xbf16> to vector<128x128xbf16>
    %c0_2 = arith.constant 0 : index
    %c0_3 = arith.constant 0 : index
    %c0_4 = arith.constant 0 : index
    %9 = vector.load %arg3[%c0_2, %c0_3, %c0_4] : memref<25x128x128xbf16, #tpu.memory_space<vmem>>, vector<1x128x128xbf16>
    %10 = vector.shape_cast %9 : vector<1x128x128xbf16> to vector<128x128xbf16>
    %cst_5 = arith.constant dense<0.000000e+00> : vector<128x128xf32>
    %11 = tpu.matmul %8, %10, %cst_5 {dimension_numbers = #tpu.dot_dimension_numbers<[1], [0], [0], [1], [0, 0, 1, 1], [], []>} : vector<128x128xbf16>, vector<128x128xbf16>, vector<128x128xf32> -> vector<128x128xf32>
    %12 = arith.addf %1, %11 : vector<128x128xf32>
    %13 = vector.extract_strided_slice %6 {offsets = [0, 3, 0], sizes = [8, 16, 128], strides = [1, 1, 1]} : vector<8x22x128xbf16> to vector<8x16x128xbf16>
    %14 = vector.shape_cast %13 : vector<8x16x128xbf16> to vector<128x128xbf16>
    %c1 = arith.constant 1 : index
    %c0_6 = arith.constant 0 : index
    %c0_7 = arith.constant 0 : index
    %15 = vector.load %arg3[%c1, %c0_6, %c0_7] : memref<25x128x128xbf16, #tpu.memory_space<vmem>>, vector<1x128x128xbf16>
    %16 = vector.shape_cast %15 : vector<1x128x128xbf16> to vector<128x128xbf16>
    %cst_8 = arith.constant dense<0.000000e+00> : vector<128x128xf32>
    %17 = tpu.matmul %14, %16, %cst_8 {dimension_numbers = #tpu.dot_dimension_numbers<[1], [0], [0], [1], [0, 0, 1, 1], [], []>} : vector<128x128xbf16>, vector<128x128xbf16>, vector<128x128xf32> -> vector<128x128xf32>
    %18 = arith.addf %12, %17 : vector<128x128xf32>
    %19 = vector.extract_strided_slice %6 {offsets = [0, 6, 0], sizes = [8, 16, 128], strides = [1, 1, 1]} : vector<8x22x128xbf16> to vector<8x16x128xbf16>
    %20 = vector.shape_cast %19 : vector<8x16x128xbf16> to vector<128x128xbf16>
    %c2 = arith.constant 2 : index
    %c0_9 = arith.constant 0 : index
    %c0_10 = arith.constant 0 : index
    %21 = vector.load %arg3[%c2, %c0_9, %c0_10] : memref<25x128x128xbf16, #tpu.memory_space<vmem>>, vector<1x128x128xbf16>
    %22 = vector.shape_cast %21 : vector<1x128x128xbf16> to vector<128x128xbf16>
    %cst_11 = arith.constant dense<0.000000e+00> : vector<128x128xf32>
    %23 = tpu.matmul %20, %22, %cst_11 {dimension_numbers = #tpu.dot_dimension_numbers<[1], [0], [0], [1], [0, 0, 1, 1], [], []>} : vector<128x128xbf16>, vector<128x128xbf16>, vector<128x128xf32> -> vector<128x128xf32>
    %24 = arith.addf %18, %23 : vector<128x128xf32>
    %c3_i32_12 = arith.constant 3 : i32
    %25 = arith.addi %0, %c3_i32_12 : i32
    %c-2_i32 = arith.constant -2 : i32
    %26 = arith.addi %25, %c-2_i32 : i32
    %c0_13 = arith.constant 0 : index
    %27 = arith.index_cast %26 : i32 to index
    %c0_14 = arith.constant 0 : index
    %c0_15 = arith.constant 0 : index
    %28 = vector.load %arg2[%c0_13, %27, %c0_14, %c0_15] : memref<1x22x22x128xbf16, #tpu.memory_space<vmem>>, vector<1x8x22x128xbf16>
    %29 = vector.shape_cast %28 : vector<1x8x22x128xbf16> to vector<8x22x128xbf16>
    %30 = vector.extract_strided_slice %29 {offsets = [0, 1, 0], sizes = [8, 16, 128], strides = [1, 1, 1]} : vector<8x22x128xbf16> to vector<8x16x128xbf16>
    %31 = vector.shape_cast %30 : vector<8x16x128xbf16> to vector<128x128xbf16>
    %c3 = arith.constant 3 : index
    %c0_16 = arith.constant 0 : index
    %c0_17 = arith.constant 0 : index
    %32 = vector.load %arg3[%c3, %c0_16, %c0_17] : memref<25x128x128xbf16, #tpu.memory_space<vmem>>, vector<1x128x128xbf16>
    %33 = vector.shape_cast %32 : vector<1x128x128xbf16> to vector<128x128xbf16>
    %cst_18 = arith.constant dense<0.000000e+00> : vector<128x128xf32>
    %34 = tpu.matmul %31, %33, %cst_18 {dimension_numbers = #tpu.dot_dimension_numbers<[1], [0], [0], [1], [0, 0, 1, 1], [], []>} : vector<128x128xbf16>, vector<128x128xbf16>, vector<128x128xf32> -> vector<128x128xf32>
    %35 = arith.addf %24, %34 : vector<128x128xf32>
    %36 = vector.extract_strided_slice %29 {offsets = [0, 3, 0], sizes = [8, 16, 128], strides = [1, 1, 1]} : vector<8x22x128xbf16> to vector<8x16x128xbf16>
    %37 = vector.shape_cast %36 : vector<8x16x128xbf16> to vector<128x128xbf16>
    %c4 = arith.constant 4 : index
    %c0_19 = arith.constant 0 : index
    %c0_20 = arith.constant 0 : index
    %38 = vector.load %arg3[%c4, %c0_19, %c0_20] : memref<25x128x128xbf16, #tpu.memory_space<vmem>>, vector<1x128x128xbf16>
    %39 = vector.shape_cast %38 : vector<1x128x128xbf16> to vector<128x128xbf16>
    %cst_21 = arith.constant dense<0.000000e+00> : vector<128x128xf32>
    %40 = tpu.matmul %37, %39, %cst_21 {dimension_numbers = #tpu.dot_dimension_numbers<[1], [0], [0], [1], [0, 0, 1, 1], [], []>} : vector<128x128xbf16>, vector<128x128xbf16>, vector<128x128xf32> -> vector<128x128xf32>
    %41 = arith.addf %35, %40 : vector<128x128xf32>
    %42 = vector.extract_strided_slice %29 {offsets = [0, 5, 0], sizes = [8, 16, 128], strides = [1, 1, 1]} : vector<8x22x128xbf16> to vector<8x16x128xbf16>
    %43 = vector.shape_cast %42 : vector<8x16x128xbf16> to vector<128x128xbf16>
    %c5 = arith.constant 5 : index
    %c0_22 = arith.constant 0 : index
    %c0_23 = arith.constant 0 : index
    %44 = vector.load %arg3[%c5, %c0_22, %c0_23] : memref<25x128x128xbf16, #tpu.memory_space<vmem>>, vector<1x128x128xbf16>
    %45 = vector.shape_cast %44 : vector<1x128x128xbf16> to vector<128x128xbf16>
    %cst_24 = arith.constant dense<0.000000e+00> : vector<128x128xf32>
    %46 = tpu.matmul %43, %45, %cst_24 {dimension_numbers = #tpu.dot_dimension_numbers<[1], [0], [0], [1], [0, 0, 1, 1], [], []>} : vector<128x128xbf16>, vector<128x128xbf16>, vector<128x128xf32> -> vector<128x128xf32>
    %47 = arith.addf %41, %46 : vector<128x128xf32>
    %c3_i32_25 = arith.constant 3 : i32
    %48 = arith.addi %0, %c3_i32_25 : i32
    %c-1_i32 = arith.constant -1 : i32
    %49 = arith.addi %48, %c-1_i32 : i32
    %c0_26 = arith.constant 0 : index
    %50 = arith.index_cast %49 : i32 to index
    %c0_27 = arith.constant 0 : index
    %c0_28 = arith.constant 0 : index
    %51 = vector.load %arg2[%c0_26, %50, %c0_27, %c0_28] : memref<1x22x22x128xbf16, #tpu.memory_space<vmem>>, vector<1x8x22x128xbf16>
    %52 = vector.shape_cast %51 : vector<1x8x22x128xbf16> to vector<8x22x128xbf16>
    %53 = vector.extract_strided_slice %52 {offsets = [0, 2, 0], sizes = [8, 16, 128], strides = [1, 1, 1]} : vector<8x22x128xbf16> to vector<8x16x128xbf16>
    %54 = vector.shape_cast %53 : vector<8x16x128xbf16> to vector<128x128xbf16>
    %c6 = arith.constant 6 : index
    %c0_29 = arith.constant 0 : index
    %c0_30 = arith.constant 0 : index
    %55 = vector.load %arg3[%c6, %c0_29, %c0_30] : memref<25x128x128xbf16, #tpu.memory_space<vmem>>, vector<1x128x128xbf16>
    %56 = vector.shape_cast %55 : vector<1x128x128xbf16> to vector<128x128xbf16>
    %cst_31 = arith.constant dense<0.000000e+00> : vector<128x128xf32>
    %57 = tpu.matmul %54, %56, %cst_31 {dimension_numbers = #tpu.dot_dimension_numbers<[1], [0], [0], [1], [0, 0, 1, 1], [], []>} : vector<128x128xbf16>, vector<128x128xbf16>, vector<128x128xf32> -> vector<128x128xf32>
    %58 = arith.addf %47, %57 : vector<128x128xf32>
    %59 = vector.extract_strided_slice %52 {offsets = [0, 3, 0], sizes = [8, 16, 128], strides = [1, 1, 1]} : vector<8x22x128xbf16> to vector<8x16x128xbf16>
    %60 = vector.shape_cast %59 : vector<8x16x128xbf16> to vector<128x128xbf16>
    %c7 = arith.constant 7 : index
    %c0_32 = arith.constant 0 : index
    %c0_33 = arith.constant 0 : index
    %61 = vector.load %arg3[%c7, %c0_32, %c0_33] : memref<25x128x128xbf16, #tpu.memory_space<vmem>>, vector<1x128x128xbf16>
    %62 = vector.shape_cast %61 : vector<1x128x128xbf16> to vector<128x128xbf16>
    %cst_34 = arith.constant dense<0.000000e+00> : vector<128x128xf32>
    %63 = tpu.matmul %60, %62, %cst_34 {dimension_numbers = #tpu.dot_dimension_numbers<[1], [0], [0], [1], [0, 0, 1, 1], [], []>} : vector<128x128xbf16>, vector<128x128xbf16>, vector<128x128xf32> -> vector<128x128xf32>
    %64 = arith.addf %58, %63 : vector<128x128xf32>
    %65 = vector.extract_strided_slice %52 {offsets = [0, 4, 0], sizes = [8, 16, 128], strides = [1, 1, 1]} : vector<8x22x128xbf16> to vector<8x16x128xbf16>
    %66 = vector.shape_cast %65 : vector<8x16x128xbf16> to vector<128x128xbf16>
    %c8 = arith.constant 8 : index
    %c0_35 = arith.constant 0 : index
    %c0_36 = arith.constant 0 : index
    %67 = vector.load %arg3[%c8, %c0_35, %c0_36] : memref<25x128x128xbf16, #tpu.memory_space<vmem>>, vector<1x128x128xbf16>
    %68 = vector.shape_cast %67 : vector<1x128x128xbf16> to vector<128x128xbf16>
    %cst_37 = arith.constant dense<0.000000e+00> : vector<128x128xf32>
    %69 = tpu.matmul %66, %68, %cst_37 {dimension_numbers = #tpu.dot_dimension_numbers<[1], [0], [0], [1], [0, 0, 1, 1], [], []>} : vector<128x128xbf16>, vector<128x128xbf16>, vector<128x128xf32> -> vector<128x128xf32>
    %70 = arith.addf %64, %69 : vector<128x128xf32>
    %c3_i32_38 = arith.constant 3 : i32
    %71 = arith.addi %0, %c3_i32_38 : i32
    %c0_i32 = arith.constant 0 : i32
    %72 = arith.addi %71, %c0_i32 : i32
    %c0_39 = arith.constant 0 : index
    %73 = arith.index_cast %72 : i32 to index
    %c0_40 = arith.constant 0 : index
    %c0_41 = arith.constant 0 : index
    %74 = vector.load %arg2[%c0_39, %73, %c0_40, %c0_41] : memref<1x22x22x128xbf16, #tpu.memory_space<vmem>>, vector<1x8x22x128xbf16>
    %75 = vector.shape_cast %74 : vector<1x8x22x128xbf16> to vector<8x22x128xbf16>
    %76 = vector.extract_strided_slice %75 {offsets = [0, 0, 0], sizes = [8, 16, 128], strides = [1, 1, 1]} : vector<8x22x128xbf16> to vector<8x16x128xbf16>
    %77 = vector.shape_cast %76 : vector<8x16x128xbf16> to vector<128x128xbf16>
    %c9 = arith.constant 9 : index
    %c0_42 = arith.constant 0 : index
    %c0_43 = arith.constant 0 : index
    %78 = vector.load %arg3[%c9, %c0_42, %c0_43] : memref<25x128x128xbf16, #tpu.memory_space<vmem>>, vector<1x128x128xbf16>
    %79 = vector.shape_cast %78 : vector<1x128x128xbf16> to vector<128x128xbf16>
    %cst_44 = arith.constant dense<0.000000e+00> : vector<128x128xf32>
    %80 = tpu.matmul %77, %79, %cst_44 {dimension_numbers = #tpu.dot_dimension_numbers<[1], [0], [0], [1], [0, 0, 1, 1], [], []>} : vector<128x128xbf16>, vector<128x128xbf16>, vector<128x128xf32> -> vector<128x128xf32>
    %81 = arith.addf %70, %80 : vector<128x128xf32>
    %82 = vector.extract_strided_slice %75 {offsets = [0, 1, 0], sizes = [8, 16, 128], strides = [1, 1, 1]} : vector<8x22x128xbf16> to vector<8x16x128xbf16>
    %83 = vector.shape_cast %82 : vector<8x16x128xbf16> to vector<128x128xbf16>
    %c10 = arith.constant 10 : index
    %c0_45 = arith.constant 0 : index
    %c0_46 = arith.constant 0 : index
    %84 = vector.load %arg3[%c10, %c0_45, %c0_46] : memref<25x128x128xbf16, #tpu.memory_space<vmem>>, vector<1x128x128xbf16>
    %85 = vector.shape_cast %84 : vector<1x128x128xbf16> to vector<128x128xbf16>
    %cst_47 = arith.constant dense<0.000000e+00> : vector<128x128xf32>
    %86 = tpu.matmul %83, %85, %cst_47 {dimension_numbers = #tpu.dot_dimension_numbers<[1], [0], [0], [1], [0, 0, 1, 1], [], []>} : vector<128x128xbf16>, vector<128x128xbf16>, vector<128x128xf32> -> vector<128x128xf32>
    %87 = arith.addf %81, %86 : vector<128x128xf32>
    %88 = vector.extract_strided_slice %75 {offsets = [0, 2, 0], sizes = [8, 16, 128], strides = [1, 1, 1]} : vector<8x22x128xbf16> to vector<8x16x128xbf16>
    %89 = vector.shape_cast %88 : vector<8x16x128xbf16> to vector<128x128xbf16>
    %c11 = arith.constant 11 : index
    %c0_48 = arith.constant 0 : index
    %c0_49 = arith.constant 0 : index
    %90 = vector.load %arg3[%c11, %c0_48, %c0_49] : memref<25x128x128xbf16, #tpu.memory_space<vmem>>, vector<1x128x128xbf16>
    %91 = vector.shape_cast %90 : vector<1x128x128xbf16> to vector<128x128xbf16>
    %cst_50 = arith.constant dense<0.000000e+00> : vector<128x128xf32>
    %92 = tpu.matmul %89, %91, %cst_50 {dimension_numbers = #tpu.dot_dimension_numbers<[1], [0], [0], [1], [0, 0, 1, 1], [], []>} : vector<128x128xbf16>, vector<128x128xbf16>, vector<128x128xf32> -> vector<128x128xf32>
    %93 = arith.addf %87, %92 : vector<128x128xf32>
    %94 = vector.extract_strided_slice %75 {offsets = [0, 3, 0], sizes = [8, 16, 128], strides = [1, 1, 1]} : vector<8x22x128xbf16> to vector<8x16x128xbf16>
    %95 = vector.shape_cast %94 : vector<8x16x128xbf16> to vector<128x128xbf16>
    %c12 = arith.constant 12 : index
    %c0_51 = arith.constant 0 : index
    %c0_52 = arith.constant 0 : index
    %96 = vector.load %arg3[%c12, %c0_51, %c0_52] : memref<25x128x128xbf16, #tpu.memory_space<vmem>>, vector<1x128x128xbf16>
    %97 = vector.shape_cast %96 : vector<1x128x128xbf16> to vector<128x128xbf16>
    %cst_53 = arith.constant dense<0.000000e+00> : vector<128x128xf32>
    %98 = tpu.matmul %95, %97, %cst_53 {dimension_numbers = #tpu.dot_dimension_numbers<[1], [0], [0], [1], [0, 0, 1, 1], [], []>} : vector<128x128xbf16>, vector<128x128xbf16>, vector<128x128xf32> -> vector<128x128xf32>
    %99 = arith.addf %93, %98 : vector<128x128xf32>
    %100 = vector.extract_strided_slice %75 {offsets = [0, 4, 0], sizes = [8, 16, 128], strides = [1, 1, 1]} : vector<8x22x128xbf16> to vector<8x16x128xbf16>
    %101 = vector.shape_cast %100 : vector<8x16x128xbf16> to vector<128x128xbf16>
    %c13 = arith.constant 13 : index
    %c0_54 = arith.constant 0 : index
    %c0_55 = arith.constant 0 : index
    %102 = vector.load %arg3[%c13, %c0_54, %c0_55] : memref<25x128x128xbf16, #tpu.memory_space<vmem>>, vector<1x128x128xbf16>
    %103 = vector.shape_cast %102 : vector<1x128x128xbf16> to vector<128x128xbf16>
    %cst_56 = arith.constant dense<0.000000e+00> : vector<128x128xf32>
    %104 = tpu.matmul %101, %103, %cst_56 {dimension_numbers = #tpu.dot_dimension_numbers<[1], [0], [0], [1], [0, 0, 1, 1], [], []>} : vector<128x128xbf16>, vector<128x128xbf16>, vector<128x128xf32> -> vector<128x128xf32>
    %105 = arith.addf %99, %104 : vector<128x128xf32>
    %106 = vector.extract_strided_slice %75 {offsets = [0, 5, 0], sizes = [8, 16, 128], strides = [1, 1, 1]} : vector<8x22x128xbf16> to vector<8x16x128xbf16>
    %107 = vector.shape_cast %106 : vector<8x16x128xbf16> to vector<128x128xbf16>
    %c14 = arith.constant 14 : index
    %c0_57 = arith.constant 0 : index
    %c0_58 = arith.constant 0 : index
    %108 = vector.load %arg3[%c14, %c0_57, %c0_58] : memref<25x128x128xbf16, #tpu.memory_space<vmem>>, vector<1x128x128xbf16>
    %109 = vector.shape_cast %108 : vector<1x128x128xbf16> to vector<128x128xbf16>
    %cst_59 = arith.constant dense<0.000000e+00> : vector<128x128xf32>
    %110 = tpu.matmul %107, %109, %cst_59 {dimension_numbers = #tpu.dot_dimension_numbers<[1], [0], [0], [1], [0, 0, 1, 1], [], []>} : vector<128x128xbf16>, vector<128x128xbf16>, vector<128x128xf32> -> vector<128x128xf32>
    %111 = arith.addf %105, %110 : vector<128x128xf32>
    %112 = vector.extract_strided_slice %75 {offsets = [0, 6, 0], sizes = [8, 16, 128], strides = [1, 1, 1]} : vector<8x22x128xbf16> to vector<8x16x128xbf16>
    %113 = vector.shape_cast %112 : vector<8x16x128xbf16> to vector<128x128xbf16>
    %c15 = arith.constant 15 : index
    %c0_60 = arith.constant 0 : index
    %c0_61 = arith.constant 0 : index
    %114 = vector.load %arg3[%c15, %c0_60, %c0_61] : memref<25x128x128xbf16, #tpu.memory_space<vmem>>, vector<1x128x128xbf16>
    %115 = vector.shape_cast %114 : vector<1x128x128xbf16> to vector<128x128xbf16>
    %cst_62 = arith.constant dense<0.000000e+00> : vector<128x128xf32>
    %116 = tpu.matmul %113, %115, %cst_62 {dimension_numbers = #tpu.dot_dimension_numbers<[1], [0], [0], [1], [0, 0, 1, 1], [], []>} : vector<128x128xbf16>, vector<128x128xbf16>, vector<128x128xf32> -> vector<128x128xf32>
    %117 = arith.addf %111, %116 : vector<128x128xf32>
    %c3_i32_63 = arith.constant 3 : i32
    %118 = arith.addi %0, %c3_i32_63 : i32
    %c1_i32 = arith.constant 1 : i32
    %119 = arith.addi %118, %c1_i32 : i32
    %c0_64 = arith.constant 0 : index
    %120 = arith.index_cast %119 : i32 to index
    %c0_65 = arith.constant 0 : index
    %c0_66 = arith.constant 0 : index
    %121 = vector.load %arg2[%c0_64, %120, %c0_65, %c0_66] : memref<1x22x22x128xbf16, #tpu.memory_space<vmem>>, vector<1x8x22x128xbf16>
    %122 = vector.shape_cast %121 : vector<1x8x22x128xbf16> to vector<8x22x128xbf16>
    %123 = vector.extract_strided_slice %122 {offsets = [0, 2, 0], sizes = [8, 16, 128], strides = [1, 1, 1]} : vector<8x22x128xbf16> to vector<8x16x128xbf16>
    %124 = vector.shape_cast %123 : vector<8x16x128xbf16> to vector<128x128xbf16>
    %c16 = arith.constant 16 : index
    %c0_67 = arith.constant 0 : index
    %c0_68 = arith.constant 0 : index
    %125 = vector.load %arg3[%c16, %c0_67, %c0_68] : memref<25x128x128xbf16, #tpu.memory_space<vmem>>, vector<1x128x128xbf16>
    %126 = vector.shape_cast %125 : vector<1x128x128xbf16> to vector<128x128xbf16>
    %cst_69 = arith.constant dense<0.000000e+00> : vector<128x128xf32>
    %127 = tpu.matmul %124, %126, %cst_69 {dimension_numbers = #tpu.dot_dimension_numbers<[1], [0], [0], [1], [0, 0, 1, 1], [], []>} : vector<128x128xbf16>, vector<128x128xbf16>, vector<128x128xf32> -> vector<128x128xf32>
    %128 = arith.addf %117, %127 : vector<128x128xf32>
    %129 = vector.extract_strided_slice %122 {offsets = [0, 3, 0], sizes = [8, 16, 128], strides = [1, 1, 1]} : vector<8x22x128xbf16> to vector<8x16x128xbf16>
    %130 = vector.shape_cast %129 : vector<8x16x128xbf16> to vector<128x128xbf16>
    %c17 = arith.constant 17 : index
    %c0_70 = arith.constant 0 : index
    %c0_71 = arith.constant 0 : index
    %131 = vector.load %arg3[%c17, %c0_70, %c0_71] : memref<25x128x128xbf16, #tpu.memory_space<vmem>>, vector<1x128x128xbf16>
    %132 = vector.shape_cast %131 : vector<1x128x128xbf16> to vector<128x128xbf16>
    %cst_72 = arith.constant dense<0.000000e+00> : vector<128x128xf32>
    %133 = tpu.matmul %130, %132, %cst_72 {dimension_numbers = #tpu.dot_dimension_numbers<[1], [0], [0], [1], [0, 0, 1, 1], [], []>} : vector<128x128xbf16>, vector<128x128xbf16>, vector<128x128xf32> -> vector<128x128xf32>
    %134 = arith.addf %128, %133 : vector<128x128xf32>
    %135 = vector.extract_strided_slice %122 {offsets = [0, 4, 0], sizes = [8, 16, 128], strides = [1, 1, 1]} : vector<8x22x128xbf16> to vector<8x16x128xbf16>
    %136 = vector.shape_cast %135 : vector<8x16x128xbf16> to vector<128x128xbf16>
    %c18 = arith.constant 18 : index
    %c0_73 = arith.constant 0 : index
    %c0_74 = arith.constant 0 : index
    %137 = vector.load %arg3[%c18, %c0_73, %c0_74] : memref<25x128x128xbf16, #tpu.memory_space<vmem>>, vector<1x128x128xbf16>
    %138 = vector.shape_cast %137 : vector<1x128x128xbf16> to vector<128x128xbf16>
    %cst_75 = arith.constant dense<0.000000e+00> : vector<128x128xf32>
    %139 = tpu.matmul %136, %138, %cst_75 {dimension_numbers = #tpu.dot_dimension_numbers<[1], [0], [0], [1], [0, 0, 1, 1], [], []>} : vector<128x128xbf16>, vector<128x128xbf16>, vector<128x128xf32> -> vector<128x128xf32>
    %140 = arith.addf %134, %139 : vector<128x128xf32>
    %c3_i32_76 = arith.constant 3 : i32
    %141 = arith.addi %0, %c3_i32_76 : i32
    %c2_i32 = arith.constant 2 : i32
    %142 = arith.addi %141, %c2_i32 : i32
    %c0_77 = arith.constant 0 : index
    %143 = arith.index_cast %142 : i32 to index
    %c0_78 = arith.constant 0 : index
    %c0_79 = arith.constant 0 : index
    %144 = vector.load %arg2[%c0_77, %143, %c0_78, %c0_79] : memref<1x22x22x128xbf16, #tpu.memory_space<vmem>>, vector<1x8x22x128xbf16>
    %145 = vector.shape_cast %144 : vector<1x8x22x128xbf16> to vector<8x22x128xbf16>
    %146 = vector.extract_strided_slice %145 {offsets = [0, 1, 0], sizes = [8, 16, 128], strides = [1, 1, 1]} : vector<8x22x128xbf16> to vector<8x16x128xbf16>
    %147 = vector.shape_cast %146 : vector<8x16x128xbf16> to vector<128x128xbf16>
    %c19 = arith.constant 19 : index
    %c0_80 = arith.constant 0 : index
    %c0_81 = arith.constant 0 : index
    %148 = vector.load %arg3[%c19, %c0_80, %c0_81] : memref<25x128x128xbf16, #tpu.memory_space<vmem>>, vector<1x128x128xbf16>
    %149 = vector.shape_cast %148 : vector<1x128x128xbf16> to vector<128x128xbf16>
    %cst_82 = arith.constant dense<0.000000e+00> : vector<128x128xf32>
    %150 = tpu.matmul %147, %149, %cst_82 {dimension_numbers = #tpu.dot_dimension_numbers<[1], [0], [0], [1], [0, 0, 1, 1], [], []>} : vector<128x128xbf16>, vector<128x128xbf16>, vector<128x128xf32> -> vector<128x128xf32>
    %151 = arith.addf %140, %150 : vector<128x128xf32>
    %152 = vector.extract_strided_slice %145 {offsets = [0, 3, 0], sizes = [8, 16, 128], strides = [1, 1, 1]} : vector<8x22x128xbf16> to vector<8x16x128xbf16>
    %153 = vector.shape_cast %152 : vector<8x16x128xbf16> to vector<128x128xbf16>
    %c20 = arith.constant 20 : index
    %c0_83 = arith.constant 0 : index
    %c0_84 = arith.constant 0 : index
    %154 = vector.load %arg3[%c20, %c0_83, %c0_84] : memref<25x128x128xbf16, #tpu.memory_space<vmem>>, vector<1x128x128xbf16>
    %155 = vector.shape_cast %154 : vector<1x128x128xbf16> to vector<128x128xbf16>
    %cst_85 = arith.constant dense<0.000000e+00> : vector<128x128xf32>
    %156 = tpu.matmul %153, %155, %cst_85 {dimension_numbers = #tpu.dot_dimension_numbers<[1], [0], [0], [1], [0, 0, 1, 1], [], []>} : vector<128x128xbf16>, vector<128x128xbf16>, vector<128x128xf32> -> vector<128x128xf32>
    %157 = arith.addf %151, %156 : vector<128x128xf32>
    %158 = vector.extract_strided_slice %145 {offsets = [0, 5, 0], sizes = [8, 16, 128], strides = [1, 1, 1]} : vector<8x22x128xbf16> to vector<8x16x128xbf16>
    %159 = vector.shape_cast %158 : vector<8x16x128xbf16> to vector<128x128xbf16>
    %c21 = arith.constant 21 : index
    %c0_86 = arith.constant 0 : index
    %c0_87 = arith.constant 0 : index
    %160 = vector.load %arg3[%c21, %c0_86, %c0_87] : memref<25x128x128xbf16, #tpu.memory_space<vmem>>, vector<1x128x128xbf16>
    %161 = vector.shape_cast %160 : vector<1x128x128xbf16> to vector<128x128xbf16>
    %cst_88 = arith.constant dense<0.000000e+00> : vector<128x128xf32>
    %162 = tpu.matmul %159, %161, %cst_88 {dimension_numbers = #tpu.dot_dimension_numbers<[1], [0], [0], [1], [0, 0, 1, 1], [], []>} : vector<128x128xbf16>, vector<128x128xbf16>, vector<128x128xf32> -> vector<128x128xf32>
    %163 = arith.addf %157, %162 : vector<128x128xf32>
    %c3_i32_89 = arith.constant 3 : i32
    %164 = arith.addi %0, %c3_i32_89 : i32
    %c3_i32_90 = arith.constant 3 : i32
    %165 = arith.addi %164, %c3_i32_90 : i32
    %c0_91 = arith.constant 0 : index
    %166 = arith.index_cast %165 : i32 to index
    %c0_92 = arith.constant 0 : index
    %c0_93 = arith.constant 0 : index
    %167 = vector.load %arg2[%c0_91, %166, %c0_92, %c0_93] : memref<1x22x22x128xbf16, #tpu.memory_space<vmem>>, vector<1x8x22x128xbf16>
    %168 = vector.shape_cast %167 : vector<1x8x22x128xbf16> to vector<8x22x128xbf16>
    %169 = vector.extract_strided_slice %168 {offsets = [0, 0, 0], sizes = [8, 16, 128], strides = [1, 1, 1]} : vector<8x22x128xbf16> to vector<8x16x128xbf16>
    %170 = vector.shape_cast %169 : vector<8x16x128xbf16> to vector<128x128xbf16>
    %c22 = arith.constant 22 : index
    %c0_94 = arith.constant 0 : index
    %c0_95 = arith.constant 0 : index
    %171 = vector.load %arg3[%c22, %c0_94, %c0_95] : memref<25x128x128xbf16, #tpu.memory_space<vmem>>, vector<1x128x128xbf16>
    %172 = vector.shape_cast %171 : vector<1x128x128xbf16> to vector<128x128xbf16>
    %cst_96 = arith.constant dense<0.000000e+00> : vector<128x128xf32>
    %173 = tpu.matmul %170, %172, %cst_96 {dimension_numbers = #tpu.dot_dimension_numbers<[1], [0], [0], [1], [0, 0, 1, 1], [], []>} : vector<128x128xbf16>, vector<128x128xbf16>, vector<128x128xf32> -> vector<128x128xf32>
    %174 = arith.addf %163, %173 : vector<128x128xf32>
    %175 = vector.extract_strided_slice %168 {offsets = [0, 3, 0], sizes = [8, 16, 128], strides = [1, 1, 1]} : vector<8x22x128xbf16> to vector<8x16x128xbf16>
    %176 = vector.shape_cast %175 : vector<8x16x128xbf16> to vector<128x128xbf16>
    %c23 = arith.constant 23 : index
    %c0_97 = arith.constant 0 : index
    %c0_98 = arith.constant 0 : index
    %177 = vector.load %arg3[%c23, %c0_97, %c0_98] : memref<25x128x128xbf16, #tpu.memory_space<vmem>>, vector<1x128x128xbf16>
    %178 = vector.shape_cast %177 : vector<1x128x128xbf16> to vector<128x128xbf16>
    %cst_99 = arith.constant dense<0.000000e+00> : vector<128x128xf32>
    %179 = tpu.matmul %176, %178, %cst_99 {dimension_numbers = #tpu.dot_dimension_numbers<[1], [0], [0], [1], [0, 0, 1, 1], [], []>} : vector<128x128xbf16>, vector<128x128xbf16>, vector<128x128xf32> -> vector<128x128xf32>
    %180 = arith.addf %174, %179 : vector<128x128xf32>
    %181 = vector.extract_strided_slice %168 {offsets = [0, 6, 0], sizes = [8, 16, 128], strides = [1, 1, 1]} : vector<8x22x128xbf16> to vector<8x16x128xbf16>
    %182 = vector.shape_cast %181 : vector<8x16x128xbf16> to vector<128x128xbf16>
    %c24 = arith.constant 24 : index
    %c0_100 = arith.constant 0 : index
    %c0_101 = arith.constant 0 : index
    %183 = vector.load %arg3[%c24, %c0_100, %c0_101] : memref<25x128x128xbf16, #tpu.memory_space<vmem>>, vector<1x128x128xbf16>
    %184 = vector.shape_cast %183 : vector<1x128x128xbf16> to vector<128x128xbf16>
    %cst_102 = arith.constant dense<0.000000e+00> : vector<128x128xf32>
    %185 = tpu.matmul %182, %184, %cst_102 {dimension_numbers = #tpu.dot_dimension_numbers<[1], [0], [0], [1], [0, 0, 1, 1], [], []>} : vector<128x128xbf16>, vector<128x128xbf16>, vector<128x128xf32> -> vector<128x128xf32>
    %186 = arith.addf %180, %185 : vector<128x128xf32>
    %c0_103 = arith.constant 0 : index
    %c0_104 = arith.constant 0 : index
    %c0_105 = arith.constant 0 : index
    %187 = vector.load %arg4[%c0_103, %c0_104, %c0_105] : memref<1x1x128xf32, #tpu.memory_space<vmem>>, vector<1x1x128xf32>
    %188 = vector.shape_cast %187 : vector<1x1x128xf32> to vector<1x128xf32>
    %189 = vector.broadcast %188 : vector<1x128xf32> to vector<128x128xf32>
    %190 = arith.addf %186, %189 : vector<128x128xf32>
    %191 = vector.shape_cast %190 : vector<128x128xf32> to vector<8x16x128xf32>
    %c0_106 = arith.constant 0 : index
    %c0_107 = arith.constant 0 : index
    %c0_108 = arith.constant 0 : index
    %c0_109 = arith.constant 0 : index
    %192 = vector.load %arg5[%c0_106, %c0_107, %c0_108, %c0_109] : memref<1x8x16x128xf32, #tpu.memory_space<vmem>>, vector<1x8x16x128xf32>
    %193 = vector.shape_cast %192 : vector<1x8x16x128xf32> to vector<8x16x128xf32>
    %194 = vector.shape_cast %191 : vector<8x16x128xf32> to vector<1x8x16x128xf32>
    tpu.vector_store %arg5[%c0_106, %c0_107, %c0_108, %c0_109], %194 {strides = array<i32>} : memref<1x8x16x128xf32, #tpu.memory_space<vmem>>, vector<1x8x16x128xf32>,
    return
  }
  func.func @transform_0(%arg0: i32, %arg1: i32) -> (i32, i32, i32, i32) {
    %c0_i32 = arith.constant 0 : i32
    %c0_i32_0 = arith.constant 0 : i32
    %c0_i32_1 = arith.constant 0 : i32
    %c0_i32_2 = arith.constant 0 : i32
    return %arg0, %c0_i32, %c0_i32_0, %c0_i32_1 : i32, i32, i32, i32
  }
  func.func @transform_1(%arg0: i32, %arg1: i32) -> (i32, i32, i32) {
    %c0_i32 = arith.constant 0 : i32
    %c0_i32_0 = arith.constant 0 : i32
    %c0_i32_1 = arith.constant 0 : i32
    %c0_i32_2 = arith.constant 0 : i32
    return %c0_i32, %c0_i32_0, %c0_i32_1 : i32, i32, i32
  }
  func.func @transform_2(%arg0: i32, %arg1: i32) -> (i32, i32, i32) {
    %c0_i32 = arith.constant 0 : i32
    %c0_i32_0 = arith.constant 0 : i32
    %c0_i32_1 = arith.constant 0 : i32
    return %arg0, %c0_i32, %c0_i32_0 : i32, i32, i32
  }
  func.func @transform_3(%arg0: i32, %arg1: i32) -> (i32, i32, i32, i32) {
    %c0_i32 = arith.constant 0 : i32
    %c0_i32_0 = arith.constant 0 : i32
    %c0_i32_1 = arith.constant 0 : i32
    return %arg0, %arg1, %c0_i32, %c0_i32_0 : i32, i32, i32, i32
  }
}

</mosaic_0001>

<llo_original>
// kernel: aspp_forward.1
$region0: #{aspp_forward.1}
  #allocation0 [shape = 'u32[]', space=smem, size = 0x4, offset = 0x4, fixed_abs, tag = 'smem constant byte address 0x4 - core index']
  #allocation1 [shape = 'u32[144,128]{1,0:T(1,128)}', space=vmem, size = 0x12000, scoped, tag = 'internal scratch']
  %s0 = inlined_call_operand.vmem [shape: bf16[2,22,22,128], index: 0, kind: input, shape index: {}]
  %s1 = inlined_call_operand.hbm [shape: bf16[25,128,128], index: 1, kind: input, shape index: {}]
  %s2 = inlined_call_operand.vmem [shape: f32[2,1,128], index: 2, kind: input, shape index: {}]
  %s3 = inlined_call_operand.hbm [shape: f32[2,16,16,128], index: 3, kind: output, shape index: {}]
  %s4 = sld [smem:[#allocation0]]
  $region49: #{aspp_forward.1} parent=0
    _
  %s6 = ssub.s32 1, %s4
  %s7 = scalar_select 0, %s6, %s4
  $region1: #{aspp_forward.1} parent=0
    #allocation2 [shape = 'u8[819200]{0}', space=vmem, size = 0xc8000, scoped, tag = 'input window, operand 1, single buffered']
    #allocation3 [shape = 's32[2]{0}', space=sflag, size = 0x8, scoped, tag = 'scoped memory for aspp_forward.1']
    #allocation4 [shape = 's32[2]{0}', space=sflag, size = 0x8, scoped, tag = 'scoped memory for aspp_forward.1']
    #allocation5 [shape = 'u8[131072]{0}', space=vmem, size = 0x20000, scoped, tag = 'output window, operand 0']
    %8 = vsyncpa [#allocation3], 0
    %9 = vsyncpa [#allocation4], 0
    %s10 = scalar_lea.sflag [#allocation4], 1
    %11 = vsyncpa %s10, 0
    loop: start=0, step=1, limit=6
    $region2: #{aspp_forward.1} parent=1 // loop_pre_header
      _
    $region3: #{aspp_forward.1} parent=1 // loop_header
      %s13 = sphi 0, %s17
      %p14 = scmp.ge.s32.totalorder %s13, 6
      %s20 = sphi 0, %s32
      %s21 = sphi 0, %s28
      %s22 = sphi 0, %s20
      %s23 = sphi 0, %s21
      %s24 = sphi 0, %s22
      %s25 = sphi 0, %s23
      %s35 = sphi 0, %s37
      %s38 = sphi 0, %s35
      %s39 = sphi 0, %s38
      %s55 = sphi 0, %s39
      %s59 = sphi 0, %s59
      %s61 = sphi 0, %s59
      %s62 = sphi 0, %s61
      %s76 = sphi 0, %s62
      %s82 = sphi 0, %s84
      %s85 = sphi 0, %s82
      %s86 = sphi 0, %s85
      %s102 = sphi 0, %s86
      %s110 = sphi 0, %s112
      %s113 = sphi 0, %s110
      %s114 = sphi 0, %s113
      %s130 = sphi 0, %s114
    $region4: #{aspp_forward.1} parent=1 // loop_header_branch
      %16 = sbr.rel (%p14) target = $region8
    $region5: #{aspp_forward.1} parent=1 // loop_body
      %s18 = ssub.s32 %s13, 1
      %s19 = ssub.s32 %s13, 2
      %s26 = sadd.s32 1, %s21
      %p27 = scmp.ge.s32.totalorder %s26, 2
      %s28 = scalar_select %p27, 0, %s26
      %s29 = sadd.s32 1, %s20
      %s30 = scalar_select %p27, %s29, %s20
      %p31 = scmp.ge.s32.totalorder %s30, 2
      %s32 = scalar_select %p31, 0, %s30
      %s33 = ssub.s32 %s20, %s32
      %p34 = scmp.eq.s32.totalorder %s33, 0
      %s36 = sadd.s32 %s35, 1
      %s37 = scalar_select %p34, %s35, %s36
      %p40 = pneg %p34
      %p41 = scmp.eq.s32.totalorder %s13, 3
      %p42 = por %p40, %p41
      %p43 = scmp.ne.s32.totalorder %s35, %s38
      %p44 = scmp.eq.s32.totalorder %s13, 0
      %p45 = por %p43, %p44
      %p46 = scmp.ne.s32.totalorder %s35, %s38
      %p47 = scmp.eq.s32.totalorder %s18, 3
      %p48 = por %p46, %p47
      %p49 = scmp.ne.s32.totalorder %s38, %s39
      %p50 = scmp.eq.s32.totalorder %s18, 0
      %p51 = por %p49, %p50
      %p52 = scmp.ne.s32.totalorder %s38, %s39
      %p53 = scmp.eq.s32.totalorder %s19, 3
      %p54 = por %p52, %p53
      %p56 = scmp.ne.s32.totalorder %s39, %s55
      %p57 = scmp.eq.s32.totalorder %s19, 0
      %p58 = por %p56, %p57
      %s60 = sadd.s32 %s59, 1
      %p63 = scmp.eq.s32.totalorder %s13, 3
      %p64 = scmp.ne.s32.totalorder %s59, %s61
      %p65 = scmp.eq.s32.totalorder %s13, 0
      %p66 = por %p64, %p65
      %p67 = scmp.ne.s32.totalorder %s59, %s61
      %p68 = scmp.eq.s32.totalorder %s18, 3
      %p69 = por %p67, %p68
      %p70 = scmp.ne.s32.totalorder %s61, %s62
      %p71 = scmp.eq.s32.totalorder %s18, 0
      %p72 = por %p70, %p71
      %p73 = scmp.ne.s32.totalorder %s61, %s62
      %p74 = scmp.eq.s32.totalorder %s19, 3
      %p75 = por %p73, %p74
      %p77 = scmp.ne.s32.totalorder %s62, %s76
      %p78 = scmp.eq.s32.totalorder %s19, 0
      %p79 = por %p77, %p78
      %s80 = ssub.s32 %s20, %s32
      %p81 = scmp.eq.s32.totalorder %s80, 0
      %s83 = sadd.s32 %s82, 1
      %s84 = scalar_select %p81, %s82, %s83
      %p87 = pneg %p81
      %p88 = scmp.eq.s32.totalorder %s13, 3
      %p89 = por %p87, %p88
      %p90 = scmp.ne.s32.totalorder %s82, %s85
      %p91 = scmp.eq.s32.totalorder %s13, 0
      %p92 = por %p90, %p91
      %p93 = scmp.ne.s32.totalorder %s82, %s85
      %p94 = scmp.eq.s32.totalorder %s18, 3
      %p95 = por %p93, %p94
      %p96 = scmp.ne.s32.totalorder %s85, %s86
      %p97 = scmp.eq.s32.totalorder %s18, 0
      %p98 = por %p96, %p97
      %p99 = scmp.ne.s32.totalorder %s85, %s86
      %p100 = scmp.eq.s32.totalorder %s19, 3
      %p101 = por %p99, %p100
      %p103 = scmp.ne.s32.totalorder %s86, %s102
      %p104 = scmp.eq.s32.totalorder %s19, 0
      %p105 = por %p103, %p104
      %s106 = ssub.s32 %s20, %s32
      %s107 = ssub.s32 %s21, %s28
      %s108 = sor.u32 %s106, %s107
      %p109 = scmp.eq.s32.totalorder %s108, 0
      %s111 = sadd.s32 %s110, 1
      %s112 = scalar_select %p109, %s110, %s111
      %p115 = pneg %p109
      %p116 = scmp.eq.s32.totalorder %s13, 3
      %p117 = por %p115, %p116
      %p118 = scmp.ne.s32.totalorder %s110, %s113
      %p119 = scmp.eq.s32.totalorder %s13, 0
      %p120 = por %p118, %p119
      %p121 = scmp.ne.s32.totalorder %s110, %s113
      %p122 = scmp.eq.s32.totalorder %s18, 3
      %p123 = por %p121, %p122
      %p124 = scmp.ne.s32.totalorder %s113, %s114
      %p125 = scmp.eq.s32.totalorder %s18, 0
      %p126 = por %p124, %p125
      %p127 = scmp.ne.s32.totalorder %s113, %s114
      %p128 = scmp.eq.s32.totalorder %s19, 3
      %p129 = por %p127, %p128
      %p131 = scmp.ne.s32.totalorder %s114, %s130
      %p132 = scmp.eq.s32.totalorder %s19, 0
      %p133 = por %p131, %p132
      %p134 = scmp.le.s32.totalorder 1, %s13
      %p135 = scmp.lt.s32.totalorder %s13, 5
      %p136 = pnand %p134, %p135
      %p137 = pneg %p136
      // Predicated region
      $region9: #{aspp_forward.1} parent=5 // pred_check
        _
      $region10: #{aspp_forward.1} parent=5 // pred_check_branch
        %139 = sbr.rel (%p136) target = $region12
      $region11: #{aspp_forward.1} parent=5 // pred_region
        %s140 = ssub.s32 %s13, 1
        // Predicated region
        $region13: #{aspp_forward.1} parent=11 // pred_check
          %p141 = pneg %p72
        $region14: #{aspp_forward.1} parent=11 // pred_check_branch
          %143 = sbr.rel (%p141) target = $region16
        $region15: #{aspp_forward.1} parent=11 // pred_region
          %s145 = ssub.s32 25600, 25600
          %146 = vsyncadd [#allocation3], %s145
          %s147 = sshll.u32 [#allocation2], 4
          %s148 = int_to_ptr.vmem [resolvable:$true] %s147
          %153 = dma.hbm_to_vmem [thread:$0]  %s1, 25600, %s148, [#allocation3], 64, 64, 4
        $region16: #{aspp_forward.1} parent=11 // pred_fallthru
          _
      $region12: #{aspp_forward.1} parent=5 // pred_fallthru
        _
      %p154 = scmp.lt.s32.totalorder %s13, 4
      // Predicated region
      $region17: #{aspp_forward.1} parent=5 // pred_check
        %p155 = pneg %p154
      $region18: #{aspp_forward.1} parent=5 // pred_check_branch
        %157 = sbr.rel (%p155) target = $region20
      $region19: #{aspp_forward.1} parent=5 // pred_region
        // Predicated region
        $region21: #{aspp_forward.1} parent=19 // pred_check
          %p158 = pneg %p45
        $region22: #{aspp_forward.1} parent=19 // pred_check_branch
          %160 = sbr.rel (%p158) target = $region24
        $region23: #{aspp_forward.1} parent=19 // pred_region
          %p161 = scmp.lt.s32.totalorder %s20, 1
          %s162 = scalar_select %p161, %s20, 1
          %s163 = smul.addr %s162, 66
          %s164 = smul.addr %s163, 4
          %s165 = scalar_lea.vmem %s0, %s164
        $region24: #{aspp_forward.1} parent=19 // pred_fallthru
          _
        // Predicated region
        $region25: #{aspp_forward.1} parent=19 // pred_check
          %p166 = pneg %p92
        $region26: #{aspp_forward.1} parent=19 // pred_check_branch
          %168 = sbr.rel (%p166) target = $region28
        $region27: #{aspp_forward.1} parent=19 // pred_region
          %p169 = scmp.lt.s32.totalorder %s20, 1
          %s170 = scalar_select %p169, %s20, 1
          %s171 = scalar_lea.vmem %s2, %s170
        $region28: #{aspp_forward.1} parent=19 // pred_fallthru
          _
      $region20: #{aspp_forward.1} parent=5 // pred_fallthru
        _
      %p172 = scmp.le.s32.totalorder 1, %s13
      %p173 = scmp.lt.s32.totalorder %s13, 5
      %p174 = pnand %p172, %p173
      %p175 = pneg %p174
      // Predicated region
      $region29: #{aspp_forward.1} parent=5 // pred_check
        _
      $region30: #{aspp_forward.1} parent=5 // pred_check_branch
        %177 = sbr.rel (%p174) target = $region32
      $region31: #{aspp_forward.1} parent=5 // pred_region
        %s178 = ssub.s32 %s13, 1
        // Predicated region
        $region33: #{aspp_forward.1} parent=31 // pred_check
          %p179 = pneg %p72
        $region34: #{aspp_forward.1} parent=31 // pred_check_branch
          %181 = sbr.rel (%p179) target = $region36
        $region35: #{aspp_forward.1} parent=31 // pred_region
          %182 = dma.done [#allocation3], 25600
        $region36: #{aspp_forward.1} parent=31 // pred_fallthru
          _
        %p183 = scmp.lt.s32.totalorder %s22, 1
        %s184 = scalar_select %p183, %s22, 1
        %s185 = smul.addr %s184, 66
        %s186 = smul.addr %s185, 4
        %s187 = scalar_lea.vmem %s0, %s186
        %p188 = pneg %p51
        %p189 = pneg %p48
        %p190 = pneg %p72
        %p191 = pneg %p69
        %p192 = scmp.lt.s32.totalorder %s22, 1
        %s193 = scalar_select %p192, %s22, 1
        %s194 = scalar_lea.vmem %s2, %s193
        %p195 = pneg %p98
        %p196 = pneg %p95
        %p197 = pneg %p126
        %p198 = pneg %p123
        %s199 = sand.u32 %s113, 1
        %s200 = scalar_lea.sflag [#allocation4], %s199
        %s201 = sand.u32 %s113, 1
        %s202 = smul.addr %s201, 128
        %s203 = scalar_lea.vmem [#allocation5], %s202
        %p204 = scmp.lt.s32.totalorder %s22, 1
        %s205 = scalar_select %p204, %s22, 1
        %s206 = smul.addr %s205, 66
        %s207 = smul.addr %s206, 4
        %s208 = scalar_lea.vmem %s0, %s207
        %p209 = scmp.lt.s32.totalorder %s22, 1
        %s210 = scalar_select %p209, %s22, 1
        %s211 = scalar_lea.vmem %s2, %s210
        %s212 = smul.u32 8, %s23
        %s214 = smul.u32 %s23, 8
        %s215 = smul.u32 %s214, 3
        %s216 = smul.addr %s215, 4
        %s217 = scalar_lea.vmem %s208, %s216
        %v218 = vld [vmem:[%s217] sm:$0xf]
        %v219 = vld [vmem:[%s217 + $0x4] sm:$0xf]
        %v220 = vld [vmem:[%s217 + $0x8] sm:$0x7]
        %v221 = vld [vmem:[%s217 + $0xc] sm:$0xf]
        %v222 = vld [vmem:[%s217 + $0x10] sm:$0xf]
        %v223 = vld [vmem:[%s217 + $0x14] sm:$0x7]
        %v224 = vld [vmem:[%s217 + $0x18] sm:$0xf]
        %v225 = vld [vmem:[%s217 + $0x1c] sm:$0xf]
        %v226 = vld [vmem:[%s217 + $0x20] sm:$0x7]
        %v227 = vld [vmem:[%s217 + $0x24] sm:$0xf]
        %v228 = vld [vmem:[%s217 + $0x28] sm:$0xf]
        %v229 = vld [vmem:[%s217 + $0x2c] sm:$0x7]
        %v230 = vld [vmem:[%s217 + $0x30] sm:$0xf]
        %v231 = vld [vmem:[%s217 + $0x34] sm:$0xf]
        %v232 = vld [vmem:[%s217 + $0x38] sm:$0x7]
        %v233 = vld [vmem:[%s217 + $0x3c] sm:$0xf]
        %v234 = vld [vmem:[%s217 + $0x40] sm:$0xf]
        %v235 = vld [vmem:[%s217 + $0x44] sm:$0x7]
        %v236 = vld [vmem:[%s217 + $0x48] sm:$0xf]
        %v237 = vld [vmem:[%s217 + $0x4c] sm:$0xf]
        %v238 = vld [vmem:[%s217 + $0x50] sm:$0x7]
        %v239 = vld [vmem:[%s217 + $0x54] sm:$0xf]
        %v240 = vld [vmem:[%s217 + $0x58] sm:$0xf]
        %v241 = vld [vmem:[%s217 + $0x5c] sm:$0x7]
        %v242 = vld [vmem:[#allocation2] sm:$0xf]
        %v243 = vld [vmem:[#allocation2 + $0x4] sm:$0xf]
        %v244 = vld [vmem:[#allocation2 + $0x8] sm:$0xf]
        %v245 = vld [vmem:[#allocation2 + $0xc] sm:$0xf]
        %v246 = vld [vmem:[#allocation2 + $0x10] sm:$0xf]
        %v247 = vld [vmem:[#allocation2 + $0x14] sm:$0xf]
        %v248 = vld [vmem:[#allocation2 + $0x18] sm:$0xf]
        %v249 = vld [vmem:[#allocation2 + $0x1c] sm:$0xf]
        %v250 = vld [vmem:[#allocation2 + $0x20] sm:$0xf]
        %v251 = vld [vmem:[#allocation2 + $0x24] sm:$0xf]
        %v252 = vld [vmem:[#allocation2 + $0x28] sm:$0xf]
        %v253 = vld [vmem:[#allocation2 + $0x2c] sm:$0xf]
        %v254 = vld [vmem:[#allocation2 + $0x30] sm:$0xf]
        %v255 = vld [vmem:[#allocation2 + $0x34] sm:$0xf]
        %v256 = vld [vmem:[#allocation2 + $0x38] sm:$0xf]
        %v257 = vld [vmem:[#allocation2 + $0x3c] sm:$0xf]
        %vm258 = vsmask.f32 2304
        %vm259 = vsmask.f32 6416
        %vm260 = vmor %vm258, %vm259
        %v262 = vshrl.u32 %v218, 16
        %v264 = vrot.slane %v262, 5
        %v265 = vshll.u32 %v218, 16
        %v267 = vrot.slane %v265, 6
        %v268 = vor.u32 %v264, %v267
        %v269 = vrot.slane %v268, 4
        %v271 = vshrl.u32 %v219, 16
        %v273 = vrot.slane %v271, 5
        %v274 = vshll.u32 %v219, 16
        %v276 = vrot.slane %v274, 6
        %v277 = vor.u32 %v273, %v276
        %v278 = vsel %vm260, %v269, %v277
        %v279 = vrot.slane %v277, 4
        %v281 = vshrl.u32 %v220, 16
        %v283 = vrot.slane %v281, 5
        %v284 = vshll.u32 %v220, 16
        %v286 = vrot.slane %v284, 6
        %v287 = vor.u32 %v283, %v286
        %v288 = vsel %vm260, %v279, %v287
        %v290 = vshrl.u32 %v221, 16
        %v292 = vrot.slane %v290, 5
        %v293 = vshll.u32 %v221, 16
        %v295 = vrot.slane %v293, 6
        %v296 = vor.u32 %v292, %v295
        %v297 = vrot.slane %v296, 4
        %v299 = vshrl.u32 %v222, 16
        %v301 = vrot.slane %v299, 5
        %v302 = vshll.u32 %v222, 16
        %v304 = vrot.slane %v302, 6
        %v305 = vor.u32 %v301, %v304
        %v306 = vsel %vm260, %v297, %v305
        %v307 = vrot.slane %v305, 4
        %v309 = vshrl.u32 %v223, 16
        %v311 = vrot.slane %v309, 5
        %v312 = vshll.u32 %v223, 16
        %v314 = vrot.slane %v312, 6
        %v315 = vor.u32 %v311, %v314
        %v316 = vsel %vm260, %v307, %v315
        %v318 = vshrl.u32 %v224, 16
        %v320 = vrot.slane %v318, 5
        %v321 = vshll.u32 %v224, 16
        %v323 = vrot.slane %v321, 6
        %v324 = vor.u32 %v320, %v323
        %v325 = vrot.slane %v324, 4
        %v327 = vshrl.u32 %v225, 16
        %v329 = vrot.slane %v327, 5
        %v330 = vshll.u32 %v225, 16
        %v332 = vrot.slane %v330, 6
        %v333 = vor.u32 %v329, %v332
        %v334 = vsel %vm260, %v325, %v333
        %v335 = vrot.slane %v333, 4
        %v337 = vshrl.u32 %v226, 16
        %v339 = vrot.slane %v337, 5
        %v340 = vshll.u32 %v226, 16
        %v342 = vrot.slane %v340, 6
        %v343 = vor.u32 %v339, %v342
        %v344 = vsel %vm260, %v335, %v343
        %v346 = vshrl.u32 %v227, 16
        %v348 = vrot.slane %v346, 5
        %v349 = vshll.u32 %v227, 16
        %v351 = vrot.slane %v349, 6
        %v352 = vor.u32 %v348, %v351
        %v353 = vrot.slane %v352, 4
        %v355 = vshrl.u32 %v228, 16
        %v357 = vrot.slane %v355, 5
        %v358 = vshll.u32 %v228, 16
        %v360 = vrot.slane %v358, 6
        %v361 = vor.u32 %v357, %v360
        %v362 = vsel %vm260, %v353, %v361
        %v363 = vrot.slane %v361, 4
        %v365 = vshrl.u32 %v229, 16
        %v367 = vrot.slane %v365, 5
        %v368 = vshll.u32 %v229, 16
        %v370 = vrot.slane %v368, 6
        %v371 = vor.u32 %v367, %v370
        %v372 = vsel %vm260, %v363, %v371
        %v374 = vshrl.u32 %v230, 16
        %v376 = vrot.slane %v374, 5
        %v377 = vshll.u32 %v230, 16
        %v379 = vrot.slane %v377, 6
        %v380 = vor.u32 %v376, %v379
        %v381 = vrot.slane %v380, 4
        %v383 = vshrl.u32 %v231, 16
        %v385 = vrot.slane %v383, 5
        %v386 = vshll.u32 %v231, 16
        %v388 = vrot.slane %v386, 6
        %v389 = vor.u32 %v385, %v388
        %v390 = vsel %vm260, %v381, %v389
        %v391 = vrot.slane %v389, 4
        %v393 = vshrl.u32 %v232, 16
        %v395 = vrot.slane %v393, 5
        %v396 = vshll.u32 %v232, 16
        %v398 = vrot.slane %v396, 6
        %v399 = vor.u32 %v395, %v398
        %v400 = vsel %vm260, %v391, %v399
        %v402 = vshrl.u32 %v233, 16
        %v404 = vrot.slane %v402, 5
        %v405 = vshll.u32 %v233, 16
        %v407 = vrot.slane %v405, 6
        %v408 = vor.u32 %v404, %v407
        %v409 = vrot.slane %v408, 4
        %v411 = vshrl.u32 %v234, 16
        %v413 = vrot.slane %v411, 5
        %v414 = vshll.u32 %v234, 16
        %v416 = vrot.slane %v414, 6
        %v417 = vor.u32 %v413, %v416
        %v418 = vsel %vm260, %v409, %v417
        %v419 = vrot.slane %v417, 4
        %v421 = vshrl.u32 %v235, 16
        %v423 = vrot.slane %v421, 5
        %v424 = vshll.u32 %v235, 16
        %v426 = vrot.slane %v424, 6
        %v427 = vor.u32 %v423, %v426
        %v428 = vsel %vm260, %v419, %v427
        %v430 = vshrl.u32 %v236, 16
        %v432 = vrot.slane %v430, 5
        %v433 = vshll.u32 %v236, 16
        %v435 = vrot.slane %v433, 6
        %v436 = vor.u32 %v432, %v435
        %v437 = vrot.slane %v436, 4
        %v439 = vshrl.u32 %v237, 16
        %v441 = vrot.slane %v439, 5
        %v442 = vshll.u32 %v237, 16
        %v444 = vrot.slane %v442, 6
        %v445 = vor.u32 %v441, %v444
        %v446 = vsel %vm260, %v437, %v445
        %v447 = vrot.slane %v445, 4
        %v449 = vshrl.u32 %v238, 16
        %v451 = vrot.slane %v449, 5
        %v452 = vshll.u32 %v238, 16
        %v454 = vrot.slane %v452, 6
        %v455 = vor.u32 %v451, %v454
        %v456 = vsel %vm260, %v447, %v455
        %v458 = vshrl.u32 %v239, 16
        %v460 = vrot.slane %v458, 5
        %v461 = vshll.u32 %v239, 16
        %v463 = vrot.slane %v461, 6
        %v464 = vor.u32 %v460, %v463
        %v465 = vrot.slane %v464, 4
        %v467 = vshrl.u32 %v240, 16
        %v469 = vrot.slane %v467, 5
        %v470 = vshll.u32 %v240, 16
        %v472 = vrot.slane %v470, 6
        %v473 = vor.u32 %v469, %v472
        %v474 = vsel %vm260, %v465, %v473
        %v475 = vrot.slane %v473, 4
        %v477 = vshrl.u32 %v241, 16
        %v479 = vrot.slane %v477, 5
        %v480 = vshll.u32 %v241, 16
        %v482 = vrot.slane %v480, 6
        %v483 = vor.u32 %v479, %v482
        %v484 = vsel %vm260, %v475, %v483
        %s485 = scalar_lea.vmem [#allocation2], 64
        %v486 = vld [vmem:[%s485] sm:$0xf]
        %v487 = vld [vmem:[%s485 + $0x4] sm:$0xf]
        %v488 = vld [vmem:[%s485 + $0x8] sm:$0xf]
        %v489 = vld [vmem:[%s485 + $0xc] sm:$0xf]
        %v490 = vld [vmem:[%s485 + $0x10] sm:$0xf]
        %v491 = vld [vmem:[%s485 + $0x14] sm:$0xf]
        %v492 = vld [vmem:[%s485 + $0x18] sm:$0xf]
        %v493 = vld [vmem:[%s485 + $0x1c] sm:$0xf]
        %v494 = vld [vmem:[%s485 + $0x20] sm:$0xf]
        %v495 = vld [vmem:[%s485 + $0x24] sm:$0xf]
        %v496 = vld [vmem:[%s485 + $0x28] sm:$0xf]
        %v497 = vld [vmem:[%s485 + $0x2c] sm:$0xf]
        %v498 = vld [vmem:[%s485 + $0x30] sm:$0xf]
        %v499 = vld [vmem:[%s485 + $0x34] sm:$0xf]
        %v500 = vld [vmem:[%s485 + $0x38] sm:$0xf]
        %v501 = vld [vmem:[%s485 + $0x3c] sm:$0xf]
        %v502 = vunpack.c.l.b16 %v278
        %v503 = vunpack.c.l.b16 %v288
        %v504 = vunpack.c.l.b16 %v306
        %v505 = vunpack.c.l.b16 %v316
        %v506 = vunpack.c.l.b16 %v334
        %v507 = vunpack.c.l.b16 %v344
        %v508 = vunpack.c.l.b16 %v362
        %v509 = vunpack.c.l.b16 %v372
        %v510 = vunpack.c.l.b16 %v390
        %v511 = vunpack.c.l.b16 %v400
        %v512 = vunpack.c.l.b16 %v418
        %v513 = vunpack.c.l.b16 %v428
        %v514 = vunpack.c.l.b16 %v446
        %v515 = vunpack.c.l.b16 %v456
        %v516 = vunpack.c.l.b16 %v474
        %v517 = vunpack.c.l.b16 %v484
        %v518 = vpack.c.b16 %v503, %v502
        %v519 = vpack.c.b16 %v505, %v504
        %v520 = vpack.c.b16 %v507, %v506
        %v521 = vpack.c.b16 %v509, %v508
        %v522 = vpack.c.b16 %v511, %v510
        %v523 = vpack.c.b16 %v513, %v512
        %v524 = vpack.c.b16 %v515, %v514
        %v525 = vpack.c.b16 %v517, %v516
        %v550 = vunpack.c.l.b16 %v486
        %v551 = vunpack.c.l.b16 %v487
        %v552 = vunpack.c.l.b16 %v488
        %v553 = vunpack.c.l.b16 %v489
        %v554 = vunpack.c.l.b16 %v490
        %v555 = vunpack.c.l.b16 %v491
        %v556 = vunpack.c.l.b16 %v492
        %v557 = vunpack.c.l.b16 %v493
        %v558 = vunpack.c.l.b16 %v494
        %v559 = vunpack.c.l.b16 %v495
        %v560 = vunpack.c.l.b16 %v496
        %v561 = vunpack.c.l.b16 %v497
        %v562 = vunpack.c.l.b16 %v498
        %v563 = vunpack.c.l.b16 %v499
        %v564 = vunpack.c.l.b16 %v500
        %v565 = vunpack.c.l.b16 %v501
        %v566 = vpack.c.b16 %v551, %v550
        %v567 = vpack.c.b16 %v553, %v552
        %v568 = vpack.c.b16 %v555, %v554
        %v569 = vpack.c.b16 %v557, %v556
        %v570 = vpack.c.b16 %v559, %v558
        %v571 = vpack.c.b16 %v561, %v560
        %v572 = vpack.c.b16 %v563, %v562
        %v573 = vpack.c.b16 %v565, %v564
        %582 = vmatprep.subr.bf16.mxu0 0
        %583 = vmatpush1.bf16.msra.mxu0 %v566
        %584 = vmatprep.subr.bf16.mxu0 0
        %585 = vmatpush1.bf16.msra.mxu0 %v567
        %586 = vmatprep.subr.bf16.mxu0 0
        %587 = vmatpush1.bf16.msra.mxu0 %v568
        %588 = vmatprep.subr.bf16.mxu0 0
        %589 = vmatpush1.bf16.msra.mxu0 %v569
        %590 = vmatprep.subr.bf16.mxu0 0
        %591 = vmatpush1.bf16.msra.mxu0 %v570
        %592 = vmatprep.subr.bf16.mxu0 0
        %593 = vmatpush1.bf16.msra.mxu0 %v571
        %594 = vmatprep.subr.bf16.mxu0 0
        %595 = vmatpush1.bf16.msra.mxu0 %v572
        %596 = vmatprep.subr.bf16.mxu0 0
        %597 = vmatpush1.bf16.msra.mxu0 %v573
        %598 = vmatprep.subr.bf16.mxu0 0
        %599 = vmatpush1.bf16.msra.mxu0 0
        %600 = vmatprep.subr.bf16.mxu0 0
        %601 = vmatpush1.bf16.msra.mxu0 0
        %602 = vmatprep.subr.bf16.mxu0 0
        %603 = vmatpush1.bf16.msra.mxu0 0
        %604 = vmatprep.subr.bf16.mxu0 0
        %605 = vmatpush1.bf16.msra.mxu0 0
        %606 = vmatprep.subr.bf16.mxu0 0
        %607 = vmatpush1.bf16.msra.mxu0 0
        %608 = vmatprep.subr.bf16.mxu0 0
        %609 = vmatpush1.bf16.msra.mxu0 0
        %610 = vmatprep.subr.bf16.mxu0 0
        %611 = vmatpush1.bf16.msra.mxu0 0
        %612 = vmatprep.subr.bf16.mxu0 0
        %613 = vmatpush1.bf16.msra.mxu0 0
        %614 = vmatprep.mubr.bf16.mxu0 0
        %615 = vmatmul.mubr.bf16.gmra.mrb[0].mxu0 %v518
        %v616 = vpop.f32.mrb[0].mxu0
        %v617 = vadd.f32 0.0, %v616
        %v618 = vpop.f32.mrb[0].mxu0
        %v619 = vpop.f32.mrb[0].mxu0
        %v620 = vadd.f32 0.0, %v619
        %v621 = vpop.f32.mrb[0].mxu0
        %622 = vmatprep.mubr.bf16.mxu0 0
        %623 = vmatmul.mubr.bf16.gmra.mrb[0].mxu0 %v519
        %v624 = vpop.f32.mrb[0].mxu0
        %v625 = vadd.f32 0.0, %v624
        %v626 = vpop.f32.mrb[0].mxu0
        %v627 = vpop.f32.mrb[0].mxu0
        %v628 = vadd.f32 0.0, %v627
        %v629 = vpop.f32.mrb[0].mxu0
        %630 = vmatprep.mubr.bf16.mxu0 0
        %631 = vmatmul.mubr.bf16.gmra.mrb[0].mxu0 %v520
        %v632 = vpop.f32.mrb[0].mxu0
        %v633 = vadd.f32 0.0, %v632
        %v634 = vpop.f32.mrb[0].mxu0
        %v635 = vpop.f32.mrb[0].mxu0
        %v636 = vadd.f32 0.0, %v635
        %v637 = vpop.f32.mrb[0].mxu0
        %638 = vmatprep.mubr.bf16.mxu0 0
        %639 = vmatmul.mubr.bf16.gmra.mrb[0].mxu0 %v521
        %v640 = vpop.f32.mrb[0].mxu0
        %v641 = vadd.f32 0.0, %v640
        %v642 = vpop.f32.mrb[0].mxu0
        %v643 = vpop.f32.mrb[0].mxu0
        %v644 = vadd.f32 0.0, %v643
        %v645 = vpop.f32.mrb[0].mxu0
        %646 = vmatprep.mubr.bf16.mxu0 0
        %647 = vmatmul.mubr.bf16.gmra.mrb[0].mxu0 %v522
        %v648 = vpop.f32.mrb[0].mxu0
        %v649 = vadd.f32 0.0, %v648
        %v650 = vpop.f32.mrb[0].mxu0
        %v651 = vpop.f32.mrb[0].mxu0
        %v652 = vadd.f32 0.0, %v651
        %v653 = vpop.f32.mrb[0].mxu0
        %654 = vmatprep.mubr.bf16.mxu0 0
        %655 = vmatmul.mubr.bf16.gmra.mrb[0].mxu0 %v523
        %v656 = vpop.f32.mrb[0].mxu0
        %v657 = vadd.f32 0.0, %v656
        %v658 = vpop.f32.mrb[0].mxu0
        %v659 = vpop.f32.mrb[0].mxu0
        %v660 = vadd.f32 0.0, %v659
        %v661 = vpop.f32.mrb[0].mxu0
        %662 = vmatprep.mubr.bf16.mxu0 0
        %663 = vmatmul.mubr.bf16.gmra.mrb[0].mxu0 %v524
        %v664 = vpop.f32.mrb[0].mxu0
        %v665 = vadd.f32 0.0, %v664
        %v666 = vpop.f32.mrb[0].mxu0
        %v667 = vpop.f32.mrb[0].mxu0
        %v668 = vadd.f32 0.0, %v667
        %v669 = vpop.f32.mrb[0].mxu0
        %670 = vmatprep.mubr.bf16.mxu0 0
        %671 = vmatmul.mubr.bf16.gmra.mrb[0].mxu0 %v525
        %v672 = vpop.f32.mrb[0].mxu0
        %v673 = vadd.f32 0.0, %v672
        %v674 = vpop.f32.mrb[0].mxu0
        %v675 = vpop.f32.mrb[0].mxu0
        %v676 = vadd.f32 0.0, %v675
        %v677 = vpop.f32.mrb[0].mxu0
        %678 = vdwg.mxu0
        %v695 = vunpack.c.l.b16 %v218
        %v696 = vunpack.c.l.b16 %v219
        %v697 = vunpack.c.l.b16 %v221
        %v698 = vunpack.c.l.b16 %v222
        %v699 = vunpack.c.l.b16 %v224
        %v700 = vunpack.c.l.b16 %v225
        %v701 = vunpack.c.l.b16 %v227
        %v702 = vunpack.c.l.b16 %v228
        %v703 = vunpack.c.l.b16 %v230
        %v704 = vunpack.c.l.b16 %v231
        %v705 = vunpack.c.l.b16 %v233
        %v706 = vunpack.c.l.b16 %v234
        %v707 = vunpack.c.l.b16 %v236
        %v708 = vunpack.c.l.b16 %v237
        %v709 = vunpack.c.l.b16 %v239
        %v710 = vunpack.c.l.b16 %v240
        %v711 = vpack.c.b16 %v696, %v695
        %v712 = vpack.c.b16 %v698, %v697
        %v713 = vpack.c.b16 %v700, %v699
        %v714 = vpack.c.b16 %v702, %v701
        %v715 = vpack.c.b16 %v704, %v703
        %v716 = vpack.c.b16 %v706, %v705
        %v717 = vpack.c.b16 %v708, %v707
        %v718 = vpack.c.b16 %v710, %v709
        %v743 = vunpack.c.l.b16 %v242
        %v744 = vunpack.c.l.b16 %v243
        %v745 = vunpack.c.l.b16 %v244
        %v746 = vunpack.c.l.b16 %v245
        %v747 = vunpack.c.l.b16 %v246
        %v748 = vunpack.c.l.b16 %v247
        %v749 = vunpack.c.l.b16 %v248
        %v750 = vunpack.c.l.b16 %v249
        %v751 = vunpack.c.l.b16 %v250
        %v752 = vunpack.c.l.b16 %v251
        %v753 = vunpack.c.l.b16 %v252
        %v754 = vunpack.c.l.b16 %v253
        %v755 = vunpack.c.l.b16 %v254
        %v756 = vunpack.c.l.b16 %v255
        %v757 = vunpack.c.l.b16 %v256
        %v758 = vunpack.c.l.b16 %v257
        %v759 = vpack.c.b16 %v744, %v743
        %v760 = vpack.c.b16 %v746, %v745
        %v761 = vpack.c.b16 %v748, %v747
        %v762 = vpack.c.b16 %v750, %v749
        %v763 = vpack.c.b16 %v752, %v751
        %v764 = vpack.c.b16 %v754, %v753
        %v765 = vpack.c.b16 %v756, %v755
        %v766 = vpack.c.b16 %v758, %v757
        %775 = vmatprep.subr.bf16.mxu0 0
        %776 = vmatpush1.bf16.msra.mxu0 %v759
        %777 = vmatprep.subr.bf16.mxu0 0
        %778 = vmatpush1.bf16.msra.mxu0 %v760
        %779 = vmatprep.subr.bf16.mxu0 0
        %780 = vmatpush1.bf16.msra.mxu0 %v761
        %781 = vmatprep.subr.bf16.mxu0 0
        %782 = vmatpush1.bf16.msra.mxu0 %v762
        %783 = vmatprep.subr.bf16.mxu0 0
        %784 = vmatpush1.bf16.msra.mxu0 %v763
        %785 = vmatprep.subr.bf16.mxu0 0
        %786 = vmatpush1.bf16.msra.mxu0 %v764
        %787 = vmatprep.subr.bf16.mxu0 0
        %788 = vmatpush1.bf16.msra.mxu0 %v765
        %789 = vmatprep.subr.bf16.mxu0 0
        %790 = vmatpush1.bf16.msra.mxu0 %v766
        %791 = vmatprep.subr.bf16.mxu0 0
        %792 = vmatpush1.bf16.msra.mxu0 0
        %793 = vmatprep.subr.bf16.mxu0 0
        %794 = vmatpush1.bf16.msra.mxu0 0
        %795 = vmatprep.subr.bf16.mxu0 0
        %796 = vmatpush1.bf16.msra.mxu0 0
        %797 = vmatprep.subr.bf16.mxu0 0
        %798 = vmatpush1.bf16.msra.mxu0 0
        %799 = vmatprep.subr.bf16.mxu0 0
        %800 = vmatpush1.bf16.msra.mxu0 0
        %801 = vmatprep.subr.bf16.mxu0 0
        %802 = vmatpush1.bf16.msra.mxu0 0
        %803 = vmatprep.subr.bf16.mxu0 0
        %804 = vmatpush1.bf16.msra.mxu0 0
        %805 = vmatprep.subr.bf16.mxu0 0
        %806 = vmatpush1.bf16.msra.mxu0 0
        %807 = vmatprep.mubr.bf16.mxu0 0
        %808 = vmatmul.mubr.bf16.gmra.mrb[0].mxu0 %v711
        %v809 = vpop.f32.mrb[0].mxu0
        %v810 = vadd.f32 %v617, %v809
        %v811 = vpop.f32.mrb[0].mxu0
        %v812 = vpop.f32.mrb[0].mxu0
        %v813 = vadd.f32 %v620, %v812
        %v814 = vpop.f32.mrb[0].mxu0
        %815 = vmatprep.mubr.bf16.mxu0 0
        %816 = vmatmul.mubr.bf16.gmra.mrb[0].mxu0 %v712
        %v817 = vpop.f32.mrb[0].mxu0
        %v818 = vadd.f32 %v625, %v817
        %v819 = vpop.f32.mrb[0].mxu0
        %v820 = vpop.f32.mrb[0].mxu0
        %v821 = vadd.f32 %v628, %v820
        %v822 = vpop.f32.mrb[0].mxu0
        %823 = vmatprep.mubr.bf16.mxu0 0
        %824 = vmatmul.mubr.bf16.gmra.mrb[0].mxu0 %v713
        %v825 = vpop.f32.mrb[0].mxu0
        %v826 = vadd.f32 %v633, %v825
        %v827 = vpop.f32.mrb[0].mxu0
        %v828 = vpop.f32.mrb[0].mxu0
        %v829 = vadd.f32 %v636, %v828
        %v830 = vpop.f32.mrb[0].mxu0
        %831 = vmatprep.mubr.bf16.mxu0 0
        %832 = vmatmul.mubr.bf16.gmra.mrb[0].mxu0 %v714
        %v833 = vpop.f32.mrb[0].mxu0
        %v834 = vadd.f32 %v641, %v833
        %v835 = vpop.f32.mrb[0].mxu0
        %v836 = vpop.f32.mrb[0].mxu0
        %v837 = vadd.f32 %v644, %v836
        %v838 = vpop.f32.mrb[0].mxu0
        %839 = vmatprep.mubr.bf16.mxu0 0
        %840 = vmatmul.mubr.bf16.gmra.mrb[0].mxu0 %v715
        %v841 = vpop.f32.mrb[0].mxu0
        %v842 = vadd.f32 %v649, %v841
        %v843 = vpop.f32.mrb[0].mxu0
        %v844 = vpop.f32.mrb[0].mxu0
        %v845 = vadd.f32 %v652, %v844
        %v846 = vpop.f32.mrb[0].mxu0
        %847 = vmatprep.mubr.bf16.mxu0 0
        %848 = vmatmul.mubr.bf16.gmra.mrb[0].mxu0 %v716
        %v849 = vpop.f32.mrb[0].mxu0
        %v850 = vadd.f32 %v657, %v849
        %v851 = vpop.f32.mrb[0].mxu0
        %v852 = vpop.f32.mrb[0].mxu0
        %v853 = vadd.f32 %v660, %v852
        %v854 = vpop.f32.mrb[0].mxu0
        %855 = vmatprep.mubr.bf16.mxu0 0
        %856 = vmatmul.mubr.bf16.gmra.mrb[0].mxu0 %v717
        %v857 = vpop.f32.mrb[0].mxu0
        %v858 = vadd.f32 %v665, %v857
        %v859 = vpop.f32.mrb[0].mxu0
        %v860 = vpop.f32.mrb[0].mxu0
        %v861 = vadd.f32 %v668, %v860
        %v862 = vpop.f32.mrb[0].mxu0
        %863 = vmatprep.mubr.bf16.mxu0 0
        %864 = vmatmul.mubr.bf16.gmra.mrb[0].mxu0 %v718
        %v865 = vpop.f32.mrb[0].mxu0
        %v866 = vadd.f32 %v673, %v865
        %v867 = vpop.f32.mrb[0].mxu0
        %v868 = vpop.f32.mrb[0].mxu0
        %v869 = vadd.f32 %v676, %v868
        %v870 = vpop.f32.mrb[0].mxu0
        %871 = vdwg.mxu0
        %vm880 = vcmask 1040384
        %vm881 = vcmask 1044484
        %vm882 = vmor %vm880, %vm881
        %v883 = vrot.slane %v218, 7
        %v884 = vrot.slane %v883, 4
        %v885 = vrot.slane %v219, 7
        %v886 = vsel %vm882, %v884, %v885
        %v887 = vrot.slane %v885, 4
        %v888 = vrot.slane %v220, 7
        %v889 = vsel %vm882, %v887, %v888
        %v890 = vrot.slane %v221, 7
        %v891 = vrot.slane %v890, 4
        %v892 = vrot.slane %v222, 7
        %v893 = vsel %vm882, %v891, %v892
        %v894 = vrot.slane %v892, 4
        %v895 = vrot.slane %v223, 7
        %v896 = vsel %vm882, %v894, %v895
        %v897 = vrot.slane %v224, 7
        %v898 = vrot.slane %v897, 4
        %v899 = vrot.slane %v225, 7
        %v900 = vsel %vm882, %v898, %v899
        %v901 = vrot.slane %v899, 4
        %v902 = vrot.slane %v226, 7
        %v903 = vsel %vm882, %v901, %v902
        %v904 = vrot.slane %v227, 7
        %v905 = vrot.slane %v904, 4
        %v906 = vrot.slane %v228, 7
        %v907 = vsel %vm882, %v905, %v906
        %v908 = vrot.slane %v906, 4
        %v909 = vrot.slane %v229, 7
        %v910 = vsel %vm882, %v908, %v909
        %v911 = vrot.slane %v230, 7
        %v912 = vrot.slane %v911, 4
        %v913 = vrot.slane %v231, 7
        %v914 = vsel %vm882, %v912, %v913
        %v915 = vrot.slane %v913, 4
        %v916 = vrot.slane %v232, 7
        %v917 = vsel %vm882, %v915, %v916
        %v918 = vrot.slane %v233, 7
        %v919 = vrot.slane %v918, 4
        %v920 = vrot.slane %v234, 7
        %v921 = vsel %vm882, %v919, %v920
        %v922 = vrot.slane %v920, 4
        %v923 = vrot.slane %v235, 7
        %v924 = vsel %vm882, %v922, %v923
        %v925 = vrot.slane %v236, 7
        %v926 = vrot.slane %v925, 4
        %v927 = vrot.slane %v237, 7
        %v928 = vsel %vm882, %v926, %v927
        %v929 = vrot.slane %v927, 4
        %v930 = vrot.slane %v238, 7
        %v931 = vsel %vm882, %v929, %v930
        %v932 = vrot.slane %v239, 7
        %v933 = vrot.slane %v932, 4
        %v934 = vrot.slane %v240, 7
        %v935 = vsel %vm882, %v933, %v934
        %v936 = vrot.slane %v934, 4
        %v937 = vrot.slane %v241, 7
        %v938 = vsel %vm882, %v936, %v937
        %s939 = scalar_lea.vmem [#allocation2], 128
        %v940 = vld [vmem:[%s939] sm:$0xf]
        %v941 = vld [vmem:[%s939 + $0x4] sm:$0xf]
        %v942 = vld [vmem:[%s939 + $0x8] sm:$0xf]
        %v943 = vld [vmem:[%s939 + $0xc] sm:$0xf]
        %v944 = vld [vmem:[%s939 + $0x10] sm:$0xf]
        %v945 = vld [vmem:[%s939 + $0x14] sm:$0xf]
        %v946 = vld [vmem:[%s939 + $0x18] sm:$0xf]
        %v947 = vld [vmem:[%s939 + $0x1c] sm:$0xf]
        %v948 = vld [vmem:[%s939 + $0x20] sm:$0xf]
        %v949 = vld [vmem:[%s939 + $0x24] sm:$0xf]
        %v950 = vld [vmem:[%s939 + $0x28] sm:$0xf]
        %v951 = vld [vmem:[%s939 + $0x2c] sm:$0xf]
        %v952 = vld [vmem:[%s939 + $0x30] sm:$0xf]
        %v953 = vld [vmem:[%s939 + $0x34] sm:$0xf]
        %v954 = vld [vmem:[%s939 + $0x38] sm:$0xf]
        %v955 = vld [vmem:[%s939 + $0x3c] sm:$0xf]
        %v956 = vunpack.c.l.b16 %v886
        %v957 = vunpack.c.l.b16 %v889
        %v958 = vunpack.c.l.b16 %v893
        %v959 = vunpack.c.l.b16 %v896
        %v960 = vunpack.c.l.b16 %v900
        %v961 = vunpack.c.l.b16 %v903
        %v962 = vunpack.c.l.b16 %v907
        %v963 = vunpack.c.l.b16 %v910
        %v964 = vunpack.c.l.b16 %v914
        %v965 = vunpack.c.l.b16 %v917
        %v966 = vunpack.c.l.b16 %v921
        %v967 = vunpack.c.l.b16 %v924
        %v968 = vunpack.c.l.b16 %v928
        %v969 = vunpack.c.l.b16 %v931
        %v970 = vunpack.c.l.b16 %v935
        %v971 = vunpack.c.l.b16 %v938
        %v972 = vpack.c.b16 %v957, %v956
        %v973 = vpack.c.b16 %v959, %v958
        %v974 = vpack.c.b16 %v961, %v960
        %v975 = vpack.c.b16 %v963, %v962
        %v976 = vpack.c.b16 %v965, %v964
        %v977 = vpack.c.b16 %v967, %v966
        %v978 = vpack.c.b16 %v969, %v968
        %v979 = vpack.c.b16 %v971, %v970
        %v1004 = vunpack.c.l.b16 %v940
        %v1005 = vunpack.c.l.b16 %v941
        %v1006 = vunpack.c.l.b16 %v942
        %v1007 = vunpack.c.l.b16 %v943
        %v1008 = vunpack.c.l.b16 %v944
        %v1009 = vunpack.c.l.b16 %v945
        %v1010 = vunpack.c.l.b16 %v946
        %v1011 = vunpack.c.l.b16 %v947
        %v1012 = vunpack.c.l.b16 %v948
        %v1013 = vunpack.c.l.b16 %v949
        %v1014 = vunpack.c.l.b16 %v950
        %v1015 = vunpack.c.l.b16 %v951
        %v1016 = vunpack.c.l.b16 %v952
        %v1017 = vunpack.c.l.b16 %v953
        %v1018 = vunpack.c.l.b16 %v954
        %v1019 = vunpack.c.l.b16 %v955
        %v1020 = vpack.c.b16 %v1005, %v1004
        %v1021 = vpack.c.b16 %v1007, %v1006
        %v1022 = vpack.c.b16 %v1009, %v1008
        %v1023 = vpack.c.b16 %v1011, %v1010
        %v1024 = vpack.c.b16 %v1013, %v1012
        %v1025 = vpack.c.b16 %v1015, %v1014
        %v1026 = vpack.c.b16 %v1017, %v1016
        %v1027 = vpack.c.b16 %v1019, %v1018
        %1036 = vmatprep.subr.bf16.mxu0 0
        %1037 = vmatpush1.bf16.msra.mxu0 %v1020
        %1038 = vmatprep.subr.bf16.mxu0 0
        %1039 = vmatpush1.bf16.msra.mxu0 %v1021
        %1040 = vmatprep.subr.bf16.mxu0 0
        %1041 = vmatpush1.bf16.msra.mxu0 %v1022
        %1042 = vmatprep.subr.bf16.mxu0 0
        %1043 = vmatpush1.bf16.msra.mxu0 %v1023
        %1044 = vmatprep.subr.bf16.mxu0 0
        %1045 = vmatpush1.bf16.msra.mxu0 %v1024
        %1046 = vmatprep.subr.bf16.mxu0 0
        %1047 = vmatpush1.bf16.msra.mxu0 %v1025
        %1048 = vmatprep.subr.bf16.mxu0 0
        %1049 = vmatpush1.bf16.msra.mxu0 %v1026
        %1050 = vmatprep.subr.bf16.mxu0 0
        %1051 = vmatpush1.bf16.msra.mxu0 %v1027
        %1052 = vmatprep.subr.bf16.mxu0 0
        %1053 = vmatpush1.bf16.msra.mxu0 0
        %1054 = vmatprep.subr.bf16.mxu0 0
        %1055 = vmatpush1.bf16.msra.mxu0 0
        %1056 = vmatprep.subr.bf16.mxu0 0
        %1057 = vmatpush1.bf16.msra.mxu0 0
        %1058 = vmatprep.subr.bf16.mxu0 0
        %1059 = vmatpush1.bf16.msra.mxu0 0
        %1060 = vmatprep.subr.bf16.mxu0 0
        %1061 = vmatpush1.bf16.msra.mxu0 0
        %1062 = vmatprep.subr.bf16.mxu0 0
        %1063 = vmatpush1.bf16.msra.mxu0 0
        %1064 = vmatprep.subr.bf16.mxu0 0
        %1065 = vmatpush1.bf16.msra.mxu0 0
        %1066 = vmatprep.subr.bf16.mxu0 0
        %1067 = vmatpush1.bf16.msra.mxu0 0
        %1068 = vmatprep.mubr.bf16.mxu0 0
        %1069 = vmatmul.mubr.bf16.gmra.mrb[0].mxu0 %v972
        %v1070 = vpop.f32.mrb[0].mxu0
        %v1071 = vadd.f32 0.0, %v1070
        %v1072 = vpop.f32.mrb[0].mxu0
        %v1073 = vpop.f32.mrb[0].mxu0
        %v1074 = vadd.f32 0.0, %v1073
        %v1075 = vpop.f32.mrb[0].mxu0
        %1076 = vmatprep.mubr.bf16.mxu0 0
        %1077 = vmatmul.mubr.bf16.gmra.mrb[0].mxu0 %v973
        %v1078 = vpop.f32.mrb[0].mxu0
        %v1079 = vadd.f32 0.0, %v1078
        %v1080 = vpop.f32.mrb[0].mxu0
        %v1081 = vpop.f32.mrb[0].mxu0
        %v1082 = vadd.f32 0.0, %v1081
        %v1083 = vpop.f32.mrb[0].mxu0
        %1084 = vmatprep.mubr.bf16.mxu0 0
        %1085 = vmatmul.mubr.bf16.gmra.mrb[0].mxu0 %v974
        %v1086 = vpop.f32.mrb[0].mxu0
        %v1087 = vadd.f32 0.0, %v1086
        %v1088 = vpop.f32.mrb[0].mxu0
        %v1089 = vpop.f32.mrb[0].mxu0
        %v1090 = vadd.f32 0.0, %v1089
        %v1091 = vpop.f32.mrb[0].mxu0
        %1092 = vmatprep.mubr.bf16.mxu0 0
        %1093 = vmatmul.mubr.bf16.gmra.mrb[0].mxu0 %v975
        %v1094 = vpop.f32.mrb[0].mxu0
        %v1095 = vadd.f32 0.0, %v1094
        %v1096 = vpop.f32.mrb[0].mxu0
        %v1097 = vpop.f32.mrb[0].mxu0
        %v1098 = vadd.f32 0.0, %v1097
        %v1099 = vpop.f32.mrb[0].mxu0
        %1100 = vmatprep.mubr.bf16.mxu0 0
        %1101 = vmatmul.mubr.bf16.gmra.mrb[0].mxu0 %v976
        %v1102 = vpop.f32.mrb[0].mxu0
        %v1103 = vadd.f32 0.0, %v1102
        %v1104 = vpop.f32.mrb[0].mxu0
        %v1105 = vpop.f32.mrb[0].mxu0
        %v1106 = vadd.f32 0.0, %v1105
        %v1107 = vpop.f32.mrb[0].mxu0
        %1108 = vmatprep.mubr.bf16.mxu0 0
        %1109 = vmatmul.mubr.bf16.gmra.mrb[0].mxu0 %v977
        %v1110 = vpop.f32.mrb[0].mxu0
        %v1111 = vadd.f32 0.0, %v1110
        %v1112 = vpop.f32.mrb[0].mxu0
        %v1113 = vpop.f32.mrb[0].mxu0
        %v1114 = vadd.f32 0.0, %v1113
        %v1115 = vpop.f32.mrb[0].mxu0
        %1116 = vmatprep.mubr.bf16.mxu0 0
        %1117 = vmatmul.mubr.bf16.gmra.mrb[0].mxu0 %v978
        %v1118 = vpop.f32.mrb[0].mxu0
        %v1119 = vadd.f32 0.0, %v1118
        %v1120 = vpop.f32.mrb[0].mxu0
        %v1121 = vpop.f32.mrb[0].mxu0
        %v1122 = vadd.f32 0.0, %v1121
        %v1123 = vpop.f32.mrb[0].mxu0
        %1124 = vmatprep.mubr.bf16.mxu0 0
        %1125 = vmatmul.mubr.bf16.gmra.mrb[0].mxu0 %v979
        %v1126 = vpop.f32.mrb[0].mxu0
        %v1127 = vadd.f32 0.0, %v1126
        %v1128 = vpop.f32.mrb[0].mxu0
        %v1129 = vpop.f32.mrb[0].mxu0
        %v1130 = vadd.f32 0.0, %v1129
        %v1131 = vpop.f32.mrb[0].mxu0
        %1132 = vdwg.mxu0
        %v1133 = vadd.f32 %v810, %v1071
        %v1134 = vadd.f32 %v813, %v1074
        %v1135 = vadd.f32 %v818, %v1079
        %v1136 = vadd.f32 %v821, %v1082
        %v1137 = vadd.f32 %v826, %v1087
        %v1138 = vadd.f32 %v829, %v1090
        %v1139 = vadd.f32 %v834, %v1095
        %v1140 = vadd.f32 %v837, %v1098
        %v1141 = vadd.f32 %v842, %v1103
        %v1142 = vadd.f32 %v845, %v1106
        %v1143 = vadd.f32 %v850, %v1111
        %v1144 = vadd.f32 %v853, %v1114
        %v1145 = vadd.f32 %v858, %v1119
        %v1146 = vadd.f32 %v861, %v1122
        %v1147 = vadd.f32 %v866, %v1127
        %v1148 = vadd.f32 %v869, %v1130
        %s1149 = sadd.s32 %s214, 1
        %s1150 = smul.u32 %s1149, 3
        %s1151 = smul.addr %s1150, 4
        %s1152 = scalar_lea.vmem %s208, %s1151
        %v1153 = vld [vmem:[%s1152] sm:$0xf]
        %v1154 = vld [vmem:[%s1152 + $0x4] sm:$0xf]
        %v1155 = vld [vmem:[%s1152 + $0x8] sm:$0x7]
        %v1156 = vld [vmem:[%s1152 + $0xc] sm:$0xf]
        %v1157 = vld [vmem:[%s1152 + $0x10] sm:$0xf]
        %v1158 = vld [vmem:[%s1152 + $0x14] sm:$0x7]
        %v1159 = vld [vmem:[%s1152 + $0x18] sm:$0xf]
        %v1160 = vld [vmem:[%s1152 + $0x1c] sm:$0xf]
        %v1161 = vld [vmem:[%s1152 + $0x20] sm:$0x7]
        %v1162 = vld [vmem:[%s1152 + $0x24] sm:$0xf]
        %v1163 = vld [vmem:[%s1152 + $0x28] sm:$0xf]
        %v1164 = vld [vmem:[%s1152 + $0x2c] sm:$0x7]
        %v1165 = vld [vmem:[%s1152 + $0x30] sm:$0xf]
        %v1166 = vld [vmem:[%s1152 + $0x34] sm:$0xf]
        %v1167 = vld [vmem:[%s1152 + $0x38] sm:$0x7]
        %v1168 = vld [vmem:[%s1152 + $0x3c] sm:$0xf]
        %v1169 = vld [vmem:[%s1152 + $0x40] sm:$0xf]
        %v1170 = vld [vmem:[%s1152 + $0x44] sm:$0x7]
        %v1171 = vld [vmem:[%s1152 + $0x48] sm:$0xf]
        %v1172 = vld [vmem:[%s1152 + $0x4c] sm:$0xf]
        %v1173 = vld [vmem:[%s1152 + $0x50] sm:$0x7]
        %v1174 = vld [vmem:[%s1152 + $0x54] sm:$0xf]
        %v1175 = vld [vmem:[%s1152 + $0x58] sm:$0xf]
        %v1176 = vld [vmem:[%s1152 + $0x5c] sm:$0x7]
        %vm1177 = vsmask.f32 3328
        %vm1178 = vsmask.f32 7440
        %vm1179 = vmor %vm1177, %vm1178
        %v1181 = vshrl.u32 %v1153, 16
        %v1183 = vrot.slane %v1181, 4
        %v1184 = vshll.u32 %v1153, 16
        %v1186 = vrot.slane %v1184, 5
        %v1187 = vor.u32 %v1183, %v1186
        %v1188 = vrot.slane %v1187, 4
        %v1190 = vshll.u32 %v1154, 16
        %v1192 = vrot.slane %v1190, 5
        %v1193 = vsel %vm1179, %v1188, %v1192
        %v1194 = vshrl.u32 %v1154, 16
        %v1196 = vrot.slane %v1194, 4
        %v1197 = vor.u32 %v1196, %v1192
        %v1198 = vrot.slane %v1197, 4
        %v1200 = vshll.u32 %v1155, 16
        %v1202 = vrot.slane %v1200, 5
        %v1203 = vsel %vm1179, %v1198, %v1202
        %v1205 = vshrl.u32 %v1156, 16
        %v1207 = vrot.slane %v1205, 4
        %v1208 = vshll.u32 %v1156, 16
        %v1210 = vrot.slane %v1208, 5
        %v1211 = vor.u32 %v1207, %v1210
        %v1212 = vrot.slane %v1211, 4
        %v1214 = vshll.u32 %v1157, 16
        %v1216 = vrot.slane %v1214, 5
        %v1217 = vsel %vm1179, %v1212, %v1216
        %v1218 = vshrl.u32 %v1157, 16
        %v1220 = vrot.slane %v1218, 4
        %v1221 = vor.u32 %v1220, %v1216
        %v1222 = vrot.slane %v1221, 4
        %v1224 = vshll.u32 %v1158, 16
        %v1226 = vrot.slane %v1224, 5
        %v1227 = vsel %vm1179, %v1222, %v1226
        %v1229 = vshrl.u32 %v1159, 16
        %v1231 = vrot.slane %v1229, 4
        %v1232 = vshll.u32 %v1159, 16
        %v1234 = vrot.slane %v1232, 5
        %v1235 = vor.u32 %v1231, %v1234
        %v1236 = vrot.slane %v1235, 4
        %v1238 = vshll.u32 %v1160, 16
        %v1240 = vrot.slane %v1238, 5
        %v1241 = vsel %vm1179, %v1236, %v1240
        %v1242 = vshrl.u32 %v1160, 16
        %v1244 = vrot.slane %v1242, 4
        %v1245 = vor.u32 %v1244, %v1240
        %v1246 = vrot.slane %v1245, 4
        %v1248 = vshll.u32 %v1161, 16
        %v1250 = vrot.slane %v1248, 5
        %v1251 = vsel %vm1179, %v1246, %v1250
        %v1253 = vshrl.u32 %v1162, 16
        %v1255 = vrot.slane %v1253, 4
        %v1256 = vshll.u32 %v1162, 16
        %v1258 = vrot.slane %v1256, 5
        %v1259 = vor.u32 %v1255, %v1258
        %v1260 = vrot.slane %v1259, 4
        %v1262 = vshll.u32 %v1163, 16
        %v1264 = vrot.slane %v1262, 5
        %v1265 = vsel %vm1179, %v1260, %v1264
        %v1266 = vshrl.u32 %v1163, 16
        %v1268 = vrot.slane %v1266, 4
        %v1269 = vor.u32 %v1268, %v1264
        %v1270 = vrot.slane %v1269, 4
        %v1272 = vshll.u32 %v1164, 16
        %v1274 = vrot.slane %v1272, 5
        %v1275 = vsel %vm1179, %v1270, %v1274
        %v1277 = vshrl.u32 %v1165, 16
        %v1279 = vrot.slane %v1277, 4
        %v1280 = vshll.u32 %v1165, 16
        %v1282 = vrot.slane %v1280, 5
        %v1283 = vor.u32 %v1279, %v1282
        %v1284 = vrot.slane %v1283, 4
        %v1286 = vshll.u32 %v1166, 16
        %v1288 = vrot.slane %v1286, 5
        %v1289 = vsel %vm1179, %v1284, %v1288
        %v1290 = vshrl.u32 %v1166, 16
        %v1292 = vrot.slane %v1290, 4
        %v1293 = vor.u32 %v1292, %v1288
        %v1294 = vrot.slane %v1293, 4
        %v1296 = vshll.u32 %v1167, 16
        %v1298 = vrot.slane %v1296, 5
        %v1299 = vsel %vm1179, %v1294, %v1298
        %v1301 = vshrl.u32 %v1168, 16
        %v1303 = vrot.slane %v1301, 4
        %v1304 = vshll.u32 %v1168, 16
        %v1306 = vrot.slane %v1304, 5
        %v1307 = vor.u32 %v1303, %v1306
        %v1308 = vrot.slane %v1307, 4
        %v1310 = vshll.u32 %v1169, 16
        %v1312 = vrot.slane %v1310, 5
        %v1313 = vsel %vm1179, %v1308, %v1312
        %v1314 = vshrl.u32 %v1169, 16
        %v1316 = vrot.slane %v1314, 4
        %v1317 = vor.u32 %v1316, %v1312
        %v1318 = vrot.slane %v1317, 4
        %v1320 = vshll.u32 %v1170, 16
        %v1322 = vrot.slane %v1320, 5
        %v1323 = vsel %vm1179, %v1318, %v1322
        %v1325 = vshrl.u32 %v1171, 16
        %v1327 = vrot.slane %v1325, 4
        %v1328 = vshll.u32 %v1171, 16
        %v1330 = vrot.slane %v1328, 5
        %v1331 = vor.u32 %v1327, %v1330
        %v1332 = vrot.slane %v1331, 4
        %v1334 = vshll.u32 %v1172, 16
        %v1336 = vrot.slane %v1334, 5
        %v1337 = vsel %vm1179, %v1332, %v1336
        %v1338 = vshrl.u32 %v1172, 16
        %v1340 = vrot.slane %v1338, 4
        %v1341 = vor.u32 %v1340, %v1336
        %v1342 = vrot.slane %v1341, 4
        %v1344 = vshll.u32 %v1173, 16
        %v1346 = vrot.slane %v1344, 5
        %v1347 = vsel %vm1179, %v1342, %v1346
        %v1349 = vshrl.u32 %v1174, 16
        %v1351 = vrot.slane %v1349, 4
        %v1352 = vshll.u32 %v1174, 16
        %v1354 = vrot.slane %v1352, 5
        %v1355 = vor.u32 %v1351, %v1354
        %v1356 = vrot.slane %v1355, 4
        %v1358 = vshll.u32 %v1175, 16
        %v1360 = vrot.slane %v1358, 5
        %v1361 = vsel %vm1179, %v1356, %v1360
        %v1362 = vshrl.u32 %v1175, 16
        %v1364 = vrot.slane %v1362, 4
        %v1365 = vor.u32 %v1364, %v1360
        %v1366 = vrot.slane %v1365, 4
        %v1368 = vshll.u32 %v1176, 16
        %v1370 = vrot.slane %v1368, 5
        %v1371 = vsel %vm1179, %v1366, %v1370
        %s1372 = scalar_lea.vmem [#allocation2], 192
        %v1373 = vld [vmem:[%s1372] sm:$0xf]
        %v1374 = vld [vmem:[%s1372 + $0x4] sm:$0xf]
        %v1375 = vld [vmem:[%s1372 + $0x8] sm:$0xf]
        %v1376 = vld [vmem:[%s1372 + $0xc] sm:$0xf]
        %v1377 = vld [vmem:[%s1372 + $0x10] sm:$0xf]
        %v1378 = vld [vmem:[%s1372 + $0x14] sm:$0xf]
        %v1379 = vld [vmem:[%s1372 + $0x18] sm:$0xf]
        %v1380 = vld [vmem:[%s1372 + $0x1c] sm:$0xf]
        %v1381 = vld [vmem:[%s1372 + $0x20] sm:$0xf]
        %v1382 = vld [vmem:[%s1372 + $0x24] sm:$0xf]
        %v1383 = vld [vmem:[%s1372 + $0x28] sm:$0xf]
        %v1384 = vld [vmem:[%s1372 + $0x2c] sm:$0xf]
        %v1385 = vld [vmem:[%s1372 + $0x30] sm:$0xf]
        %v1386 = vld [vmem:[%s1372 + $0x34] sm:$0xf]
        %v1387 = vld [vmem:[%s1372 + $0x38] sm:$0xf]
        %v1388 = vld [vmem:[%s1372 + $0x3c] sm:$0xf]
        %v1389 = vunpack.c.l.b16 %v1193
        %v1390 = vunpack.c.l.b16 %v1203
        %v1391 = vunpack.c.l.b16 %v1217
        %v1392 = vunpack.c.l.b16 %v1227
        %v1393 = vunpack.c.l.b16 %v1241
        %v1394 = vunpack.c.l.b16 %v1251
        %v1395 = vunpack.c.l.b16 %v1265
        %v1396 = vunpack.c.l.b16 %v1275
        %v1397 = vunpack.c.l.b16 %v1289
        %v1398 = vunpack.c.l.b16 %v1299
        %v1399 = vunpack.c.l.b16 %v1313
        %v1400 = vunpack.c.l.b16 %v1323
        %v1401 = vunpack.c.l.b16 %v1337
        %v1402 = vunpack.c.l.b16 %v1347
        %v1403 = vunpack.c.l.b16 %v1361
        %v1404 = vunpack.c.l.b16 %v1371
        %v1405 = vpack.c.b16 %v1390, %v1389
        %v1406 = vpack.c.b16 %v1392, %v1391
        %v1407 = vpack.c.b16 %v1394, %v1393
        %v1408 = vpack.c.b16 %v1396, %v1395
        %v1409 = vpack.c.b16 %v1398, %v1397
        %v1410 = vpack.c.b16 %v1400, %v1399
        %v1411 = vpack.c.b16 %v1402, %v1401
        %v1412 = vpack.c.b16 %v1404, %v1403
        %v1437 = vunpack.c.l.b16 %v1373
        %v1438 = vunpack.c.l.b16 %v1374
        %v1439 = vunpack.c.l.b16 %v1375
        %v1440 = vunpack.c.l.b16 %v1376
        %v1441 = vunpack.c.l.b16 %v1377
        %v1442 = vunpack.c.l.b16 %v1378
        %v1443 = vunpack.c.l.b16 %v1379
        %v1444 = vunpack.c.l.b16 %v1380
        %v1445 = vunpack.c.l.b16 %v1381
        %v1446 = vunpack.c.l.b16 %v1382
        %v1447 = vunpack.c.l.b16 %v1383
        %v1448 = vunpack.c.l.b16 %v1384
        %v1449 = vunpack.c.l.b16 %v1385
        %v1450 = vunpack.c.l.b16 %v1386
        %v1451 = vunpack.c.l.b16 %v1387
        %v1452 = vunpack.c.l.b16 %v1388
        %v1453 = vpack.c.b16 %v1438, %v1437
        %v1454 = vpack.c.b16 %v1440, %v1439
        %v1455 = vpack.c.b16 %v1442, %v1441
        %v1456 = vpack.c.b16 %v1444, %v1443
        %v1457 = vpack.c.b16 %v1446, %v1445
        %v1458 = vpack.c.b16 %v1448, %v1447
        %v1459 = vpack.c.b16 %v1450, %v1449
        %v1460 = vpack.c.b16 %v1452, %v1451
        %1469 = vmatprep.subr.bf16.mxu0 0
        %1470 = vmatpush1.bf16.msra.mxu0 %v1453
        %1471 = vmatprep.subr.bf16.mxu0 0
        %1472 = vmatpush1.bf16.msra.mxu0 %v1454
        %1473 = vmatprep.subr.bf16.mxu0 0
        %1474 = vmatpush1.bf16.msra.mxu0 %v1455
        %1475 = vmatprep.subr.bf16.mxu0 0
        %1476 = vmatpush1.bf16.msra.mxu0 %v1456
        %1477 = vmatprep.subr.bf16.mxu0 0
        %1478 = vmatpush1.bf16.msra.mxu0 %v1457
        %1479 = vmatprep.subr.bf16.mxu0 0
        %1480 = vmatpush1.bf16.msra.mxu0 %v1458
        %1481 = vmatprep.subr.bf16.mxu0 0
        %1482 = vmatpush1.bf16.msra.mxu0 %v1459
        %1483 = vmatprep.subr.bf16.mxu0 0
        %1484 = vmatpush1.bf16.msra.mxu0 %v1460
        %1485 = vmatprep.subr.bf16.mxu0 0
        %1486 = vmatpush1.bf16.msra.mxu0 0
        %1487 = vmatprep.subr.bf16.mxu0 0
        %1488 = vmatpush1.bf16.msra.mxu0 0
        %1489 = vmatprep.subr.bf16.mxu0 0
        %1490 = vmatpush1.bf16.msra.mxu0 0
        %1491 = vmatprep.subr.bf16.mxu0 0
        %1492 = vmatpush1.bf16.msra.mxu0 0
        %1493 = vmatprep.subr.bf16.mxu0 0
        %1494 = vmatpush1.bf16.msra.mxu0 0
        %1495 = vmatprep.subr.bf16.mxu0 0
        %1496 = vmatpush1.bf16.msra.mxu0 0
        %1497 = vmatprep.subr.bf16.mxu0 0
        %1498 = vmatpush1.bf16.msra.mxu0 0
        %1499 = vmatprep.subr.bf16.mxu0 0
        %1500 = vmatpush1.bf16.msra.mxu0 0
        %1501 = vmatprep.mubr.bf16.mxu0 0
        %1502 = vmatmul.mubr.bf16.gmra.mrb[0].mxu0 %v1405
        %v1503 = vpop.f32.mrb[0].mxu0
        %v1504 = vadd.f32 0.0, %v1503
        %v1505 = vpop.f32.mrb[0].mxu0
        %v1506 = vpop.f32.mrb[0].mxu0
        %v1507 = vadd.f32 0.0, %v1506
        %v1508 = vpop.f32.mrb[0].mxu0
        %1509 = vmatprep.mubr.bf16.mxu0 0
        %1510 = vmatmul.mubr.bf16.gmra.mrb[0].mxu0 %v1406
        %v1511 = vpop.f32.mrb[0].mxu0
        %v1512 = vadd.f32 0.0, %v1511
        %v1513 = vpop.f32.mrb[0].mxu0
        %v1514 = vpop.f32.mrb[0].mxu0
        %v1515 = vadd.f32 0.0, %v1514
        %v1516 = vpop.f32.mrb[0].mxu0
        %1517 = vmatprep.mubr.bf16.mxu0 0
        %1518 = vmatmul.mubr.bf16.gmra.mrb[0].mxu0 %v1407
        %v1519 = vpop.f32.mrb[0].mxu0
        %v1520 = vadd.f32 0.0, %v1519
        %v1521 = vpop.f32.mrb[0].mxu0
        %v1522 = vpop.f32.mrb[0].mxu0
        %v1523 = vadd.f32 0.0, %v1522
        %v1524 = vpop.f32.mrb[0].mxu0
        %1525 = vmatprep.mubr.bf16.mxu0 0
        %1526 = vmatmul.mubr.bf16.gmra.mrb[0].mxu0 %v1408
        %v1527 = vpop.f32.mrb[0].mxu0
        %v1528 = vadd.f32 0.0, %v1527
        %v1529 = vpop.f32.mrb[0].mxu0
        %v1530 = vpop.f32.mrb[0].mxu0
        %v1531 = vadd.f32 0.0, %v1530
        %v1532 = vpop.f32.mrb[0].mxu0
        %1533 = vmatprep.mubr.bf16.mxu0 0
        %1534 = vmatmul.mubr.bf16.gmra.mrb[0].mxu0 %v1409
        %v1535 = vpop.f32.mrb[0].mxu0
        %v1536 = vadd.f32 0.0, %v1535
        %v1537 = vpop.f32.mrb[0].mxu0
        %v1538 = vpop.f32.mrb[0].mxu0
        %v1539 = vadd.f32 0.0, %v1538
        %v1540 = vpop.f32.mrb[0].mxu0
        %1541 = vmatprep.mubr.bf16.mxu0 0
        %1542 = vmatmul.mubr.bf16.gmra.mrb[0].mxu0 %v1410
        %v1543 = vpop.f32.mrb[0].mxu0
        %v1544 = vadd.f32 0.0, %v1543
        %v1545 = vpop.f32.mrb[0].mxu0
        %v1546 = vpop.f32.mrb[0].mxu0
        %v1547 = vadd.f32 0.0, %v1546
        %v1548 = vpop.f32.mrb[0].mxu0
        %1549 = vmatprep.mubr.bf16.mxu0 0
        %1550 = vmatmul.mubr.bf16.gmra.mrb[0].mxu0 %v1411
        %v1551 = vpop.f32.mrb[0].mxu0
        %v1552 = vadd.f32 0.0, %v1551
        %v1553 = vpop.f32.mrb[0].mxu0
        %v1554 = vpop.f32.mrb[0].mxu0
        %v1555 = vadd.f32 0.0, %v1554
        %v1556 = vpop.f32.mrb[0].mxu0
        %1557 = vmatprep.mubr.bf16.mxu0 0
        %1558 = vmatmul.mubr.bf16.gmra.mrb[0].mxu0 %v1412
        %v1559 = vpop.f32.mrb[0].mxu0
        %v1560 = vadd.f32 0.0, %v1559
        %v1561 = vpop.f32.mrb[0].mxu0
        %v1562 = vpop.f32.mrb[0].mxu0
        %v1563 = vadd.f32 0.0, %v1562
        %v1564 = vpop.f32.mrb[0].mxu0
        %1565 = vdwg.mxu0
        %v1566 = vadd.f32 %v1133, %v1504
        %v1567 = vadd.f32 %v1134, %v1507
        %v1568 = vadd.f32 %v1135, %v1512
        %v1569 = vadd.f32 %v1136, %v1515
        %v1570 = vadd.f32 %v1137, %v1520
        %v1571 = vadd.f32 %v1138, %v1523
        %v1572 = vadd.f32 %v1139, %v1528
        %v1573 = vadd.f32 %v1140, %v1531
        %v1574 = vadd.f32 %v1141, %v1536
        %v1575 = vadd.f32 %v1142, %v1539
        %v1576 = vadd.f32 %v1143, %v1544
        %v1577 = vadd.f32 %v1144, %v1547
        %v1578 = vadd.f32 %v1145, %v1552
        %v1579 = vadd.f32 %v1146, %v1555
        %v1580 = vadd.f32 %v1147, %v1560
        %v1581 = vadd.f32 %v1148, %v1563
        %v1582 = vrot.slane %v1181, 5
        %v1583 = vrot.slane %v1184, 6
        %v1584 = vor.u32 %v1582, %v1583
        %v1585 = vrot.slane %v1584, 4
        %v1586 = vrot.slane %v1194, 5
        %v1587 = vrot.slane %v1190, 6
        %v1588 = vor.u32 %v1586, %v1587
        %v1589 = vsel %vm260, %v1585, %v1588
        %v1590 = vrot.slane %v1588, 4
        %v1591 = vshrl.u32 %v1155, 16
        %v1593 = vrot.slane %v1591, 5
        %v1594 = vrot.slane %v1200, 6
        %v1595 = vor.u32 %v1593, %v1594
        %v1596 = vsel %vm260, %v1590, %v1595
        %v1597 = vrot.slane %v1205, 5
        %v1598 = vrot.slane %v1208, 6
        %v1599 = vor.u32 %v1597, %v1598
        %v1600 = vrot.slane %v1599, 4
        %v1601 = vrot.slane %v1218, 5
        %v1602 = vrot.slane %v1214, 6
        %v1603 = vor.u32 %v1601, %v1602
        %v1604 = vsel %vm260, %v1600, %v1603
        %v1605 = vrot.slane %v1603, 4
        %v1606 = vshrl.u32 %v1158, 16
        %v1608 = vrot.slane %v1606, 5
        %v1609 = vrot.slane %v1224, 6
        %v1610 = vor.u32 %v1608, %v1609
        %v1611 = vsel %vm260, %v1605, %v1610
        %v1612 = vrot.slane %v1229, 5
        %v1613 = vrot.slane %v1232, 6
        %v1614 = vor.u32 %v1612, %v1613
        %v1615 = vrot.slane %v1614, 4
        %v1616 = vrot.slane %v1242, 5
        %v1617 = vrot.slane %v1238, 6
        %v1618 = vor.u32 %v1616, %v1617
        %v1619 = vsel %vm260, %v1615, %v1618
        %v1620 = vrot.slane %v1618, 4
        %v1621 = vshrl.u32 %v1161, 16
        %v1623 = vrot.slane %v1621, 5
        %v1624 = vrot.slane %v1248, 6
        %v1625 = vor.u32 %v1623, %v1624
        %v1626 = vsel %vm260, %v1620, %v1625
        %v1627 = vrot.slane %v1253, 5
        %v1628 = vrot.slane %v1256, 6
        %v1629 = vor.u32 %v1627, %v1628
        %v1630 = vrot.slane %v1629, 4
        %v1631 = vrot.slane %v1266, 5
        %v1632 = vrot.slane %v1262, 6
        %v1633 = vor.u32 %v1631, %v1632
        %v1634 = vsel %vm260, %v1630, %v1633
        %v1635 = vrot.slane %v1633, 4
        %v1636 = vshrl.u32 %v1164, 16
        %v1638 = vrot.slane %v1636, 5
        %v1639 = vrot.slane %v1272, 6
        %v1640 = vor.u32 %v1638, %v1639
        %v1641 = vsel %vm260, %v1635, %v1640
        %v1642 = vrot.slane %v1277, 5
        %v1643 = vrot.slane %v1280, 6
        %v1644 = vor.u32 %v1642, %v1643
        %v1645 = vrot.slane %v1644, 4
        %v1646 = vrot.slane %v1290, 5
        %v1647 = vrot.slane %v1286, 6
        %v1648 = vor.u32 %v1646, %v1647
        %v1649 = vsel %vm260, %v1645, %v1648
        %v1650 = vrot.slane %v1648, 4
        %v1651 = vshrl.u32 %v1167, 16
        %v1653 = vrot.slane %v1651, 5
        %v1654 = vrot.slane %v1296, 6
        %v1655 = vor.u32 %v1653, %v1654
        %v1656 = vsel %vm260, %v1650, %v1655
        %v1657 = vrot.slane %v1301, 5
        %v1658 = vrot.slane %v1304, 6
        %v1659 = vor.u32 %v1657, %v1658
        %v1660 = vrot.slane %v1659, 4
        %v1661 = vrot.slane %v1314, 5
        %v1662 = vrot.slane %v1310, 6
        %v1663 = vor.u32 %v1661, %v1662
        %v1664 = vsel %vm260, %v1660, %v1663
        %v1665 = vrot.slane %v1663, 4
        %v1666 = vshrl.u32 %v1170, 16
        %v1668 = vrot.slane %v1666, 5
        %v1669 = vrot.slane %v1320, 6
        %v1670 = vor.u32 %v1668, %v1669
        %v1671 = vsel %vm260, %v1665, %v1670
        %v1672 = vrot.slane %v1325, 5
        %v1673 = vrot.slane %v1328, 6
        %v1674 = vor.u32 %v1672, %v1673
        %v1675 = vrot.slane %v1674, 4
        %v1676 = vrot.slane %v1338, 5
        %v1677 = vrot.slane %v1334, 6
        %v1678 = vor.u32 %v1676, %v1677
        %v1679 = vsel %vm260, %v1675, %v1678
        %v1680 = vrot.slane %v1678, 4
        %v1681 = vshrl.u32 %v1173, 16
        %v1683 = vrot.slane %v1681, 5
        %v1684 = vrot.slane %v1344, 6
        %v1685 = vor.u32 %v1683, %v1684
        %v1686 = vsel %vm260, %v1680, %v1685
        %v1687 = vrot.slane %v1349, 5
        %v1688 = vrot.slane %v1352, 6
        %v1689 = vor.u32 %v1687, %v1688
        %v1690 = vrot.slane %v1689, 4
        %v1691 = vrot.slane %v1362, 5
        %v1692 = vrot.slane %v1358, 6
        %v1693 = vor.u32 %v1691, %v1692
        %v1694 = vsel %vm260, %v1690, %v1693
        %v1695 = vrot.slane %v1693, 4
        %v1696 = vshrl.u32 %v1176, 16
        %v1698 = vrot.slane %v1696, 5
        %v1699 = vrot.slane %v1368, 6
        %v1700 = vor.u32 %v1698, %v1699
        %v1701 = vsel %vm260, %v1695, %v1700
        %s1702 = scalar_lea.vmem [#allocation2], 256
        %v1703 = vld [vmem:[%s1702] sm:$0xf]
        %v1704 = vld [vmem:[%s1702 + $0x4] sm:$0xf]
        %v1705 = vld [vmem:[%s1702 + $0x8] sm:$0xf]
        %v1706 = vld [vmem:[%s1702 + $0xc] sm:$0xf]
        %v1707 = vld [vmem:[%s1702 + $0x10] sm:$0xf]
        %v1708 = vld [vmem:[%s1702 + $0x14] sm:$0xf]
        %v1709 = vld [vmem:[%s1702 + $0x18] sm:$0xf]
        %v1710 = vld [vmem:[%s1702 + $0x1c] sm:$0xf]
        %v1711 = vld [vmem:[%s1702 + $0x20] sm:$0xf]
        %v1712 = vld [vmem:[%s1702 + $0x24] sm:$0xf]
        %v1713 = vld [vmem:[%s1702 + $0x28] sm:$0xf]
        %v1714 = vld [vmem:[%s1702 + $0x2c] sm:$0xf]
        %v1715 = vld [vmem:[%s1702 + $0x30] sm:$0xf]
        %v1716 = vld [vmem:[%s1702 + $0x34] sm:$0xf]
        %v1717 = vld [vmem:[%s1702 + $0x38] sm:$0xf]
        %v1718 = vld [vmem:[%s1702 + $0x3c] sm:$0xf]
        %v1719 = vunpack.c.l.b16 %v1589
        %v1720 = vunpack.c.l.b16 %v1596
        %v1721 = vunpack.c.l.b16 %v1604
        %v1722 = vunpack.c.l.b16 %v1611
        %v1723 = vunpack.c.l.b16 %v1619
        %v1724 = vunpack.c.l.b16 %v1626
        %v1725 = vunpack.c.l.b16 %v1634
        %v1726 = vunpack.c.l.b16 %v1641
        %v1727 = vunpack.c.l.b16 %v1649
        %v1728 = vunpack.c.l.b16 %v1656
        %v1729 = vunpack.c.l.b16 %v1664
        %v1730 = vunpack.c.l.b16 %v1671
        %v1731 = vunpack.c.l.b16 %v1679
        %v1732 = vunpack.c.l.b16 %v1686
        %v1733 = vunpack.c.l.b16 %v1694
        %v1734 = vunpack.c.l.b16 %v1701
        %v1735 = vpack.c.b16 %v1720, %v1719
        %v1736 = vpack.c.b16 %v1722, %v1721
        %v1737 = vpack.c.b16 %v1724, %v1723
        %v1738 = vpack.c.b16 %v1726, %v1725
        %v1739 = vpack.c.b16 %v1728, %v1727
        %v1740 = vpack.c.b16 %v1730, %v1729
        %v1741 = vpack.c.b16 %v1732, %v1731
        %v1742 = vpack.c.b16 %v1734, %v1733
        %v1767 = vunpack.c.l.b16 %v1703
        %v1768 = vunpack.c.l.b16 %v1704
        %v1769 = vunpack.c.l.b16 %v1705
        %v1770 = vunpack.c.l.b16 %v1706
        %v1771 = vunpack.c.l.b16 %v1707
        %v1772 = vunpack.c.l.b16 %v1708
        %v1773 = vunpack.c.l.b16 %v1709
        %v1774 = vunpack.c.l.b16 %v1710
        %v1775 = vunpack.c.l.b16 %v1711
        %v1776 = vunpack.c.l.b16 %v1712
        %v1777 = vunpack.c.l.b16 %v1713
        %v1778 = vunpack.c.l.b16 %v1714
        %v1779 = vunpack.c.l.b16 %v1715
        %v1780 = vunpack.c.l.b16 %v1716
        %v1781 = vunpack.c.l.b16 %v1717
        %v1782 = vunpack.c.l.b16 %v1718
        %v1783 = vpack.c.b16 %v1768, %v1767
        %v1784 = vpack.c.b16 %v1770, %v1769
        %v1785 = vpack.c.b16 %v1772, %v1771
        %v1786 = vpack.c.b16 %v1774, %v1773
        %v1787 = vpack.c.b16 %v1776, %v1775
        %v1788 = vpack.c.b16 %v1778, %v1777
        %v1789 = vpack.c.b16 %v1780, %v1779
        %v1790 = vpack.c.b16 %v1782, %v1781
        %1799 = vmatprep.subr.bf16.mxu0 0
        %1800 = vmatpush1.bf16.msra.mxu0 %v1783
        %1801 = vmatprep.subr.bf16.mxu0 0
        %1802 = vmatpush1.bf16.msra.mxu0 %v1784
        %1803 = vmatprep.subr.bf16.mxu0 0
        %1804 = vmatpush1.bf16.msra.mxu0 %v1785
        %1805 = vmatprep.subr.bf16.mxu0 0
        %1806 = vmatpush1.bf16.msra.mxu0 %v1786
        %1807 = vmatprep.subr.bf16.mxu0 0
        %1808 = vmatpush1.bf16.msra.mxu0 %v1787
        %1809 = vmatprep.subr.bf16.mxu0 0
        %1810 = vmatpush1.bf16.msra.mxu0 %v1788
        %1811 = vmatprep.subr.bf16.mxu0 0
        %1812 = vmatpush1.bf16.msra.mxu0 %v1789
        %1813 = vmatprep.subr.bf16.mxu0 0
        %1814 = vmatpush1.bf16.msra.mxu0 %v1790
        %1815 = vmatprep.subr.bf16.mxu0 0
        %1816 = vmatpush1.bf16.msra.mxu0 0
        %1817 = vmatprep.subr.bf16.mxu0 0
        %1818 = vmatpush1.bf16.msra.mxu0 0
        %1819 = vmatprep.subr.bf16.mxu0 0
        %1820 = vmatpush1.bf16.msra.mxu0 0
        %1821 = vmatprep.subr.bf16.mxu0 0
        %1822 = vmatpush1.bf16.msra.mxu0 0
        %1823 = vmatprep.subr.bf16.mxu0 0
        %1824 = vmatpush1.bf16.msra.mxu0 0
        %1825 = vmatprep.subr.bf16.mxu0 0
        %1826 = vmatpush1.bf16.msra.mxu0 0
        %1827 = vmatprep.subr.bf16.mxu0 0
        %1828 = vmatpush1.bf16.msra.mxu0 0
        %1829 = vmatprep.subr.bf16.mxu0 0
        %1830 = vmatpush1.bf16.msra.mxu0 0
        %1831 = vmatprep.mubr.bf16.mxu0 0
        %1832 = vmatmul.mubr.bf16.gmra.mrb[0].mxu0 %v1735
        %v1833 = vpop.f32.mrb[0].mxu0
        %v1834 = vadd.f32 0.0, %v1833
        %v1835 = vpop.f32.mrb[0].mxu0
        %v1836 = vpop.f32.mrb[0].mxu0
        %v1837 = vadd.f32 0.0, %v1836
        %v1838 = vpop.f32.mrb[0].mxu0
        %1839 = vmatprep.mubr.bf16.mxu0 0
        %1840 = vmatmul.mubr.bf16.gmra.mrb[0].mxu0 %v1736
        %v1841 = vpop.f32.mrb[0].mxu0
        %v1842 = vadd.f32 0.0, %v1841
        %v1843 = vpop.f32.mrb[0].mxu0
        %v1844 = vpop.f32.mrb[0].mxu0
        %v1845 = vadd.f32 0.0, %v1844
        %v1846 = vpop.f32.mrb[0].mxu0
        %1847 = vmatprep.mubr.bf16.mxu0 0
        %1848 = vmatmul.mubr.bf16.gmra.mrb[0].mxu0 %v1737
        %v1849 = vpop.f32.mrb[0].mxu0
        %v1850 = vadd.f32 0.0, %v1849
        %v1851 = vpop.f32.mrb[0].mxu0
        %v1852 = vpop.f32.mrb[0].mxu0
        %v1853 = vadd.f32 0.0, %v1852
        %v1854 = vpop.f32.mrb[0].mxu0
        %1855 = vmatprep.mubr.bf16.mxu0 0
        %1856 = vmatmul.mubr.bf16.gmra.mrb[0].mxu0 %v1738
        %v1857 = vpop.f32.mrb[0].mxu0
        %v1858 = vadd.f32 0.0, %v1857
        %v1859 = vpop.f32.mrb[0].mxu0
        %v1860 = vpop.f32.mrb[0].mxu0
        %v1861 = vadd.f32 0.0, %v1860
        %v1862 = vpop.f32.mrb[0].mxu0
        %1863 = vmatprep.mubr.bf16.mxu0 0
        %1864 = vmatmul.mubr.bf16.gmra.mrb[0].mxu0 %v1739
        %v1865 = vpop.f32.mrb[0].mxu0
        %v1866 = vadd.f32 0.0, %v1865
        %v1867 = vpop.f32.mrb[0].mxu0
        %v1868 = vpop.f32.mrb[0].mxu0
        %v1869 = vadd.f32 0.0, %v1868
        %v1870 = vpop.f32.mrb[0].mxu0
        %1871 = vmatprep.mubr.bf16.mxu0 0
        %1872 = vmatmul.mubr.bf16.gmra.mrb[0].mxu0 %v1740
        %v1873 = vpop.f32.mrb[0].mxu0
        %v1874 = vadd.f32 0.0, %v1873
        %v1875 = vpop.f32.mrb[0].mxu0
        %v1876 = vpop.f32.mrb[0].mxu0
        %v1877 = vadd.f32 0.0, %v1876
        %v1878 = vpop.f32.mrb[0].mxu0
        %1879 = vmatprep.mubr.bf16.mxu0 0
        %1880 = vmatmul.mubr.bf16.gmra.mrb[0].mxu0 %v1741
        %v1881 = vpop.f32.mrb[0].mxu0
        %v1882 = vadd.f32 0.0, %v1881
        %v1883 = vpop.f32.mrb[0].mxu0
        %v1884 = vpop.f32.mrb[0].mxu0
        %v1885 = vadd.f32 0.0, %v1884
        %v1886 = vpop.f32.mrb[0].mxu0
        %1887 = vmatprep.mubr.bf16.mxu0 0
        %1888 = vmatmul.mubr.bf16.gmra.mrb[0].mxu0 %v1742
        %v1889 = vpop.f32.mrb[0].mxu0
        %v1890 = vadd.f32 0.0, %v1889
        %v1891 = vpop.f32.mrb[0].mxu0
        %v1892 = vpop.f32.mrb[0].mxu0
        %v1893 = vadd.f32 0.0, %v1892
        %v1894 = vpop.f32.mrb[0].mxu0
        %1895 = vdwg.mxu0
        %v1896 = vadd.f32 %v1566, %v1834
        %v1897 = vadd.f32 %v1567, %v1837
        %v1898 = vadd.f32 %v1568, %v1842
        %v1899 = vadd.f32 %v1569, %v1845
        %v1900 = vadd.f32 %v1570, %v1850
        %v1901 = vadd.f32 %v1571, %v1853
        %v1902 = vadd.f32 %v1572, %v1858
        %v1903 = vadd.f32 %v1573, %v1861
        %v1904 = vadd.f32 %v1574, %v1866
        %v1905 = vadd.f32 %v1575, %v1869
        %v1906 = vadd.f32 %v1576, %v1874
        %v1907 = vadd.f32 %v1577, %v1877
        %v1908 = vadd.f32 %v1578, %v1882
        %v1909 = vadd.f32 %v1579, %v1885
        %v1910 = vadd.f32 %v1580, %v1890
        %v1911 = vadd.f32 %v1581, %v1893
        %vm1912 = vsmask.f32 1280
        %vm1913 = vsmask.f32 5392
        %vm1914 = vmor %vm1912, %vm1913
        %v1915 = vrot.slane %v1181, 6
        %v1916 = vrot.slane %v1184, 7
        %v1917 = vor.u32 %v1915, %v1916
        %v1918 = vrot.slane %v1917, 4
        %v1919 = vrot.slane %v1194, 6
        %v1920 = vrot.slane %v1190, 7
        %v1921 = vor.u32 %v1919, %v1920
        %v1922 = vsel %vm1914, %v1918, %v1921
        %v1923 = vrot.slane %v1921, 4
        %v1924 = vrot.slane %v1591, 6
        %v1925 = vrot.slane %v1200, 7
        %v1926 = vor.u32 %v1924, %v1925
        %v1927 = vsel %vm1914, %v1923, %v1926
        %v1928 = vrot.slane %v1205, 6
        %v1929 = vrot.slane %v1208, 7
        %v1930 = vor.u32 %v1928, %v1929
        %v1931 = vrot.slane %v1930, 4
        %v1932 = vrot.slane %v1218, 6
        %v1933 = vrot.slane %v1214, 7
        %v1934 = vor.u32 %v1932, %v1933
        %v1935 = vsel %vm1914, %v1931, %v1934
        %v1936 = vrot.slane %v1934, 4
        %v1937 = vrot.slane %v1606, 6
        %v1938 = vrot.slane %v1224, 7
        %v1939 = vor.u32 %v1937, %v1938
        %v1940 = vsel %vm1914, %v1936, %v1939
        %v1941 = vrot.slane %v1229, 6
        %v1942 = vrot.slane %v1232, 7
        %v1943 = vor.u32 %v1941, %v1942
        %v1944 = vrot.slane %v1943, 4
        %v1945 = vrot.slane %v1242, 6
        %v1946 = vrot.slane %v1238, 7
        %v1947 = vor.u32 %v1945, %v1946
        %v1948 = vsel %vm1914, %v1944, %v1947
        %v1949 = vrot.slane %v1947, 4
        %v1950 = vrot.slane %v1621, 6
        %v1951 = vrot.slane %v1248, 7
        %v1952 = vor.u32 %v1950, %v1951
        %v1953 = vsel %vm1914, %v1949, %v1952
        %v1954 = vrot.slane %v1253, 6
        %v1955 = vrot.slane %v1256, 7
        %v1956 = vor.u32 %v1954, %v1955
        %v1957 = vrot.slane %v1956, 4
        %v1958 = vrot.slane %v1266, 6
        %v1959 = vrot.slane %v1262, 7
        %v1960 = vor.u32 %v1958, %v1959
        %v1961 = vsel %vm1914, %v1957, %v1960
        %v1962 = vrot.slane %v1960, 4
        %v1963 = vrot.slane %v1636, 6
        %v1964 = vrot.slane %v1272, 7
        %v1965 = vor.u32 %v1963, %v1964
        %v1966 = vsel %vm1914, %v1962, %v1965
        %v1967 = vrot.slane %v1277, 6
        %v1968 = vrot.slane %v1280, 7
        %v1969 = vor.u32 %v1967, %v1968
        %v1970 = vrot.slane %v1969, 4
        %v1971 = vrot.slane %v1290, 6
        %v1972 = vrot.slane %v1286, 7
        %v1973 = vor.u32 %v1971, %v1972
        %v1974 = vsel %vm1914, %v1970, %v1973
        %v1975 = vrot.slane %v1973, 4
        %v1976 = vrot.slane %v1651, 6
        %v1977 = vrot.slane %v1296, 7
        %v1978 = vor.u32 %v1976, %v1977
        %v1979 = vsel %vm1914, %v1975, %v1978
        %v1980 = vrot.slane %v1301, 6
        %v1981 = vrot.slane %v1304, 7
        %v1982 = vor.u32 %v1980, %v1981
        %v1983 = vrot.slane %v1982, 4
        %v1984 = vrot.slane %v1314, 6
        %v1985 = vrot.slane %v1310, 7
        %v1986 = vor.u32 %v1984, %v1985
        %v1987 = vsel %vm1914, %v1983, %v1986
        %v1988 = vrot.slane %v1986, 4
        %v1989 = vrot.slane %v1666, 6
        %v1990 = vrot.slane %v1320, 7
        %v1991 = vor.u32 %v1989, %v1990
        %v1992 = vsel %vm1914, %v1988, %v1991
        %v1993 = vrot.slane %v1325, 6
        %v1994 = vrot.slane %v1328, 7
        %v1995 = vor.u32 %v1993, %v1994
        %v1996 = vrot.slane %v1995, 4
        %v1997 = vrot.slane %v1338, 6
        %v1998 = vrot.slane %v1334, 7
        %v1999 = vor.u32 %v1997, %v1998
        %v2000 = vsel %vm1914, %v1996, %v1999
        %v2001 = vrot.slane %v1999, 4
        %v2002 = vrot.slane %v1681, 6
        %v2003 = vrot.slane %v1344, 7
        %v2004 = vor.u32 %v2002, %v2003
        %v2005 = vsel %vm1914, %v2001, %v2004
        %v2006 = vrot.slane %v1349, 6
        %v2007 = vrot.slane %v1352, 7
        %v2008 = vor.u32 %v2006, %v2007
        %v2009 = vrot.slane %v2008, 4
        %v2010 = vrot.slane %v1362, 6
        %v2011 = vrot.slane %v1358, 7
        %v2012 = vor.u32 %v2010, %v2011
        %v2013 = vsel %vm1914, %v2009, %v2012
        %v2014 = vrot.slane %v2012, 4
        %v2015 = vrot.slane %v1696, 6
        %v2016 = vrot.slane %v1368, 7
        %v2017 = vor.u32 %v2015, %v2016
        %v2018 = vsel %vm1914, %v2014, %v2017
        %s2019 = scalar_lea.vmem [#allocation2], 320
        %v2020 = vld [vmem:[%s2019] sm:$0xf]
        %v2021 = vld [vmem:[%s2019 + $0x4] sm:$0xf]
        %v2022 = vld [vmem:[%s2019 + $0x8] sm:$0xf]
        %v2023 = vld [vmem:[%s2019 + $0xc] sm:$0xf]
        %v2024 = vld [vmem:[%s2019 + $0x10] sm:$0xf]
        %v2025 = vld [vmem:[%s2019 + $0x14] sm:$0xf]
        %v2026 = vld [vmem:[%s2019 + $0x18] sm:$0xf]
        %v2027 = vld [vmem:[%s2019 + $0x1c] sm:$0xf]
        %v2028 = vld [vmem:[%s2019 + $0x20] sm:$0xf]
        %v2029 = vld [vmem:[%s2019 + $0x24] sm:$0xf]
        %v2030 = vld [vmem:[%s2019 + $0x28] sm:$0xf]
        %v2031 = vld [vmem:[%s2019 + $0x2c] sm:$0xf]
        %v2032 = vld [vmem:[%s2019 + $0x30] sm:$0xf]
        %v2033 = vld [vmem:[%s2019 + $0x34] sm:$0xf]
        %v2034 = vld [vmem:[%s2019 + $0x38] sm:$0xf]
        %v2035 = vld [vmem:[%s2019 + $0x3c] sm:$0xf]
        %v2036 = vunpack.c.l.b16 %v1922
        %v2037 = vunpack.c.l.b16 %v1927
        %v2038 = vunpack.c.l.b16 %v1935
        %v2039 = vunpack.c.l.b16 %v1940
        %v2040 = vunpack.c.l.b16 %v1948
        %v2041 = vunpack.c.l.b16 %v1953
        %v2042 = vunpack.c.l.b16 %v1961
        %v2043 = vunpack.c.l.b16 %v1966
        %v2044 = vunpack.c.l.b16 %v1974
        %v2045 = vunpack.c.l.b16 %v1979
        %v2046 = vunpack.c.l.b16 %v1987
        %v2047 = vunpack.c.l.b16 %v1992
        %v2048 = vunpack.c.l.b16 %v2000
        %v2049 = vunpack.c.l.b16 %v2005
        %v2050 = vunpack.c.l.b16 %v2013
        %v2051 = vunpack.c.l.b16 %v2018
        %v2052 = vpack.c.b16 %v2037, %v2036
        %v2053 = vpack.c.b16 %v2039, %v2038
        %v2054 = vpack.c.b16 %v2041, %v2040
        %v2055 = vpack.c.b16 %v2043, %v2042
        %v2056 = vpack.c.b16 %v2045, %v2044
        %v2057 = vpack.c.b16 %v2047, %v2046
        %v2058 = vpack.c.b16 %v2049, %v2048
        %v2059 = vpack.c.b16 %v2051, %v2050
        %v2084 = vunpack.c.l.b16 %v2020
        %v2085 = vunpack.c.l.b16 %v2021
        %v2086 = vunpack.c.l.b16 %v2022
        %v2087 = vunpack.c.l.b16 %v2023
        %v2088 = vunpack.c.l.b16 %v2024
        %v2089 = vunpack.c.l.b16 %v2025
        %v2090 = vunpack.c.l.b16 %v2026
        %v2091 = vunpack.c.l.b16 %v2027
        %v2092 = vunpack.c.l.b16 %v2028
        %v2093 = vunpack.c.l.b16 %v2029
        %v2094 = vunpack.c.l.b16 %v2030
        %v2095 = vunpack.c.l.b16 %v2031
        %v2096 = vunpack.c.l.b16 %v2032
        %v2097 = vunpack.c.l.b16 %v2033
        %v2098 = vunpack.c.l.b16 %v2034
        %v2099 = vunpack.c.l.b16 %v2035
        %v2100 = vpack.c.b16 %v2085, %v2084
        %v2101 = vpack.c.b16 %v2087, %v2086
        %v2102 = vpack.c.b16 %v2089, %v2088
        %v2103 = vpack.c.b16 %v2091, %v2090
        %v2104 = vpack.c.b16 %v2093, %v2092
        %v2105 = vpack.c.b16 %v2095, %v2094
        %v2106 = vpack.c.b16 %v2097, %v2096
        %v2107 = vpack.c.b16 %v2099, %v2098
        %2116 = vmatprep.subr.bf16.mxu0 0
        %2117 = vmatpush1.bf16.msra.mxu0 %v2100
        %2118 = vmatprep.subr.bf16.mxu0 0
        %2119 = vmatpush1.bf16.msra.mxu0 %v2101
        %2120 = vmatprep.subr.bf16.mxu0 0
        %2121 = vmatpush1.bf16.msra.mxu0 %v2102
        %2122 = vmatprep.subr.bf16.mxu0 0
        %2123 = vmatpush1.bf16.msra.mxu0 %v2103
        %2124 = vmatprep.subr.bf16.mxu0 0
        %2125 = vmatpush1.bf16.msra.mxu0 %v2104
        %2126 = vmatprep.subr.bf16.mxu0 0
        %2127 = vmatpush1.bf16.msra.mxu0 %v2105
        %2128 = vmatprep.subr.bf16.mxu0 0
        %2129 = vmatpush1.bf16.msra.mxu0 %v2106
        %2130 = vmatprep.subr.bf16.mxu0 0
        %2131 = vmatpush1.bf16.msra.mxu0 %v2107
        %2132 = vmatprep.subr.bf16.mxu0 0
        %2133 = vmatpush1.bf16.msra.mxu0 0
        %2134 = vmatprep.subr.bf16.mxu0 0
        %2135 = vmatpush1.bf16.msra.mxu0 0
        %2136 = vmatprep.subr.bf16.mxu0 0
        %2137 = vmatpush1.bf16.msra.mxu0 0
        %2138 = vmatprep.subr.bf16.mxu0 0
        %2139 = vmatpush1.bf16.msra.mxu0 0
        %2140 = vmatprep.subr.bf16.mxu0 0
        %2141 = vmatpush1.bf16.msra.mxu0 0
        %2142 = vmatprep.subr.bf16.mxu0 0
        %2143 = vmatpush1.bf16.msra.mxu0 0
        %2144 = vmatprep.subr.bf16.mxu0 0
        %2145 = vmatpush1.bf16.msra.mxu0 0
        %2146 = vmatprep.subr.bf16.mxu0 0
        %2147 = vmatpush1.bf16.msra.mxu0 0
        %2148 = vmatprep.mubr.bf16.mxu0 0
        %2149 = vmatmul.mubr.bf16.gmra.mrb[0].mxu0 %v2052
        %v2150 = vpop.f32.mrb[0].mxu0
        %v2151 = vadd.f32 0.0, %v2150
        %v2152 = vpop.f32.mrb[0].mxu0
        %v2153 = vpop.f32.mrb[0].mxu0
        %v2154 = vadd.f32 0.0, %v2153
        %v2155 = vpop.f32.mrb[0].mxu0
        %2156 = vmatprep.mubr.bf16.mxu0 0
        %2157 = vmatmul.mubr.bf16.gmra.mrb[0].mxu0 %v2053
        %v2158 = vpop.f32.mrb[0].mxu0
        %v2159 = vadd.f32 0.0, %v2158
        %v2160 = vpop.f32.mrb[0].mxu0
        %v2161 = vpop.f32.mrb[0].mxu0
        %v2162 = vadd.f32 0.0, %v2161
        %v2163 = vpop.f32.mrb[0].mxu0
        %2164 = vmatprep.mubr.bf16.mxu0 0
        %2165 = vmatmul.mubr.bf16.gmra.mrb[0].mxu0 %v2054
        %v2166 = vpop.f32.mrb[0].mxu0
        %v2167 = vadd.f32 0.0, %v2166
        %v2168 = vpop.f32.mrb[0].mxu0
        %v2169 = vpop.f32.mrb[0].mxu0
        %v2170 = vadd.f32 0.0, %v2169
        %v2171 = vpop.f32.mrb[0].mxu0
        %2172 = vmatprep.mubr.bf16.mxu0 0
        %2173 = vmatmul.mubr.bf16.gmra.mrb[0].mxu0 %v2055
        %v2174 = vpop.f32.mrb[0].mxu0
        %v2175 = vadd.f32 0.0, %v2174
        %v2176 = vpop.f32.mrb[0].mxu0
        %v2177 = vpop.f32.mrb[0].mxu0
        %v2178 = vadd.f32 0.0, %v2177
        %v2179 = vpop.f32.mrb[0].mxu0
        %2180 = vmatprep.mubr.bf16.mxu0 0
        %2181 = vmatmul.mubr.bf16.gmra.mrb[0].mxu0 %v2056
        %v2182 = vpop.f32.mrb[0].mxu0
        %v2183 = vadd.f32 0.0, %v2182
        %v2184 = vpop.f32.mrb[0].mxu0
        %v2185 = vpop.f32.mrb[0].mxu0
        %v2186 = vadd.f32 0.0, %v2185
        %v2187 = vpop.f32.mrb[0].mxu0
        %2188 = vmatprep.mubr.bf16.mxu0 0
        %2189 = vmatmul.mubr.bf16.gmra.mrb[0].mxu0 %v2057
        %v2190 = vpop.f32.mrb[0].mxu0
        %v2191 = vadd.f32 0.0, %v2190
        %v2192 = vpop.f32.mrb[0].mxu0
        %v2193 = vpop.f32.mrb[0].mxu0
        %v2194 = vadd.f32 0.0, %v2193
        %v2195 = vpop.f32.mrb[0].mxu0
        %2196 = vmatprep.mubr.bf16.mxu0 0
        %2197 = vmatmul.mubr.bf16.gmra.mrb[0].mxu0 %v2058
        %v2198 = vpop.f32.mrb[0].mxu0
        %v2199 = vadd.f32 0.0, %v2198
        %v2200 = vpop.f32.mrb[0].mxu0
        %v2201 = vpop.f32.mrb[0].mxu0
        %v2202 = vadd.f32 0.0, %v2201
        %v2203 = vpop.f32.mrb[0].mxu0
        %2204 = vmatprep.mubr.bf16.mxu0 0
        %2205 = vmatmul.mubr.bf16.gmra.mrb[0].mxu0 %v2059
        %v2206 = vpop.f32.mrb[0].mxu0
        %v2207 = vadd.f32 0.0, %v2206
        %v2208 = vpop.f32.mrb[0].mxu0
        %v2209 = vpop.f32.mrb[0].mxu0
        %v2210 = vadd.f32 0.0, %v2209
        %v2211 = vpop.f32.mrb[0].mxu0
        %2212 = vdwg.mxu0
        %v2213 = vadd.f32 %v1896, %v2151
        %v2214 = vadd.f32 %v1897, %v2154
        %v2215 = vadd.f32 %v1898, %v2159
        %v2216 = vadd.f32 %v1899, %v2162
        %v2217 = vadd.f32 %v1900, %v2167
        %v2218 = vadd.f32 %v1901, %v2170
        %v2219 = vadd.f32 %v1902, %v2175
        %v2220 = vadd.f32 %v1903, %v2178
        %v2221 = vadd.f32 %v1904, %v2183
        %v2222 = vadd.f32 %v1905, %v2186
        %v2223 = vadd.f32 %v1906, %v2191
        %v2224 = vadd.f32 %v1907, %v2194
        %v2225 = vadd.f32 %v1908, %v2199
        %v2226 = vadd.f32 %v1909, %v2202
        %v2227 = vadd.f32 %v1910, %v2207
        %v2228 = vadd.f32 %v1911, %v2210
        %s2229 = sadd.s32 %s214, 2
        %s2230 = smul.u32 %s2229, 3
        %s2231 = smul.addr %s2230, 4
        %s2232 = scalar_lea.vmem %s208, %s2231
        %v2233 = vld [vmem:[%s2232] sm:$0xf]
        %v2234 = vld [vmem:[%s2232 + $0x4] sm:$0xf]
        %v2235 = vld [vmem:[%s2232 + $0x8] sm:$0x7]
        %v2236 = vld [vmem:[%s2232 + $0xc] sm:$0xf]
        %v2237 = vld [vmem:[%s2232 + $0x10] sm:$0xf]
        %v2238 = vld [vmem:[%s2232 + $0x14] sm:$0x7]
        %v2239 = vld [vmem:[%s2232 + $0x18] sm:$0xf]
        %v2240 = vld [vmem:[%s2232 + $0x1c] sm:$0xf]
        %v2241 = vld [vmem:[%s2232 + $0x20] sm:$0x7]
        %v2242 = vld [vmem:[%s2232 + $0x24] sm:$0xf]
        %v2243 = vld [vmem:[%s2232 + $0x28] sm:$0xf]
        %v2244 = vld [vmem:[%s2232 + $0x2c] sm:$0x7]
        %v2245 = vld [vmem:[%s2232 + $0x30] sm:$0xf]
        %v2246 = vld [vmem:[%s2232 + $0x34] sm:$0xf]
        %v2247 = vld [vmem:[%s2232 + $0x38] sm:$0x7]
        %v2248 = vld [vmem:[%s2232 + $0x3c] sm:$0xf]
        %v2249 = vld [vmem:[%s2232 + $0x40] sm:$0xf]
        %v2250 = vld [vmem:[%s2232 + $0x44] sm:$0x7]
        %v2251 = vld [vmem:[%s2232 + $0x48] sm:$0xf]
        %v2252 = vld [vmem:[%s2232 + $0x4c] sm:$0xf]
        %v2253 = vld [vmem:[%s2232 + $0x50] sm:$0x7]
        %v2254 = vld [vmem:[%s2232 + $0x54] sm:$0xf]
        %v2255 = vld [vmem:[%s2232 + $0x58] sm:$0xf]
        %v2256 = vld [vmem:[%s2232 + $0x5c] sm:$0x7]
        %vm2281 = vcmask 1042432
        %vm2282 = vcmask 1046532
        %vm2283 = vmor %vm2281, %vm2282
        %v2284 = vrot.slane %v2233, 5
        %v2285 = vrot.slane %v2284, 4
        %v2286 = vrot.slane %v2234, 5
        %v2287 = vsel %vm2283, %v2285, %v2286
        %v2288 = vrot.slane %v2286, 4
        %v2289 = vrot.slane %v2235, 5
        %v2290 = vsel %vm2283, %v2288, %v2289
        %v2291 = vrot.slane %v2236, 5
        %v2292 = vrot.slane %v2291, 4
        %v2293 = vrot.slane %v2237, 5
        %v2294 = vsel %vm2283, %v2292, %v2293
        %v2295 = vrot.slane %v2293, 4
        %v2296 = vrot.slane %v2238, 5
        %v2297 = vsel %vm2283, %v2295, %v2296
        %v2298 = vrot.slane %v2239, 5
        %v2299 = vrot.slane %v2298, 4
        %v2300 = vrot.slane %v2240, 5
        %v2301 = vsel %vm2283, %v2299, %v2300
        %v2302 = vrot.slane %v2300, 4
        %v2303 = vrot.slane %v2241, 5
        %v2304 = vsel %vm2283, %v2302, %v2303
        %v2305 = vrot.slane %v2242, 5
        %v2306 = vrot.slane %v2305, 4
        %v2307 = vrot.slane %v2243, 5
        %v2308 = vsel %vm2283, %v2306, %v2307
        %v2309 = vrot.slane %v2307, 4
        %v2310 = vrot.slane %v2244, 5
        %v2311 = vsel %vm2283, %v2309, %v2310
        %v2312 = vrot.slane %v2245, 5
        %v2313 = vrot.slane %v2312, 4
        %v2314 = vrot.slane %v2246, 5
        %v2315 = vsel %vm2283, %v2313, %v2314
        %v2316 = vrot.slane %v2314, 4
        %v2317 = vrot.slane %v2247, 5
        %v2318 = vsel %vm2283, %v2316, %v2317
        %v2319 = vrot.slane %v2248, 5
        %v2320 = vrot.slane %v2319, 4
        %v2321 = vrot.slane %v2249, 5
        %v2322 = vsel %vm2283, %v2320, %v2321
        %v2323 = vrot.slane %v2321, 4
        %v2324 = vrot.slane %v2250, 5
        %v2325 = vsel %vm2283, %v2323, %v2324
        %v2326 = vrot.slane %v2251, 5
        %v2327 = vrot.slane %v2326, 4
        %v2328 = vrot.slane %v2252, 5
        %v2329 = vsel %vm2283, %v2327, %v2328
        %v2330 = vrot.slane %v2328, 4
        %v2331 = vrot.slane %v2253, 5
        %v2332 = vsel %vm2283, %v2330, %v2331
        %v2333 = vrot.slane %v2254, 5
        %v2334 = vrot.slane %v2333, 4
        %v2335 = vrot.slane %v2255, 5
        %v2336 = vsel %vm2283, %v2334, %v2335
        %v2337 = vrot.slane %v2335, 4
        %v2338 = vrot.slane %v2256, 5
        %v2339 = vsel %vm2283, %v2337, %v2338
        %s2340 = scalar_lea.vmem [#allocation2], 384
        %v2341 = vld [vmem:[%s2340] sm:$0xf]
        %v2342 = vld [vmem:[%s2340 + $0x4] sm:$0xf]
        %v2343 = vld [vmem:[%s2340 + $0x8] sm:$0xf]
        %v2344 = vld [vmem:[%s2340 + $0xc] sm:$0xf]
        %v2345 = vld [vmem:[%s2340 + $0x10] sm:$0xf]
        %v2346 = vld [vmem:[%s2340 + $0x14] sm:$0xf]
        %v2347 = vld [vmem:[%s2340 + $0x18] sm:$0xf]
        %v2348 = vld [vmem:[%s2340 + $0x1c] sm:$0xf]
        %v2349 = vld [vmem:[%s2340 + $0x20] sm:$0xf]
        %v2350 = vld [vmem:[%s2340 + $0x24] sm:$0xf]
        %v2351 = vld [vmem:[%s2340 + $0x28] sm:$0xf]
        %v2352 = vld [vmem:[%s2340 + $0x2c] sm:$0xf]
        %v2353 = vld [vmem:[%s2340 + $0x30] sm:$0xf]
        %v2354 = vld [vmem:[%s2340 + $0x34] sm:$0xf]
        %v2355 = vld [vmem:[%s2340 + $0x38] sm:$0xf]
        %v2356 = vld [vmem:[%s2340 + $0x3c] sm:$0xf]
        %v2357 = vunpack.c.l.b16 %v2287
        %v2358 = vunpack.c.l.b16 %v2290
        %v2359 = vunpack.c.l.b16 %v2294
        %v2360 = vunpack.c.l.b16 %v2297
        %v2361 = vunpack.c.l.b16 %v2301
        %v2362 = vunpack.c.l.b16 %v2304
        %v2363 = vunpack.c.l.b16 %v2308
        %v2364 = vunpack.c.l.b16 %v2311
        %v2365 = vunpack.c.l.b16 %v2315
        %v2366 = vunpack.c.l.b16 %v2318
        %v2367 = vunpack.c.l.b16 %v2322
        %v2368 = vunpack.c.l.b16 %v2325
        %v2369 = vunpack.c.l.b16 %v2329
        %v2370 = vunpack.c.l.b16 %v2332
        %v2371 = vunpack.c.l.b16 %v2336
        %v2372 = vunpack.c.l.b16 %v2339
        %v2373 = vpack.c.b16 %v2358, %v2357
        %v2374 = vpack.c.b16 %v2360, %v2359
        %v2375 = vpack.c.b16 %v2362, %v2361
        %v2376 = vpack.c.b16 %v2364, %v2363
        %v2377 = vpack.c.b16 %v2366, %v2365
        %v2378 = vpack.c.b16 %v2368, %v2367
        %v2379 = vpack.c.b16 %v2370, %v2369
        %v2380 = vpack.c.b16 %v2372, %v2371
        %v2405 = vunpack.c.l.b16 %v2341
        %v2406 = vunpack.c.l.b16 %v2342
        %v2407 = vunpack.c.l.b16 %v2343
        %v2408 = vunpack.c.l.b16 %v2344
        %v2409 = vunpack.c.l.b16 %v2345
        %v2410 = vunpack.c.l.b16 %v2346
        %v2411 = vunpack.c.l.b16 %v2347
        %v2412 = vunpack.c.l.b16 %v2348
        %v2413 = vunpack.c.l.b16 %v2349
        %v2414 = vunpack.c.l.b16 %v2350
        %v2415 = vunpack.c.l.b16 %v2351
        %v2416 = vunpack.c.l.b16 %v2352
        %v2417 = vunpack.c.l.b16 %v2353
        %v2418 = vunpack.c.l.b16 %v2354
        %v2419 = vunpack.c.l.b16 %v2355
        %v2420 = vunpack.c.l.b16 %v2356
        %v2421 = vpack.c.b16 %v2406, %v2405
        %v2422 = vpack.c.b16 %v2408, %v2407
        %v2423 = vpack.c.b16 %v2410, %v2409
        %v2424 = vpack.c.b16 %v2412, %v2411
        %v2425 = vpack.c.b16 %v2414, %v2413
        %v2426 = vpack.c.b16 %v2416, %v2415
        %v2427 = vpack.c.b16 %v2418, %v2417
        %v2428 = vpack.c.b16 %v2420, %v2419
        %2437 = vmatprep.subr.bf16.mxu0 0
        %2438 = vmatpush1.bf16.msra.mxu0 %v2421
        %2439 = vmatprep.subr.bf16.mxu0 0
        %2440 = vmatpush1.bf16.msra.mxu0 %v2422
        %2441 = vmatprep.subr.bf16.mxu0 0
        %2442 = vmatpush1.bf16.msra.mxu0 %v2423
        %2443 = vmatprep.subr.bf16.mxu0 0
        %2444 = vmatpush1.bf16.msra.mxu0 %v2424
        %2445 = vmatprep.subr.bf16.mxu0 0
        %2446 = vmatpush1.bf16.msra.mxu0 %v2425
        %2447 = vmatprep.subr.bf16.mxu0 0
        %2448 = vmatpush1.bf16.msra.mxu0 %v2426
        %2449 = vmatprep.subr.bf16.mxu0 0
        %2450 = vmatpush1.bf16.msra.mxu0 %v2427
        %2451 = vmatprep.subr.bf16.mxu0 0
        %2452 = vmatpush1.bf16.msra.mxu0 %v2428
        %2453 = vmatprep.subr.bf16.mxu0 0
        %2454 = vmatpush1.bf16.msra.mxu0 0
        %2455 = vmatprep.subr.bf16.mxu0 0
        %2456 = vmatpush1.bf16.msra.mxu0 0
        %2457 = vmatprep.subr.bf16.mxu0 0
        %2458 = vmatpush1.bf16.msra.mxu0 0
        %2459 = vmatprep.subr.bf16.mxu0 0
        %2460 = vmatpush1.bf16.msra.mxu0 0
        %2461 = vmatprep.subr.bf16.mxu0 0
        %2462 = vmatpush1.bf16.msra.mxu0 0
        %2463 = vmatprep.subr.bf16.mxu0 0
        %2464 = vmatpush1.bf16.msra.mxu0 0
        %2465 = vmatprep.subr.bf16.mxu0 0
        %2466 = vmatpush1.bf16.msra.mxu0 0
        %2467 = vmatprep.subr.bf16.mxu0 0
        %2468 = vmatpush1.bf16.msra.mxu0 0
        %2469 = vmatprep.mubr.bf16.mxu0 0
        %2470 = vmatmul.mubr.bf16.gmra.mrb[0].mxu0 %v2373
        %v2471 = vpop.f32.mrb[0].mxu0
        %v2472 = vadd.f32 0.0, %v2471
        %v2473 = vpop.f32.mrb[0].mxu0
        %v2474 = vpop.f32.mrb[0].mxu0
        %v2475 = vadd.f32 0.0, %v2474
        %v2476 = vpop.f32.mrb[0].mxu0
        %2477 = vmatprep.mubr.bf16.mxu0 0
        %2478 = vmatmul.mubr.bf16.gmra.mrb[0].mxu0 %v2374
        %v2479 = vpop.f32.mrb[0].mxu0
        %v2480 = vadd.f32 0.0, %v2479
        %v2481 = vpop.f32.mrb[0].mxu0
        %v2482 = vpop.f32.mrb[0].mxu0
        %v2483 = vadd.f32 0.0, %v2482
        %v2484 = vpop.f32.mrb[0].mxu0
        %2485 = vmatprep.mubr.bf16.mxu0 0
        %2486 = vmatmul.mubr.bf16.gmra.mrb[0].mxu0 %v2375
        %v2487 = vpop.f32.mrb[0].mxu0
        %v2488 = vadd.f32 0.0, %v2487
        %v2489 = vpop.f32.mrb[0].mxu0
        %v2490 = vpop.f32.mrb[0].mxu0
        %v2491 = vadd.f32 0.0, %v2490
        %v2492 = vpop.f32.mrb[0].mxu0
        %2493 = vmatprep.mubr.bf16.mxu0 0
        %2494 = vmatmul.mubr.bf16.gmra.mrb[0].mxu0 %v2376
        %v2495 = vpop.f32.mrb[0].mxu0
        %v2496 = vadd.f32 0.0, %v2495
        %v2497 = vpop.f32.mrb[0].mxu0
        %v2498 = vpop.f32.mrb[0].mxu0
        %v2499 = vadd.f32 0.0, %v2498
        %v2500 = vpop.f32.mrb[0].mxu0
        %2501 = vmatprep.mubr.bf16.mxu0 0
        %2502 = vmatmul.mubr.bf16.gmra.mrb[0].mxu0 %v2377
        %v2503 = vpop.f32.mrb[0].mxu0
        %v2504 = vadd.f32 0.0, %v2503
        %v2505 = vpop.f32.mrb[0].mxu0
        %v2506 = vpop.f32.mrb[0].mxu0
        %v2507 = vadd.f32 0.0, %v2506
        %v2508 = vpop.f32.mrb[0].mxu0
        %2509 = vmatprep.mubr.bf16.mxu0 0
        %2510 = vmatmul.mubr.bf16.gmra.mrb[0].mxu0 %v2378
        %v2511 = vpop.f32.mrb[0].mxu0
        %v2512 = vadd.f32 0.0, %v2511
        %v2513 = vpop.f32.mrb[0].mxu0
        %v2514 = vpop.f32.mrb[0].mxu0
        %v2515 = vadd.f32 0.0, %v2514
        %v2516 = vpop.f32.mrb[0].mxu0
        %2517 = vmatprep.mubr.bf16.mxu0 0
        %2518 = vmatmul.mubr.bf16.gmra.mrb[0].mxu0 %v2379
        %v2519 = vpop.f32.mrb[0].mxu0
        %v2520 = vadd.f32 0.0, %v2519
        %v2521 = vpop.f32.mrb[0].mxu0
        %v2522 = vpop.f32.mrb[0].mxu0
        %v2523 = vadd.f32 0.0, %v2522
        %v2524 = vpop.f32.mrb[0].mxu0
        %2525 = vmatprep.mubr.bf16.mxu0 0
        %2526 = vmatmul.mubr.bf16.gmra.mrb[0].mxu0 %v2380
        %v2527 = vpop.f32.mrb[0].mxu0
        %v2528 = vadd.f32 0.0, %v2527
        %v2529 = vpop.f32.mrb[0].mxu0
        %v2530 = vpop.f32.mrb[0].mxu0
        %v2531 = vadd.f32 0.0, %v2530
        %v2532 = vpop.f32.mrb[0].mxu0
        %2533 = vdwg.mxu0
        %v2534 = vadd.f32 %v2213, %v2472
        %v2535 = vadd.f32 %v2214, %v2475
        %v2536 = vadd.f32 %v2215, %v2480
        %v2537 = vadd.f32 %v2216, %v2483
        %v2538 = vadd.f32 %v2217, %v2488
        %v2539 = vadd.f32 %v2218, %v2491
        %v2540 = vadd.f32 %v2219, %v2496
        %v2541 = vadd.f32 %v2220, %v2499
        %v2542 = vadd.f32 %v2221, %v2504
        %v2543 = vadd.f32 %v2222, %v2507
        %v2544 = vadd.f32 %v2223, %v2512
        %v2545 = vadd.f32 %v2224, %v2515
        %v2546 = vadd.f32 %v2225, %v2520
        %v2547 = vadd.f32 %v2226, %v2523
        %v2548 = vadd.f32 %v2227, %v2528
        %v2549 = vadd.f32 %v2228, %v2531
        %v2551 = vshrl.u32 %v2233, 16
        %v2553 = vrot.slane %v2551, 5
        %v2554 = vshll.u32 %v2233, 16
        %v2556 = vrot.slane %v2554, 6
        %v2557 = vor.u32 %v2553, %v2556
        %v2558 = vrot.slane %v2557, 4
        %v2560 = vshrl.u32 %v2234, 16
        %v2562 = vrot.slane %v2560, 5
        %v2563 = vshll.u32 %v2234, 16
        %v2565 = vrot.slane %v2563, 6
        %v2566 = vor.u32 %v2562, %v2565
        %v2567 = vsel %vm260, %v2558, %v2566
        %v2568 = vrot.slane %v2566, 4
        %v2570 = vshrl.u32 %v2235, 16
        %v2572 = vrot.slane %v2570, 5
        %v2573 = vshll.u32 %v2235, 16
        %v2575 = vrot.slane %v2573, 6
        %v2576 = vor.u32 %v2572, %v2575
        %v2577 = vsel %vm260, %v2568, %v2576
        %v2579 = vshrl.u32 %v2236, 16
        %v2581 = vrot.slane %v2579, 5
        %v2582 = vshll.u32 %v2236, 16
        %v2584 = vrot.slane %v2582, 6
        %v2585 = vor.u32 %v2581, %v2584
        %v2586 = vrot.slane %v2585, 4
        %v2588 = vshrl.u32 %v2237, 16
        %v2590 = vrot.slane %v2588, 5
        %v2591 = vshll.u32 %v2237, 16
        %v2593 = vrot.slane %v2591, 6
        %v2594 = vor.u32 %v2590, %v2593
        %v2595 = vsel %vm260, %v2586, %v2594
        %v2596 = vrot.slane %v2594, 4
        %v2598 = vshrl.u32 %v2238, 16
        %v2600 = vrot.slane %v2598, 5
        %v2601 = vshll.u32 %v2238, 16
        %v2603 = vrot.slane %v2601, 6
        %v2604 = vor.u32 %v2600, %v2603
        %v2605 = vsel %vm260, %v2596, %v2604
        %v2607 = vshrl.u32 %v2239, 16
        %v2609 = vrot.slane %v2607, 5
        %v2610 = vshll.u32 %v2239, 16
        %v2612 = vrot.slane %v2610, 6
        %v2613 = vor.u32 %v2609, %v2612
        %v2614 = vrot.slane %v2613, 4
        %v2616 = vshrl.u32 %v2240, 16
        %v2618 = vrot.slane %v2616, 5
        %v2619 = vshll.u32 %v2240, 16
        %v2621 = vrot.slane %v2619, 6
        %v2622 = vor.u32 %v2618, %v2621
        %v2623 = vsel %vm260, %v2614, %v2622
        %v2624 = vrot.slane %v2622, 4
        %v2626 = vshrl.u32 %v2241, 16
        %v2628 = vrot.slane %v2626, 5
        %v2629 = vshll.u32 %v2241, 16
        %v2631 = vrot.slane %v2629, 6
        %v2632 = vor.u32 %v2628, %v2631
        %v2633 = vsel %vm260, %v2624, %v2632
        %v2635 = vshrl.u32 %v2242, 16
        %v2637 = vrot.slane %v2635, 5
        %v2638 = vshll.u32 %v2242, 16
        %v2640 = vrot.slane %v2638, 6
        %v2641 = vor.u32 %v2637, %v2640
        %v2642 = vrot.slane %v2641, 4
        %v2644 = vshrl.u32 %v2243, 16
        %v2646 = vrot.slane %v2644, 5
        %v2647 = vshll.u32 %v2243, 16
        %v2649 = vrot.slane %v2647, 6
        %v2650 = vor.u32 %v2646, %v2649
        %v2651 = vsel %vm260, %v2642, %v2650
        %v2652 = vrot.slane %v2650, 4
        %v2654 = vshrl.u32 %v2244, 16
        %v2656 = vrot.slane %v2654, 5
        %v2657 = vshll.u32 %v2244, 16
        %v2659 = vrot.slane %v2657, 6
        %v2660 = vor.u32 %v2656, %v2659
        %v2661 = vsel %vm260, %v2652, %v2660
        %v2663 = vshrl.u32 %v2245, 16
        %v2665 = vrot.slane %v2663, 5
        %v2666 = vshll.u32 %v2245, 16
        %v2668 = vrot.slane %v2666, 6
        %v2669 = vor.u32 %v2665, %v2668
        %v2670 = vrot.slane %v2669, 4
        %v2672 = vshrl.u32 %v2246, 16
        %v2674 = vrot.slane %v2672, 5
        %v2675 = vshll.u32 %v2246, 16
        %v2677 = vrot.slane %v2675, 6
        %v2678 = vor.u32 %v2674, %v2677
        %v2679 = vsel %vm260, %v2670, %v2678
        %v2680 = vrot.slane %v2678, 4
        %v2682 = vshrl.u32 %v2247, 16
        %v2684 = vrot.slane %v2682, 5
        %v2685 = vshll.u32 %v2247, 16
        %v2687 = vrot.slane %v2685, 6
        %v2688 = vor.u32 %v2684, %v2687
        %v2689 = vsel %vm260, %v2680, %v2688
        %v2691 = vshrl.u32 %v2248, 16
        %v2693 = vrot.slane %v2691, 5
        %v2694 = vshll.u32 %v2248, 16
        %v2696 = vrot.slane %v2694, 6
        %v2697 = vor.u32 %v2693, %v2696
        %v2698 = vrot.slane %v2697, 4
        %v2700 = vshrl.u32 %v2249, 16
        %v2702 = vrot.slane %v2700, 5
        %v2703 = vshll.u32 %v2249, 16
        %v2705 = vrot.slane %v2703, 6
        %v2706 = vor.u32 %v2702, %v2705
        %v2707 = vsel %vm260, %v2698, %v2706
        %v2708 = vrot.slane %v2706, 4
        %v2710 = vshrl.u32 %v2250, 16
        %v2712 = vrot.slane %v2710, 5
        %v2713 = vshll.u32 %v2250, 16
        %v2715 = vrot.slane %v2713, 6
        %v2716 = vor.u32 %v2712, %v2715
        %v2717 = vsel %vm260, %v2708, %v2716
        %v2719 = vshrl.u32 %v2251, 16
        %v2721 = vrot.slane %v2719, 5
        %v2722 = vshll.u32 %v2251, 16
        %v2724 = vrot.slane %v2722, 6
        %v2725 = vor.u32 %v2721, %v2724
        %v2726 = vrot.slane %v2725, 4
        %v2728 = vshrl.u32 %v2252, 16
        %v2730 = vrot.slane %v2728, 5
        %v2731 = vshll.u32 %v2252, 16
        %v2733 = vrot.slane %v2731, 6
        %v2734 = vor.u32 %v2730, %v2733
        %v2735 = vsel %vm260, %v2726, %v2734
        %v2736 = vrot.slane %v2734, 4
        %v2738 = vshrl.u32 %v2253, 16
        %v2740 = vrot.slane %v2738, 5
        %v2741 = vshll.u32 %v2253, 16
        %v2743 = vrot.slane %v2741, 6
        %v2744 = vor.u32 %v2740, %v2743
        %v2745 = vsel %vm260, %v2736, %v2744
        %v2747 = vshrl.u32 %v2254, 16
        %v2749 = vrot.slane %v2747, 5
        %v2750 = vshll.u32 %v2254, 16
        %v2752 = vrot.slane %v2750, 6
        %v2753 = vor.u32 %v2749, %v2752
        %v2754 = vrot.slane %v2753, 4
        %v2756 = vshrl.u32 %v2255, 16
        %v2758 = vrot.slane %v2756, 5
        %v2759 = vshll.u32 %v2255, 16
        %v2761 = vrot.slane %v2759, 6
        %v2762 = vor.u32 %v2758, %v2761
        %v2763 = vsel %vm260, %v2754, %v2762
        %v2764 = vrot.slane %v2762, 4
        %v2766 = vshrl.u32 %v2256, 16
        %v2768 = vrot.slane %v2766, 5
        %v2769 = vshll.u32 %v2256, 16
        %v2771 = vrot.slane %v2769, 6
        %v2772 = vor.u32 %v2768, %v2771
        %v2773 = vsel %vm260, %v2764, %v2772
        %s2774 = scalar_lea.vmem [#allocation2], 448
        %v2775 = vld [vmem:[%s2774] sm:$0xf]
        %v2776 = vld [vmem:[%s2774 + $0x4] sm:$0xf]
        %v2777 = vld [vmem:[%s2774 + $0x8] sm:$0xf]
        %v2778 = vld [vmem:[%s2774 + $0xc] sm:$0xf]
        %v2779 = vld [vmem:[%s2774 + $0x10] sm:$0xf]
        %v2780 = vld [vmem:[%s2774 + $0x14] sm:$0xf]
        %v2781 = vld [vmem:[%s2774 + $0x18] sm:$0xf]
        %v2782 = vld [vmem:[%s2774 + $0x1c] sm:$0xf]
        %v2783 = vld [vmem:[%s2774 + $0x20] sm:$0xf]
        %v2784 = vld [vmem:[%s2774 + $0x24] sm:$0xf]
        %v2785 = vld [vmem:[%s2774 + $0x28] sm:$0xf]
        %v2786 = vld [vmem:[%s2774 + $0x2c] sm:$0xf]
        %v2787 = vld [vmem:[%s2774 + $0x30] sm:$0xf]
        %v2788 = vld [vmem:[%s2774 + $0x34] sm:$0xf]
        %v2789 = vld [vmem:[%s2774 + $0x38] sm:$0xf]
        %v2790 = vld [vmem:[%s2774 + $0x3c] sm:$0xf]
        %v2791 = vunpack.c.l.b16 %v2567
        %v2792 = vunpack.c.l.b16 %v2577
        %v2793 = vunpack.c.l.b16 %v2595
        %v2794 = vunpack.c.l.b16 %v2605
        %v2795 = vunpack.c.l.b16 %v2623
        %v2796 = vunpack.c.l.b16 %v2633
        %v2797 = vunpack.c.l.b16 %v2651
        %v2798 = vunpack.c.l.b16 %v2661
        %v2799 = vunpack.c.l.b16 %v2679
        %v2800 = vunpack.c.l.b16 %v2689
        %v2801 = vunpack.c.l.b16 %v2707
        %v2802 = vunpack.c.l.b16 %v2717
        %v2803 = vunpack.c.l.b16 %v2735
        %v2804 = vunpack.c.l.b16 %v2745
        %v2805 = vunpack.c.l.b16 %v2763
        %v2806 = vunpack.c.l.b16 %v2773
        %v2807 = vpack.c.b16 %v2792, %v2791
        %v2808 = vpack.c.b16 %v2794, %v2793
        %v2809 = vpack.c.b16 %v2796, %v2795
        %v2810 = vpack.c.b16 %v2798, %v2797
        %v2811 = vpack.c.b16 %v2800, %v2799
        %v2812 = vpack.c.b16 %v2802, %v2801
        %v2813 = vpack.c.b16 %v2804, %v2803
        %v2814 = vpack.c.b16 %v2806, %v2805
        %v2839 = vunpack.c.l.b16 %v2775
        %v2840 = vunpack.c.l.b16 %v2776
        %v2841 = vunpack.c.l.b16 %v2777
        %v2842 = vunpack.c.l.b16 %v2778
        %v2843 = vunpack.c.l.b16 %v2779
        %v2844 = vunpack.c.l.b16 %v2780
        %v2845 = vunpack.c.l.b16 %v2781
        %v2846 = vunpack.c.l.b16 %v2782
        %v2847 = vunpack.c.l.b16 %v2783
        %v2848 = vunpack.c.l.b16 %v2784
        %v2849 = vunpack.c.l.b16 %v2785
        %v2850 = vunpack.c.l.b16 %v2786
        %v2851 = vunpack.c.l.b16 %v2787
        %v2852 = vunpack.c.l.b16 %v2788
        %v2853 = vunpack.c.l.b16 %v2789
        %v2854 = vunpack.c.l.b16 %v2790
        %v2855 = vpack.c.b16 %v2840, %v2839
        %v2856 = vpack.c.b16 %v2842, %v2841
        %v2857 = vpack.c.b16 %v2844, %v2843
        %v2858 = vpack.c.b16 %v2846, %v2845
        %v2859 = vpack.c.b16 %v2848, %v2847
        %v2860 = vpack.c.b16 %v2850, %v2849
        %v2861 = vpack.c.b16 %v2852, %v2851
        %v2862 = vpack.c.b16 %v2854, %v2853
        %2871 = vmatprep.subr.bf16.mxu0 0
        %2872 = vmatpush1.bf16.msra.mxu0 %v2855
        %2873 = vmatprep.subr.bf16.mxu0 0
        %2874 = vmatpush1.bf16.msra.mxu0 %v2856
        %2875 = vmatprep.subr.bf16.mxu0 0
        %2876 = vmatpush1.bf16.msra.mxu0 %v2857
        %2877 = vmatprep.subr.bf16.mxu0 0
        %2878 = vmatpush1.bf16.msra.mxu0 %v2858
        %2879 = vmatprep.subr.bf16.mxu0 0
        %2880 = vmatpush1.bf16.msra.mxu0 %v2859
        %2881 = vmatprep.subr.bf16.mxu0 0
        %2882 = vmatpush1.bf16.msra.mxu0 %v2860
        %2883 = vmatprep.subr.bf16.mxu0 0
        %2884 = vmatpush1.bf16.msra.mxu0 %v2861
        %2885 = vmatprep.subr.bf16.mxu0 0
        %2886 = vmatpush1.bf16.msra.mxu0 %v2862
        %2887 = vmatprep.subr.bf16.mxu0 0
        %2888 = vmatpush1.bf16.msra.mxu0 0
        %2889 = vmatprep.subr.bf16.mxu0 0
        %2890 = vmatpush1.bf16.msra.mxu0 0
        %2891 = vmatprep.subr.bf16.mxu0 0
        %2892 = vmatpush1.bf16.msra.mxu0 0
        %2893 = vmatprep.subr.bf16.mxu0 0
        %2894 = vmatpush1.bf16.msra.mxu0 0
        %2895 = vmatprep.subr.bf16.mxu0 0
        %2896 = vmatpush1.bf16.msra.mxu0 0
        %2897 = vmatprep.subr.bf16.mxu0 0
        %2898 = vmatpush1.bf16.msra.mxu0 0
        %2899 = vmatprep.subr.bf16.mxu0 0
        %2900 = vmatpush1.bf16.msra.mxu0 0
        %2901 = vmatprep.subr.bf16.mxu0 0
        %2902 = vmatpush1.bf16.msra.mxu0 0
        %2903 = vmatprep.mubr.bf16.mxu0 0
        %2904 = vmatmul.mubr.bf16.gmra.mrb[0].mxu0 %v2807
        %v2905 = vpop.f32.mrb[0].mxu0
        %v2906 = vadd.f32 0.0, %v2905
        %v2907 = vpop.f32.mrb[0].mxu0
        %v2908 = vpop.f32.mrb[0].mxu0
        %v2909 = vadd.f32 0.0, %v2908
        %v2910 = vpop.f32.mrb[0].mxu0
        %2911 = vmatprep.mubr.bf16.mxu0 0
        %2912 = vmatmul.mubr.bf16.gmra.mrb[0].mxu0 %v2808
        %v2913 = vpop.f32.mrb[0].mxu0
        %v2914 = vadd.f32 0.0, %v2913
        %v2915 = vpop.f32.mrb[0].mxu0
        %v2916 = vpop.f32.mrb[0].mxu0
        %v2917 = vadd.f32 0.0, %v2916
        %v2918 = vpop.f32.mrb[0].mxu0
        %2919 = vmatprep.mubr.bf16.mxu0 0
        %2920 = vmatmul.mubr.bf16.gmra.mrb[0].mxu0 %v2809
        %v2921 = vpop.f32.mrb[0].mxu0
        %v2922 = vadd.f32 0.0, %v2921
        %v2923 = vpop.f32.mrb[0].mxu0
        %v2924 = vpop.f32.mrb[0].mxu0
        %v2925 = vadd.f32 0.0, %v2924
        %v2926 = vpop.f32.mrb[0].mxu0
        %2927 = vmatprep.mubr.bf16.mxu0 0
        %2928 = vmatmul.mubr.bf16.gmra.mrb[0].mxu0 %v2810
        %v2929 = vpop.f32.mrb[0].mxu0
        %v2930 = vadd.f32 0.0, %v2929
        %v2931 = vpop.f32.mrb[0].mxu0
        %v2932 = vpop.f32.mrb[0].mxu0
        %v2933 = vadd.f32 0.0, %v2932
        %v2934 = vpop.f32.mrb[0].mxu0
        %2935 = vmatprep.mubr.bf16.mxu0 0
        %2936 = vmatmul.mubr.bf16.gmra.mrb[0].mxu0 %v2811
        %v2937 = vpop.f32.mrb[0].mxu0
        %v2938 = vadd.f32 0.0, %v2937
        %v2939 = vpop.f32.mrb[0].mxu0
        %v2940 = vpop.f32.mrb[0].mxu0
        %v2941 = vadd.f32 0.0, %v2940
        %v2942 = vpop.f32.mrb[0].mxu0
        %2943 = vmatprep.mubr.bf16.mxu0 0
        %2944 = vmatmul.mubr.bf16.gmra.mrb[0].mxu0 %v2812
        %v2945 = vpop.f32.mrb[0].mxu0
        %v2946 = vadd.f32 0.0, %v2945
        %v2947 = vpop.f32.mrb[0].mxu0
        %v2948 = vpop.f32.mrb[0].mxu0
        %v2949 = vadd.f32 0.0, %v2948
        %v2950 = vpop.f32.mrb[0].mxu0
        %2951 = vmatprep.mubr.bf16.mxu0 0
        %2952 = vmatmul.mubr.bf16.gmra.mrb[0].mxu0 %v2813
        %v2953 = vpop.f32.mrb[0].mxu0
        %v2954 = vadd.f32 0.0, %v2953
        %v2955 = vpop.f32.mrb[0].mxu0
        %v2956 = vpop.f32.mrb[0].mxu0
        %v2957 = vadd.f32 0.0, %v2956
        %v2958 = vpop.f32.mrb[0].mxu0
        %2959 = vmatprep.mubr.bf16.mxu0 0
        %2960 = vmatmul.mubr.bf16.gmra.mrb[0].mxu0 %v2814
        %v2961 = vpop.f32.mrb[0].mxu0
        %v2962 = vadd.f32 0.0, %v2961
        %v2963 = vpop.f32.mrb[0].mxu0
        %v2964 = vpop.f32.mrb[0].mxu0
        %v2965 = vadd.f32 0.0, %v2964
        %v2966 = vpop.f32.mrb[0].mxu0
        %2967 = vdwg.mxu0
        %v2968 = vadd.f32 %v2534, %v2906
        %v2969 = vadd.f32 %v2535, %v2909
        %v2970 = vadd.f32 %v2536, %v2914
        %v2971 = vadd.f32 %v2537, %v2917
        %v2972 = vadd.f32 %v2538, %v2922
        %v2973 = vadd.f32 %v2539, %v2925
        %v2974 = vadd.f32 %v2540, %v2930
        %v2975 = vadd.f32 %v2541, %v2933
        %v2976 = vadd.f32 %v2542, %v2938
        %v2977 = vadd.f32 %v2543, %v2941
        %v2978 = vadd.f32 %v2544, %v2946
        %v2979 = vadd.f32 %v2545, %v2949
        %v2980 = vadd.f32 %v2546, %v2954
        %v2981 = vadd.f32 %v2547, %v2957
        %v2982 = vadd.f32 %v2548, %v2962
        %v2983 = vadd.f32 %v2549, %v2965
        %vm2984 = vcmask 1041408
        %vm2985 = vcmask 1045508
        %vm2986 = vmor %vm2984, %vm2985
        %v2987 = vrot.slane %v2233, 6
        %v2988 = vrot.slane %v2987, 4
        %v2989 = vrot.slane %v2234, 6
        %v2990 = vsel %vm2986, %v2988, %v2989
        %v2991 = vrot.slane %v2989, 4
        %v2992 = vrot.slane %v2235, 6
        %v2993 = vsel %vm2986, %v2991, %v2992
        %v2994 = vrot.slane %v2236, 6
        %v2995 = vrot.slane %v2994, 4
        %v2996 = vrot.slane %v2237, 6
        %v2997 = vsel %vm2986, %v2995, %v2996
        %v2998 = vrot.slane %v2996, 4
        %v2999 = vrot.slane %v2238, 6
        %v3000 = vsel %vm2986, %v2998, %v2999
        %v3001 = vrot.slane %v2239, 6
        %v3002 = vrot.slane %v3001, 4
        %v3003 = vrot.slane %v2240, 6
        %v3004 = vsel %vm2986, %v3002, %v3003
        %v3005 = vrot.slane %v3003, 4
        %v3006 = vrot.slane %v2241, 6
        %v3007 = vsel %vm2986, %v3005, %v3006
        %v3008 = vrot.slane %v2242, 6
        %v3009 = vrot.slane %v3008, 4
        %v3010 = vrot.slane %v2243, 6
        %v3011 = vsel %vm2986, %v3009, %v3010
        %v3012 = vrot.slane %v3010, 4
        %v3013 = vrot.slane %v2244, 6
        %v3014 = vsel %vm2986, %v3012, %v3013
        %v3015 = vrot.slane %v2245, 6
        %v3016 = vrot.slane %v3015, 4
        %v3017 = vrot.slane %v2246, 6
        %v3018 = vsel %vm2986, %v3016, %v3017
        %v3019 = vrot.slane %v3017, 4
        %v3020 = vrot.slane %v2247, 6
        %v3021 = vsel %vm2986, %v3019, %v3020
        %v3022 = vrot.slane %v2248, 6
        %v3023 = vrot.slane %v3022, 4
        %v3024 = vrot.slane %v2249, 6
        %v3025 = vsel %vm2986, %v3023, %v3024
        %v3026 = vrot.slane %v3024, 4
        %v3027 = vrot.slane %v2250, 6
        %v3028 = vsel %vm2986, %v3026, %v3027
        %v3029 = vrot.slane %v2251, 6
        %v3030 = vrot.slane %v3029, 4
        %v3031 = vrot.slane %v2252, 6
        %v3032 = vsel %vm2986, %v3030, %v3031
        %v3033 = vrot.slane %v3031, 4
        %v3034 = vrot.slane %v2253, 6
        %v3035 = vsel %vm2986, %v3033, %v3034
        %v3036 = vrot.slane %v2254, 6
        %v3037 = vrot.slane %v3036, 4
        %v3038 = vrot.slane %v2255, 6
        %v3039 = vsel %vm2986, %v3037, %v3038
        %v3040 = vrot.slane %v3038, 4
        %v3041 = vrot.slane %v2256, 6
        %v3042 = vsel %vm2986, %v3040, %v3041
        %s3043 = scalar_lea.vmem [#allocation2], 512
        %v3044 = vld [vmem:[%s3043] sm:$0xf]
        %v3045 = vld [vmem:[%s3043 + $0x4] sm:$0xf]
        %v3046 = vld [vmem:[%s3043 + $0x8] sm:$0xf]
        %v3047 = vld [vmem:[%s3043 + $0xc] sm:$0xf]
        %v3048 = vld [vmem:[%s3043 + $0x10] sm:$0xf]
        %v3049 = vld [vmem:[%s3043 + $0x14] sm:$0xf]
        %v3050 = vld [vmem:[%s3043 + $0x18] sm:$0xf]
        %v3051 = vld [vmem:[%s3043 + $0x1c] sm:$0xf]
        %v3052 = vld [vmem:[%s3043 + $0x20] sm:$0xf]
        %v3053 = vld [vmem:[%s3043 + $0x24] sm:$0xf]
        %v3054 = vld [vmem:[%s3043 + $0x28] sm:$0xf]
        %v3055 = vld [vmem:[%s3043 + $0x2c] sm:$0xf]
        %v3056 = vld [vmem:[%s3043 + $0x30] sm:$0xf]
        %v3057 = vld [vmem:[%s3043 + $0x34] sm:$0xf]
        %v3058 = vld [vmem:[%s3043 + $0x38] sm:$0xf]
        %v3059 = vld [vmem:[%s3043 + $0x3c] sm:$0xf]
        %v3060 = vunpack.c.l.b16 %v2990
        %v3061 = vunpack.c.l.b16 %v2993
        %v3062 = vunpack.c.l.b16 %v2997
        %v3063 = vunpack.c.l.b16 %v3000
        %v3064 = vunpack.c.l.b16 %v3004
        %v3065 = vunpack.c.l.b16 %v3007
        %v3066 = vunpack.c.l.b16 %v3011
        %v3067 = vunpack.c.l.b16 %v3014
        %v3068 = vunpack.c.l.b16 %v3018
        %v3069 = vunpack.c.l.b16 %v3021
        %v3070 = vunpack.c.l.b16 %v3025
        %v3071 = vunpack.c.l.b16 %v3028
        %v3072 = vunpack.c.l.b16 %v3032
        %v3073 = vunpack.c.l.b16 %v3035
        %v3074 = vunpack.c.l.b16 %v3039
        %v3075 = vunpack.c.l.b16 %v3042
        %v3076 = vpack.c.b16 %v3061, %v3060
        %v3077 = vpack.c.b16 %v3063, %v3062
        %v3078 = vpack.c.b16 %v3065, %v3064
        %v3079 = vpack.c.b16 %v3067, %v3066
        %v3080 = vpack.c.b16 %v3069, %v3068
        %v3081 = vpack.c.b16 %v3071, %v3070
        %v3082 = vpack.c.b16 %v3073, %v3072
        %v3083 = vpack.c.b16 %v3075, %v3074
        %v3108 = vunpack.c.l.b16 %v3044
        %v3109 = vunpack.c.l.b16 %v3045
        %v3110 = vunpack.c.l.b16 %v3046
        %v3111 = vunpack.c.l.b16 %v3047
        %v3112 = vunpack.c.l.b16 %v3048
        %v3113 = vunpack.c.l.b16 %v3049
        %v3114 = vunpack.c.l.b16 %v3050
        %v3115 = vunpack.c.l.b16 %v3051
        %v3116 = vunpack.c.l.b16 %v3052
        %v3117 = vunpack.c.l.b16 %v3053
        %v3118 = vunpack.c.l.b16 %v3054
        %v3119 = vunpack.c.l.b16 %v3055
        %v3120 = vunpack.c.l.b16 %v3056
        %v3121 = vunpack.c.l.b16 %v3057
        %v3122 = vunpack.c.l.b16 %v3058
        %v3123 = vunpack.c.l.b16 %v3059
        %v3124 = vpack.c.b16 %v3109, %v3108
        %v3125 = vpack.c.b16 %v3111, %v3110
        %v3126 = vpack.c.b16 %v3113, %v3112
        %v3127 = vpack.c.b16 %v3115, %v3114
        %v3128 = vpack.c.b16 %v3117, %v3116
        %v3129 = vpack.c.b16 %v3119, %v3118
        %v3130 = vpack.c.b16 %v3121, %v3120
        %v3131 = vpack.c.b16 %v3123, %v3122
        %3140 = vmatprep.subr.bf16.mxu0 0
        %3141 = vmatpush1.bf16.msra.mxu0 %v3124
        %3142 = vmatprep.subr.bf16.mxu0 0
        %3143 = vmatpush1.bf16.msra.mxu0 %v3125
        %3144 = vmatprep.subr.bf16.mxu0 0
        %3145 = vmatpush1.bf16.msra.mxu0 %v3126
        %3146 = vmatprep.subr.bf16.mxu0 0
        %3147 = vmatpush1.bf16.msra.mxu0 %v3127
        %3148 = vmatprep.subr.bf16.mxu0 0
        %3149 = vmatpush1.bf16.msra.mxu0 %v3128
        %3150 = vmatprep.subr.bf16.mxu0 0
        %3151 = vmatpush1.bf16.msra.mxu0 %v3129
        %3152 = vmatprep.subr.bf16.mxu0 0
        %3153 = vmatpush1.bf16.msra.mxu0 %v3130
        %3154 = vmatprep.subr.bf16.mxu0 0
        %3155 = vmatpush1.bf16.msra.mxu0 %v3131
        %3156 = vmatprep.subr.bf16.mxu0 0
        %3157 = vmatpush1.bf16.msra.mxu0 0
        %3158 = vmatprep.subr.bf16.mxu0 0
        %3159 = vmatpush1.bf16.msra.mxu0 0
        %3160 = vmatprep.subr.bf16.mxu0 0
        %3161 = vmatpush1.bf16.msra.mxu0 0
        %3162 = vmatprep.subr.bf16.mxu0 0
        %3163 = vmatpush1.bf16.msra.mxu0 0
        %3164 = vmatprep.subr.bf16.mxu0 0
        %3165 = vmatpush1.bf16.msra.mxu0 0
        %3166 = vmatprep.subr.bf16.mxu0 0
        %3167 = vmatpush1.bf16.msra.mxu0 0
        %3168 = vmatprep.subr.bf16.mxu0 0
        %3169 = vmatpush1.bf16.msra.mxu0 0
        %3170 = vmatprep.subr.bf16.mxu0 0
        %3171 = vmatpush1.bf16.msra.mxu0 0
        %3172 = vmatprep.mubr.bf16.mxu0 0
        %3173 = vmatmul.mubr.bf16.gmra.mrb[0].mxu0 %v3076
        %v3174 = vpop.f32.mrb[0].mxu0
        %v3175 = vadd.f32 0.0, %v3174
        %v3176 = vpop.f32.mrb[0].mxu0
        %v3177 = vpop.f32.mrb[0].mxu0
        %v3178 = vadd.f32 0.0, %v3177
        %v3179 = vpop.f32.mrb[0].mxu0
        %3180 = vmatprep.mubr.bf16.mxu0 0
        %3181 = vmatmul.mubr.bf16.gmra.mrb[0].mxu0 %v3077
        %v3182 = vpop.f32.mrb[0].mxu0
        %v3183 = vadd.f32 0.0, %v3182
        %v3184 = vpop.f32.mrb[0].mxu0
        %v3185 = vpop.f32.mrb[0].mxu0
        %v3186 = vadd.f32 0.0, %v3185
        %v3187 = vpop.f32.mrb[0].mxu0
        %3188 = vmatprep.mubr.bf16.mxu0 0
        %3189 = vmatmul.mubr.bf16.gmra.mrb[0].mxu0 %v3078
        %v3190 = vpop.f32.mrb[0].mxu0
        %v3191 = vadd.f32 0.0, %v3190
        %v3192 = vpop.f32.mrb[0].mxu0
        %v3193 = vpop.f32.mrb[0].mxu0
        %v3194 = vadd.f32 0.0, %v3193
        %v3195 = vpop.f32.mrb[0].mxu0
        %3196 = vmatprep.mubr.bf16.mxu0 0
        %3197 = vmatmul.mubr.bf16.gmra.mrb[0].mxu0 %v3079
        %v3198 = vpop.f32.mrb[0].mxu0
        %v3199 = vadd.f32 0.0, %v3198
        %v3200 = vpop.f32.mrb[0].mxu0
        %v3201 = vpop.f32.mrb[0].mxu0
        %v3202 = vadd.f32 0.0, %v3201
        %v3203 = vpop.f32.mrb[0].mxu0
        %3204 = vmatprep.mubr.bf16.mxu0 0
        %3205 = vmatmul.mubr.bf16.gmra.mrb[0].mxu0 %v3080
        %v3206 = vpop.f32.mrb[0].mxu0
        %v3207 = vadd.f32 0.0, %v3206
        %v3208 = vpop.f32.mrb[0].mxu0
        %v3209 = vpop.f32.mrb[0].mxu0
        %v3210 = vadd.f32 0.0, %v3209
        %v3211 = vpop.f32.mrb[0].mxu0
        %3212 = vmatprep.mubr.bf16.mxu0 0
        %3213 = vmatmul.mubr.bf16.gmra.mrb[0].mxu0 %v3081
        %v3214 = vpop.f32.mrb[0].mxu0
        %v3215 = vadd.f32 0.0, %v3214
        %v3216 = vpop.f32.mrb[0].mxu0
        %v3217 = vpop.f32.mrb[0].mxu0
        %v3218 = vadd.f32 0.0, %v3217
        %v3219 = vpop.f32.mrb[0].mxu0
        %3220 = vmatprep.mubr.bf16.mxu0 0
        %3221 = vmatmul.mubr.bf16.gmra.mrb[0].mxu0 %v3082
        %v3222 = vpop.f32.mrb[0].mxu0
        %v3223 = vadd.f32 0.0, %v3222
        %v3224 = vpop.f32.mrb[0].mxu0
        %v3225 = vpop.f32.mrb[0].mxu0
        %v3226 = vadd.f32 0.0, %v3225
        %v3227 = vpop.f32.mrb[0].mxu0
        %3228 = vmatprep.mubr.bf16.mxu0 0
        %3229 = vmatmul.mubr.bf16.gmra.mrb[0].mxu0 %v3083
        %v3230 = vpop.f32.mrb[0].mxu0
        %v3231 = vadd.f32 0.0, %v3230
        %v3232 = vpop.f32.mrb[0].mxu0
        %v3233 = vpop.f32.mrb[0].mxu0
        %v3234 = vadd.f32 0.0, %v3233
        %v3235 = vpop.f32.mrb[0].mxu0
        %3236 = vdwg.mxu0
        %v3237 = vadd.f32 %v2968, %v3175
        %v3238 = vadd.f32 %v2969, %v3178
        %v3239 = vadd.f32 %v2970, %v3183
        %v3240 = vadd.f32 %v2971, %v3186
        %v3241 = vadd.f32 %v2972, %v3191
        %v3242 = vadd.f32 %v2973, %v3194
        %v3243 = vadd.f32 %v2974, %v3199
        %v3244 = vadd.f32 %v2975, %v3202
        %v3245 = vadd.f32 %v2976, %v3207
        %v3246 = vadd.f32 %v2977, %v3210
        %v3247 = vadd.f32 %v2978, %v3215
        %v3248 = vadd.f32 %v2979, %v3218
        %v3249 = vadd.f32 %v2980, %v3223
        %v3250 = vadd.f32 %v2981, %v3226
        %v3251 = vadd.f32 %v2982, %v3231
        %v3252 = vadd.f32 %v2983, %v3234
        %s3253 = sadd.s32 %s214, 3
        %s3254 = smul.u32 %s3253, 3
        %s3255 = smul.addr %s3254, 4
        %s3256 = scalar_lea.vmem %s208, %s3255
        %v3257 = vld [vmem:[%s3256] sm:$0xf]
        %v3258 = vld [vmem:[%s3256 + $0x4] sm:$0xf]
        %v3259 = vld [vmem:[%s3256 + $0x8] sm:$0x7]
        %v3260 = vld [vmem:[%s3256 + $0xc] sm:$0xf]
        %v3261 = vld [vmem:[%s3256 + $0x10] sm:$0xf]
        %v3262 = vld [vmem:[%s3256 + $0x14] sm:$0x7]
        %v3263 = vld [vmem:[%s3256 + $0x18] sm:$0xf]
        %v3264 = vld [vmem:[%s3256 + $0x1c] sm:$0xf]
        %v3265 = vld [vmem:[%s3256 + $0x20] sm:$0x7]
        %v3266 = vld [vmem:[%s3256 + $0x24] sm:$0xf]
        %v3267 = vld [vmem:[%s3256 + $0x28] sm:$0xf]
        %v3268 = vld [vmem:[%s3256 + $0x2c] sm:$0x7]
        %v3269 = vld [vmem:[%s3256 + $0x30] sm:$0xf]
        %v3270 = vld [vmem:[%s3256 + $0x34] sm:$0xf]
        %v3271 = vld [vmem:[%s3256 + $0x38] sm:$0x7]
        %v3272 = vld [vmem:[%s3256 + $0x3c] sm:$0xf]
        %v3273 = vld [vmem:[%s3256 + $0x40] sm:$0xf]
        %v3274 = vld [vmem:[%s3256 + $0x44] sm:$0x7]
        %v3275 = vld [vmem:[%s3256 + $0x48] sm:$0xf]
        %v3276 = vld [vmem:[%s3256 + $0x4c] sm:$0xf]
        %v3277 = vld [vmem:[%s3256 + $0x50] sm:$0x7]
        %v3278 = vld [vmem:[%s3256 + $0x54] sm:$0xf]
        %v3279 = vld [vmem:[%s3256 + $0x58] sm:$0xf]
        %v3280 = vld [vmem:[%s3256 + $0x5c] sm:$0x7]
        %s3281 = scalar_lea.vmem [#allocation2], 576
        %v3282 = vld [vmem:[%s3281] sm:$0xf]
        %v3283 = vld [vmem:[%s3281 + $0x4] sm:$0xf]
        %v3284 = vld [vmem:[%s3281 + $0x8] sm:$0xf]
        %v3285 = vld [vmem:[%s3281 + $0xc] sm:$0xf]
        %v3286 = vld [vmem:[%s3281 + $0x10] sm:$0xf]
        %v3287 = vld [vmem:[%s3281 + $0x14] sm:$0xf]
        %v3288 = vld [vmem:[%s3281 + $0x18] sm:$0xf]
        %v3289 = vld [vmem:[%s3281 + $0x1c] sm:$0xf]
        %v3290 = vld [vmem:[%s3281 + $0x20] sm:$0xf]
        %v3291 = vld [vmem:[%s3281 + $0x24] sm:$0xf]
        %v3292 = vld [vmem:[%s3281 + $0x28] sm:$0xf]
        %v3293 = vld [vmem:[%s3281 + $0x2c] sm:$0xf]
        %v3294 = vld [vmem:[%s3281 + $0x30] sm:$0xf]
        %v3295 = vld [vmem:[%s3281 + $0x34] sm:$0xf]
        %v3296 = vld [vmem:[%s3281 + $0x38] sm:$0xf]
        %v3297 = vld [vmem:[%s3281 + $0x3c] sm:$0xf]
        %v3314 = vunpack.c.l.b16 %v3257
        %v3315 = vunpack.c.l.b16 %v3258
        %v3316 = vunpack.c.l.b16 %v3260
        %v3317 = vunpack.c.l.b16 %v3261
        %v3318 = vunpack.c.l.b16 %v3263
        %v3319 = vunpack.c.l.b16 %v3264
        %v3320 = vunpack.c.l.b16 %v3266
        %v3321 = vunpack.c.l.b16 %v3267
        %v3322 = vunpack.c.l.b16 %v3269
        %v3323 = vunpack.c.l.b16 %v3270
        %v3324 = vunpack.c.l.b16 %v3272
        %v3325 = vunpack.c.l.b16 %v3273
        %v3326 = vunpack.c.l.b16 %v3275
        %v3327 = vunpack.c.l.b16 %v3276
        %v3328 = vunpack.c.l.b16 %v3278
        %v3329 = vunpack.c.l.b16 %v3279
        %v3330 = vpack.c.b16 %v3315, %v3314
        %v3331 = vpack.c.b16 %v3317, %v3316
        %v3332 = vpack.c.b16 %v3319, %v3318
        %v3333 = vpack.c.b16 %v3321, %v3320
        %v3334 = vpack.c.b16 %v3323, %v3322
        %v3335 = vpack.c.b16 %v3325, %v3324
        %v3336 = vpack.c.b16 %v3327, %v3326
        %v3337 = vpack.c.b16 %v3329, %v3328
        %v3362 = vunpack.c.l.b16 %v3282
        %v3363 = vunpack.c.l.b16 %v3283
        %v3364 = vunpack.c.l.b16 %v3284
        %v3365 = vunpack.c.l.b16 %v3285
        %v3366 = vunpack.c.l.b16 %v3286
        %v3367 = vunpack.c.l.b16 %v3287
        %v3368 = vunpack.c.l.b16 %v3288
        %v3369 = vunpack.c.l.b16 %v3289
        %v3370 = vunpack.c.l.b16 %v3290
        %v3371 = vunpack.c.l.b16 %v3291
        %v3372 = vunpack.c.l.b16 %v3292
        %v3373 = vunpack.c.l.b16 %v3293
        %v3374 = vunpack.c.l.b16 %v3294
        %v3375 = vunpack.c.l.b16 %v3295
        %v3376 = vunpack.c.l.b16 %v3296
        %v3377 = vunpack.c.l.b16 %v3297
        %v3378 = vpack.c.b16 %v3363, %v3362
        %v3379 = vpack.c.b16 %v3365, %v3364
        %v3380 = vpack.c.b16 %v3367, %v3366
        %v3381 = vpack.c.b16 %v3369, %v3368
        %v3382 = vpack.c.b16 %v3371, %v3370
        %v3383 = vpack.c.b16 %v3373, %v3372
        %v3384 = vpack.c.b16 %v3375, %v3374
        %v3385 = vpack.c.b16 %v3377, %v3376
        %3394 = vmatprep.subr.bf16.mxu0 0
        %3395 = vmatpush1.bf16.msra.mxu0 %v3378
        %3396 = vmatprep.subr.bf16.mxu0 0
        %3397 = vmatpush1.bf16.msra.mxu0 %v3379
        %3398 = vmatprep.subr.bf16.mxu0 0
        %3399 = vmatpush1.bf16.msra.mxu0 %v3380
        %3400 = vmatprep.subr.bf16.mxu0 0
        %3401 = vmatpush1.bf16.msra.mxu0 %v3381
        %3402 = vmatprep.subr.bf16.mxu0 0
        %3403 = vmatpush1.bf16.msra.mxu0 %v3382
        %3404 = vmatprep.subr.bf16.mxu0 0
        %3405 = vmatpush1.bf16.msra.mxu0 %v3383
        %3406 = vmatprep.subr.bf16.mxu0 0
        %3407 = vmatpush1.bf16.msra.mxu0 %v3384
        %3408 = vmatprep.subr.bf16.mxu0 0
        %3409 = vmatpush1.bf16.msra.mxu0 %v3385
        %3410 = vmatprep.subr.bf16.mxu0 0
        %3411 = vmatpush1.bf16.msra.mxu0 0
        %3412 = vmatprep.subr.bf16.mxu0 0
        %3413 = vmatpush1.bf16.msra.mxu0 0
        %3414 = vmatprep.subr.bf16.mxu0 0
        %3415 = vmatpush1.bf16.msra.mxu0 0
        %3416 = vmatprep.subr.bf16.mxu0 0
        %3417 = vmatpush1.bf16.msra.mxu0 0
        %3418 = vmatprep.subr.bf16.mxu0 0
        %3419 = vmatpush1.bf16.msra.mxu0 0
        %3420 = vmatprep.subr.bf16.mxu0 0
        %3421 = vmatpush1.bf16.msra.mxu0 0
        %3422 = vmatprep.subr.bf16.mxu0 0
        %3423 = vmatpush1.bf16.msra.mxu0 0
        %3424 = vmatprep.subr.bf16.mxu0 0
        %3425 = vmatpush1.bf16.msra.mxu0 0
        %3426 = vmatprep.mubr.bf16.mxu0 0
        %3427 = vmatmul.mubr.bf16.gmra.mrb[0].mxu0 %v3330
        %v3428 = vpop.f32.mrb[0].mxu0
        %v3429 = vadd.f32 0.0, %v3428
        %v3430 = vpop.f32.mrb[0].mxu0
        %v3431 = vpop.f32.mrb[0].mxu0
        %v3432 = vadd.f32 0.0, %v3431
        %v3433 = vpop.f32.mrb[0].mxu0
        %3434 = vmatprep.mubr.bf16.mxu0 0
        %3435 = vmatmul.mubr.bf16.gmra.mrb[0].mxu0 %v3331
        %v3436 = vpop.f32.mrb[0].mxu0
        %v3437 = vadd.f32 0.0, %v3436
        %v3438 = vpop.f32.mrb[0].mxu0
        %v3439 = vpop.f32.mrb[0].mxu0
        %v3440 = vadd.f32 0.0, %v3439
        %v3441 = vpop.f32.mrb[0].mxu0
        %3442 = vmatprep.mubr.bf16.mxu0 0
        %3443 = vmatmul.mubr.bf16.gmra.mrb[0].mxu0 %v3332
        %v3444 = vpop.f32.mrb[0].mxu0
        %v3445 = vadd.f32 0.0, %v3444
        %v3446 = vpop.f32.mrb[0].mxu0
        %v3447 = vpop.f32.mrb[0].mxu0
        %v3448 = vadd.f32 0.0, %v3447
        %v3449 = vpop.f32.mrb[0].mxu0
        %3450 = vmatprep.mubr.bf16.mxu0 0
        %3451 = vmatmul.mubr.bf16.gmra.mrb[0].mxu0 %v3333
        %v3452 = vpop.f32.mrb[0].mxu0
        %v3453 = vadd.f32 0.0, %v3452
        %v3454 = vpop.f32.mrb[0].mxu0
        %v3455 = vpop.f32.mrb[0].mxu0
        %v3456 = vadd.f32 0.0, %v3455
        %v3457 = vpop.f32.mrb[0].mxu0
        %3458 = vmatprep.mubr.bf16.mxu0 0
        %3459 = vmatmul.mubr.bf16.gmra.mrb[0].mxu0 %v3334
        %v3460 = vpop.f32.mrb[0].mxu0
        %v3461 = vadd.f32 0.0, %v3460
        %v3462 = vpop.f32.mrb[0].mxu0
        %v3463 = vpop.f32.mrb[0].mxu0
        %v3464 = vadd.f32 0.0, %v3463
        %v3465 = vpop.f32.mrb[0].mxu0
        %3466 = vmatprep.mubr.bf16.mxu0 0
        %3467 = vmatmul.mubr.bf16.gmra.mrb[0].mxu0 %v3335
        %v3468 = vpop.f32.mrb[0].mxu0
        %v3469 = vadd.f32 0.0, %v3468
        %v3470 = vpop.f32.mrb[0].mxu0
        %v3471 = vpop.f32.mrb[0].mxu0
        %v3472 = vadd.f32 0.0, %v3471
        %v3473 = vpop.f32.mrb[0].mxu0
        %3474 = vmatprep.mubr.bf16.mxu0 0
        %3475 = vmatmul.mubr.bf16.gmra.mrb[0].mxu0 %v3336
        %v3476 = vpop.f32.mrb[0].mxu0
        %v3477 = vadd.f32 0.0, %v3476
        %v3478 = vpop.f32.mrb[0].mxu0
        %v3479 = vpop.f32.mrb[0].mxu0
        %v3480 = vadd.f32 0.0, %v3479
        %v3481 = vpop.f32.mrb[0].mxu0
        %3482 = vmatprep.mubr.bf16.mxu0 0
        %3483 = vmatmul.mubr.bf16.gmra.mrb[0].mxu0 %v3337
        %v3484 = vpop.f32.mrb[0].mxu0
        %v3485 = vadd.f32 0.0, %v3484
        %v3486 = vpop.f32.mrb[0].mxu0
        %v3487 = vpop.f32.mrb[0].mxu0
        %v3488 = vadd.f32 0.0, %v3487
        %v3489 = vpop.f32.mrb[0].mxu0
        %3490 = vdwg.mxu0
        %v3491 = vadd.f32 %v3237, %v3429
        %v3492 = vadd.f32 %v3238, %v3432
        %v3493 = vadd.f32 %v3239, %v3437
        %v3494 = vadd.f32 %v3240, %v3440
        %v3495 = vadd.f32 %v3241, %v3445
        %v3496 = vadd.f32 %v3242, %v3448
        %v3497 = vadd.f32 %v3243, %v3453
        %v3498 = vadd.f32 %v3244, %v3456
        %v3499 = vadd.f32 %v3245, %v3461
        %v3500 = vadd.f32 %v3246, %v3464
        %v3501 = vadd.f32 %v3247, %v3469
        %v3502 = vadd.f32 %v3248, %v3472
        %v3503 = vadd.f32 %v3249, %v3477
        %v3504 = vadd.f32 %v3250, %v3480
        %v3505 = vadd.f32 %v3251, %v3485
        %v3506 = vadd.f32 %v3252, %v3488
        %v3508 = vshrl.u32 %v3257, 16
        %v3510 = vrot.slane %v3508, 4
        %v3511 = vshll.u32 %v3257, 16
        %v3513 = vrot.slane %v3511, 5
        %v3514 = vor.u32 %v3510, %v3513
        %v3515 = vrot.slane %v3514, 4
        %v3517 = vshll.u32 %v3258, 16
        %v3519 = vrot.slane %v3517, 5
        %v3520 = vsel %vm1179, %v3515, %v3519
        %v3521 = vshrl.u32 %v3258, 16
        %v3523 = vrot.slane %v3521, 4
        %v3524 = vor.u32 %v3523, %v3519
        %v3525 = vrot.slane %v3524, 4
        %v3527 = vshll.u32 %v3259, 16
        %v3529 = vrot.slane %v3527, 5
        %v3530 = vsel %vm1179, %v3525, %v3529
        %v3532 = vshrl.u32 %v3260, 16
        %v3534 = vrot.slane %v3532, 4
        %v3535 = vshll.u32 %v3260, 16
        %v3537 = vrot.slane %v3535, 5
        %v3538 = vor.u32 %v3534, %v3537
        %v3539 = vrot.slane %v3538, 4
        %v3541 = vshll.u32 %v3261, 16
        %v3543 = vrot.slane %v3541, 5
        %v3544 = vsel %vm1179, %v3539, %v3543
        %v3545 = vshrl.u32 %v3261, 16
        %v3547 = vrot.slane %v3545, 4
        %v3548 = vor.u32 %v3547, %v3543
        %v3549 = vrot.slane %v3548, 4
        %v3551 = vshll.u32 %v3262, 16
        %v3553 = vrot.slane %v3551, 5
        %v3554 = vsel %vm1179, %v3549, %v3553
        %v3556 = vshrl.u32 %v3263, 16
        %v3558 = vrot.slane %v3556, 4
        %v3559 = vshll.u32 %v3263, 16
        %v3561 = vrot.slane %v3559, 5
        %v3562 = vor.u32 %v3558, %v3561
        %v3563 = vrot.slane %v3562, 4
        %v3565 = vshll.u32 %v3264, 16
        %v3567 = vrot.slane %v3565, 5
        %v3568 = vsel %vm1179, %v3563, %v3567
        %v3569 = vshrl.u32 %v3264, 16
        %v3571 = vrot.slane %v3569, 4
        %v3572 = vor.u32 %v3571, %v3567
        %v3573 = vrot.slane %v3572, 4
        %v3575 = vshll.u32 %v3265, 16
        %v3577 = vrot.slane %v3575, 5
        %v3578 = vsel %vm1179, %v3573, %v3577
        %v3580 = vshrl.u32 %v3266, 16
        %v3582 = vrot.slane %v3580, 4
        %v3583 = vshll.u32 %v3266, 16
        %v3585 = vrot.slane %v3583, 5
        %v3586 = vor.u32 %v3582, %v3585
        %v3587 = vrot.slane %v3586, 4
        %v3589 = vshll.u32 %v3267, 16
        %v3591 = vrot.slane %v3589, 5
        %v3592 = vsel %vm1179, %v3587, %v3591
        %v3593 = vshrl.u32 %v3267, 16
        %v3595 = vrot.slane %v3593, 4
        %v3596 = vor.u32 %v3595, %v3591
        %v3597 = vrot.slane %v3596, 4
        %v3599 = vshll.u32 %v3268, 16
        %v3601 = vrot.slane %v3599, 5
        %v3602 = vsel %vm1179, %v3597, %v3601
        %v3604 = vshrl.u32 %v3269, 16
        %v3606 = vrot.slane %v3604, 4
        %v3607 = vshll.u32 %v3269, 16
        %v3609 = vrot.slane %v3607, 5
        %v3610 = vor.u32 %v3606, %v3609
        %v3611 = vrot.slane %v3610, 4
        %v3613 = vshll.u32 %v3270, 16
        %v3615 = vrot.slane %v3613, 5
        %v3616 = vsel %vm1179, %v3611, %v3615
        %v3617 = vshrl.u32 %v3270, 16
        %v3619 = vrot.slane %v3617, 4
        %v3620 = vor.u32 %v3619, %v3615
        %v3621 = vrot.slane %v3620, 4
        %v3623 = vshll.u32 %v3271, 16
        %v3625 = vrot.slane %v3623, 5
        %v3626 = vsel %vm1179, %v3621, %v3625
        %v3628 = vshrl.u32 %v3272, 16
        %v3630 = vrot.slane %v3628, 4
        %v3631 = vshll.u32 %v3272, 16
        %v3633 = vrot.slane %v3631, 5
        %v3634 = vor.u32 %v3630, %v3633
        %v3635 = vrot.slane %v3634, 4
        %v3637 = vshll.u32 %v3273, 16
        %v3639 = vrot.slane %v3637, 5
        %v3640 = vsel %vm1179, %v3635, %v3639
        %v3641 = vshrl.u32 %v3273, 16
        %v3643 = vrot.slane %v3641, 4
        %v3644 = vor.u32 %v3643, %v3639
        %v3645 = vrot.slane %v3644, 4
        %v3647 = vshll.u32 %v3274, 16
        %v3649 = vrot.slane %v3647, 5
        %v3650 = vsel %vm1179, %v3645, %v3649
        %v3652 = vshrl.u32 %v3275, 16
        %v3654 = vrot.slane %v3652, 4
        %v3655 = vshll.u32 %v3275, 16
        %v3657 = vrot.slane %v3655, 5
        %v3658 = vor.u32 %v3654, %v3657
        %v3659 = vrot.slane %v3658, 4
        %v3661 = vshll.u32 %v3276, 16
        %v3663 = vrot.slane %v3661, 5
        %v3664 = vsel %vm1179, %v3659, %v3663
        %v3665 = vshrl.u32 %v3276, 16
        %v3667 = vrot.slane %v3665, 4
        %v3668 = vor.u32 %v3667, %v3663
        %v3669 = vrot.slane %v3668, 4
        %v3671 = vshll.u32 %v3277, 16
        %v3673 = vrot.slane %v3671, 5
        %v3674 = vsel %vm1179, %v3669, %v3673
        %v3676 = vshrl.u32 %v3278, 16
        %v3678 = vrot.slane %v3676, 4
        %v3679 = vshll.u32 %v3278, 16
        %v3681 = vrot.slane %v3679, 5
        %v3682 = vor.u32 %v3678, %v3681
        %v3683 = vrot.slane %v3682, 4
        %v3685 = vshll.u32 %v3279, 16
        %v3687 = vrot.slane %v3685, 5
        %v3688 = vsel %vm1179, %v3683, %v3687
        %v3689 = vshrl.u32 %v3279, 16
        %v3691 = vrot.slane %v3689, 4
        %v3692 = vor.u32 %v3691, %v3687
        %v3693 = vrot.slane %v3692, 4
        %v3695 = vshll.u32 %v3280, 16
        %v3697 = vrot.slane %v3695, 5
        %v3698 = vsel %vm1179, %v3693, %v3697
        %s3699 = scalar_lea.vmem [#allocation2], 640
        %v3700 = vld [vmem:[%s3699] sm:$0xf]
        %v3701 = vld [vmem:[%s3699 + $0x4] sm:$0xf]
        %v3702 = vld [vmem:[%s3699 + $0x8] sm:$0xf]
        %v3703 = vld [vmem:[%s3699 + $0xc] sm:$0xf]
        %v3704 = vld [vmem:[%s3699 + $0x10] sm:$0xf]
        %v3705 = vld [vmem:[%s3699 + $0x14] sm:$0xf]
        %v3706 = vld [vmem:[%s3699 + $0x18] sm:$0xf]
        %v3707 = vld [vmem:[%s3699 + $0x1c] sm:$0xf]
        %v3708 = vld [vmem:[%s3699 + $0x20] sm:$0xf]
        %v3709 = vld [vmem:[%s3699 + $0x24] sm:$0xf]
        %v3710 = vld [vmem:[%s3699 + $0x28] sm:$0xf]
        %v3711 = vld [vmem:[%s3699 + $0x2c] sm:$0xf]
        %v3712 = vld [vmem:[%s3699 + $0x30] sm:$0xf]
        %v3713 = vld [vmem:[%s3699 + $0x34] sm:$0xf]
        %v3714 = vld [vmem:[%s3699 + $0x38] sm:$0xf]
        %v3715 = vld [vmem:[%s3699 + $0x3c] sm:$0xf]
        %v3716 = vunpack.c.l.b16 %v3520
        %v3717 = vunpack.c.l.b16 %v3530
        %v3718 = vunpack.c.l.b16 %v3544
        %v3719 = vunpack.c.l.b16 %v3554
        %v3720 = vunpack.c.l.b16 %v3568
        %v3721 = vunpack.c.l.b16 %v3578
        %v3722 = vunpack.c.l.b16 %v3592
        %v3723 = vunpack.c.l.b16 %v3602
        %v3724 = vunpack.c.l.b16 %v3616
        %v3725 = vunpack.c.l.b16 %v3626
        %v3726 = vunpack.c.l.b16 %v3640
        %v3727 = vunpack.c.l.b16 %v3650
        %v3728 = vunpack.c.l.b16 %v3664
        %v3729 = vunpack.c.l.b16 %v3674
        %v3730 = vunpack.c.l.b16 %v3688
        %v3731 = vunpack.c.l.b16 %v3698
        %v3732 = vpack.c.b16 %v3717, %v3716
        %v3733 = vpack.c.b16 %v3719, %v3718
        %v3734 = vpack.c.b16 %v3721, %v3720
        %v3735 = vpack.c.b16 %v3723, %v3722
        %v3736 = vpack.c.b16 %v3725, %v3724
        %v3737 = vpack.c.b16 %v3727, %v3726
        %v3738 = vpack.c.b16 %v3729, %v3728
        %v3739 = vpack.c.b16 %v3731, %v3730
        %v3764 = vunpack.c.l.b16 %v3700
        %v3765 = vunpack.c.l.b16 %v3701
        %v3766 = vunpack.c.l.b16 %v3702
        %v3767 = vunpack.c.l.b16 %v3703
        %v3768 = vunpack.c.l.b16 %v3704
        %v3769 = vunpack.c.l.b16 %v3705
        %v3770 = vunpack.c.l.b16 %v3706
        %v3771 = vunpack.c.l.b16 %v3707
        %v3772 = vunpack.c.l.b16 %v3708
        %v3773 = vunpack.c.l.b16 %v3709
        %v3774 = vunpack.c.l.b16 %v3710
        %v3775 = vunpack.c.l.b16 %v3711
        %v3776 = vunpack.c.l.b16 %v3712
        %v3777 = vunpack.c.l.b16 %v3713
        %v3778 = vunpack.c.l.b16 %v3714
        %v3779 = vunpack.c.l.b16 %v3715
        %v3780 = vpack.c.b16 %v3765, %v3764
        %v3781 = vpack.c.b16 %v3767, %v3766
        %v3782 = vpack.c.b16 %v3769, %v3768
        %v3783 = vpack.c.b16 %v3771, %v3770
        %v3784 = vpack.c.b16 %v3773, %v3772
        %v3785 = vpack.c.b16 %v3775, %v3774
        %v3786 = vpack.c.b16 %v3777, %v3776
        %v3787 = vpack.c.b16 %v3779, %v3778
        %3796 = vmatprep.subr.bf16.mxu0 0
        %3797 = vmatpush1.bf16.msra.mxu0 %v3780
        %3798 = vmatprep.subr.bf16.mxu0 0
        %3799 = vmatpush1.bf16.msra.mxu0 %v3781
        %3800 = vmatprep.subr.bf16.mxu0 0
        %3801 = vmatpush1.bf16.msra.mxu0 %v3782
        %3802 = vmatprep.subr.bf16.mxu0 0
        %3803 = vmatpush1.bf16.msra.mxu0 %v3783
        %3804 = vmatprep.subr.bf16.mxu0 0
        %3805 = vmatpush1.bf16.msra.mxu0 %v3784
        %3806 = vmatprep.subr.bf16.mxu0 0
        %3807 = vmatpush1.bf16.msra.mxu0 %v3785
        %3808 = vmatprep.subr.bf16.mxu0 0
        %3809 = vmatpush1.bf16.msra.mxu0 %v3786
        %3810 = vmatprep.subr.bf16.mxu0 0
        %3811 = vmatpush1.bf16.msra.mxu0 %v3787
        %3812 = vmatprep.subr.bf16.mxu0 0
        %3813 = vmatpush1.bf16.msra.mxu0 0
        %3814 = vmatprep.subr.bf16.mxu0 0
        %3815 = vmatpush1.bf16.msra.mxu0 0
        %3816 = vmatprep.subr.bf16.mxu0 0
        %3817 = vmatpush1.bf16.msra.mxu0 0
        %3818 = vmatprep.subr.bf16.mxu0 0
        %3819 = vmatpush1.bf16.msra.mxu0 0
        %3820 = vmatprep.subr.bf16.mxu0 0
        %3821 = vmatpush1.bf16.msra.mxu0 0
        %3822 = vmatprep.subr.bf16.mxu0 0
        %3823 = vmatpush1.bf16.msra.mxu0 0
        %3824 = vmatprep.subr.bf16.mxu0 0
        %3825 = vmatpush1.bf16.msra.mxu0 0
        %3826 = vmatprep.subr.bf16.mxu0 0
        %3827 = vmatpush1.bf16.msra.mxu0 0
        %3828 = vmatprep.mubr.bf16.mxu0 0
        %3829 = vmatmul.mubr.bf16.gmra.mrb[0].mxu0 %v3732
        %v3830 = vpop.f32.mrb[0].mxu0
        %v3831 = vadd.f32 0.0, %v3830
        %v3832 = vpop.f32.mrb[0].mxu0
        %v3833 = vpop.f32.mrb[0].mxu0
        %v3834 = vadd.f32 0.0, %v3833
        %v3835 = vpop.f32.mrb[0].mxu0
        %3836 = vmatprep.mubr.bf16.mxu0 0
        %3837 = vmatmul.mubr.bf16.gmra.mrb[0].mxu0 %v3733
        %v3838 = vpop.f32.mrb[0].mxu0
        %v3839 = vadd.f32 0.0, %v3838
        %v3840 = vpop.f32.mrb[0].mxu0
        %v3841 = vpop.f32.mrb[0].mxu0
        %v3842 = vadd.f32 0.0, %v3841
        %v3843 = vpop.f32.mrb[0].mxu0
        %3844 = vmatprep.mubr.bf16.mxu0 0
        %3845 = vmatmul.mubr.bf16.gmra.mrb[0].mxu0 %v3734
        %v3846 = vpop.f32.mrb[0].mxu0
        %v3847 = vadd.f32 0.0, %v3846
        %v3848 = vpop.f32.mrb[0].mxu0
        %v3849 = vpop.f32.mrb[0].mxu0
        %v3850 = vadd.f32 0.0, %v3849
        %v3851 = vpop.f32.mrb[0].mxu0
        %3852 = vmatprep.mubr.bf16.mxu0 0
        %3853 = vmatmul.mubr.bf16.gmra.mrb[0].mxu0 %v3735
        %v3854 = vpop.f32.mrb[0].mxu0
        %v3855 = vadd.f32 0.0, %v3854
        %v3856 = vpop.f32.mrb[0].mxu0
        %v3857 = vpop.f32.mrb[0].mxu0
        %v3858 = vadd.f32 0.0, %v3857
        %v3859 = vpop.f32.mrb[0].mxu0
        %3860 = vmatprep.mubr.bf16.mxu0 0
        %3861 = vmatmul.mubr.bf16.gmra.mrb[0].mxu0 %v3736
        %v3862 = vpop.f32.mrb[0].mxu0
        %v3863 = vadd.f32 0.0, %v3862
        %v3864 = vpop.f32.mrb[0].mxu0
        %v3865 = vpop.f32.mrb[0].mxu0
        %v3866 = vadd.f32 0.0, %v3865
        %v3867 = vpop.f32.mrb[0].mxu0
        %3868 = vmatprep.mubr.bf16.mxu0 0
        %3869 = vmatmul.mubr.bf16.gmra.mrb[0].mxu0 %v3737
        %v3870 = vpop.f32.mrb[0].mxu0
        %v3871 = vadd.f32 0.0, %v3870
        %v3872 = vpop.f32.mrb[0].mxu0
        %v3873 = vpop.f32.mrb[0].mxu0
        %v3874 = vadd.f32 0.0, %v3873
        %v3875 = vpop.f32.mrb[0].mxu0
        %3876 = vmatprep.mubr.bf16.mxu0 0
        %3877 = vmatmul.mubr.bf16.gmra.mrb[0].mxu0 %v3738
        %v3878 = vpop.f32.mrb[0].mxu0
        %v3879 = vadd.f32 0.0, %v3878
        %v3880 = vpop.f32.mrb[0].mxu0
        %v3881 = vpop.f32.mrb[0].mxu0
        %v3882 = vadd.f32 0.0, %v3881
        %v3883 = vpop.f32.mrb[0].mxu0
        %3884 = vmatprep.mubr.bf16.mxu0 0
        %3885 = vmatmul.mubr.bf16.gmra.mrb[0].mxu0 %v3739
        %v3886 = vpop.f32.mrb[0].mxu0
        %v3887 = vadd.f32 0.0, %v3886
        %v3888 = vpop.f32.mrb[0].mxu0
        %v3889 = vpop.f32.mrb[0].mxu0
        %v3890 = vadd.f32 0.0, %v3889
        %v3891 = vpop.f32.mrb[0].mxu0
        %3892 = vdwg.mxu0
        %v3893 = vadd.f32 %v3491, %v3831
        %v3894 = vadd.f32 %v3492, %v3834
        %v3895 = vadd.f32 %v3493, %v3839
        %v3896 = vadd.f32 %v3494, %v3842
        %v3897 = vadd.f32 %v3495, %v3847
        %v3898 = vadd.f32 %v3496, %v3850
        %v3899 = vadd.f32 %v3497, %v3855
        %v3900 = vadd.f32 %v3498, %v3858
        %v3901 = vadd.f32 %v3499, %v3863
        %v3902 = vadd.f32 %v3500, %v3866
        %v3903 = vadd.f32 %v3501, %v3871
        %v3904 = vadd.f32 %v3502, %v3874
        %v3905 = vadd.f32 %v3503, %v3879
        %v3906 = vadd.f32 %v3504, %v3882
        %v3907 = vadd.f32 %v3505, %v3887
        %v3908 = vadd.f32 %v3506, %v3890
        %v3917 = vrot.slane %v3257, 5
        %v3918 = vrot.slane %v3917, 4
        %v3919 = vrot.slane %v3258, 5
        %v3920 = vsel %vm2283, %v3918, %v3919
        %v3921 = vrot.slane %v3919, 4
        %v3922 = vrot.slane %v3259, 5
        %v3923 = vsel %vm2283, %v3921, %v3922
        %v3924 = vrot.slane %v3260, 5
        %v3925 = vrot.slane %v3924, 4
        %v3926 = vrot.slane %v3261, 5
        %v3927 = vsel %vm2283, %v3925, %v3926
        %v3928 = vrot.slane %v3926, 4
        %v3929 = vrot.slane %v3262, 5
        %v3930 = vsel %vm2283, %v3928, %v3929
        %v3931 = vrot.slane %v3263, 5
        %v3932 = vrot.slane %v3931, 4
        %v3933 = vrot.slane %v3264, 5
        %v3934 = vsel %vm2283, %v3932, %v3933
        %v3935 = vrot.slane %v3933, 4
        %v3936 = vrot.slane %v3265, 5
        %v3937 = vsel %vm2283, %v3935, %v3936
        %v3938 = vrot.slane %v3266, 5
        %v3939 = vrot.slane %v3938, 4
        %v3940 = vrot.slane %v3267, 5
        %v3941 = vsel %vm2283, %v3939, %v3940
        %v3942 = vrot.slane %v3940, 4
        %v3943 = vrot.slane %v3268, 5
        %v3944 = vsel %vm2283, %v3942, %v3943
        %v3945 = vrot.slane %v3269, 5
        %v3946 = vrot.slane %v3945, 4
        %v3947 = vrot.slane %v3270, 5
        %v3948 = vsel %vm2283, %v3946, %v3947
        %v3949 = vrot.slane %v3947, 4
        %v3950 = vrot.slane %v3271, 5
        %v3951 = vsel %vm2283, %v3949, %v3950
        %v3952 = vrot.slane %v3272, 5
        %v3953 = vrot.slane %v3952, 4
        %v3954 = vrot.slane %v3273, 5
        %v3955 = vsel %vm2283, %v3953, %v3954
        %v3956 = vrot.slane %v3954, 4
        %v3957 = vrot.slane %v3274, 5
        %v3958 = vsel %vm2283, %v3956, %v3957
        %v3959 = vrot.slane %v3275, 5
        %v3960 = vrot.slane %v3959, 4
        %v3961 = vrot.slane %v3276, 5
        %v3962 = vsel %vm2283, %v3960, %v3961
        %v3963 = vrot.slane %v3961, 4
        %v3964 = vrot.slane %v3277, 5
        %v3965 = vsel %vm2283, %v3963, %v3964
        %v3966 = vrot.slane %v3278, 5
        %v3967 = vrot.slane %v3966, 4
        %v3968 = vrot.slane %v3279, 5
        %v3969 = vsel %vm2283, %v3967, %v3968
        %v3970 = vrot.slane %v3968, 4
        %v3971 = vrot.slane %v3280, 5
        %v3972 = vsel %vm2283, %v3970, %v3971
        %s3973 = scalar_lea.vmem [#allocation2], 704
        %v3974 = vld [vmem:[%s3973] sm:$0xf]
        %v3975 = vld [vmem:[%s3973 + $0x4] sm:$0xf]
        %v3976 = vld [vmem:[%s3973 + $0x8] sm:$0xf]
        %v3977 = vld [vmem:[%s3973 + $0xc] sm:$0xf]
        %v3978 = vld [vmem:[%s3973 + $0x10] sm:$0xf]
        %v3979 = vld [vmem:[%s3973 + $0x14] sm:$0xf]
        %v3980 = vld [vmem:[%s3973 + $0x18] sm:$0xf]
        %v3981 = vld [vmem:[%s3973 + $0x1c] sm:$0xf]
        %v3982 = vld [vmem:[%s3973 + $0x20] sm:$0xf]
        %v3983 = vld [vmem:[%s3973 + $0x24] sm:$0xf]
        %v3984 = vld [vmem:[%s3973 + $0x28] sm:$0xf]
        %v3985 = vld [vmem:[%s3973 + $0x2c] sm:$0xf]
        %v3986 = vld [vmem:[%s3973 + $0x30] sm:$0xf]
        %v3987 = vld [vmem:[%s3973 + $0x34] sm:$0xf]
        %v3988 = vld [vmem:[%s3973 + $0x38] sm:$0xf]
        %v3989 = vld [vmem:[%s3973 + $0x3c] sm:$0xf]
        %v3990 = vunpack.c.l.b16 %v3920
        %v3991 = vunpack.c.l.b16 %v3923
        %v3992 = vunpack.c.l.b16 %v3927
        %v3993 = vunpack.c.l.b16 %v3930
        %v3994 = vunpack.c.l.b16 %v3934
        %v3995 = vunpack.c.l.b16 %v3937
        %v3996 = vunpack.c.l.b16 %v3941
        %v3997 = vunpack.c.l.b16 %v3944
        %v3998 = vunpack.c.l.b16 %v3948
        %v3999 = vunpack.c.l.b16 %v3951
        %v4000 = vunpack.c.l.b16 %v3955
        %v4001 = vunpack.c.l.b16 %v3958
        %v4002 = vunpack.c.l.b16 %v3962
        %v4003 = vunpack.c.l.b16 %v3965
        %v4004 = vunpack.c.l.b16 %v3969
        %v4005 = vunpack.c.l.b16 %v3972
        %v4006 = vpack.c.b16 %v3991, %v3990
        %v4007 = vpack.c.b16 %v3993, %v3992
        %v4008 = vpack.c.b16 %v3995, %v3994
        %v4009 = vpack.c.b16 %v3997, %v3996
        %v4010 = vpack.c.b16 %v3999, %v3998
        %v4011 = vpack.c.b16 %v4001, %v4000
        %v4012 = vpack.c.b16 %v4003, %v4002
        %v4013 = vpack.c.b16 %v4005, %v4004
        %v4038 = vunpack.c.l.b16 %v3974
        %v4039 = vunpack.c.l.b16 %v3975
        %v4040 = vunpack.c.l.b16 %v3976
        %v4041 = vunpack.c.l.b16 %v3977
        %v4042 = vunpack.c.l.b16 %v3978
        %v4043 = vunpack.c.l.b16 %v3979
        %v4044 = vunpack.c.l.b16 %v3980
        %v4045 = vunpack.c.l.b16 %v3981
        %v4046 = vunpack.c.l.b16 %v3982
        %v4047 = vunpack.c.l.b16 %v3983
        %v4048 = vunpack.c.l.b16 %v3984
        %v4049 = vunpack.c.l.b16 %v3985
        %v4050 = vunpack.c.l.b16 %v3986
        %v4051 = vunpack.c.l.b16 %v3987
        %v4052 = vunpack.c.l.b16 %v3988
        %v4053 = vunpack.c.l.b16 %v3989
        %v4054 = vpack.c.b16 %v4039, %v4038
        %v4055 = vpack.c.b16 %v4041, %v4040
        %v4056 = vpack.c.b16 %v4043, %v4042
        %v4057 = vpack.c.b16 %v4045, %v4044
        %v4058 = vpack.c.b16 %v4047, %v4046
        %v4059 = vpack.c.b16 %v4049, %v4048
        %v4060 = vpack.c.b16 %v4051, %v4050
        %v4061 = vpack.c.b16 %v4053, %v4052
        %4070 = vmatprep.subr.bf16.mxu0 0
        %4071 = vmatpush1.bf16.msra.mxu0 %v4054
        %4072 = vmatprep.subr.bf16.mxu0 0
        %4073 = vmatpush1.bf16.msra.mxu0 %v4055
        %4074 = vmatprep.subr.bf16.mxu0 0
        %4075 = vmatpush1.bf16.msra.mxu0 %v4056
        %4076 = vmatprep.subr.bf16.mxu0 0
        %4077 = vmatpush1.bf16.msra.mxu0 %v4057
        %4078 = vmatprep.subr.bf16.mxu0 0
        %4079 = vmatpush1.bf16.msra.mxu0 %v4058
        %4080 = vmatprep.subr.bf16.mxu0 0
        %4081 = vmatpush1.bf16.msra.mxu0 %v4059
        %4082 = vmatprep.subr.bf16.mxu0 0
        %4083 = vmatpush1.bf16.msra.mxu0 %v4060
        %4084 = vmatprep.subr.bf16.mxu0 0
        %4085 = vmatpush1.bf16.msra.mxu0 %v4061
        %4086 = vmatprep.subr.bf16.mxu0 0
        %4087 = vmatpush1.bf16.msra.mxu0 0
        %4088 = vmatprep.subr.bf16.mxu0 0
        %4089 = vmatpush1.bf16.msra.mxu0 0
        %4090 = vmatprep.subr.bf16.mxu0 0
        %4091 = vmatpush1.bf16.msra.mxu0 0
        %4092 = vmatprep.subr.bf16.mxu0 0
        %4093 = vmatpush1.bf16.msra.mxu0 0
        %4094 = vmatprep.subr.bf16.mxu0 0
        %4095 = vmatpush1.bf16.msra.mxu0 0
        %4096 = vmatprep.subr.bf16.mxu0 0
        %4097 = vmatpush1.bf16.msra.mxu0 0
        %4098 = vmatprep.subr.bf16.mxu0 0
        %4099 = vmatpush1.bf16.msra.mxu0 0
        %4100 = vmatprep.subr.bf16.mxu0 0
        %4101 = vmatpush1.bf16.msra.mxu0 0
        %4102 = vmatprep.mubr.bf16.mxu0 0
        %4103 = vmatmul.mubr.bf16.gmra.mrb[0].mxu0 %v4006
        %v4104 = vpop.f32.mrb[0].mxu0
        %v4105 = vadd.f32 0.0, %v4104
        %v4106 = vpop.f32.mrb[0].mxu0
        %v4107 = vpop.f32.mrb[0].mxu0
        %v4108 = vadd.f32 0.0, %v4107
        %v4109 = vpop.f32.mrb[0].mxu0
        %4110 = vmatprep.mubr.bf16.mxu0 0
        %4111 = vmatmul.mubr.bf16.gmra.mrb[0].mxu0 %v4007
        %v4112 = vpop.f32.mrb[0].mxu0
        %v4113 = vadd.f32 0.0, %v4112
        %v4114 = vpop.f32.mrb[0].mxu0
        %v4115 = vpop.f32.mrb[0].mxu0
        %v4116 = vadd.f32 0.0, %v4115
        %v4117 = vpop.f32.mrb[0].mxu0
        %4118 = vmatprep.mubr.bf16.mxu0 0
        %4119 = vmatmul.mubr.bf16.gmra.mrb[0].mxu0 %v4008
        %v4120 = vpop.f32.mrb[0].mxu0
        %v4121 = vadd.f32 0.0, %v4120
        %v4122 = vpop.f32.mrb[0].mxu0
        %v4123 = vpop.f32.mrb[0].mxu0
        %v4124 = vadd.f32 0.0, %v4123
        %v4125 = vpop.f32.mrb[0].mxu0
        %4126 = vmatprep.mubr.bf16.mxu0 0
        %4127 = vmatmul.mubr.bf16.gmra.mrb[0].mxu0 %v4009
        %v4128 = vpop.f32.mrb[0].mxu0
        %v4129 = vadd.f32 0.0, %v4128
        %v4130 = vpop.f32.mrb[0].mxu0
        %v4131 = vpop.f32.mrb[0].mxu0
        %v4132 = vadd.f32 0.0, %v4131
        %v4133 = vpop.f32.mrb[0].mxu0
        %4134 = vmatprep.mubr.bf16.mxu0 0
        %4135 = vmatmul.mubr.bf16.gmra.mrb[0].mxu0 %v4010
        %v4136 = vpop.f32.mrb[0].mxu0
        %v4137 = vadd.f32 0.0, %v4136
        %v4138 = vpop.f32.mrb[0].mxu0
        %v4139 = vpop.f32.mrb[0].mxu0
        %v4140 = vadd.f32 0.0, %v4139
        %v4141 = vpop.f32.mrb[0].mxu0
        %4142 = vmatprep.mubr.bf16.mxu0 0
        %4143 = vmatmul.mubr.bf16.gmra.mrb[0].mxu0 %v4011
        %v4144 = vpop.f32.mrb[0].mxu0
        %v4145 = vadd.f32 0.0, %v4144
        %v4146 = vpop.f32.mrb[0].mxu0
        %v4147 = vpop.f32.mrb[0].mxu0
        %v4148 = vadd.f32 0.0, %v4147
        %v4149 = vpop.f32.mrb[0].mxu0
        %4150 = vmatprep.mubr.bf16.mxu0 0
        %4151 = vmatmul.mubr.bf16.gmra.mrb[0].mxu0 %v4012
        %v4152 = vpop.f32.mrb[0].mxu0
        %v4153 = vadd.f32 0.0, %v4152
        %v4154 = vpop.f32.mrb[0].mxu0
        %v4155 = vpop.f32.mrb[0].mxu0
        %v4156 = vadd.f32 0.0, %v4155
        %v4157 = vpop.f32.mrb[0].mxu0
        %4158 = vmatprep.mubr.bf16.mxu0 0
        %4159 = vmatmul.mubr.bf16.gmra.mrb[0].mxu0 %v4013
        %v4160 = vpop.f32.mrb[0].mxu0
        %v4161 = vadd.f32 0.0, %v4160
        %v4162 = vpop.f32.mrb[0].mxu0
        %v4163 = vpop.f32.mrb[0].mxu0
        %v4164 = vadd.f32 0.0, %v4163
        %v4165 = vpop.f32.mrb[0].mxu0
        %4166 = vdwg.mxu0
        %v4167 = vadd.f32 %v3893, %v4105
        %v4168 = vadd.f32 %v3894, %v4108
        %v4169 = vadd.f32 %v3895, %v4113
        %v4170 = vadd.f32 %v3896, %v4116
        %v4171 = vadd.f32 %v3897, %v4121
        %v4172 = vadd.f32 %v3898, %v4124
        %v4173 = vadd.f32 %v3899, %v4129
        %v4174 = vadd.f32 %v3900, %v4132
        %v4175 = vadd.f32 %v3901, %v4137
        %v4176 = vadd.f32 %v3902, %v4140
        %v4177 = vadd.f32 %v3903, %v4145
        %v4178 = vadd.f32 %v3904, %v4148
        %v4179 = vadd.f32 %v3905, %v4153
        %v4180 = vadd.f32 %v3906, %v4156
        %v4181 = vadd.f32 %v3907, %v4161
        %v4182 = vadd.f32 %v3908, %v4164
        %v4183 = vrot.slane %v3508, 5
        %v4184 = vrot.slane %v3511, 6
        %v4185 = vor.u32 %v4183, %v4184
        %v4186 = vrot.slane %v4185, 4
        %v4187 = vrot.slane %v3521, 5
        %v4188 = vrot.slane %v3517, 6
        %v4189 = vor.u32 %v4187, %v4188
        %v4190 = vsel %vm260, %v4186, %v4189
        %v4191 = vrot.slane %v4189, 4
        %v4192 = vshrl.u32 %v3259, 16
        %v4194 = vrot.slane %v4192, 5
        %v4195 = vrot.slane %v3527, 6
        %v4196 = vor.u32 %v4194, %v4195
        %v4197 = vsel %vm260, %v4191, %v4196
        %v4198 = vrot.slane %v3532, 5
        %v4199 = vrot.slane %v3535, 6
        %v4200 = vor.u32 %v4198, %v4199
        %v4201 = vrot.slane %v4200, 4
        %v4202 = vrot.slane %v3545, 5
        %v4203 = vrot.slane %v3541, 6
        %v4204 = vor.u32 %v4202, %v4203
        %v4205 = vsel %vm260, %v4201, %v4204
        %v4206 = vrot.slane %v4204, 4
        %v4207 = vshrl.u32 %v3262, 16
        %v4209 = vrot.slane %v4207, 5
        %v4210 = vrot.slane %v3551, 6
        %v4211 = vor.u32 %v4209, %v4210
        %v4212 = vsel %vm260, %v4206, %v4211
        %v4213 = vrot.slane %v3556, 5
        %v4214 = vrot.slane %v3559, 6
        %v4215 = vor.u32 %v4213, %v4214
        %v4216 = vrot.slane %v4215, 4
        %v4217 = vrot.slane %v3569, 5
        %v4218 = vrot.slane %v3565, 6
        %v4219 = vor.u32 %v4217, %v4218
        %v4220 = vsel %vm260, %v4216, %v4219
        %v4221 = vrot.slane %v4219, 4
        %v4222 = vshrl.u32 %v3265, 16
        %v4224 = vrot.slane %v4222, 5
        %v4225 = vrot.slane %v3575, 6
        %v4226 = vor.u32 %v4224, %v4225
        %v4227 = vsel %vm260, %v4221, %v4226
        %v4228 = vrot.slane %v3580, 5
        %v4229 = vrot.slane %v3583, 6
        %v4230 = vor.u32 %v4228, %v4229
        %v4231 = vrot.slane %v4230, 4
        %v4232 = vrot.slane %v3593, 5
        %v4233 = vrot.slane %v3589, 6
        %v4234 = vor.u32 %v4232, %v4233
        %v4235 = vsel %vm260, %v4231, %v4234
        %v4236 = vrot.slane %v4234, 4
        %v4237 = vshrl.u32 %v3268, 16
        %v4239 = vrot.slane %v4237, 5
        %v4240 = vrot.slane %v3599, 6
        %v4241 = vor.u32 %v4239, %v4240
        %v4242 = vsel %vm260, %v4236, %v4241
        %v4243 = vrot.slane %v3604, 5
        %v4244 = vrot.slane %v3607, 6
        %v4245 = vor.u32 %v4243, %v4244
        %v4246 = vrot.slane %v4245, 4
        %v4247 = vrot.slane %v3617, 5
        %v4248 = vrot.slane %v3613, 6
        %v4249 = vor.u32 %v4247, %v4248
        %v4250 = vsel %vm260, %v4246, %v4249
        %v4251 = vrot.slane %v4249, 4
        %v4252 = vshrl.u32 %v3271, 16
        %v4254 = vrot.slane %v4252, 5
        %v4255 = vrot.slane %v3623, 6
        %v4256 = vor.u32 %v4254, %v4255
        %v4257 = vsel %vm260, %v4251, %v4256
        %v4258 = vrot.slane %v3628, 5
        %v4259 = vrot.slane %v3631, 6
        %v4260 = vor.u32 %v4258, %v4259
        %v4261 = vrot.slane %v4260, 4
        %v4262 = vrot.slane %v3641, 5
        %v4263 = vrot.slane %v3637, 6
        %v4264 = vor.u32 %v4262, %v4263
        %v4265 = vsel %vm260, %v4261, %v4264
        %v4266 = vrot.slane %v4264, 4
        %v4267 = vshrl.u32 %v3274, 16
        %v4269 = vrot.slane %v4267, 5
        %v4270 = vrot.slane %v3647, 6
        %v4271 = vor.u32 %v4269, %v4270
        %v4272 = vsel %vm260, %v4266, %v4271
        %v4273 = vrot.slane %v3652, 5
        %v4274 = vrot.slane %v3655, 6
        %v4275 = vor.u32 %v4273, %v4274
        %v4276 = vrot.slane %v4275, 4
        %v4277 = vrot.slane %v3665, 5
        %v4278 = vrot.slane %v3661, 6
        %v4279 = vor.u32 %v4277, %v4278
        %v4280 = vsel %vm260, %v4276, %v4279
        %v4281 = vrot.slane %v4279, 4
        %v4282 = vshrl.u32 %v3277, 16
        %v4284 = vrot.slane %v4282, 5
        %v4285 = vrot.slane %v3671, 6
        %v4286 = vor.u32 %v4284, %v4285
        %v4287 = vsel %vm260, %v4281, %v4286
        %v4288 = vrot.slane %v3676, 5
        %v4289 = vrot.slane %v3679, 6
        %v4290 = vor.u32 %v4288, %v4289
        %v4291 = vrot.slane %v4290, 4
        %v4292 = vrot.slane %v3689, 5
        %v4293 = vrot.slane %v3685, 6
        %v4294 = vor.u32 %v4292, %v4293
        %v4295 = vsel %vm260, %v4291, %v4294
        %v4296 = vrot.slane %v4294, 4
        %v4297 = vshrl.u32 %v3280, 16
        %v4299 = vrot.slane %v4297, 5
        %v4300 = vrot.slane %v3695, 6
        %v4301 = vor.u32 %v4299, %v4300
        %v4302 = vsel %vm260, %v4296, %v4301
        %s4303 = scalar_lea.vmem [#allocation2], 768
        %v4304 = vld [vmem:[%s4303] sm:$0xf]
        %v4305 = vld [vmem:[%s4303 + $0x4] sm:$0xf]
        %v4306 = vld [vmem:[%s4303 + $0x8] sm:$0xf]
        %v4307 = vld [vmem:[%s4303 + $0xc] sm:$0xf]
        %v4308 = vld [vmem:[%s4303 + $0x10] sm:$0xf]
        %v4309 = vld [vmem:[%s4303 + $0x14] sm:$0xf]
        %v4310 = vld [vmem:[%s4303 + $0x18] sm:$0xf]
        %v4311 = vld [vmem:[%s4303 + $0x1c] sm:$0xf]
        %v4312 = vld [vmem:[%s4303 + $0x20] sm:$0xf]
        %v4313 = vld [vmem:[%s4303 + $0x24] sm:$0xf]
        %v4314 = vld [vmem:[%s4303 + $0x28] sm:$0xf]
        %v4315 = vld [vmem:[%s4303 + $0x2c] sm:$0xf]
        %v4316 = vld [vmem:[%s4303 + $0x30] sm:$0xf]
        %v4317 = vld [vmem:[%s4303 + $0x34] sm:$0xf]
        %v4318 = vld [vmem:[%s4303 + $0x38] sm:$0xf]
        %v4319 = vld [vmem:[%s4303 + $0x3c] sm:$0xf]
        %v4320 = vunpack.c.l.b16 %v4190
        %v4321 = vunpack.c.l.b16 %v4197
        %v4322 = vunpack.c.l.b16 %v4205
        %v4323 = vunpack.c.l.b16 %v4212
        %v4324 = vunpack.c.l.b16 %v4220
        %v4325 = vunpack.c.l.b16 %v4227
        %v4326 = vunpack.c.l.b16 %v4235
        %v4327 = vunpack.c.l.b16 %v4242
        %v4328 = vunpack.c.l.b16 %v4250
        %v4329 = vunpack.c.l.b16 %v4257
        %v4330 = vunpack.c.l.b16 %v4265
        %v4331 = vunpack.c.l.b16 %v4272
        %v4332 = vunpack.c.l.b16 %v4280
        %v4333 = vunpack.c.l.b16 %v4287
        %v4334 = vunpack.c.l.b16 %v4295
        %v4335 = vunpack.c.l.b16 %v4302
        %v4336 = vpack.c.b16 %v4321, %v4320
        %v4337 = vpack.c.b16 %v4323, %v4322
        %v4338 = vpack.c.b16 %v4325, %v4324
        %v4339 = vpack.c.b16 %v4327, %v4326
        %v4340 = vpack.c.b16 %v4329, %v4328
        %v4341 = vpack.c.b16 %v4331, %v4330
        %v4342 = vpack.c.b16 %v4333, %v4332
        %v4343 = vpack.c.b16 %v4335, %v4334
        %v4368 = vunpack.c.l.b16 %v4304
        %v4369 = vunpack.c.l.b16 %v4305
        %v4370 = vunpack.c.l.b16 %v4306
        %v4371 = vunpack.c.l.b16 %v4307
        %v4372 = vunpack.c.l.b16 %v4308
        %v4373 = vunpack.c.l.b16 %v4309
        %v4374 = vunpack.c.l.b16 %v4310
        %v4375 = vunpack.c.l.b16 %v4311
        %v4376 = vunpack.c.l.b16 %v4312
        %v4377 = vunpack.c.l.b16 %v4313
        %v4378 = vunpack.c.l.b16 %v4314
        %v4379 = vunpack.c.l.b16 %v4315
        %v4380 = vunpack.c.l.b16 %v4316
        %v4381 = vunpack.c.l.b16 %v4317
        %v4382 = vunpack.c.l.b16 %v4318
        %v4383 = vunpack.c.l.b16 %v4319
        %v4384 = vpack.c.b16 %v4369, %v4368
        %v4385 = vpack.c.b16 %v4371, %v4370
        %v4386 = vpack.c.b16 %v4373, %v4372
        %v4387 = vpack.c.b16 %v4375, %v4374
        %v4388 = vpack.c.b16 %v4377, %v4376
        %v4389 = vpack.c.b16 %v4379, %v4378
        %v4390 = vpack.c.b16 %v4381, %v4380
        %v4391 = vpack.c.b16 %v4383, %v4382
        %4400 = vmatprep.subr.bf16.mxu0 0
        %4401 = vmatpush1.bf16.msra.mxu0 %v4384
        %4402 = vmatprep.subr.bf16.mxu0 0
        %4403 = vmatpush1.bf16.msra.mxu0 %v4385
        %4404 = vmatprep.subr.bf16.mxu0 0
        %4405 = vmatpush1.bf16.msra.mxu0 %v4386
        %4406 = vmatprep.subr.bf16.mxu0 0
        %4407 = vmatpush1.bf16.msra.mxu0 %v4387
        %4408 = vmatprep.subr.bf16.mxu0 0
        %4409 = vmatpush1.bf16.msra.mxu0 %v4388
        %4410 = vmatprep.subr.bf16.mxu0 0
        %4411 = vmatpush1.bf16.msra.mxu0 %v4389
        %4412 = vmatprep.subr.bf16.mxu0 0
        %4413 = vmatpush1.bf16.msra.mxu0 %v4390
        %4414 = vmatprep.subr.bf16.mxu0 0
        %4415 = vmatpush1.bf16.msra.mxu0 %v4391
        %4416 = vmatprep.subr.bf16.mxu0 0
        %4417 = vmatpush1.bf16.msra.mxu0 0
        %4418 = vmatprep.subr.bf16.mxu0 0
        %4419 = vmatpush1.bf16.msra.mxu0 0
        %4420 = vmatprep.subr.bf16.mxu0 0
        %4421 = vmatpush1.bf16.msra.mxu0 0
        %4422 = vmatprep.subr.bf16.mxu0 0
        %4423 = vmatpush1.bf16.msra.mxu0 0
        %4424 = vmatprep.subr.bf16.mxu0 0
        %4425 = vmatpush1.bf16.msra.mxu0 0
        %4426 = vmatprep.subr.bf16.mxu0 0
        %4427 = vmatpush1.bf16.msra.mxu0 0
        %4428 = vmatprep.subr.bf16.mxu0 0
        %4429 = vmatpush1.bf16.msra.mxu0 0
        %4430 = vmatprep.subr.bf16.mxu0 0
        %4431 = vmatpush1.bf16.msra.mxu0 0
        %4432 = vmatprep.mubr.bf16.mxu0 0
        %4433 = vmatmul.mubr.bf16.gmra.mrb[0].mxu0 %v4336
        %v4434 = vpop.f32.mrb[0].mxu0
        %v4435 = vadd.f32 0.0, %v4434
        %v4436 = vpop.f32.mrb[0].mxu0
        %v4437 = vpop.f32.mrb[0].mxu0
        %v4438 = vadd.f32 0.0, %v4437
        %v4439 = vpop.f32.mrb[0].mxu0
        %4440 = vmatprep.mubr.bf16.mxu0 0
        %4441 = vmatmul.mubr.bf16.gmra.mrb[0].mxu0 %v4337
        %v4442 = vpop.f32.mrb[0].mxu0
        %v4443 = vadd.f32 0.0, %v4442
        %v4444 = vpop.f32.mrb[0].mxu0
        %v4445 = vpop.f32.mrb[0].mxu0
        %v4446 = vadd.f32 0.0, %v4445
        %v4447 = vpop.f32.mrb[0].mxu0
        %4448 = vmatprep.mubr.bf16.mxu0 0
        %4449 = vmatmul.mubr.bf16.gmra.mrb[0].mxu0 %v4338
        %v4450 = vpop.f32.mrb[0].mxu0
        %v4451 = vadd.f32 0.0, %v4450
        %v4452 = vpop.f32.mrb[0].mxu0
        %v4453 = vpop.f32.mrb[0].mxu0
        %v4454 = vadd.f32 0.0, %v4453
        %v4455 = vpop.f32.mrb[0].mxu0
        %4456 = vmatprep.mubr.bf16.mxu0 0
        %4457 = vmatmul.mubr.bf16.gmra.mrb[0].mxu0 %v4339
        %v4458 = vpop.f32.mrb[0].mxu0
        %v4459 = vadd.f32 0.0, %v4458
        %v4460 = vpop.f32.mrb[0].mxu0
        %v4461 = vpop.f32.mrb[0].mxu0
        %v4462 = vadd.f32 0.0, %v4461
        %v4463 = vpop.f32.mrb[0].mxu0
        %4464 = vmatprep.mubr.bf16.mxu0 0
        %4465 = vmatmul.mubr.bf16.gmra.mrb[0].mxu0 %v4340
        %v4466 = vpop.f32.mrb[0].mxu0
        %v4467 = vadd.f32 0.0, %v4466
        %v4468 = vpop.f32.mrb[0].mxu0
        %v4469 = vpop.f32.mrb[0].mxu0
        %v4470 = vadd.f32 0.0, %v4469
        %v4471 = vpop.f32.mrb[0].mxu0
        %4472 = vmatprep.mubr.bf16.mxu0 0
        %4473 = vmatmul.mubr.bf16.gmra.mrb[0].mxu0 %v4341
        %v4474 = vpop.f32.mrb[0].mxu0
        %v4475 = vadd.f32 0.0, %v4474
        %v4476 = vpop.f32.mrb[0].mxu0
        %v4477 = vpop.f32.mrb[0].mxu0
        %v4478 = vadd.f32 0.0, %v4477
        %v4479 = vpop.f32.mrb[0].mxu0
        %4480 = vmatprep.mubr.bf16.mxu0 0
        %4481 = vmatmul.mubr.bf16.gmra.mrb[0].mxu0 %v4342
        %v4482 = vpop.f32.mrb[0].mxu0
        %v4483 = vadd.f32 0.0, %v4482
        %v4484 = vpop.f32.mrb[0].mxu0
        %v4485 = vpop.f32.mrb[0].mxu0
        %v4486 = vadd.f32 0.0, %v4485
        %v4487 = vpop.f32.mrb[0].mxu0
        %4488 = vmatprep.mubr.bf16.mxu0 0
        %4489 = vmatmul.mubr.bf16.gmra.mrb[0].mxu0 %v4343
        %v4490 = vpop.f32.mrb[0].mxu0
        %v4491 = vadd.f32 0.0, %v4490
        %v4492 = vpop.f32.mrb[0].mxu0
        %v4493 = vpop.f32.mrb[0].mxu0
        %v4494 = vadd.f32 0.0, %v4493
        %v4495 = vpop.f32.mrb[0].mxu0
        %4496 = vdwg.mxu0
        %v4497 = vadd.f32 %v4167, %v4435
        %v4498 = vadd.f32 %v4168, %v4438
        %v4499 = vadd.f32 %v4169, %v4443
        %v4500 = vadd.f32 %v4170, %v4446
        %v4501 = vadd.f32 %v4171, %v4451
        %v4502 = vadd.f32 %v4172, %v4454
        %v4503 = vadd.f32 %v4173, %v4459
        %v4504 = vadd.f32 %v4174, %v4462
        %v4505 = vadd.f32 %v4175, %v4467
        %v4506 = vadd.f32 %v4176, %v4470
        %v4507 = vadd.f32 %v4177, %v4475
        %v4508 = vadd.f32 %v4178, %v4478
        %v4509 = vadd.f32 %v4179, %v4483
        %v4510 = vadd.f32 %v4180, %v4486
        %v4511 = vadd.f32 %v4181, %v4491
        %v4512 = vadd.f32 %v4182, %v4494
        %v4513 = vrot.slane %v3257, 6
        %v4514 = vrot.slane %v4513, 4
        %v4515 = vrot.slane %v3258, 6
        %v4516 = vsel %vm2986, %v4514, %v4515
        %v4517 = vrot.slane %v4515, 4
        %v4518 = vrot.slane %v3259, 6
        %v4519 = vsel %vm2986, %v4517, %v4518
        %v4520 = vrot.slane %v3260, 6
        %v4521 = vrot.slane %v4520, 4
        %v4522 = vrot.slane %v3261, 6
        %v4523 = vsel %vm2986, %v4521, %v4522
        %v4524 = vrot.slane %v4522, 4
        %v4525 = vrot.slane %v3262, 6
        %v4526 = vsel %vm2986, %v4524, %v4525
        %v4527 = vrot.slane %v3263, 6
        %v4528 = vrot.slane %v4527, 4
        %v4529 = vrot.slane %v3264, 6
        %v4530 = vsel %vm2986, %v4528, %v4529
        %v4531 = vrot.slane %v4529, 4
        %v4532 = vrot.slane %v3265, 6
        %v4533 = vsel %vm2986, %v4531, %v4532
        %v4534 = vrot.slane %v3266, 6
        %v4535 = vrot.slane %v4534, 4
        %v4536 = vrot.slane %v3267, 6
        %v4537 = vsel %vm2986, %v4535, %v4536
        %v4538 = vrot.slane %v4536, 4
        %v4539 = vrot.slane %v3268, 6
        %v4540 = vsel %vm2986, %v4538, %v4539
        %v4541 = vrot.slane %v3269, 6
        %v4542 = vrot.slane %v4541, 4
        %v4543 = vrot.slane %v3270, 6
        %v4544 = vsel %vm2986, %v4542, %v4543
        %v4545 = vrot.slane %v4543, 4
        %v4546 = vrot.slane %v3271, 6
        %v4547 = vsel %vm2986, %v4545, %v4546
        %v4548 = vrot.slane %v3272, 6
        %v4549 = vrot.slane %v4548, 4
        %v4550 = vrot.slane %v3273, 6
        %v4551 = vsel %vm2986, %v4549, %v4550
        %v4552 = vrot.slane %v4550, 4
        %v4553 = vrot.slane %v3274, 6
        %v4554 = vsel %vm2986, %v4552, %v4553
        %v4555 = vrot.slane %v3275, 6
        %v4556 = vrot.slane %v4555, 4
        %v4557 = vrot.slane %v3276, 6
        %v4558 = vsel %vm2986, %v4556, %v4557
        %v4559 = vrot.slane %v4557, 4
        %v4560 = vrot.slane %v3277, 6
        %v4561 = vsel %vm2986, %v4559, %v4560
        %v4562 = vrot.slane %v3278, 6
        %v4563 = vrot.slane %v4562, 4
        %v4564 = vrot.slane %v3279, 6
        %v4565 = vsel %vm2986, %v4563, %v4564
        %v4566 = vrot.slane %v4564, 4
        %v4567 = vrot.slane %v3280, 6
        %v4568 = vsel %vm2986, %v4566, %v4567
        %s4569 = scalar_lea.vmem [#allocation2], 832
        %v4570 = vld [vmem:[%s4569] sm:$0xf]
        %v4571 = vld [vmem:[%s4569 + $0x4] sm:$0xf]
        %v4572 = vld [vmem:[%s4569 + $0x8] sm:$0xf]
        %v4573 = vld [vmem:[%s4569 + $0xc] sm:$0xf]
        %v4574 = vld [vmem:[%s4569 + $0x10] sm:$0xf]
        %v4575 = vld [vmem:[%s4569 + $0x14] sm:$0xf]
        %v4576 = vld [vmem:[%s4569 + $0x18] sm:$0xf]
        %v4577 = vld [vmem:[%s4569 + $0x1c] sm:$0xf]
        %v4578 = vld [vmem:[%s4569 + $0x20] sm:$0xf]
        %v4579 = vld [vmem:[%s4569 + $0x24] sm:$0xf]
        %v4580 = vld [vmem:[%s4569 + $0x28] sm:$0xf]
        %v4581 = vld [vmem:[%s4569 + $0x2c] sm:$0xf]
        %v4582 = vld [vmem:[%s4569 + $0x30] sm:$0xf]
        %v4583 = vld [vmem:[%s4569 + $0x34] sm:$0xf]
        %v4584 = vld [vmem:[%s4569 + $0x38] sm:$0xf]
        %v4585 = vld [vmem:[%s4569 + $0x3c] sm:$0xf]
        %v4586 = vunpack.c.l.b16 %v4516
        %v4587 = vunpack.c.l.b16 %v4519
        %v4588 = vunpack.c.l.b16 %v4523
        %v4589 = vunpack.c.l.b16 %v4526
        %v4590 = vunpack.c.l.b16 %v4530
        %v4591 = vunpack.c.l.b16 %v4533
        %v4592 = vunpack.c.l.b16 %v4537
        %v4593 = vunpack.c.l.b16 %v4540
        %v4594 = vunpack.c.l.b16 %v4544
        %v4595 = vunpack.c.l.b16 %v4547
        %v4596 = vunpack.c.l.b16 %v4551
        %v4597 = vunpack.c.l.b16 %v4554
        %v4598 = vunpack.c.l.b16 %v4558
        %v4599 = vunpack.c.l.b16 %v4561
        %v4600 = vunpack.c.l.b16 %v4565
        %v4601 = vunpack.c.l.b16 %v4568
        %v4602 = vpack.c.b16 %v4587, %v4586
        %v4603 = vpack.c.b16 %v4589, %v4588
        %v4604 = vpack.c.b16 %v4591, %v4590
        %v4605 = vpack.c.b16 %v4593, %v4592
        %v4606 = vpack.c.b16 %v4595, %v4594
        %v4607 = vpack.c.b16 %v4597, %v4596
        %v4608 = vpack.c.b16 %v4599, %v4598
        %v4609 = vpack.c.b16 %v4601, %v4600
        %v4634 = vunpack.c.l.b16 %v4570
        %v4635 = vunpack.c.l.b16 %v4571
        %v4636 = vunpack.c.l.b16 %v4572
        %v4637 = vunpack.c.l.b16 %v4573
        %v4638 = vunpack.c.l.b16 %v4574
        %v4639 = vunpack.c.l.b16 %v4575
        %v4640 = vunpack.c.l.b16 %v4576
        %v4641 = vunpack.c.l.b16 %v4577
        %v4642 = vunpack.c.l.b16 %v4578
        %v4643 = vunpack.c.l.b16 %v4579
        %v4644 = vunpack.c.l.b16 %v4580
        %v4645 = vunpack.c.l.b16 %v4581
        %v4646 = vunpack.c.l.b16 %v4582
        %v4647 = vunpack.c.l.b16 %v4583
        %v4648 = vunpack.c.l.b16 %v4584
        %v4649 = vunpack.c.l.b16 %v4585
        %v4650 = vpack.c.b16 %v4635, %v4634
        %v4651 = vpack.c.b16 %v4637, %v4636
        %v4652 = vpack.c.b16 %v4639, %v4638
        %v4653 = vpack.c.b16 %v4641, %v4640
        %v4654 = vpack.c.b16 %v4643, %v4642
        %v4655 = vpack.c.b16 %v4645, %v4644
        %v4656 = vpack.c.b16 %v4647, %v4646
        %v4657 = vpack.c.b16 %v4649, %v4648
        %4666 = vmatprep.subr.bf16.mxu0 0
        %4667 = vmatpush1.bf16.msra.mxu0 %v4650
        %4668 = vmatprep.subr.bf16.mxu0 0
        %4669 = vmatpush1.bf16.msra.mxu0 %v4651
        %4670 = vmatprep.subr.bf16.mxu0 0
        %4671 = vmatpush1.bf16.msra.mxu0 %v4652
        %4672 = vmatprep.subr.bf16.mxu0 0
        %4673 = vmatpush1.bf16.msra.mxu0 %v4653
        %4674 = vmatprep.subr.bf16.mxu0 0
        %4675 = vmatpush1.bf16.msra.mxu0 %v4654
        %4676 = vmatprep.subr.bf16.mxu0 0
        %4677 = vmatpush1.bf16.msra.mxu0 %v4655
        %4678 = vmatprep.subr.bf16.mxu0 0
        %4679 = vmatpush1.bf16.msra.mxu0 %v4656
        %4680 = vmatprep.subr.bf16.mxu0 0
        %4681 = vmatpush1.bf16.msra.mxu0 %v4657
        %4682 = vmatprep.subr.bf16.mxu0 0
        %4683 = vmatpush1.bf16.msra.mxu0 0
        %4684 = vmatprep.subr.bf16.mxu0 0
        %4685 = vmatpush1.bf16.msra.mxu0 0
        %4686 = vmatprep.subr.bf16.mxu0 0
        %4687 = vmatpush1.bf16.msra.mxu0 0
        %4688 = vmatprep.subr.bf16.mxu0 0
        %4689 = vmatpush1.bf16.msra.mxu0 0
        %4690 = vmatprep.subr.bf16.mxu0 0
        %4691 = vmatpush1.bf16.msra.mxu0 0
        %4692 = vmatprep.subr.bf16.mxu0 0
        %4693 = vmatpush1.bf16.msra.mxu0 0
        %4694 = vmatprep.subr.bf16.mxu0 0
        %4695 = vmatpush1.bf16.msra.mxu0 0
        %4696 = vmatprep.subr.bf16.mxu0 0
        %4697 = vmatpush1.bf16.msra.mxu0 0
        %4698 = vmatprep.mubr.bf16.mxu0 0
        %4699 = vmatmul.mubr.bf16.gmra.mrb[0].mxu0 %v4602
        %v4700 = vpop.f32.mrb[0].mxu0
        %v4701 = vadd.f32 0.0, %v4700
        %v4702 = vpop.f32.mrb[0].mxu0
        %v4703 = vpop.f32.mrb[0].mxu0
        %v4704 = vadd.f32 0.0, %v4703
        %v4705 = vpop.f32.mrb[0].mxu0
        %4706 = vmatprep.mubr.bf16.mxu0 0
        %4707 = vmatmul.mubr.bf16.gmra.mrb[0].mxu0 %v4603
        %v4708 = vpop.f32.mrb[0].mxu0
        %v4709 = vadd.f32 0.0, %v4708
        %v4710 = vpop.f32.mrb[0].mxu0
        %v4711 = vpop.f32.mrb[0].mxu0
        %v4712 = vadd.f32 0.0, %v4711
        %v4713 = vpop.f32.mrb[0].mxu0
        %4714 = vmatprep.mubr.bf16.mxu0 0
        %4715 = vmatmul.mubr.bf16.gmra.mrb[0].mxu0 %v4604
        %v4716 = vpop.f32.mrb[0].mxu0
        %v4717 = vadd.f32 0.0, %v4716
        %v4718 = vpop.f32.mrb[0].mxu0
        %v4719 = vpop.f32.mrb[0].mxu0
        %v4720 = vadd.f32 0.0, %v4719
        %v4721 = vpop.f32.mrb[0].mxu0
        %4722 = vmatprep.mubr.bf16.mxu0 0
        %4723 = vmatmul.mubr.bf16.gmra.mrb[0].mxu0 %v4605
        %v4724 = vpop.f32.mrb[0].mxu0
        %v4725 = vadd.f32 0.0, %v4724
        %v4726 = vpop.f32.mrb[0].mxu0
        %v4727 = vpop.f32.mrb[0].mxu0
        %v4728 = vadd.f32 0.0, %v4727
        %v4729 = vpop.f32.mrb[0].mxu0
        %4730 = vmatprep.mubr.bf16.mxu0 0
        %4731 = vmatmul.mubr.bf16.gmra.mrb[0].mxu0 %v4606
        %v4732 = vpop.f32.mrb[0].mxu0
        %v4733 = vadd.f32 0.0, %v4732
        %v4734 = vpop.f32.mrb[0].mxu0
        %v4735 = vpop.f32.mrb[0].mxu0
        %v4736 = vadd.f32 0.0, %v4735
        %v4737 = vpop.f32.mrb[0].mxu0
        %4738 = vmatprep.mubr.bf16.mxu0 0
        %4739 = vmatmul.mubr.bf16.gmra.mrb[0].mxu0 %v4607
        %v4740 = vpop.f32.mrb[0].mxu0
        %v4741 = vadd.f32 0.0, %v4740
        %v4742 = vpop.f32.mrb[0].mxu0
        %v4743 = vpop.f32.mrb[0].mxu0
        %v4744 = vadd.f32 0.0, %v4743
        %v4745 = vpop.f32.mrb[0].mxu0
        %4746 = vmatprep.mubr.bf16.mxu0 0
        %4747 = vmatmul.mubr.bf16.gmra.mrb[0].mxu0 %v4608
        %v4748 = vpop.f32.mrb[0].mxu0
        %v4749 = vadd.f32 0.0, %v4748
        %v4750 = vpop.f32.mrb[0].mxu0
        %v4751 = vpop.f32.mrb[0].mxu0
        %v4752 = vadd.f32 0.0, %v4751
        %v4753 = vpop.f32.mrb[0].mxu0
        %4754 = vmatprep.mubr.bf16.mxu0 0
        %4755 = vmatmul.mubr.bf16.gmra.mrb[0].mxu0 %v4609
        %v4756 = vpop.f32.mrb[0].mxu0
        %v4757 = vadd.f32 0.0, %v4756
        %v4758 = vpop.f32.mrb[0].mxu0
        %v4759 = vpop.f32.mrb[0].mxu0
        %v4760 = vadd.f32 0.0, %v4759
        %v4761 = vpop.f32.mrb[0].mxu0
        %4762 = vdwg.mxu0
        %v4763 = vadd.f32 %v4497, %v4701
        %v4764 = vadd.f32 %v4498, %v4704
        %v4765 = vadd.f32 %v4499, %v4709
        %v4766 = vadd.f32 %v4500, %v4712
        %v4767 = vadd.f32 %v4501, %v4717
        %v4768 = vadd.f32 %v4502, %v4720
        %v4769 = vadd.f32 %v4503, %v4725
        %v4770 = vadd.f32 %v4504, %v4728
        %v4771 = vadd.f32 %v4505, %v4733
        %v4772 = vadd.f32 %v4506, %v4736
        %v4773 = vadd.f32 %v4507, %v4741
        %v4774 = vadd.f32 %v4508, %v4744
        %v4775 = vadd.f32 %v4509, %v4749
        %v4776 = vadd.f32 %v4510, %v4752
        %v4777 = vadd.f32 %v4511, %v4757
        %v4778 = vadd.f32 %v4512, %v4760
        %v4779 = vrot.slane %v3508, 6
        %v4780 = vrot.slane %v3511, 7
        %v4781 = vor.u32 %v4779, %v4780
        %v4782 = vrot.slane %v4781, 4
        %v4783 = vrot.slane %v3521, 6
        %v4784 = vrot.slane %v3517, 7
        %v4785 = vor.u32 %v4783, %v4784
        %v4786 = vsel %vm1914, %v4782, %v4785
        %v4787 = vrot.slane %v4785, 4
        %v4788 = vrot.slane %v4192, 6
        %v4789 = vrot.slane %v3527, 7
        %v4790 = vor.u32 %v4788, %v4789
        %v4791 = vsel %vm1914, %v4787, %v4790
        %v4792 = vrot.slane %v3532, 6
        %v4793 = vrot.slane %v3535, 7
        %v4794 = vor.u32 %v4792, %v4793
        %v4795 = vrot.slane %v4794, 4
        %v4796 = vrot.slane %v3545, 6
        %v4797 = vrot.slane %v3541, 7
        %v4798 = vor.u32 %v4796, %v4797
        %v4799 = vsel %vm1914, %v4795, %v4798
        %v4800 = vrot.slane %v4798, 4
        %v4801 = vrot.slane %v4207, 6
        %v4802 = vrot.slane %v3551, 7
        %v4803 = vor.u32 %v4801, %v4802
        %v4804 = vsel %vm1914, %v4800, %v4803
        %v4805 = vrot.slane %v3556, 6
        %v4806 = vrot.slane %v3559, 7
        %v4807 = vor.u32 %v4805, %v4806
        %v4808 = vrot.slane %v4807, 4
        %v4809 = vrot.slane %v3569, 6
        %v4810 = vrot.slane %v3565, 7
        %v4811 = vor.u32 %v4809, %v4810
        %v4812 = vsel %vm1914, %v4808, %v4811
        %v4813 = vrot.slane %v4811, 4
        %v4814 = vrot.slane %v4222, 6
        %v4815 = vrot.slane %v3575, 7
        %v4816 = vor.u32 %v4814, %v4815
        %v4817 = vsel %vm1914, %v4813, %v4816
        %v4818 = vrot.slane %v3580, 6
        %v4819 = vrot.slane %v3583, 7
        %v4820 = vor.u32 %v4818, %v4819
        %v4821 = vrot.slane %v4820, 4
        %v4822 = vrot.slane %v3593, 6
        %v4823 = vrot.slane %v3589, 7
        %v4824 = vor.u32 %v4822, %v4823
        %v4825 = vsel %vm1914, %v4821, %v4824
        %v4826 = vrot.slane %v4824, 4
        %v4827 = vrot.slane %v4237, 6
        %v4828 = vrot.slane %v3599, 7
        %v4829 = vor.u32 %v4827, %v4828
        %v4830 = vsel %vm1914, %v4826, %v4829
        %v4831 = vrot.slane %v3604, 6
        %v4832 = vrot.slane %v3607, 7
        %v4833 = vor.u32 %v4831, %v4832
        %v4834 = vrot.slane %v4833, 4
        %v4835 = vrot.slane %v3617, 6
        %v4836 = vrot.slane %v3613, 7
        %v4837 = vor.u32 %v4835, %v4836
        %v4838 = vsel %vm1914, %v4834, %v4837
        %v4839 = vrot.slane %v4837, 4
        %v4840 = vrot.slane %v4252, 6
        %v4841 = vrot.slane %v3623, 7
        %v4842 = vor.u32 %v4840, %v4841
        %v4843 = vsel %vm1914, %v4839, %v4842
        %v4844 = vrot.slane %v3628, 6
        %v4845 = vrot.slane %v3631, 7
        %v4846 = vor.u32 %v4844, %v4845
        %v4847 = vrot.slane %v4846, 4
        %v4848 = vrot.slane %v3641, 6
        %v4849 = vrot.slane %v3637, 7
        %v4850 = vor.u32 %v4848, %v4849
        %v4851 = vsel %vm1914, %v4847, %v4850
        %v4852 = vrot.slane %v4850, 4
        %v4853 = vrot.slane %v4267, 6
        %v4854 = vrot.slane %v3647, 7
        %v4855 = vor.u32 %v4853, %v4854
        %v4856 = vsel %vm1914, %v4852, %v4855
        %v4857 = vrot.slane %v3652, 6
        %v4858 = vrot.slane %v3655, 7
        %v4859 = vor.u32 %v4857, %v4858
        %v4860 = vrot.slane %v4859, 4
        %v4861 = vrot.slane %v3665, 6
        %v4862 = vrot.slane %v3661, 7
        %v4863 = vor.u32 %v4861, %v4862
        %v4864 = vsel %vm1914, %v4860, %v4863
        %v4865 = vrot.slane %v4863, 4
        %v4866 = vrot.slane %v4282, 6
        %v4867 = vrot.slane %v3671, 7
        %v4868 = vor.u32 %v4866, %v4867
        %v4869 = vsel %vm1914, %v4865, %v4868
        %v4870 = vrot.slane %v3676, 6
        %v4871 = vrot.slane %v3679, 7
        %v4872 = vor.u32 %v4870, %v4871
        %v4873 = vrot.slane %v4872, 4
        %v4874 = vrot.slane %v3689, 6
        %v4875 = vrot.slane %v3685, 7
        %v4876 = vor.u32 %v4874, %v4875
        %v4877 = vsel %vm1914, %v4873, %v4876
        %v4878 = vrot.slane %v4876, 4
        %v4879 = vrot.slane %v4297, 6
        %v4880 = vrot.slane %v3695, 7
        %v4881 = vor.u32 %v4879, %v4880
        %v4882 = vsel %vm1914, %v4878, %v4881
        %s4883 = scalar_lea.vmem [#allocation2], 896
        %v4884 = vld [vmem:[%s4883] sm:$0xf]
        %v4885 = vld [vmem:[%s4883 + $0x4] sm:$0xf]
        %v4886 = vld [vmem:[%s4883 + $0x8] sm:$0xf]
        %v4887 = vld [vmem:[%s4883 + $0xc] sm:$0xf]
        %v4888 = vld [vmem:[%s4883 + $0x10] sm:$0xf]
        %v4889 = vld [vmem:[%s4883 + $0x14] sm:$0xf]
        %v4890 = vld [vmem:[%s4883 + $0x18] sm:$0xf]
        %v4891 = vld [vmem:[%s4883 + $0x1c] sm:$0xf]
        %v4892 = vld [vmem:[%s4883 + $0x20] sm:$0xf]
        %v4893 = vld [vmem:[%s4883 + $0x24] sm:$0xf]
        %v4894 = vld [vmem:[%s4883 + $0x28] sm:$0xf]
        %v4895 = vld [vmem:[%s4883 + $0x2c] sm:$0xf]
        %v4896 = vld [vmem:[%s4883 + $0x30] sm:$0xf]
        %v4897 = vld [vmem:[%s4883 + $0x34] sm:$0xf]
        %v4898 = vld [vmem:[%s4883 + $0x38] sm:$0xf]
        %v4899 = vld [vmem:[%s4883 + $0x3c] sm:$0xf]
        %v4900 = vunpack.c.l.b16 %v4786
        %v4901 = vunpack.c.l.b16 %v4791
        %v4902 = vunpack.c.l.b16 %v4799
        %v4903 = vunpack.c.l.b16 %v4804
        %v4904 = vunpack.c.l.b16 %v4812
        %v4905 = vunpack.c.l.b16 %v4817
        %v4906 = vunpack.c.l.b16 %v4825
        %v4907 = vunpack.c.l.b16 %v4830
        %v4908 = vunpack.c.l.b16 %v4838
        %v4909 = vunpack.c.l.b16 %v4843
        %v4910 = vunpack.c.l.b16 %v4851
        %v4911 = vunpack.c.l.b16 %v4856
        %v4912 = vunpack.c.l.b16 %v4864
        %v4913 = vunpack.c.l.b16 %v4869
        %v4914 = vunpack.c.l.b16 %v4877
        %v4915 = vunpack.c.l.b16 %v4882
        %v4916 = vpack.c.b16 %v4901, %v4900
        %v4917 = vpack.c.b16 %v4903, %v4902
        %v4918 = vpack.c.b16 %v4905, %v4904
        %v4919 = vpack.c.b16 %v4907, %v4906
        %v4920 = vpack.c.b16 %v4909, %v4908
        %v4921 = vpack.c.b16 %v4911, %v4910
        %v4922 = vpack.c.b16 %v4913, %v4912
        %v4923 = vpack.c.b16 %v4915, %v4914
        %v4948 = vunpack.c.l.b16 %v4884
        %v4949 = vunpack.c.l.b16 %v4885
        %v4950 = vunpack.c.l.b16 %v4886
        %v4951 = vunpack.c.l.b16 %v4887
        %v4952 = vunpack.c.l.b16 %v4888
        %v4953 = vunpack.c.l.b16 %v4889
        %v4954 = vunpack.c.l.b16 %v4890
        %v4955 = vunpack.c.l.b16 %v4891
        %v4956 = vunpack.c.l.b16 %v4892
        %v4957 = vunpack.c.l.b16 %v4893
        %v4958 = vunpack.c.l.b16 %v4894
        %v4959 = vunpack.c.l.b16 %v4895
        %v4960 = vunpack.c.l.b16 %v4896
        %v4961 = vunpack.c.l.b16 %v4897
        %v4962 = vunpack.c.l.b16 %v4898
        %v4963 = vunpack.c.l.b16 %v4899
        %v4964 = vpack.c.b16 %v4949, %v4948
        %v4965 = vpack.c.b16 %v4951, %v4950
        %v4966 = vpack.c.b16 %v4953, %v4952
        %v4967 = vpack.c.b16 %v4955, %v4954
        %v4968 = vpack.c.b16 %v4957, %v4956
        %v4969 = vpack.c.b16 %v4959, %v4958
        %v4970 = vpack.c.b16 %v4961, %v4960
        %v4971 = vpack.c.b16 %v4963, %v4962
        %4980 = vmatprep.subr.bf16.mxu0 0
        %4981 = vmatpush1.bf16.msra.mxu0 %v4964
        %4982 = vmatprep.subr.bf16.mxu0 0
        %4983 = vmatpush1.bf16.msra.mxu0 %v4965
        %4984 = vmatprep.subr.bf16.mxu0 0
        %4985 = vmatpush1.bf16.msra.mxu0 %v4966
        %4986 = vmatprep.subr.bf16.mxu0 0
        %4987 = vmatpush1.bf16.msra.mxu0 %v4967
        %4988 = vmatprep.subr.bf16.mxu0 0
        %4989 = vmatpush1.bf16.msra.mxu0 %v4968
        %4990 = vmatprep.subr.bf16.mxu0 0
        %4991 = vmatpush1.bf16.msra.mxu0 %v4969
        %4992 = vmatprep.subr.bf16.mxu0 0
        %4993 = vmatpush1.bf16.msra.mxu0 %v4970
        %4994 = vmatprep.subr.bf16.mxu0 0
        %4995 = vmatpush1.bf16.msra.mxu0 %v4971
        %4996 = vmatprep.subr.bf16.mxu0 0
        %4997 = vmatpush1.bf16.msra.mxu0 0
        %4998 = vmatprep.subr.bf16.mxu0 0
        %4999 = vmatpush1.bf16.msra.mxu0 0
        %5000 = vmatprep.subr.bf16.mxu0 0
        %5001 = vmatpush1.bf16.msra.mxu0 0
        %5002 = vmatprep.subr.bf16.mxu0 0
        %5003 = vmatpush1.bf16.msra.mxu0 0
        %5004 = vmatprep.subr.bf16.mxu0 0
        %5005 = vmatpush1.bf16.msra.mxu0 0
        %5006 = vmatprep.subr.bf16.mxu0 0
        %5007 = vmatpush1.bf16.msra.mxu0 0
        %5008 = vmatprep.subr.bf16.mxu0 0
        %5009 = vmatpush1.bf16.msra.mxu0 0
        %5010 = vmatprep.subr.bf16.mxu0 0
        %5011 = vmatpush1.bf16.msra.mxu0 0
        %5012 = vmatprep.mubr.bf16.mxu0 0
        %5013 = vmatmul.mubr.bf16.gmra.mrb[0].mxu0 %v4916
        %v5014 = vpop.f32.mrb[0].mxu0
        %v5015 = vadd.f32 0.0, %v5014
        %v5016 = vpop.f32.mrb[0].mxu0
        %v5017 = vpop.f32.mrb[0].mxu0
        %v5018 = vadd.f32 0.0, %v5017
        %v5019 = vpop.f32.mrb[0].mxu0
        %5020 = vmatprep.mubr.bf16.mxu0 0
        %5021 = vmatmul.mubr.bf16.gmra.mrb[0].mxu0 %v4917
        %v5022 = vpop.f32.mrb[0].mxu0
        %v5023 = vadd.f32 0.0, %v5022
        %v5024 = vpop.f32.mrb[0].mxu0
        %v5025 = vpop.f32.mrb[0].mxu0
        %v5026 = vadd.f32 0.0, %v5025
        %v5027 = vpop.f32.mrb[0].mxu0
        %5028 = vmatprep.mubr.bf16.mxu0 0
        %5029 = vmatmul.mubr.bf16.gmra.mrb[0].mxu0 %v4918
        %v5030 = vpop.f32.mrb[0].mxu0
        %v5031 = vadd.f32 0.0, %v5030
        %v5032 = vpop.f32.mrb[0].mxu0
        %v5033 = vpop.f32.mrb[0].mxu0
        %v5034 = vadd.f32 0.0, %v5033
        %v5035 = vpop.f32.mrb[0].mxu0
        %5036 = vmatprep.mubr.bf16.mxu0 0
        %5037 = vmatmul.mubr.bf16.gmra.mrb[0].mxu0 %v4919
        %v5038 = vpop.f32.mrb[0].mxu0
        %v5039 = vadd.f32 0.0, %v5038
        %v5040 = vpop.f32.mrb[0].mxu0
        %v5041 = vpop.f32.mrb[0].mxu0
        %v5042 = vadd.f32 0.0, %v5041
        %v5043 = vpop.f32.mrb[0].mxu0
        %5044 = vmatprep.mubr.bf16.mxu0 0
        %5045 = vmatmul.mubr.bf16.gmra.mrb[0].mxu0 %v4920
        %v5046 = vpop.f32.mrb[0].mxu0
        %v5047 = vadd.f32 0.0, %v5046
        %v5048 = vpop.f32.mrb[0].mxu0
        %v5049 = vpop.f32.mrb[0].mxu0
        %v5050 = vadd.f32 0.0, %v5049
        %v5051 = vpop.f32.mrb[0].mxu0
        %5052 = vmatprep.mubr.bf16.mxu0 0
        %5053 = vmatmul.mubr.bf16.gmra.mrb[0].mxu0 %v4921
        %v5054 = vpop.f32.mrb[0].mxu0
        %v5055 = vadd.f32 0.0, %v5054
        %v5056 = vpop.f32.mrb[0].mxu0
        %v5057 = vpop.f32.mrb[0].mxu0
        %v5058 = vadd.f32 0.0, %v5057
        %v5059 = vpop.f32.mrb[0].mxu0
        %5060 = vmatprep.mubr.bf16.mxu0 0
        %5061 = vmatmul.mubr.bf16.gmra.mrb[0].mxu0 %v4922
        %v5062 = vpop.f32.mrb[0].mxu0
        %v5063 = vadd.f32 0.0, %v5062
        %v5064 = vpop.f32.mrb[0].mxu0
        %v5065 = vpop.f32.mrb[0].mxu0
        %v5066 = vadd.f32 0.0, %v5065
        %v5067 = vpop.f32.mrb[0].mxu0
        %5068 = vmatprep.mubr.bf16.mxu0 0
        %5069 = vmatmul.mubr.bf16.gmra.mrb[0].mxu0 %v4923
        %v5070 = vpop.f32.mrb[0].mxu0
        %v5071 = vadd.f32 0.0, %v5070
        %v5072 = vpop.f32.mrb[0].mxu0
        %v5073 = vpop.f32.mrb[0].mxu0
        %v5074 = vadd.f32 0.0, %v5073
        %v5075 = vpop.f32.mrb[0].mxu0
        %5076 = vdwg.mxu0
        %v5077 = vadd.f32 %v4763, %v5015
        %v5078 = vadd.f32 %v4764, %v5018
        %v5079 = vadd.f32 %v4765, %v5023
        %v5080 = vadd.f32 %v4766, %v5026
        %v5081 = vadd.f32 %v4767, %v5031
        %v5082 = vadd.f32 %v4768, %v5034
        %v5083 = vadd.f32 %v4769, %v5039
        %v5084 = vadd.f32 %v4770, %v5042
        %v5085 = vadd.f32 %v4771, %v5047
        %v5086 = vadd.f32 %v4772, %v5050
        %v5087 = vadd.f32 %v4773, %v5055
        %v5088 = vadd.f32 %v4774, %v5058
        %v5089 = vadd.f32 %v4775, %v5063
        %v5090 = vadd.f32 %v4776, %v5066
        %v5091 = vadd.f32 %v4777, %v5071
        %v5092 = vadd.f32 %v4778, %v5074
        %v5093 = vrot.slane %v3257, 7
        %v5094 = vrot.slane %v5093, 4
        %v5095 = vrot.slane %v3258, 7
        %v5096 = vsel %vm882, %v5094, %v5095
        %v5097 = vrot.slane %v5095, 4
        %v5098 = vrot.slane %v3259, 7
        %v5099 = vsel %vm882, %v5097, %v5098
        %v5100 = vrot.slane %v3260, 7
        %v5101 = vrot.slane %v5100, 4
        %v5102 = vrot.slane %v3261, 7
        %v5103 = vsel %vm882, %v5101, %v5102
        %v5104 = vrot.slane %v5102, 4
        %v5105 = vrot.slane %v3262, 7
        %v5106 = vsel %vm882, %v5104, %v5105
        %v5107 = vrot.slane %v3263, 7
        %v5108 = vrot.slane %v5107, 4
        %v5109 = vrot.slane %v3264, 7
        %v5110 = vsel %vm882, %v5108, %v5109
        %v5111 = vrot.slane %v5109, 4
        %v5112 = vrot.slane %v3265, 7
        %v5113 = vsel %vm882, %v5111, %v5112
        %v5114 = vrot.slane %v3266, 7
        %v5115 = vrot.slane %v5114, 4
        %v5116 = vrot.slane %v3267, 7
        %v5117 = vsel %vm882, %v5115, %v5116
        %v5118 = vrot.slane %v5116, 4
        %v5119 = vrot.slane %v3268, 7
        %v5120 = vsel %vm882, %v5118, %v5119
        %v5121 = vrot.slane %v3269, 7
        %v5122 = vrot.slane %v5121, 4
        %v5123 = vrot.slane %v3270, 7
        %v5124 = vsel %vm882, %v5122, %v5123
        %v5125 = vrot.slane %v5123, 4
        %v5126 = vrot.slane %v3271, 7
        %v5127 = vsel %vm882, %v5125, %v5126
        %v5128 = vrot.slane %v3272, 7
        %v5129 = vrot.slane %v5128, 4
        %v5130 = vrot.slane %v3273, 7
        %v5131 = vsel %vm882, %v5129, %v5130
        %v5132 = vrot.slane %v5130, 4
        %v5133 = vrot.slane %v3274, 7
        %v5134 = vsel %vm882, %v5132, %v5133
        %v5135 = vrot.slane %v3275, 7
        %v5136 = vrot.slane %v5135, 4
        %v5137 = vrot.slane %v3276, 7
        %v5138 = vsel %vm882, %v5136, %v5137
        %v5139 = vrot.slane %v5137, 4
        %v5140 = vrot.slane %v3277, 7
        %v5141 = vsel %vm882, %v5139, %v5140
        %v5142 = vrot.slane %v3278, 7
        %v5143 = vrot.slane %v5142, 4
        %v5144 = vrot.slane %v3279, 7
        %v5145 = vsel %vm882, %v5143, %v5144
        %v5146 = vrot.slane %v5144, 4
        %v5147 = vrot.slane %v3280, 7
        %v5148 = vsel %vm882, %v5146, %v5147
        %s5149 = scalar_lea.vmem [#allocation2], 960
        %v5150 = vld [vmem:[%s5149] sm:$0xf]
        %v5151 = vld [vmem:[%s5149 + $0x4] sm:$0xf]
        %v5152 = vld [vmem:[%s5149 + $0x8] sm:$0xf]
        %v5153 = vld [vmem:[%s5149 + $0xc] sm:$0xf]
        %v5154 = vld [vmem:[%s5149 + $0x10] sm:$0xf]
        %v5155 = vld [vmem:[%s5149 + $0x14] sm:$0xf]
        %v5156 = vld [vmem:[%s5149 + $0x18] sm:$0xf]
        %v5157 = vld [vmem:[%s5149 + $0x1c] sm:$0xf]
        %v5158 = vld [vmem:[%s5149 + $0x20] sm:$0xf]
        %v5159 = vld [vmem:[%s5149 + $0x24] sm:$0xf]
        %v5160 = vld [vmem:[%s5149 + $0x28] sm:$0xf]
        %v5161 = vld [vmem:[%s5149 + $0x2c] sm:$0xf]
        %v5162 = vld [vmem:[%s5149 + $0x30] sm:$0xf]
        %v5163 = vld [vmem:[%s5149 + $0x34] sm:$0xf]
        %v5164 = vld [vmem:[%s5149 + $0x38] sm:$0xf]
        %v5165 = vld [vmem:[%s5149 + $0x3c] sm:$0xf]
        %v5166 = vunpack.c.l.b16 %v5096
        %v5167 = vunpack.c.l.b16 %v5099
        %v5168 = vunpack.c.l.b16 %v5103
        %v5169 = vunpack.c.l.b16 %v5106
        %v5170 = vunpack.c.l.b16 %v5110
        %v5171 = vunpack.c.l.b16 %v5113
        %v5172 = vunpack.c.l.b16 %v5117
        %v5173 = vunpack.c.l.b16 %v5120
        %v5174 = vunpack.c.l.b16 %v5124
        %v5175 = vunpack.c.l.b16 %v5127
        %v5176 = vunpack.c.l.b16 %v5131
        %v5177 = vunpack.c.l.b16 %v5134
        %v5178 = vunpack.c.l.b16 %v5138
        %v5179 = vunpack.c.l.b16 %v5141
        %v5180 = vunpack.c.l.b16 %v5145
        %v5181 = vunpack.c.l.b16 %v5148
        %v5182 = vpack.c.b16 %v5167, %v5166
        %v5183 = vpack.c.b16 %v5169, %v5168
        %v5184 = vpack.c.b16 %v5171, %v5170
        %v5185 = vpack.c.b16 %v5173, %v5172
        %v5186 = vpack.c.b16 %v5175, %v5174
        %v5187 = vpack.c.b16 %v5177, %v5176
        %v5188 = vpack.c.b16 %v5179, %v5178
        %v5189 = vpack.c.b16 %v5181, %v5180
        %v5214 = vunpack.c.l.b16 %v5150
        %v5215 = vunpack.c.l.b16 %v5151
        %v5216 = vunpack.c.l.b16 %v5152
        %v5217 = vunpack.c.l.b16 %v5153
        %v5218 = vunpack.c.l.b16 %v5154
        %v5219 = vunpack.c.l.b16 %v5155
        %v5220 = vunpack.c.l.b16 %v5156
        %v5221 = vunpack.c.l.b16 %v5157
        %v5222 = vunpack.c.l.b16 %v5158
        %v5223 = vunpack.c.l.b16 %v5159
        %v5224 = vunpack.c.l.b16 %v5160
        %v5225 = vunpack.c.l.b16 %v5161
        %v5226 = vunpack.c.l.b16 %v5162
        %v5227 = vunpack.c.l.b16 %v5163
        %v5228 = vunpack.c.l.b16 %v5164
        %v5229 = vunpack.c.l.b16 %v5165
        %v5230 = vpack.c.b16 %v5215, %v5214
        %v5231 = vpack.c.b16 %v5217, %v5216
        %v5232 = vpack.c.b16 %v5219, %v5218
        %v5233 = vpack.c.b16 %v5221, %v5220
        %v5234 = vpack.c.b16 %v5223, %v5222
        %v5235 = vpack.c.b16 %v5225, %v5224
        %v5236 = vpack.c.b16 %v5227, %v5226
        %v5237 = vpack.c.b16 %v5229, %v5228
        %5246 = vmatprep.subr.bf16.mxu0 0
        %5247 = vmatpush1.bf16.msra.mxu0 %v5230
        %5248 = vmatprep.subr.bf16.mxu0 0
        %5249 = vmatpush1.bf16.msra.mxu0 %v5231
        %5250 = vmatprep.subr.bf16.mxu0 0
        %5251 = vmatpush1.bf16.msra.mxu0 %v5232
        %5252 = vmatprep.subr.bf16.mxu0 0
        %5253 = vmatpush1.bf16.msra.mxu0 %v5233
        %5254 = vmatprep.subr.bf16.mxu0 0
        %5255 = vmatpush1.bf16.msra.mxu0 %v5234
        %5256 = vmatprep.subr.bf16.mxu0 0
        %5257 = vmatpush1.bf16.msra.mxu0 %v5235
        %5258 = vmatprep.subr.bf16.mxu0 0
        %5259 = vmatpush1.bf16.msra.mxu0 %v5236
        %5260 = vmatprep.subr.bf16.mxu0 0
        %5261 = vmatpush1.bf16.msra.mxu0 %v5237
        %5262 = vmatprep.subr.bf16.mxu0 0
        %5263 = vmatpush1.bf16.msra.mxu0 0
        %5264 = vmatprep.subr.bf16.mxu0 0
        %5265 = vmatpush1.bf16.msra.mxu0 0
        %5266 = vmatprep.subr.bf16.mxu0 0
        %5267 = vmatpush1.bf16.msra.mxu0 0
        %5268 = vmatprep.subr.bf16.mxu0 0
        %5269 = vmatpush1.bf16.msra.mxu0 0
        %5270 = vmatprep.subr.bf16.mxu0 0
        %5271 = vmatpush1.bf16.msra.mxu0 0
        %5272 = vmatprep.subr.bf16.mxu0 0
        %5273 = vmatpush1.bf16.msra.mxu0 0
        %5274 = vmatprep.subr.bf16.mxu0 0
        %5275 = vmatpush1.bf16.msra.mxu0 0
        %5276 = vmatprep.subr.bf16.mxu0 0
        %5277 = vmatpush1.bf16.msra.mxu0 0
        %5278 = vmatprep.mubr.bf16.mxu0 0
        %5279 = vmatmul.mubr.bf16.gmra.mrb[0].mxu0 %v5182
        %v5280 = vpop.f32.mrb[0].mxu0
        %v5281 = vadd.f32 0.0, %v5280
        %v5282 = vpop.f32.mrb[0].mxu0
        %v5283 = vpop.f32.mrb[0].mxu0
        %v5284 = vadd.f32 0.0, %v5283
        %v5285 = vpop.f32.mrb[0].mxu0
        %5286 = vmatprep.mubr.bf16.mxu0 0
        %5287 = vmatmul.mubr.bf16.gmra.mrb[0].mxu0 %v5183
        %v5288 = vpop.f32.mrb[0].mxu0
        %v5289 = vadd.f32 0.0, %v5288
        %v5290 = vpop.f32.mrb[0].mxu0
        %v5291 = vpop.f32.mrb[0].mxu0
        %v5292 = vadd.f32 0.0, %v5291
        %v5293 = vpop.f32.mrb[0].mxu0
        %5294 = vmatprep.mubr.bf16.mxu0 0
        %5295 = vmatmul.mubr.bf16.gmra.mrb[0].mxu0 %v5184
        %v5296 = vpop.f32.mrb[0].mxu0
        %v5297 = vadd.f32 0.0, %v5296
        %v5298 = vpop.f32.mrb[0].mxu0
        %v5299 = vpop.f32.mrb[0].mxu0
        %v5300 = vadd.f32 0.0, %v5299
        %v5301 = vpop.f32.mrb[0].mxu0
        %5302 = vmatprep.mubr.bf16.mxu0 0
        %5303 = vmatmul.mubr.bf16.gmra.mrb[0].mxu0 %v5185
        %v5304 = vpop.f32.mrb[0].mxu0
        %v5305 = vadd.f32 0.0, %v5304
        %v5306 = vpop.f32.mrb[0].mxu0
        %v5307 = vpop.f32.mrb[0].mxu0
        %v5308 = vadd.f32 0.0, %v5307
        %v5309 = vpop.f32.mrb[0].mxu0
        %5310 = vmatprep.mubr.bf16.mxu0 0
        %5311 = vmatmul.mubr.bf16.gmra.mrb[0].mxu0 %v5186
        %v5312 = vpop.f32.mrb[0].mxu0
        %v5313 = vadd.f32 0.0, %v5312
        %v5314 = vpop.f32.mrb[0].mxu0
        %v5315 = vpop.f32.mrb[0].mxu0
        %v5316 = vadd.f32 0.0, %v5315
        %v5317 = vpop.f32.mrb[0].mxu0
        %5318 = vmatprep.mubr.bf16.mxu0 0
        %5319 = vmatmul.mubr.bf16.gmra.mrb[0].mxu0 %v5187
        %v5320 = vpop.f32.mrb[0].mxu0
        %v5321 = vadd.f32 0.0, %v5320
        %v5322 = vpop.f32.mrb[0].mxu0
        %v5323 = vpop.f32.mrb[0].mxu0
        %v5324 = vadd.f32 0.0, %v5323
        %v5325 = vpop.f32.mrb[0].mxu0
        %5326 = vmatprep.mubr.bf16.mxu0 0
        %5327 = vmatmul.mubr.bf16.gmra.mrb[0].mxu0 %v5188
        %v5328 = vpop.f32.mrb[0].mxu0
        %v5329 = vadd.f32 0.0, %v5328
        %v5330 = vpop.f32.mrb[0].mxu0
        %v5331 = vpop.f32.mrb[0].mxu0
        %v5332 = vadd.f32 0.0, %v5331
        %v5333 = vpop.f32.mrb[0].mxu0
        %5334 = vmatprep.mubr.bf16.mxu0 0
        %5335 = vmatmul.mubr.bf16.gmra.mrb[0].mxu0 %v5189
        %v5336 = vpop.f32.mrb[0].mxu0
        %v5337 = vadd.f32 0.0, %v5336
        %v5338 = vpop.f32.mrb[0].mxu0
        %v5339 = vpop.f32.mrb[0].mxu0
        %v5340 = vadd.f32 0.0, %v5339
        %v5341 = vpop.f32.mrb[0].mxu0
        %5342 = vdwg.mxu0
        %v5343 = vadd.f32 %v5077, %v5281
        %v5344 = vadd.f32 %v5078, %v5284
        %v5345 = vadd.f32 %v5079, %v5289
        %v5346 = vadd.f32 %v5080, %v5292
        %v5347 = vadd.f32 %v5081, %v5297
        %v5348 = vadd.f32 %v5082, %v5300
        %v5349 = vadd.f32 %v5083, %v5305
        %v5350 = vadd.f32 %v5084, %v5308
        %v5351 = vadd.f32 %v5085, %v5313
        %v5352 = vadd.f32 %v5086, %v5316
        %v5353 = vadd.f32 %v5087, %v5321
        %v5354 = vadd.f32 %v5088, %v5324
        %v5355 = vadd.f32 %v5089, %v5329
        %v5356 = vadd.f32 %v5090, %v5332
        %v5357 = vadd.f32 %v5091, %v5337
        %v5358 = vadd.f32 %v5092, %v5340
        %s5359 = sadd.s32 %s214, 4
        %s5360 = smul.u32 %s5359, 3
        %s5361 = smul.addr %s5360, 4
        %s5362 = scalar_lea.vmem %s208, %s5361
        %v5363 = vld [vmem:[%s5362] sm:$0xf]
        %v5364 = vld [vmem:[%s5362 + $0x4] sm:$0xf]
        %v5365 = vld [vmem:[%s5362 + $0x8] sm:$0x7]
        %v5366 = vld [vmem:[%s5362 + $0xc] sm:$0xf]
        %v5367 = vld [vmem:[%s5362 + $0x10] sm:$0xf]
        %v5368 = vld [vmem:[%s5362 + $0x14] sm:$0x7]
        %v5369 = vld [vmem:[%s5362 + $0x18] sm:$0xf]
        %v5370 = vld [vmem:[%s5362 + $0x1c] sm:$0xf]
        %v5371 = vld [vmem:[%s5362 + $0x20] sm:$0x7]
        %v5372 = vld [vmem:[%s5362 + $0x24] sm:$0xf]
        %v5373 = vld [vmem:[%s5362 + $0x28] sm:$0xf]
        %v5374 = vld [vmem:[%s5362 + $0x2c] sm:$0x7]
        %v5375 = vld [vmem:[%s5362 + $0x30] sm:$0xf]
        %v5376 = vld [vmem:[%s5362 + $0x34] sm:$0xf]
        %v5377 = vld [vmem:[%s5362 + $0x38] sm:$0x7]
        %v5378 = vld [vmem:[%s5362 + $0x3c] sm:$0xf]
        %v5379 = vld [vmem:[%s5362 + $0x40] sm:$0xf]
        %v5380 = vld [vmem:[%s5362 + $0x44] sm:$0x7]
        %v5381 = vld [vmem:[%s5362 + $0x48] sm:$0xf]
        %v5382 = vld [vmem:[%s5362 + $0x4c] sm:$0xf]
        %v5383 = vld [vmem:[%s5362 + $0x50] sm:$0x7]
        %v5384 = vld [vmem:[%s5362 + $0x54] sm:$0xf]
        %v5385 = vld [vmem:[%s5362 + $0x58] sm:$0xf]
        %v5386 = vld [vmem:[%s5362 + $0x5c] sm:$0x7]
        %v5411 = vrot.slane %v5363, 5
        %v5412 = vrot.slane %v5411, 4
        %v5413 = vrot.slane %v5364, 5
        %v5414 = vsel %vm2283, %v5412, %v5413
        %v5415 = vrot.slane %v5413, 4
        %v5416 = vrot.slane %v5365, 5
        %v5417 = vsel %vm2283, %v5415, %v5416
        %v5418 = vrot.slane %v5366, 5
        %v5419 = vrot.slane %v5418, 4
        %v5420 = vrot.slane %v5367, 5
        %v5421 = vsel %vm2283, %v5419, %v5420
        %v5422 = vrot.slane %v5420, 4
        %v5423 = vrot.slane %v5368, 5
        %v5424 = vsel %vm2283, %v5422, %v5423
        %v5425 = vrot.slane %v5369, 5
        %v5426 = vrot.slane %v5425, 4
        %v5427 = vrot.slane %v5370, 5
        %v5428 = vsel %vm2283, %v5426, %v5427
        %v5429 = vrot.slane %v5427, 4
        %v5430 = vrot.slane %v5371, 5
        %v5431 = vsel %vm2283, %v5429, %v5430
        %v5432 = vrot.slane %v5372, 5
        %v5433 = vrot.slane %v5432, 4
        %v5434 = vrot.slane %v5373, 5
        %v5435 = vsel %vm2283, %v5433, %v5434
        %v5436 = vrot.slane %v5434, 4
        %v5437 = vrot.slane %v5374, 5
        %v5438 = vsel %vm2283, %v5436, %v5437
        %v5439 = vrot.slane %v5375, 5
        %v5440 = vrot.slane %v5439, 4
        %v5441 = vrot.slane %v5376, 5
        %v5442 = vsel %vm2283, %v5440, %v5441
        %v5443 = vrot.slane %v5441, 4
        %v5444 = vrot.slane %v5377, 5
        %v5445 = vsel %vm2283, %v5443, %v5444
        %v5446 = vrot.slane %v5378, 5
        %v5447 = vrot.slane %v5446, 4
        %v5448 = vrot.slane %v5379, 5
        %v5449 = vsel %vm2283, %v5447, %v5448
        %v5450 = vrot.slane %v5448, 4
        %v5451 = vrot.slane %v5380, 5
        %v5452 = vsel %vm2283, %v5450, %v5451
        %v5453 = vrot.slane %v5381, 5
        %v5454 = vrot.slane %v5453, 4
        %v5455 = vrot.slane %v5382, 5
        %v5456 = vsel %vm2283, %v5454, %v5455
        %v5457 = vrot.slane %v5455, 4
        %v5458 = vrot.slane %v5383, 5
        %v5459 = vsel %vm2283, %v5457, %v5458
        %v5460 = vrot.slane %v5384, 5
        %v5461 = vrot.slane %v5460, 4
        %v5462 = vrot.slane %v5385, 5
        %v5463 = vsel %vm2283, %v5461, %v5462
        %v5464 = vrot.slane %v5462, 4
        %v5465 = vrot.slane %v5386, 5
        %v5466 = vsel %vm2283, %v5464, %v5465
        %s5467 = scalar_lea.vmem [#allocation2], 1024
        %v5468 = vld [vmem:[%s5467] sm:$0xf]
        %v5469 = vld [vmem:[%s5467 + $0x4] sm:$0xf]
        %v5470 = vld [vmem:[%s5467 + $0x8] sm:$0xf]
        %v5471 = vld [vmem:[%s5467 + $0xc] sm:$0xf]
        %v5472 = vld [vmem:[%s5467 + $0x10] sm:$0xf]
        %v5473 = vld [vmem:[%s5467 + $0x14] sm:$0xf]
        %v5474 = vld [vmem:[%s5467 + $0x18] sm:$0xf]
        %v5475 = vld [vmem:[%s5467 + $0x1c] sm:$0xf]
        %v5476 = vld [vmem:[%s5467 + $0x20] sm:$0xf]
        %v5477 = vld [vmem:[%s5467 + $0x24] sm:$0xf]
        %v5478 = vld [vmem:[%s5467 + $0x28] sm:$0xf]
        %v5479 = vld [vmem:[%s5467 + $0x2c] sm:$0xf]
        %v5480 = vld [vmem:[%s5467 + $0x30] sm:$0xf]
        %v5481 = vld [vmem:[%s5467 + $0x34] sm:$0xf]
        %v5482 = vld [vmem:[%s5467 + $0x38] sm:$0xf]
        %v5483 = vld [vmem:[%s5467 + $0x3c] sm:$0xf]
        %v5484 = vunpack.c.l.b16 %v5414
        %v5485 = vunpack.c.l.b16 %v5417
        %v5486 = vunpack.c.l.b16 %v5421
        %v5487 = vunpack.c.l.b16 %v5424
        %v5488 = vunpack.c.l.b16 %v5428
        %v5489 = vunpack.c.l.b16 %v5431
        %v5490 = vunpack.c.l.b16 %v5435
        %v5491 = vunpack.c.l.b16 %v5438
        %v5492 = vunpack.c.l.b16 %v5442
        %v5493 = vunpack.c.l.b16 %v5445
        %v5494 = vunpack.c.l.b16 %v5449
        %v5495 = vunpack.c.l.b16 %v5452
        %v5496 = vunpack.c.l.b16 %v5456
        %v5497 = vunpack.c.l.b16 %v5459
        %v5498 = vunpack.c.l.b16 %v5463
        %v5499 = vunpack.c.l.b16 %v5466
        %v5500 = vpack.c.b16 %v5485, %v5484
        %v5501 = vpack.c.b16 %v5487, %v5486
        %v5502 = vpack.c.b16 %v5489, %v5488
        %v5503 = vpack.c.b16 %v5491, %v5490
        %v5504 = vpack.c.b16 %v5493, %v5492
        %v5505 = vpack.c.b16 %v5495, %v5494
        %v5506 = vpack.c.b16 %v5497, %v5496
        %v5507 = vpack.c.b16 %v5499, %v5498
        %v5532 = vunpack.c.l.b16 %v5468
        %v5533 = vunpack.c.l.b16 %v5469
        %v5534 = vunpack.c.l.b16 %v5470
        %v5535 = vunpack.c.l.b16 %v5471
        %v5536 = vunpack.c.l.b16 %v5472
        %v5537 = vunpack.c.l.b16 %v5473
        %v5538 = vunpack.c.l.b16 %v5474
        %v5539 = vunpack.c.l.b16 %v5475
        %v5540 = vunpack.c.l.b16 %v5476
        %v5541 = vunpack.c.l.b16 %v5477
        %v5542 = vunpack.c.l.b16 %v5478
        %v5543 = vunpack.c.l.b16 %v5479
        %v5544 = vunpack.c.l.b16 %v5480
        %v5545 = vunpack.c.l.b16 %v5481
        %v5546 = vunpack.c.l.b16 %v5482
        %v5547 = vunpack.c.l.b16 %v5483
        %v5548 = vpack.c.b16 %v5533, %v5532
        %v5549 = vpack.c.b16 %v5535, %v5534
        %v5550 = vpack.c.b16 %v5537, %v5536
        %v5551 = vpack.c.b16 %v5539, %v5538
        %v5552 = vpack.c.b16 %v5541, %v5540
        %v5553 = vpack.c.b16 %v5543, %v5542
        %v5554 = vpack.c.b16 %v5545, %v5544
        %v5555 = vpack.c.b16 %v5547, %v5546
        %5564 = vmatprep.subr.bf16.mxu0 0
        %5565 = vmatpush1.bf16.msra.mxu0 %v5548
        %5566 = vmatprep.subr.bf16.mxu0 0
        %5567 = vmatpush1.bf16.msra.mxu0 %v5549
        %5568 = vmatprep.subr.bf16.mxu0 0
        %5569 = vmatpush1.bf16.msra.mxu0 %v5550
        %5570 = vmatprep.subr.bf16.mxu0 0
        %5571 = vmatpush1.bf16.msra.mxu0 %v5551
        %5572 = vmatprep.subr.bf16.mxu0 0
        %5573 = vmatpush1.bf16.msra.mxu0 %v5552
        %5574 = vmatprep.subr.bf16.mxu0 0
        %5575 = vmatpush1.bf16.msra.mxu0 %v5553
        %5576 = vmatprep.subr.bf16.mxu0 0
        %5577 = vmatpush1.bf16.msra.mxu0 %v5554
        %5578 = vmatprep.subr.bf16.mxu0 0
        %5579 = vmatpush1.bf16.msra.mxu0 %v5555
        %5580 = vmatprep.subr.bf16.mxu0 0
        %5581 = vmatpush1.bf16.msra.mxu0 0
        %5582 = vmatprep.subr.bf16.mxu0 0
        %5583 = vmatpush1.bf16.msra.mxu0 0
        %5584 = vmatprep.subr.bf16.mxu0 0
        %5585 = vmatpush1.bf16.msra.mxu0 0
        %5586 = vmatprep.subr.bf16.mxu0 0
        %5587 = vmatpush1.bf16.msra.mxu0 0
        %5588 = vmatprep.subr.bf16.mxu0 0
        %5589 = vmatpush1.bf16.msra.mxu0 0
        %5590 = vmatprep.subr.bf16.mxu0 0
        %5591 = vmatpush1.bf16.msra.mxu0 0
        %5592 = vmatprep.subr.bf16.mxu0 0
        %5593 = vmatpush1.bf16.msra.mxu0 0
        %5594 = vmatprep.subr.bf16.mxu0 0
        %5595 = vmatpush1.bf16.msra.mxu0 0
        %5596 = vmatprep.mubr.bf16.mxu0 0
        %5597 = vmatmul.mubr.bf16.gmra.mrb[0].mxu0 %v5500
        %v5598 = vpop.f32.mrb[0].mxu0
        %v5599 = vadd.f32 0.0, %v5598
        %v5600 = vpop.f32.mrb[0].mxu0
        %v5601 = vpop.f32.mrb[0].mxu0
        %v5602 = vadd.f32 0.0, %v5601
        %v5603 = vpop.f32.mrb[0].mxu0
        %5604 = vmatprep.mubr.bf16.mxu0 0
        %5605 = vmatmul.mubr.bf16.gmra.mrb[0].mxu0 %v5501
        %v5606 = vpop.f32.mrb[0].mxu0
        %v5607 = vadd.f32 0.0, %v5606
        %v5608 = vpop.f32.mrb[0].mxu0
        %v5609 = vpop.f32.mrb[0].mxu0
        %v5610 = vadd.f32 0.0, %v5609
        %v5611 = vpop.f32.mrb[0].mxu0
        %5612 = vmatprep.mubr.bf16.mxu0 0
        %5613 = vmatmul.mubr.bf16.gmra.mrb[0].mxu0 %v5502
        %v5614 = vpop.f32.mrb[0].mxu0
        %v5615 = vadd.f32 0.0, %v5614
        %v5616 = vpop.f32.mrb[0].mxu0
        %v5617 = vpop.f32.mrb[0].mxu0
        %v5618 = vadd.f32 0.0, %v5617
        %v5619 = vpop.f32.mrb[0].mxu0
        %5620 = vmatprep.mubr.bf16.mxu0 0
        %5621 = vmatmul.mubr.bf16.gmra.mrb[0].mxu0 %v5503
        %v5622 = vpop.f32.mrb[0].mxu0
        %v5623 = vadd.f32 0.0, %v5622
        %v5624 = vpop.f32.mrb[0].mxu0
        %v5625 = vpop.f32.mrb[0].mxu0
        %v5626 = vadd.f32 0.0, %v5625
        %v5627 = vpop.f32.mrb[0].mxu0
        %5628 = vmatprep.mubr.bf16.mxu0 0
        %5629 = vmatmul.mubr.bf16.gmra.mrb[0].mxu0 %v5504
        %v5630 = vpop.f32.mrb[0].mxu0
        %v5631 = vadd.f32 0.0, %v5630
        %v5632 = vpop.f32.mrb[0].mxu0
        %v5633 = vpop.f32.mrb[0].mxu0
        %v5634 = vadd.f32 0.0, %v5633
        %v5635 = vpop.f32.mrb[0].mxu0
        %5636 = vmatprep.mubr.bf16.mxu0 0
        %5637 = vmatmul.mubr.bf16.gmra.mrb[0].mxu0 %v5505
        %v5638 = vpop.f32.mrb[0].mxu0
        %v5639 = vadd.f32 0.0, %v5638
        %v5640 = vpop.f32.mrb[0].mxu0
        %v5641 = vpop.f32.mrb[0].mxu0
        %v5642 = vadd.f32 0.0, %v5641
        %v5643 = vpop.f32.mrb[0].mxu0
        %5644 = vmatprep.mubr.bf16.mxu0 0
        %5645 = vmatmul.mubr.bf16.gmra.mrb[0].mxu0 %v5506
        %v5646 = vpop.f32.mrb[0].mxu0
        %v5647 = vadd.f32 0.0, %v5646
        %v5648 = vpop.f32.mrb[0].mxu0
        %v5649 = vpop.f32.mrb[0].mxu0
        %v5650 = vadd.f32 0.0, %v5649
        %v5651 = vpop.f32.mrb[0].mxu0
        %5652 = vmatprep.mubr.bf16.mxu0 0
        %5653 = vmatmul.mubr.bf16.gmra.mrb[0].mxu0 %v5507
        %v5654 = vpop.f32.mrb[0].mxu0
        %v5655 = vadd.f32 0.0, %v5654
        %v5656 = vpop.f32.mrb[0].mxu0
        %v5657 = vpop.f32.mrb[0].mxu0
        %v5658 = vadd.f32 0.0, %v5657
        %v5659 = vpop.f32.mrb[0].mxu0
        %5660 = vdwg.mxu0
        %v5661 = vadd.f32 %v5343, %v5599
        %v5662 = vadd.f32 %v5344, %v5602
        %v5663 = vadd.f32 %v5345, %v5607
        %v5664 = vadd.f32 %v5346, %v5610
        %v5665 = vadd.f32 %v5347, %v5615
        %v5666 = vadd.f32 %v5348, %v5618
        %v5667 = vadd.f32 %v5349, %v5623
        %v5668 = vadd.f32 %v5350, %v5626
        %v5669 = vadd.f32 %v5351, %v5631
        %v5670 = vadd.f32 %v5352, %v5634
        %v5671 = vadd.f32 %v5353, %v5639
        %v5672 = vadd.f32 %v5354, %v5642
        %v5673 = vadd.f32 %v5355, %v5647
        %v5674 = vadd.f32 %v5356, %v5650
        %v5675 = vadd.f32 %v5357, %v5655
        %v5676 = vadd.f32 %v5358, %v5658
        %v5678 = vshrl.u32 %v5363, 16
        %v5680 = vrot.slane %v5678, 5
        %v5681 = vshll.u32 %v5363, 16
        %v5683 = vrot.slane %v5681, 6
        %v5684 = vor.u32 %v5680, %v5683
        %v5685 = vrot.slane %v5684, 4
        %v5687 = vshrl.u32 %v5364, 16
        %v5689 = vrot.slane %v5687, 5
        %v5690 = vshll.u32 %v5364, 16
        %v5692 = vrot.slane %v5690, 6
        %v5693 = vor.u32 %v5689, %v5692
        %v5694 = vsel %vm260, %v5685, %v5693
        %v5695 = vrot.slane %v5693, 4
        %v5697 = vshrl.u32 %v5365, 16
        %v5699 = vrot.slane %v5697, 5
        %v5700 = vshll.u32 %v5365, 16
        %v5702 = vrot.slane %v5700, 6
        %v5703 = vor.u32 %v5699, %v5702
        %v5704 = vsel %vm260, %v5695, %v5703
        %v5706 = vshrl.u32 %v5366, 16
        %v5708 = vrot.slane %v5706, 5
        %v5709 = vshll.u32 %v5366, 16
        %v5711 = vrot.slane %v5709, 6
        %v5712 = vor.u32 %v5708, %v5711
        %v5713 = vrot.slane %v5712, 4
        %v5715 = vshrl.u32 %v5367, 16
        %v5717 = vrot.slane %v5715, 5
        %v5718 = vshll.u32 %v5367, 16
        %v5720 = vrot.slane %v5718, 6
        %v5721 = vor.u32 %v5717, %v5720
        %v5722 = vsel %vm260, %v5713, %v5721
        %v5723 = vrot.slane %v5721, 4
        %v5725 = vshrl.u32 %v5368, 16
        %v5727 = vrot.slane %v5725, 5
        %v5728 = vshll.u32 %v5368, 16
        %v5730 = vrot.slane %v5728, 6
        %v5731 = vor.u32 %v5727, %v5730
        %v5732 = vsel %vm260, %v5723, %v5731
        %v5734 = vshrl.u32 %v5369, 16
        %v5736 = vrot.slane %v5734, 5
        %v5737 = vshll.u32 %v5369, 16
        %v5739 = vrot.slane %v5737, 6
        %v5740 = vor.u32 %v5736, %v5739
        %v5741 = vrot.slane %v5740, 4
        %v5743 = vshrl.u32 %v5370, 16
        %v5745 = vrot.slane %v5743, 5
        %v5746 = vshll.u32 %v5370, 16
        %v5748 = vrot.slane %v5746, 6
        %v5749 = vor.u32 %v5745, %v5748
        %v5750 = vsel %vm260, %v5741, %v5749
        %v5751 = vrot.slane %v5749, 4
        %v5753 = vshrl.u32 %v5371, 16
        %v5755 = vrot.slane %v5753, 5
        %v5756 = vshll.u32 %v5371, 16
        %v5758 = vrot.slane %v5756, 6
        %v5759 = vor.u32 %v5755, %v5758
        %v5760 = vsel %vm260, %v5751, %v5759
        %v5762 = vshrl.u32 %v5372, 16
        %v5764 = vrot.slane %v5762, 5
        %v5765 = vshll.u32 %v5372, 16
        %v5767 = vrot.slane %v5765, 6
        %v5768 = vor.u32 %v5764, %v5767
        %v5769 = vrot.slane %v5768, 4
        %v5771 = vshrl.u32 %v5373, 16
        %v5773 = vrot.slane %v5771, 5
        %v5774 = vshll.u32 %v5373, 16
        %v5776 = vrot.slane %v5774, 6
        %v5777 = vor.u32 %v5773, %v5776
        %v5778 = vsel %vm260, %v5769, %v5777
        %v5779 = vrot.slane %v5777, 4
        %v5781 = vshrl.u32 %v5374, 16
        %v5783 = vrot.slane %v5781, 5
        %v5784 = vshll.u32 %v5374, 16
        %v5786 = vrot.slane %v5784, 6
        %v5787 = vor.u32 %v5783, %v5786
        %v5788 = vsel %vm260, %v5779, %v5787
        %v5790 = vshrl.u32 %v5375, 16
        %v5792 = vrot.slane %v5790, 5
        %v5793 = vshll.u32 %v5375, 16
        %v5795 = vrot.slane %v5793, 6
        %v5796 = vor.u32 %v5792, %v5795
        %v5797 = vrot.slane %v5796, 4
        %v5799 = vshrl.u32 %v5376, 16
        %v5801 = vrot.slane %v5799, 5
        %v5802 = vshll.u32 %v5376, 16
        %v5804 = vrot.slane %v5802, 6
        %v5805 = vor.u32 %v5801, %v5804
        %v5806 = vsel %vm260, %v5797, %v5805
        %v5807 = vrot.slane %v5805, 4
        %v5809 = vshrl.u32 %v5377, 16
        %v5811 = vrot.slane %v5809, 5
        %v5812 = vshll.u32 %v5377, 16
        %v5814 = vrot.slane %v5812, 6
        %v5815 = vor.u32 %v5811, %v5814
        %v5816 = vsel %vm260, %v5807, %v5815
        %v5818 = vshrl.u32 %v5378, 16
        %v5820 = vrot.slane %v5818, 5
        %v5821 = vshll.u32 %v5378, 16
        %v5823 = vrot.slane %v5821, 6
        %v5824 = vor.u32 %v5820, %v5823
        %v5825 = vrot.slane %v5824, 4
        %v5827 = vshrl.u32 %v5379, 16
        %v5829 = vrot.slane %v5827, 5
        %v5830 = vshll.u32 %v5379, 16
        %v5832 = vrot.slane %v5830, 6
        %v5833 = vor.u32 %v5829, %v5832
        %v5834 = vsel %vm260, %v5825, %v5833
        %v5835 = vrot.slane %v5833, 4
        %v5837 = vshrl.u32 %v5380, 16
        %v5839 = vrot.slane %v5837, 5
        %v5840 = vshll.u32 %v5380, 16
        %v5842 = vrot.slane %v5840, 6
        %v5843 = vor.u32 %v5839, %v5842
        %v5844 = vsel %vm260, %v5835, %v5843
        %v5846 = vshrl.u32 %v5381, 16
        %v5848 = vrot.slane %v5846, 5
        %v5849 = vshll.u32 %v5381, 16
        %v5851 = vrot.slane %v5849, 6
        %v5852 = vor.u32 %v5848, %v5851
        %v5853 = vrot.slane %v5852, 4
        %v5855 = vshrl.u32 %v5382, 16
        %v5857 = vrot.slane %v5855, 5
        %v5858 = vshll.u32 %v5382, 16
        %v5860 = vrot.slane %v5858, 6
        %v5861 = vor.u32 %v5857, %v5860
        %v5862 = vsel %vm260, %v5853, %v5861
        %v5863 = vrot.slane %v5861, 4
        %v5865 = vshrl.u32 %v5383, 16
        %v5867 = vrot.slane %v5865, 5
        %v5868 = vshll.u32 %v5383, 16
        %v5870 = vrot.slane %v5868, 6
        %v5871 = vor.u32 %v5867, %v5870
        %v5872 = vsel %vm260, %v5863, %v5871
        %v5874 = vshrl.u32 %v5384, 16
        %v5876 = vrot.slane %v5874, 5
        %v5877 = vshll.u32 %v5384, 16
        %v5879 = vrot.slane %v5877, 6
        %v5880 = vor.u32 %v5876, %v5879
        %v5881 = vrot.slane %v5880, 4
        %v5883 = vshrl.u32 %v5385, 16
        %v5885 = vrot.slane %v5883, 5
        %v5886 = vshll.u32 %v5385, 16
        %v5888 = vrot.slane %v5886, 6
        %v5889 = vor.u32 %v5885, %v5888
        %v5890 = vsel %vm260, %v5881, %v5889
        %v5891 = vrot.slane %v5889, 4
        %v5893 = vshrl.u32 %v5386, 16
        %v5895 = vrot.slane %v5893, 5
        %v5896 = vshll.u32 %v5386, 16
        %v5898 = vrot.slane %v5896, 6
        %v5899 = vor.u32 %v5895, %v5898
        %v5900 = vsel %vm260, %v5891, %v5899
        %s5901 = scalar_lea.vmem [#allocation2], 1088
        %v5902 = vld [vmem:[%s5901] sm:$0xf]
        %v5903 = vld [vmem:[%s5901 + $0x4] sm:$0xf]
        %v5904 = vld [vmem:[%s5901 + $0x8] sm:$0xf]
        %v5905 = vld [vmem:[%s5901 + $0xc] sm:$0xf]
        %v5906 = vld [vmem:[%s5901 + $0x10] sm:$0xf]
        %v5907 = vld [vmem:[%s5901 + $0x14] sm:$0xf]
        %v5908 = vld [vmem:[%s5901 + $0x18] sm:$0xf]
        %v5909 = vld [vmem:[%s5901 + $0x1c] sm:$0xf]
        %v5910 = vld [vmem:[%s5901 + $0x20] sm:$0xf]
        %v5911 = vld [vmem:[%s5901 + $0x24] sm:$0xf]
        %v5912 = vld [vmem:[%s5901 + $0x28] sm:$0xf]
        %v5913 = vld [vmem:[%s5901 + $0x2c] sm:$0xf]
        %v5914 = vld [vmem:[%s5901 + $0x30] sm:$0xf]
        %v5915 = vld [vmem:[%s5901 + $0x34] sm:$0xf]
        %v5916 = vld [vmem:[%s5901 + $0x38] sm:$0xf]
        %v5917 = vld [vmem:[%s5901 + $0x3c] sm:$0xf]
        %v5918 = vunpack.c.l.b16 %v5694
        %v5919 = vunpack.c.l.b16 %v5704
        %v5920 = vunpack.c.l.b16 %v5722
        %v5921 = vunpack.c.l.b16 %v5732
        %v5922 = vunpack.c.l.b16 %v5750
        %v5923 = vunpack.c.l.b16 %v5760
        %v5924 = vunpack.c.l.b16 %v5778
        %v5925 = vunpack.c.l.b16 %v5788
        %v5926 = vunpack.c.l.b16 %v5806
        %v5927 = vunpack.c.l.b16 %v5816
        %v5928 = vunpack.c.l.b16 %v5834
        %v5929 = vunpack.c.l.b16 %v5844
        %v5930 = vunpack.c.l.b16 %v5862
        %v5931 = vunpack.c.l.b16 %v5872
        %v5932 = vunpack.c.l.b16 %v5890
        %v5933 = vunpack.c.l.b16 %v5900
        %v5934 = vpack.c.b16 %v5919, %v5918
        %v5935 = vpack.c.b16 %v5921, %v5920
        %v5936 = vpack.c.b16 %v5923, %v5922
        %v5937 = vpack.c.b16 %v5925, %v5924
        %v5938 = vpack.c.b16 %v5927, %v5926
        %v5939 = vpack.c.b16 %v5929, %v5928
        %v5940 = vpack.c.b16 %v5931, %v5930
        %v5941 = vpack.c.b16 %v5933, %v5932
        %v5966 = vunpack.c.l.b16 %v5902
        %v5967 = vunpack.c.l.b16 %v5903
        %v5968 = vunpack.c.l.b16 %v5904
        %v5969 = vunpack.c.l.b16 %v5905
        %v5970 = vunpack.c.l.b16 %v5906
        %v5971 = vunpack.c.l.b16 %v5907
        %v5972 = vunpack.c.l.b16 %v5908
        %v5973 = vunpack.c.l.b16 %v5909
        %v5974 = vunpack.c.l.b16 %v5910
        %v5975 = vunpack.c.l.b16 %v5911
        %v5976 = vunpack.c.l.b16 %v5912
        %v5977 = vunpack.c.l.b16 %v5913
        %v5978 = vunpack.c.l.b16 %v5914
        %v5979 = vunpack.c.l.b16 %v5915
        %v5980 = vunpack.c.l.b16 %v5916
        %v5981 = vunpack.c.l.b16 %v5917
        %v5982 = vpack.c.b16 %v5967, %v5966
        %v5983 = vpack.c.b16 %v5969, %v5968
        %v5984 = vpack.c.b16 %v5971, %v5970
        %v5985 = vpack.c.b16 %v5973, %v5972
        %v5986 = vpack.c.b16 %v5975, %v5974
        %v5987 = vpack.c.b16 %v5977, %v5976
        %v5988 = vpack.c.b16 %v5979, %v5978
        %v5989 = vpack.c.b16 %v5981, %v5980
        %5998 = vmatprep.subr.bf16.mxu0 0
        %5999 = vmatpush1.bf16.msra.mxu0 %v5982
        %6000 = vmatprep.subr.bf16.mxu0 0
        %6001 = vmatpush1.bf16.msra.mxu0 %v5983
        %6002 = vmatprep.subr.bf16.mxu0 0
        %6003 = vmatpush1.bf16.msra.mxu0 %v5984
        %6004 = vmatprep.subr.bf16.mxu0 0
        %6005 = vmatpush1.bf16.msra.mxu0 %v5985
        %6006 = vmatprep.subr.bf16.mxu0 0
        %6007 = vmatpush1.bf16.msra.mxu0 %v5986
        %6008 = vmatprep.subr.bf16.mxu0 0
        %6009 = vmatpush1.bf16.msra.mxu0 %v5987
        %6010 = vmatprep.subr.bf16.mxu0 0
        %6011 = vmatpush1.bf16.msra.mxu0 %v5988
        %6012 = vmatprep.subr.bf16.mxu0 0
        %6013 = vmatpush1.bf16.msra.mxu0 %v5989
        %6014 = vmatprep.subr.bf16.mxu0 0
        %6015 = vmatpush1.bf16.msra.mxu0 0
        %6016 = vmatprep.subr.bf16.mxu0 0
        %6017 = vmatpush1.bf16.msra.mxu0 0
        %6018 = vmatprep.subr.bf16.mxu0 0
        %6019 = vmatpush1.bf16.msra.mxu0 0
        %6020 = vmatprep.subr.bf16.mxu0 0
        %6021 = vmatpush1.bf16.msra.mxu0 0
        %6022 = vmatprep.subr.bf16.mxu0 0
        %6023 = vmatpush1.bf16.msra.mxu0 0
        %6024 = vmatprep.subr.bf16.mxu0 0
        %6025 = vmatpush1.bf16.msra.mxu0 0
        %6026 = vmatprep.subr.bf16.mxu0 0
        %6027 = vmatpush1.bf16.msra.mxu0 0
        %6028 = vmatprep.subr.bf16.mxu0 0
        %6029 = vmatpush1.bf16.msra.mxu0 0
        %6030 = vmatprep.mubr.bf16.mxu0 0
        %6031 = vmatmul.mubr.bf16.gmra.mrb[0].mxu0 %v5934
        %v6032 = vpop.f32.mrb[0].mxu0
        %v6033 = vadd.f32 0.0, %v6032
        %v6034 = vpop.f32.mrb[0].mxu0
        %v6035 = vpop.f32.mrb[0].mxu0
        %v6036 = vadd.f32 0.0, %v6035
        %v6037 = vpop.f32.mrb[0].mxu0
        %6038 = vmatprep.mubr.bf16.mxu0 0
        %6039 = vmatmul.mubr.bf16.gmra.mrb[0].mxu0 %v5935
        %v6040 = vpop.f32.mrb[0].mxu0
        %v6041 = vadd.f32 0.0, %v6040
        %v6042 = vpop.f32.mrb[0].mxu0
        %v6043 = vpop.f32.mrb[0].mxu0
        %v6044 = vadd.f32 0.0, %v6043
        %v6045 = vpop.f32.mrb[0].mxu0
        %6046 = vmatprep.mubr.bf16.mxu0 0
        %6047 = vmatmul.mubr.bf16.gmra.mrb[0].mxu0 %v5936
        %v6048 = vpop.f32.mrb[0].mxu0
        %v6049 = vadd.f32 0.0, %v6048
        %v6050 = vpop.f32.mrb[0].mxu0
        %v6051 = vpop.f32.mrb[0].mxu0
        %v6052 = vadd.f32 0.0, %v6051
        %v6053 = vpop.f32.mrb[0].mxu0
        %6054 = vmatprep.mubr.bf16.mxu0 0
        %6055 = vmatmul.mubr.bf16.gmra.mrb[0].mxu0 %v5937
        %v6056 = vpop.f32.mrb[0].mxu0
        %v6057 = vadd.f32 0.0, %v6056
        %v6058 = vpop.f32.mrb[0].mxu0
        %v6059 = vpop.f32.mrb[0].mxu0
        %v6060 = vadd.f32 0.0, %v6059
        %v6061 = vpop.f32.mrb[0].mxu0
        %6062 = vmatprep.mubr.bf16.mxu0 0
        %6063 = vmatmul.mubr.bf16.gmra.mrb[0].mxu0 %v5938
        %v6064 = vpop.f32.mrb[0].mxu0
        %v6065 = vadd.f32 0.0, %v6064
        %v6066 = vpop.f32.mrb[0].mxu0
        %v6067 = vpop.f32.mrb[0].mxu0
        %v6068 = vadd.f32 0.0, %v6067
        %v6069 = vpop.f32.mrb[0].mxu0
        %6070 = vmatprep.mubr.bf16.mxu0 0
        %6071 = vmatmul.mubr.bf16.gmra.mrb[0].mxu0 %v5939
        %v6072 = vpop.f32.mrb[0].mxu0
        %v6073 = vadd.f32 0.0, %v6072
        %v6074 = vpop.f32.mrb[0].mxu0
        %v6075 = vpop.f32.mrb[0].mxu0
        %v6076 = vadd.f32 0.0, %v6075
        %v6077 = vpop.f32.mrb[0].mxu0
        %6078 = vmatprep.mubr.bf16.mxu0 0
        %6079 = vmatmul.mubr.bf16.gmra.mrb[0].mxu0 %v5940
        %v6080 = vpop.f32.mrb[0].mxu0
        %v6081 = vadd.f32 0.0, %v6080
        %v6082 = vpop.f32.mrb[0].mxu0
        %v6083 = vpop.f32.mrb[0].mxu0
        %v6084 = vadd.f32 0.0, %v6083
        %v6085 = vpop.f32.mrb[0].mxu0
        %6086 = vmatprep.mubr.bf16.mxu0 0
        %6087 = vmatmul.mubr.bf16.gmra.mrb[0].mxu0 %v5941
        %v6088 = vpop.f32.mrb[0].mxu0
        %v6089 = vadd.f32 0.0, %v6088
        %v6090 = vpop.f32.mrb[0].mxu0
        %v6091 = vpop.f32.mrb[0].mxu0
        %v6092 = vadd.f32 0.0, %v6091
        %v6093 = vpop.f32.mrb[0].mxu0
        %6094 = vdwg.mxu0
        %v6095 = vadd.f32 %v5661, %v6033
        %v6096 = vadd.f32 %v5662, %v6036
        %v6097 = vadd.f32 %v5663, %v6041
        %v6098 = vadd.f32 %v5664, %v6044
        %v6099 = vadd.f32 %v5665, %v6049
        %v6100 = vadd.f32 %v5666, %v6052
        %v6101 = vadd.f32 %v5667, %v6057
        %v6102 = vadd.f32 %v5668, %v6060
        %v6103 = vadd.f32 %v5669, %v6065
        %v6104 = vadd.f32 %v5670, %v6068
        %v6105 = vadd.f32 %v5671, %v6073
        %v6106 = vadd.f32 %v5672, %v6076
        %v6107 = vadd.f32 %v5673, %v6081
        %v6108 = vadd.f32 %v5674, %v6084
        %v6109 = vadd.f32 %v5675, %v6089
        %v6110 = vadd.f32 %v5676, %v6092
        %v6111 = vrot.slane %v5363, 6
        %v6112 = vrot.slane %v6111, 4
        %v6113 = vrot.slane %v5364, 6
        %v6114 = vsel %vm2986, %v6112, %v6113
        %v6115 = vrot.slane %v6113, 4
        %v6116 = vrot.slane %v5365, 6
        %v6117 = vsel %vm2986, %v6115, %v6116
        %v6118 = vrot.slane %v5366, 6
        %v6119 = vrot.slane %v6118, 4
        %v6120 = vrot.slane %v5367, 6
        %v6121 = vsel %vm2986, %v6119, %v6120
        %v6122 = vrot.slane %v6120, 4
        %v6123 = vrot.slane %v5368, 6
        %v6124 = vsel %vm2986, %v6122, %v6123
        %v6125 = vrot.slane %v5369, 6
        %v6126 = vrot.slane %v6125, 4
        %v6127 = vrot.slane %v5370, 6
        %v6128 = vsel %vm2986, %v6126, %v6127
        %v6129 = vrot.slane %v6127, 4
        %v6130 = vrot.slane %v5371, 6
        %v6131 = vsel %vm2986, %v6129, %v6130
        %v6132 = vrot.slane %v5372, 6
        %v6133 = vrot.slane %v6132, 4
        %v6134 = vrot.slane %v5373, 6
        %v6135 = vsel %vm2986, %v6133, %v6134
        %v6136 = vrot.slane %v6134, 4
        %v6137 = vrot.slane %v5374, 6
        %v6138 = vsel %vm2986, %v6136, %v6137
        %v6139 = vrot.slane %v5375, 6
        %v6140 = vrot.slane %v6139, 4
        %v6141 = vrot.slane %v5376, 6
        %v6142 = vsel %vm2986, %v6140, %v6141
        %v6143 = vrot.slane %v6141, 4
        %v6144 = vrot.slane %v5377, 6
        %v6145 = vsel %vm2986, %v6143, %v6144
        %v6146 = vrot.slane %v5378, 6
        %v6147 = vrot.slane %v6146, 4
        %v6148 = vrot.slane %v5379, 6
        %v6149 = vsel %vm2986, %v6147, %v6148
        %v6150 = vrot.slane %v6148, 4
        %v6151 = vrot.slane %v5380, 6
        %v6152 = vsel %vm2986, %v6150, %v6151
        %v6153 = vrot.slane %v5381, 6
        %v6154 = vrot.slane %v6153, 4
        %v6155 = vrot.slane %v5382, 6
        %v6156 = vsel %vm2986, %v6154, %v6155
        %v6157 = vrot.slane %v6155, 4
        %v6158 = vrot.slane %v5383, 6
        %v6159 = vsel %vm2986, %v6157, %v6158
        %v6160 = vrot.slane %v5384, 6
        %v6161 = vrot.slane %v6160, 4
        %v6162 = vrot.slane %v5385, 6
        %v6163 = vsel %vm2986, %v6161, %v6162
        %v6164 = vrot.slane %v6162, 4
        %v6165 = vrot.slane %v5386, 6
        %v6166 = vsel %vm2986, %v6164, %v6165
        %s6167 = scalar_lea.vmem [#allocation2], 1152
        %v6168 = vld [vmem:[%s6167] sm:$0xf]
        %v6169 = vld [vmem:[%s6167 + $0x4] sm:$0xf]
        %v6170 = vld [vmem:[%s6167 + $0x8] sm:$0xf]
        %v6171 = vld [vmem:[%s6167 + $0xc] sm:$0xf]
        %v6172 = vld [vmem:[%s6167 + $0x10] sm:$0xf]
        %v6173 = vld [vmem:[%s6167 + $0x14] sm:$0xf]
        %v6174 = vld [vmem:[%s6167 + $0x18] sm:$0xf]
        %v6175 = vld [vmem:[%s6167 + $0x1c] sm:$0xf]
        %v6176 = vld [vmem:[%s6167 + $0x20] sm:$0xf]
        %v6177 = vld [vmem:[%s6167 + $0x24] sm:$0xf]
        %v6178 = vld [vmem:[%s6167 + $0x28] sm:$0xf]
        %v6179 = vld [vmem:[%s6167 + $0x2c] sm:$0xf]
        %v6180 = vld [vmem:[%s6167 + $0x30] sm:$0xf]
        %v6181 = vld [vmem:[%s6167 + $0x34] sm:$0xf]
        %v6182 = vld [vmem:[%s6167 + $0x38] sm:$0xf]
        %v6183 = vld [vmem:[%s6167 + $0x3c] sm:$0xf]
        %v6184 = vunpack.c.l.b16 %v6114
        %v6185 = vunpack.c.l.b16 %v6117
        %v6186 = vunpack.c.l.b16 %v6121
        %v6187 = vunpack.c.l.b16 %v6124
        %v6188 = vunpack.c.l.b16 %v6128
        %v6189 = vunpack.c.l.b16 %v6131
        %v6190 = vunpack.c.l.b16 %v6135
        %v6191 = vunpack.c.l.b16 %v6138
        %v6192 = vunpack.c.l.b16 %v6142
        %v6193 = vunpack.c.l.b16 %v6145
        %v6194 = vunpack.c.l.b16 %v6149
        %v6195 = vunpack.c.l.b16 %v6152
        %v6196 = vunpack.c.l.b16 %v6156
        %v6197 = vunpack.c.l.b16 %v6159
        %v6198 = vunpack.c.l.b16 %v6163
        %v6199 = vunpack.c.l.b16 %v6166
        %v6200 = vpack.c.b16 %v6185, %v6184
        %v6201 = vpack.c.b16 %v6187, %v6186
        %v6202 = vpack.c.b16 %v6189, %v6188
        %v6203 = vpack.c.b16 %v6191, %v6190
        %v6204 = vpack.c.b16 %v6193, %v6192
        %v6205 = vpack.c.b16 %v6195, %v6194
        %v6206 = vpack.c.b16 %v6197, %v6196
        %v6207 = vpack.c.b16 %v6199, %v6198
        %v6232 = vunpack.c.l.b16 %v6168
        %v6233 = vunpack.c.l.b16 %v6169
        %v6234 = vunpack.c.l.b16 %v6170
        %v6235 = vunpack.c.l.b16 %v6171
        %v6236 = vunpack.c.l.b16 %v6172
        %v6237 = vunpack.c.l.b16 %v6173
        %v6238 = vunpack.c.l.b16 %v6174
        %v6239 = vunpack.c.l.b16 %v6175
        %v6240 = vunpack.c.l.b16 %v6176
        %v6241 = vunpack.c.l.b16 %v6177
        %v6242 = vunpack.c.l.b16 %v6178
        %v6243 = vunpack.c.l.b16 %v6179
        %v6244 = vunpack.c.l.b16 %v6180
        %v6245 = vunpack.c.l.b16 %v6181
        %v6246 = vunpack.c.l.b16 %v6182
        %v6247 = vunpack.c.l.b16 %v6183
        %v6248 = vpack.c.b16 %v6233, %v6232
        %v6249 = vpack.c.b16 %v6235, %v6234
        %v6250 = vpack.c.b16 %v6237, %v6236
        %v6251 = vpack.c.b16 %v6239, %v6238
        %v6252 = vpack.c.b16 %v6241, %v6240
        %v6253 = vpack.c.b16 %v6243, %v6242
        %v6254 = vpack.c.b16 %v6245, %v6244
        %v6255 = vpack.c.b16 %v6247, %v6246
        %6264 = vmatprep.subr.bf16.mxu0 0
        %6265 = vmatpush1.bf16.msra.mxu0 %v6248
        %6266 = vmatprep.subr.bf16.mxu0 0
        %6267 = vmatpush1.bf16.msra.mxu0 %v6249
        %6268 = vmatprep.subr.bf16.mxu0 0
        %6269 = vmatpush1.bf16.msra.mxu0 %v6250
        %6270 = vmatprep.subr.bf16.mxu0 0
        %6271 = vmatpush1.bf16.msra.mxu0 %v6251
        %6272 = vmatprep.subr.bf16.mxu0 0
        %6273 = vmatpush1.bf16.msra.mxu0 %v6252
        %6274 = vmatprep.subr.bf16.mxu0 0
        %6275 = vmatpush1.bf16.msra.mxu0 %v6253
        %6276 = vmatprep.subr.bf16.mxu0 0
        %6277 = vmatpush1.bf16.msra.mxu0 %v6254
        %6278 = vmatprep.subr.bf16.mxu0 0
        %6279 = vmatpush1.bf16.msra.mxu0 %v6255
        %6280 = vmatprep.subr.bf16.mxu0 0
        %6281 = vmatpush1.bf16.msra.mxu0 0
        %6282 = vmatprep.subr.bf16.mxu0 0
        %6283 = vmatpush1.bf16.msra.mxu0 0
        %6284 = vmatprep.subr.bf16.mxu0 0
        %6285 = vmatpush1.bf16.msra.mxu0 0
        %6286 = vmatprep.subr.bf16.mxu0 0
        %6287 = vmatpush1.bf16.msra.mxu0 0
        %6288 = vmatprep.subr.bf16.mxu0 0
        %6289 = vmatpush1.bf16.msra.mxu0 0
        %6290 = vmatprep.subr.bf16.mxu0 0
        %6291 = vmatpush1.bf16.msra.mxu0 0
        %6292 = vmatprep.subr.bf16.mxu0 0
        %6293 = vmatpush1.bf16.msra.mxu0 0
        %6294 = vmatprep.subr.bf16.mxu0 0
        %6295 = vmatpush1.bf16.msra.mxu0 0
        %6296 = vmatprep.mubr.bf16.mxu0 0
        %6297 = vmatmul.mubr.bf16.gmra.mrb[0].mxu0 %v6200
        %v6298 = vpop.f32.mrb[0].mxu0
        %v6299 = vadd.f32 0.0, %v6298
        %v6300 = vpop.f32.mrb[0].mxu0
        %v6301 = vpop.f32.mrb[0].mxu0
        %v6302 = vadd.f32 0.0, %v6301
        %v6303 = vpop.f32.mrb[0].mxu0
        %6304 = vmatprep.mubr.bf16.mxu0 0
        %6305 = vmatmul.mubr.bf16.gmra.mrb[0].mxu0 %v6201
        %v6306 = vpop.f32.mrb[0].mxu0
        %v6307 = vadd.f32 0.0, %v6306
        %v6308 = vpop.f32.mrb[0].mxu0
        %v6309 = vpop.f32.mrb[0].mxu0
        %v6310 = vadd.f32 0.0, %v6309
        %v6311 = vpop.f32.mrb[0].mxu0
        %6312 = vmatprep.mubr.bf16.mxu0 0
        %6313 = vmatmul.mubr.bf16.gmra.mrb[0].mxu0 %v6202
        %v6314 = vpop.f32.mrb[0].mxu0
        %v6315 = vadd.f32 0.0, %v6314
        %v6316 = vpop.f32.mrb[0].mxu0
        %v6317 = vpop.f32.mrb[0].mxu0
        %v6318 = vadd.f32 0.0, %v6317
        %v6319 = vpop.f32.mrb[0].mxu0
        %6320 = vmatprep.mubr.bf16.mxu0 0
        %6321 = vmatmul.mubr.bf16.gmra.mrb[0].mxu0 %v6203
        %v6322 = vpop.f32.mrb[0].mxu0
        %v6323 = vadd.f32 0.0, %v6322
        %v6324 = vpop.f32.mrb[0].mxu0
        %v6325 = vpop.f32.mrb[0].mxu0
        %v6326 = vadd.f32 0.0, %v6325
        %v6327 = vpop.f32.mrb[0].mxu0
        %6328 = vmatprep.mubr.bf16.mxu0 0
        %6329 = vmatmul.mubr.bf16.gmra.mrb[0].mxu0 %v6204
        %v6330 = vpop.f32.mrb[0].mxu0
        %v6331 = vadd.f32 0.0, %v6330
        %v6332 = vpop.f32.mrb[0].mxu0
        %v6333 = vpop.f32.mrb[0].mxu0
        %v6334 = vadd.f32 0.0, %v6333
        %v6335 = vpop.f32.mrb[0].mxu0
        %6336 = vmatprep.mubr.bf16.mxu0 0
        %6337 = vmatmul.mubr.bf16.gmra.mrb[0].mxu0 %v6205
        %v6338 = vpop.f32.mrb[0].mxu0
        %v6339 = vadd.f32 0.0, %v6338
        %v6340 = vpop.f32.mrb[0].mxu0
        %v6341 = vpop.f32.mrb[0].mxu0
        %v6342 = vadd.f32 0.0, %v6341
        %v6343 = vpop.f32.mrb[0].mxu0
        %6344 = vmatprep.mubr.bf16.mxu0 0
        %6345 = vmatmul.mubr.bf16.gmra.mrb[0].mxu0 %v6206
        %v6346 = vpop.f32.mrb[0].mxu0
        %v6347 = vadd.f32 0.0, %v6346
        %v6348 = vpop.f32.mrb[0].mxu0
        %v6349 = vpop.f32.mrb[0].mxu0
        %v6350 = vadd.f32 0.0, %v6349
        %v6351 = vpop.f32.mrb[0].mxu0
        %6352 = vmatprep.mubr.bf16.mxu0 0
        %6353 = vmatmul.mubr.bf16.gmra.mrb[0].mxu0 %v6207
        %v6354 = vpop.f32.mrb[0].mxu0
        %v6355 = vadd.f32 0.0, %v6354
        %v6356 = vpop.f32.mrb[0].mxu0
        %v6357 = vpop.f32.mrb[0].mxu0
        %v6358 = vadd.f32 0.0, %v6357
        %v6359 = vpop.f32.mrb[0].mxu0
        %6360 = vdwg.mxu0
        %v6361 = vadd.f32 %v6095, %v6299
        %v6362 = vadd.f32 %v6096, %v6302
        %v6363 = vadd.f32 %v6097, %v6307
        %v6364 = vadd.f32 %v6098, %v6310
        %v6365 = vadd.f32 %v6099, %v6315
        %v6366 = vadd.f32 %v6100, %v6318
        %v6367 = vadd.f32 %v6101, %v6323
        %v6368 = vadd.f32 %v6102, %v6326
        %v6369 = vadd.f32 %v6103, %v6331
        %v6370 = vadd.f32 %v6104, %v6334
        %v6371 = vadd.f32 %v6105, %v6339
        %v6372 = vadd.f32 %v6106, %v6342
        %v6373 = vadd.f32 %v6107, %v6347
        %v6374 = vadd.f32 %v6108, %v6350
        %v6375 = vadd.f32 %v6109, %v6355
        %v6376 = vadd.f32 %v6110, %v6358
        %s6377 = sadd.s32 %s214, 5
        %s6378 = smul.u32 %s6377, 3
        %s6379 = smul.addr %s6378, 4
        %s6380 = scalar_lea.vmem %s208, %s6379
        %v6381 = vld [vmem:[%s6380] sm:$0xf]
        %v6382 = vld [vmem:[%s6380 + $0x4] sm:$0xf]
        %v6383 = vld [vmem:[%s6380 + $0x8] sm:$0x7]
        %v6384 = vld [vmem:[%s6380 + $0xc] sm:$0xf]
        %v6385 = vld [vmem:[%s6380 + $0x10] sm:$0xf]
        %v6386 = vld [vmem:[%s6380 + $0x14] sm:$0x7]
        %v6387 = vld [vmem:[%s6380 + $0x18] sm:$0xf]
        %v6388 = vld [vmem:[%s6380 + $0x1c] sm:$0xf]
        %v6389 = vld [vmem:[%s6380 + $0x20] sm:$0x7]
        %v6390 = vld [vmem:[%s6380 + $0x24] sm:$0xf]
        %v6391 = vld [vmem:[%s6380 + $0x28] sm:$0xf]
        %v6392 = vld [vmem:[%s6380 + $0x2c] sm:$0x7]
        %v6393 = vld [vmem:[%s6380 + $0x30] sm:$0xf]
        %v6394 = vld [vmem:[%s6380 + $0x34] sm:$0xf]
        %v6395 = vld [vmem:[%s6380 + $0x38] sm:$0x7]
        %v6396 = vld [vmem:[%s6380 + $0x3c] sm:$0xf]
        %v6397 = vld [vmem:[%s6380 + $0x40] sm:$0xf]
        %v6398 = vld [vmem:[%s6380 + $0x44] sm:$0x7]
        %v6399 = vld [vmem:[%s6380 + $0x48] sm:$0xf]
        %v6400 = vld [vmem:[%s6380 + $0x4c] sm:$0xf]
        %v6401 = vld [vmem:[%s6380 + $0x50] sm:$0x7]
        %v6402 = vld [vmem:[%s6380 + $0x54] sm:$0xf]
        %v6403 = vld [vmem:[%s6380 + $0x58] sm:$0xf]
        %v6404 = vld [vmem:[%s6380 + $0x5c] sm:$0x7]
        %v6406 = vshrl.u32 %v6381, 16
        %v6408 = vrot.slane %v6406, 4
        %v6409 = vshll.u32 %v6381, 16
        %v6411 = vrot.slane %v6409, 5
        %v6412 = vor.u32 %v6408, %v6411
        %v6413 = vrot.slane %v6412, 4
        %v6415 = vshll.u32 %v6382, 16
        %v6417 = vrot.slane %v6415, 5
        %v6418 = vsel %vm1179, %v6413, %v6417
        %v6419 = vshrl.u32 %v6382, 16
        %v6421 = vrot.slane %v6419, 4
        %v6422 = vor.u32 %v6421, %v6417
        %v6423 = vrot.slane %v6422, 4
        %v6425 = vshll.u32 %v6383, 16
        %v6427 = vrot.slane %v6425, 5
        %v6428 = vsel %vm1179, %v6423, %v6427
        %v6430 = vshrl.u32 %v6384, 16
        %v6432 = vrot.slane %v6430, 4
        %v6433 = vshll.u32 %v6384, 16
        %v6435 = vrot.slane %v6433, 5
        %v6436 = vor.u32 %v6432, %v6435
        %v6437 = vrot.slane %v6436, 4
        %v6439 = vshll.u32 %v6385, 16
        %v6441 = vrot.slane %v6439, 5
        %v6442 = vsel %vm1179, %v6437, %v6441
        %v6443 = vshrl.u32 %v6385, 16
        %v6445 = vrot.slane %v6443, 4
        %v6446 = vor.u32 %v6445, %v6441
        %v6447 = vrot.slane %v6446, 4
        %v6449 = vshll.u32 %v6386, 16
        %v6451 = vrot.slane %v6449, 5
        %v6452 = vsel %vm1179, %v6447, %v6451
        %v6454 = vshrl.u32 %v6387, 16
        %v6456 = vrot.slane %v6454, 4
        %v6457 = vshll.u32 %v6387, 16
        %v6459 = vrot.slane %v6457, 5
        %v6460 = vor.u32 %v6456, %v6459
        %v6461 = vrot.slane %v6460, 4
        %v6463 = vshll.u32 %v6388, 16
        %v6465 = vrot.slane %v6463, 5
        %v6466 = vsel %vm1179, %v6461, %v6465
        %v6467 = vshrl.u32 %v6388, 16
        %v6469 = vrot.slane %v6467, 4
        %v6470 = vor.u32 %v6469, %v6465
        %v6471 = vrot.slane %v6470, 4
        %v6473 = vshll.u32 %v6389, 16
        %v6475 = vrot.slane %v6473, 5
        %v6476 = vsel %vm1179, %v6471, %v6475
        %v6478 = vshrl.u32 %v6390, 16
        %v6480 = vrot.slane %v6478, 4
        %v6481 = vshll.u32 %v6390, 16
        %v6483 = vrot.slane %v6481, 5
        %v6484 = vor.u32 %v6480, %v6483
        %v6485 = vrot.slane %v6484, 4
        %v6487 = vshll.u32 %v6391, 16
        %v6489 = vrot.slane %v6487, 5
        %v6490 = vsel %vm1179, %v6485, %v6489
        %v6491 = vshrl.u32 %v6391, 16
        %v6493 = vrot.slane %v6491, 4
        %v6494 = vor.u32 %v6493, %v6489
        %v6495 = vrot.slane %v6494, 4
        %v6497 = vshll.u32 %v6392, 16
        %v6499 = vrot.slane %v6497, 5
        %v6500 = vsel %vm1179, %v6495, %v6499
        %v6502 = vshrl.u32 %v6393, 16
        %v6504 = vrot.slane %v6502, 4
        %v6505 = vshll.u32 %v6393, 16
        %v6507 = vrot.slane %v6505, 5
        %v6508 = vor.u32 %v6504, %v6507
        %v6509 = vrot.slane %v6508, 4
        %v6511 = vshll.u32 %v6394, 16
        %v6513 = vrot.slane %v6511, 5
        %v6514 = vsel %vm1179, %v6509, %v6513
        %v6515 = vshrl.u32 %v6394, 16
        %v6517 = vrot.slane %v6515, 4
        %v6518 = vor.u32 %v6517, %v6513
        %v6519 = vrot.slane %v6518, 4
        %v6521 = vshll.u32 %v6395, 16
        %v6523 = vrot.slane %v6521, 5
        %v6524 = vsel %vm1179, %v6519, %v6523
        %v6526 = vshrl.u32 %v6396, 16
        %v6528 = vrot.slane %v6526, 4
        %v6529 = vshll.u32 %v6396, 16
        %v6531 = vrot.slane %v6529, 5
        %v6532 = vor.u32 %v6528, %v6531
        %v6533 = vrot.slane %v6532, 4
        %v6535 = vshll.u32 %v6397, 16
        %v6537 = vrot.slane %v6535, 5
        %v6538 = vsel %vm1179, %v6533, %v6537
        %v6539 = vshrl.u32 %v6397, 16
        %v6541 = vrot.slane %v6539, 4
        %v6542 = vor.u32 %v6541, %v6537
        %v6543 = vrot.slane %v6542, 4
        %v6545 = vshll.u32 %v6398, 16
        %v6547 = vrot.slane %v6545, 5
        %v6548 = vsel %vm1179, %v6543, %v6547
        %v6550 = vshrl.u32 %v6399, 16
        %v6552 = vrot.slane %v6550, 4
        %v6553 = vshll.u32 %v6399, 16
        %v6555 = vrot.slane %v6553, 5
        %v6556 = vor.u32 %v6552, %v6555
        %v6557 = vrot.slane %v6556, 4
        %v6559 = vshll.u32 %v6400, 16
        %v6561 = vrot.slane %v6559, 5
        %v6562 = vsel %vm1179, %v6557, %v6561
        %v6563 = vshrl.u32 %v6400, 16
        %v6565 = vrot.slane %v6563, 4
        %v6566 = vor.u32 %v6565, %v6561
        %v6567 = vrot.slane %v6566, 4
        %v6569 = vshll.u32 %v6401, 16
        %v6571 = vrot.slane %v6569, 5
        %v6572 = vsel %vm1179, %v6567, %v6571
        %v6574 = vshrl.u32 %v6402, 16
        %v6576 = vrot.slane %v6574, 4
        %v6577 = vshll.u32 %v6402, 16
        %v6579 = vrot.slane %v6577, 5
        %v6580 = vor.u32 %v6576, %v6579
        %v6581 = vrot.slane %v6580, 4
        %v6583 = vshll.u32 %v6403, 16
        %v6585 = vrot.slane %v6583, 5
        %v6586 = vsel %vm1179, %v6581, %v6585
        %v6587 = vshrl.u32 %v6403, 16
        %v6589 = vrot.slane %v6587, 4
        %v6590 = vor.u32 %v6589, %v6585
        %v6591 = vrot.slane %v6590, 4
        %v6593 = vshll.u32 %v6404, 16
        %v6595 = vrot.slane %v6593, 5
        %v6596 = vsel %vm1179, %v6591, %v6595
        %s6597 = scalar_lea.vmem [#allocation2], 1216
        %v6598 = vld [vmem:[%s6597] sm:$0xf]
        %v6599 = vld [vmem:[%s6597 + $0x4] sm:$0xf]
        %v6600 = vld [vmem:[%s6597 + $0x8] sm:$0xf]
        %v6601 = vld [vmem:[%s6597 + $0xc] sm:$0xf]
        %v6602 = vld [vmem:[%s6597 + $0x10] sm:$0xf]
        %v6603 = vld [vmem:[%s6597 + $0x14] sm:$0xf]
        %v6604 = vld [vmem:[%s6597 + $0x18] sm:$0xf]
        %v6605 = vld [vmem:[%s6597 + $0x1c] sm:$0xf]
        %v6606 = vld [vmem:[%s6597 + $0x20] sm:$0xf]
        %v6607 = vld [vmem:[%s6597 + $0x24] sm:$0xf]
        %v6608 = vld [vmem:[%s6597 + $0x28] sm:$0xf]
        %v6609 = vld [vmem:[%s6597 + $0x2c] sm:$0xf]
        %v6610 = vld [vmem:[%s6597 + $0x30] sm:$0xf]
        %v6611 = vld [vmem:[%s6597 + $0x34] sm:$0xf]
        %v6612 = vld [vmem:[%s6597 + $0x38] sm:$0xf]
        %v6613 = vld [vmem:[%s6597 + $0x3c] sm:$0xf]
        %v6614 = vunpack.c.l.b16 %v6418
        %v6615 = vunpack.c.l.b16 %v6428
        %v6616 = vunpack.c.l.b16 %v6442
        %v6617 = vunpack.c.l.b16 %v6452
        %v6618 = vunpack.c.l.b16 %v6466
        %v6619 = vunpack.c.l.b16 %v6476
        %v6620 = vunpack.c.l.b16 %v6490
        %v6621 = vunpack.c.l.b16 %v6500
        %v6622 = vunpack.c.l.b16 %v6514
        %v6623 = vunpack.c.l.b16 %v6524
        %v6624 = vunpack.c.l.b16 %v6538
        %v6625 = vunpack.c.l.b16 %v6548
        %v6626 = vunpack.c.l.b16 %v6562
        %v6627 = vunpack.c.l.b16 %v6572
        %v6628 = vunpack.c.l.b16 %v6586
        %v6629 = vunpack.c.l.b16 %v6596
        %v6630 = vpack.c.b16 %v6615, %v6614
        %v6631 = vpack.c.b16 %v6617, %v6616
        %v6632 = vpack.c.b16 %v6619, %v6618
        %v6633 = vpack.c.b16 %v6621, %v6620
        %v6634 = vpack.c.b16 %v6623, %v6622
        %v6635 = vpack.c.b16 %v6625, %v6624
        %v6636 = vpack.c.b16 %v6627, %v6626
        %v6637 = vpack.c.b16 %v6629, %v6628
        %v6662 = vunpack.c.l.b16 %v6598
        %v6663 = vunpack.c.l.b16 %v6599
        %v6664 = vunpack.c.l.b16 %v6600
        %v6665 = vunpack.c.l.b16 %v6601
        %v6666 = vunpack.c.l.b16 %v6602
        %v6667 = vunpack.c.l.b16 %v6603
        %v6668 = vunpack.c.l.b16 %v6604
        %v6669 = vunpack.c.l.b16 %v6605
        %v6670 = vunpack.c.l.b16 %v6606
        %v6671 = vunpack.c.l.b16 %v6607
        %v6672 = vunpack.c.l.b16 %v6608
        %v6673 = vunpack.c.l.b16 %v6609
        %v6674 = vunpack.c.l.b16 %v6610
        %v6675 = vunpack.c.l.b16 %v6611
        %v6676 = vunpack.c.l.b16 %v6612
        %v6677 = vunpack.c.l.b16 %v6613
        %v6678 = vpack.c.b16 %v6663, %v6662
        %v6679 = vpack.c.b16 %v6665, %v6664
        %v6680 = vpack.c.b16 %v6667, %v6666
        %v6681 = vpack.c.b16 %v6669, %v6668
        %v6682 = vpack.c.b16 %v6671, %v6670
        %v6683 = vpack.c.b16 %v6673, %v6672
        %v6684 = vpack.c.b16 %v6675, %v6674
        %v6685 = vpack.c.b16 %v6677, %v6676
        %6694 = vmatprep.subr.bf16.mxu0 0
        %6695 = vmatpush1.bf16.msra.mxu0 %v6678
        %6696 = vmatprep.subr.bf16.mxu0 0
        %6697 = vmatpush1.bf16.msra.mxu0 %v6679
        %6698 = vmatprep.subr.bf16.mxu0 0
        %6699 = vmatpush1.bf16.msra.mxu0 %v6680
        %6700 = vmatprep.subr.bf16.mxu0 0
        %6701 = vmatpush1.bf16.msra.mxu0 %v6681
        %6702 = vmatprep.subr.bf16.mxu0 0
        %6703 = vmatpush1.bf16.msra.mxu0 %v6682
        %6704 = vmatprep.subr.bf16.mxu0 0
        %6705 = vmatpush1.bf16.msra.mxu0 %v6683
        %6706 = vmatprep.subr.bf16.mxu0 0
        %6707 = vmatpush1.bf16.msra.mxu0 %v6684
        %6708 = vmatprep.subr.bf16.mxu0 0
        %6709 = vmatpush1.bf16.msra.mxu0 %v6685
        %6710 = vmatprep.subr.bf16.mxu0 0
        %6711 = vmatpush1.bf16.msra.mxu0 0
        %6712 = vmatprep.subr.bf16.mxu0 0
        %6713 = vmatpush1.bf16.msra.mxu0 0
        %6714 = vmatprep.subr.bf16.mxu0 0
        %6715 = vmatpush1.bf16.msra.mxu0 0
        %6716 = vmatprep.subr.bf16.mxu0 0
        %6717 = vmatpush1.bf16.msra.mxu0 0
        %6718 = vmatprep.subr.bf16.mxu0 0
        %6719 = vmatpush1.bf16.msra.mxu0 0
        %6720 = vmatprep.subr.bf16.mxu0 0
        %6721 = vmatpush1.bf16.msra.mxu0 0
        %6722 = vmatprep.subr.bf16.mxu0 0
        %6723 = vmatpush1.bf16.msra.mxu0 0
        %6724 = vmatprep.subr.bf16.mxu0 0
        %6725 = vmatpush1.bf16.msra.mxu0 0
        %6726 = vmatprep.mubr.bf16.mxu0 0
        %6727 = vmatmul.mubr.bf16.gmra.mrb[0].mxu0 %v6630
        %v6728 = vpop.f32.mrb[0].mxu0
        %v6729 = vadd.f32 0.0, %v6728
        %v6730 = vpop.f32.mrb[0].mxu0
        %v6731 = vpop.f32.mrb[0].mxu0
        %v6732 = vadd.f32 0.0, %v6731
        %v6733 = vpop.f32.mrb[0].mxu0
        %6734 = vmatprep.mubr.bf16.mxu0 0
        %6735 = vmatmul.mubr.bf16.gmra.mrb[0].mxu0 %v6631
        %v6736 = vpop.f32.mrb[0].mxu0
        %v6737 = vadd.f32 0.0, %v6736
        %v6738 = vpop.f32.mrb[0].mxu0
        %v6739 = vpop.f32.mrb[0].mxu0
        %v6740 = vadd.f32 0.0, %v6739
        %v6741 = vpop.f32.mrb[0].mxu0
        %6742 = vmatprep.mubr.bf16.mxu0 0
        %6743 = vmatmul.mubr.bf16.gmra.mrb[0].mxu0 %v6632
        %v6744 = vpop.f32.mrb[0].mxu0
        %v6745 = vadd.f32 0.0, %v6744
        %v6746 = vpop.f32.mrb[0].mxu0
        %v6747 = vpop.f32.mrb[0].mxu0
        %v6748 = vadd.f32 0.0, %v6747
        %v6749 = vpop.f32.mrb[0].mxu0
        %6750 = vmatprep.mubr.bf16.mxu0 0
        %6751 = vmatmul.mubr.bf16.gmra.mrb[0].mxu0 %v6633
        %v6752 = vpop.f32.mrb[0].mxu0
        %v6753 = vadd.f32 0.0, %v6752
        %v6754 = vpop.f32.mrb[0].mxu0
        %v6755 = vpop.f32.mrb[0].mxu0
        %v6756 = vadd.f32 0.0, %v6755
        %v6757 = vpop.f32.mrb[0].mxu0
        %6758 = vmatprep.mubr.bf16.mxu0 0
        %6759 = vmatmul.mubr.bf16.gmra.mrb[0].mxu0 %v6634
        %v6760 = vpop.f32.mrb[0].mxu0
        %v6761 = vadd.f32 0.0, %v6760
        %v6762 = vpop.f32.mrb[0].mxu0
        %v6763 = vpop.f32.mrb[0].mxu0
        %v6764 = vadd.f32 0.0, %v6763
        %v6765 = vpop.f32.mrb[0].mxu0
        %6766 = vmatprep.mubr.bf16.mxu0 0
        %6767 = vmatmul.mubr.bf16.gmra.mrb[0].mxu0 %v6635
        %v6768 = vpop.f32.mrb[0].mxu0
        %v6769 = vadd.f32 0.0, %v6768
        %v6770 = vpop.f32.mrb[0].mxu0
        %v6771 = vpop.f32.mrb[0].mxu0
        %v6772 = vadd.f32 0.0, %v6771
        %v6773 = vpop.f32.mrb[0].mxu0
        %6774 = vmatprep.mubr.bf16.mxu0 0
        %6775 = vmatmul.mubr.bf16.gmra.mrb[0].mxu0 %v6636
        %v6776 = vpop.f32.mrb[0].mxu0
        %v6777 = vadd.f32 0.0, %v6776
        %v6778 = vpop.f32.mrb[0].mxu0
        %v6779 = vpop.f32.mrb[0].mxu0
        %v6780 = vadd.f32 0.0, %v6779
        %v6781 = vpop.f32.mrb[0].mxu0
        %6782 = vmatprep.mubr.bf16.mxu0 0
        %6783 = vmatmul.mubr.bf16.gmra.mrb[0].mxu0 %v6637
        %v6784 = vpop.f32.mrb[0].mxu0
        %v6785 = vadd.f32 0.0, %v6784
        %v6786 = vpop.f32.mrb[0].mxu0
        %v6787 = vpop.f32.mrb[0].mxu0
        %v6788 = vadd.f32 0.0, %v6787
        %v6789 = vpop.f32.mrb[0].mxu0
        %6790 = vdwg.mxu0
        %v6791 = vadd.f32 %v6361, %v6729
        %v6792 = vadd.f32 %v6362, %v6732
        %v6793 = vadd.f32 %v6363, %v6737
        %v6794 = vadd.f32 %v6364, %v6740
        %v6795 = vadd.f32 %v6365, %v6745
        %v6796 = vadd.f32 %v6366, %v6748
        %v6797 = vadd.f32 %v6367, %v6753
        %v6798 = vadd.f32 %v6368, %v6756
        %v6799 = vadd.f32 %v6369, %v6761
        %v6800 = vadd.f32 %v6370, %v6764
        %v6801 = vadd.f32 %v6371, %v6769
        %v6802 = vadd.f32 %v6372, %v6772
        %v6803 = vadd.f32 %v6373, %v6777
        %v6804 = vadd.f32 %v6374, %v6780
        %v6805 = vadd.f32 %v6375, %v6785
        %v6806 = vadd.f32 %v6376, %v6788
        %v6807 = vrot.slane %v6406, 5
        %v6808 = vrot.slane %v6409, 6
        %v6809 = vor.u32 %v6807, %v6808
        %v6810 = vrot.slane %v6809, 4
        %v6811 = vrot.slane %v6419, 5
        %v6812 = vrot.slane %v6415, 6
        %v6813 = vor.u32 %v6811, %v6812
        %v6814 = vsel %vm260, %v6810, %v6813
        %v6815 = vrot.slane %v6813, 4
        %v6816 = vshrl.u32 %v6383, 16
        %v6818 = vrot.slane %v6816, 5
        %v6819 = vrot.slane %v6425, 6
        %v6820 = vor.u32 %v6818, %v6819
        %v6821 = vsel %vm260, %v6815, %v6820
        %v6822 = vrot.slane %v6430, 5
        %v6823 = vrot.slane %v6433, 6
        %v6824 = vor.u32 %v6822, %v6823
        %v6825 = vrot.slane %v6824, 4
        %v6826 = vrot.slane %v6443, 5
        %v6827 = vrot.slane %v6439, 6
        %v6828 = vor.u32 %v6826, %v6827
        %v6829 = vsel %vm260, %v6825, %v6828
        %v6830 = vrot.slane %v6828, 4
        %v6831 = vshrl.u32 %v6386, 16
        %v6833 = vrot.slane %v6831, 5
        %v6834 = vrot.slane %v6449, 6
        %v6835 = vor.u32 %v6833, %v6834
        %v6836 = vsel %vm260, %v6830, %v6835
        %v6837 = vrot.slane %v6454, 5
        %v6838 = vrot.slane %v6457, 6
        %v6839 = vor.u32 %v6837, %v6838
        %v6840 = vrot.slane %v6839, 4
        %v6841 = vrot.slane %v6467, 5
        %v6842 = vrot.slane %v6463, 6
        %v6843 = vor.u32 %v6841, %v6842
        %v6844 = vsel %vm260, %v6840, %v6843
        %v6845 = vrot.slane %v6843, 4
        %v6846 = vshrl.u32 %v6389, 16
        %v6848 = vrot.slane %v6846, 5
        %v6849 = vrot.slane %v6473, 6
        %v6850 = vor.u32 %v6848, %v6849
        %v6851 = vsel %vm260, %v6845, %v6850
        %v6852 = vrot.slane %v6478, 5
        %v6853 = vrot.slane %v6481, 6
        %v6854 = vor.u32 %v6852, %v6853
        %v6855 = vrot.slane %v6854, 4
        %v6856 = vrot.slane %v6491, 5
        %v6857 = vrot.slane %v6487, 6
        %v6858 = vor.u32 %v6856, %v6857
        %v6859 = vsel %vm260, %v6855, %v6858
        %v6860 = vrot.slane %v6858, 4
        %v6861 = vshrl.u32 %v6392, 16
        %v6863 = vrot.slane %v6861, 5
        %v6864 = vrot.slane %v6497, 6
        %v6865 = vor.u32 %v6863, %v6864
        %v6866 = vsel %vm260, %v6860, %v6865
        %v6867 = vrot.slane %v6502, 5
        %v6868 = vrot.slane %v6505, 6
        %v6869 = vor.u32 %v6867, %v6868
        %v6870 = vrot.slane %v6869, 4
        %v6871 = vrot.slane %v6515, 5
        %v6872 = vrot.slane %v6511, 6
        %v6873 = vor.u32 %v6871, %v6872
        %v6874 = vsel %vm260, %v6870, %v6873
        %v6875 = vrot.slane %v6873, 4
        %v6876 = vshrl.u32 %v6395, 16
        %v6878 = vrot.slane %v6876, 5
        %v6879 = vrot.slane %v6521, 6
        %v6880 = vor.u32 %v6878, %v6879
        %v6881 = vsel %vm260, %v6875, %v6880
        %v6882 = vrot.slane %v6526, 5
        %v6883 = vrot.slane %v6529, 6
        %v6884 = vor.u32 %v6882, %v6883
        %v6885 = vrot.slane %v6884, 4
        %v6886 = vrot.slane %v6539, 5
        %v6887 = vrot.slane %v6535, 6
        %v6888 = vor.u32 %v6886, %v6887
        %v6889 = vsel %vm260, %v6885, %v6888
        %v6890 = vrot.slane %v6888, 4
        %v6891 = vshrl.u32 %v6398, 16
        %v6893 = vrot.slane %v6891, 5
        %v6894 = vrot.slane %v6545, 6
        %v6895 = vor.u32 %v6893, %v6894
        %v6896 = vsel %vm260, %v6890, %v6895
        %v6897 = vrot.slane %v6550, 5
        %v6898 = vrot.slane %v6553, 6
        %v6899 = vor.u32 %v6897, %v6898
        %v6900 = vrot.slane %v6899, 4
        %v6901 = vrot.slane %v6563, 5
        %v6902 = vrot.slane %v6559, 6
        %v6903 = vor.u32 %v6901, %v6902
        %v6904 = vsel %vm260, %v6900, %v6903
        %v6905 = vrot.slane %v6903, 4
        %v6906 = vshrl.u32 %v6401, 16
        %v6908 = vrot.slane %v6906, 5
        %v6909 = vrot.slane %v6569, 6
        %v6910 = vor.u32 %v6908, %v6909
        %v6911 = vsel %vm260, %v6905, %v6910
        %v6912 = vrot.slane %v6574, 5
        %v6913 = vrot.slane %v6577, 6
        %v6914 = vor.u32 %v6912, %v6913
        %v6915 = vrot.slane %v6914, 4
        %v6916 = vrot.slane %v6587, 5
        %v6917 = vrot.slane %v6583, 6
        %v6918 = vor.u32 %v6916, %v6917
        %v6919 = vsel %vm260, %v6915, %v6918
        %v6920 = vrot.slane %v6918, 4
        %v6921 = vshrl.u32 %v6404, 16
        %v6923 = vrot.slane %v6921, 5
        %v6924 = vrot.slane %v6593, 6
        %v6925 = vor.u32 %v6923, %v6924
        %v6926 = vsel %vm260, %v6920, %v6925
        %s6927 = scalar_lea.vmem [#allocation2], 1280
        %v6928 = vld [vmem:[%s6927] sm:$0xf]
        %v6929 = vld [vmem:[%s6927 + $0x4] sm:$0xf]
        %v6930 = vld [vmem:[%s6927 + $0x8] sm:$0xf]
        %v6931 = vld [vmem:[%s6927 + $0xc] sm:$0xf]
        %v6932 = vld [vmem:[%s6927 + $0x10] sm:$0xf]
        %v6933 = vld [vmem:[%s6927 + $0x14] sm:$0xf]
        %v6934 = vld [vmem:[%s6927 + $0x18] sm:$0xf]
        %v6935 = vld [vmem:[%s6927 + $0x1c] sm:$0xf]
        %v6936 = vld [vmem:[%s6927 + $0x20] sm:$0xf]
        %v6937 = vld [vmem:[%s6927 + $0x24] sm:$0xf]
        %v6938 = vld [vmem:[%s6927 + $0x28] sm:$0xf]
        %v6939 = vld [vmem:[%s6927 + $0x2c] sm:$0xf]
        %v6940 = vld [vmem:[%s6927 + $0x30] sm:$0xf]
        %v6941 = vld [vmem:[%s6927 + $0x34] sm:$0xf]
        %v6942 = vld [vmem:[%s6927 + $0x38] sm:$0xf]
        %v6943 = vld [vmem:[%s6927 + $0x3c] sm:$0xf]
        %v6944 = vunpack.c.l.b16 %v6814
        %v6945 = vunpack.c.l.b16 %v6821
        %v6946 = vunpack.c.l.b16 %v6829
        %v6947 = vunpack.c.l.b16 %v6836
        %v6948 = vunpack.c.l.b16 %v6844
        %v6949 = vunpack.c.l.b16 %v6851
        %v6950 = vunpack.c.l.b16 %v6859
        %v6951 = vunpack.c.l.b16 %v6866
        %v6952 = vunpack.c.l.b16 %v6874
        %v6953 = vunpack.c.l.b16 %v6881
        %v6954 = vunpack.c.l.b16 %v6889
        %v6955 = vunpack.c.l.b16 %v6896
        %v6956 = vunpack.c.l.b16 %v6904
        %v6957 = vunpack.c.l.b16 %v6911
        %v6958 = vunpack.c.l.b16 %v6919
        %v6959 = vunpack.c.l.b16 %v6926
        %v6960 = vpack.c.b16 %v6945, %v6944
        %v6961 = vpack.c.b16 %v6947, %v6946
        %v6962 = vpack.c.b16 %v6949, %v6948
        %v6963 = vpack.c.b16 %v6951, %v6950
        %v6964 = vpack.c.b16 %v6953, %v6952
        %v6965 = vpack.c.b16 %v6955, %v6954
        %v6966 = vpack.c.b16 %v6957, %v6956
        %v6967 = vpack.c.b16 %v6959, %v6958
        %v6992 = vunpack.c.l.b16 %v6928
        %v6993 = vunpack.c.l.b16 %v6929
        %v6994 = vunpack.c.l.b16 %v6930
        %v6995 = vunpack.c.l.b16 %v6931
        %v6996 = vunpack.c.l.b16 %v6932
        %v6997 = vunpack.c.l.b16 %v6933
        %v6998 = vunpack.c.l.b16 %v6934
        %v6999 = vunpack.c.l.b16 %v6935
        %v7000 = vunpack.c.l.b16 %v6936
        %v7001 = vunpack.c.l.b16 %v6937
        %v7002 = vunpack.c.l.b16 %v6938
        %v7003 = vunpack.c.l.b16 %v6939
        %v7004 = vunpack.c.l.b16 %v6940
        %v7005 = vunpack.c.l.b16 %v6941
        %v7006 = vunpack.c.l.b16 %v6942
        %v7007 = vunpack.c.l.b16 %v6943
        %v7008 = vpack.c.b16 %v6993, %v6992
        %v7009 = vpack.c.b16 %v6995, %v6994
        %v7010 = vpack.c.b16 %v6997, %v6996
        %v7011 = vpack.c.b16 %v6999, %v6998
        %v7012 = vpack.c.b16 %v7001, %v7000
        %v7013 = vpack.c.b16 %v7003, %v7002
        %v7014 = vpack.c.b16 %v7005, %v7004
        %v7015 = vpack.c.b16 %v7007, %v7006
        %7024 = vmatprep.subr.bf16.mxu0 0
        %7025 = vmatpush1.bf16.msra.mxu0 %v7008
        %7026 = vmatprep.subr.bf16.mxu0 0
        %7027 = vmatpush1.bf16.msra.mxu0 %v7009
        %7028 = vmatprep.subr.bf16.mxu0 0
        %7029 = vmatpush1.bf16.msra.mxu0 %v7010
        %7030 = vmatprep.subr.bf16.mxu0 0
        %7031 = vmatpush1.bf16.msra.mxu0 %v7011
        %7032 = vmatprep.subr.bf16.mxu0 0
        %7033 = vmatpush1.bf16.msra.mxu0 %v7012
        %7034 = vmatprep.subr.bf16.mxu0 0
        %7035 = vmatpush1.bf16.msra.mxu0 %v7013
        %7036 = vmatprep.subr.bf16.mxu0 0
        %7037 = vmatpush1.bf16.msra.mxu0 %v7014
        %7038 = vmatprep.subr.bf16.mxu0 0
        %7039 = vmatpush1.bf16.msra.mxu0 %v7015
        %7040 = vmatprep.subr.bf16.mxu0 0
        %7041 = vmatpush1.bf16.msra.mxu0 0
        %7042 = vmatprep.subr.bf16.mxu0 0
        %7043 = vmatpush1.bf16.msra.mxu0 0
        %7044 = vmatprep.subr.bf16.mxu0 0
        %7045 = vmatpush1.bf16.msra.mxu0 0
        %7046 = vmatprep.subr.bf16.mxu0 0
        %7047 = vmatpush1.bf16.msra.mxu0 0
        %7048 = vmatprep.subr.bf16.mxu0 0
        %7049 = vmatpush1.bf16.msra.mxu0 0
        %7050 = vmatprep.subr.bf16.mxu0 0
        %7051 = vmatpush1.bf16.msra.mxu0 0
        %7052 = vmatprep.subr.bf16.mxu0 0
        %7053 = vmatpush1.bf16.msra.mxu0 0
        %7054 = vmatprep.subr.bf16.mxu0 0
        %7055 = vmatpush1.bf16.msra.mxu0 0
        %7056 = vmatprep.mubr.bf16.mxu0 0
        %7057 = vmatmul.mubr.bf16.gmra.mrb[0].mxu0 %v6960
        %v7058 = vpop.f32.mrb[0].mxu0
        %v7059 = vadd.f32 0.0, %v7058
        %v7060 = vpop.f32.mrb[0].mxu0
        %v7061 = vpop.f32.mrb[0].mxu0
        %v7062 = vadd.f32 0.0, %v7061
        %v7063 = vpop.f32.mrb[0].mxu0
        %7064 = vmatprep.mubr.bf16.mxu0 0
        %7065 = vmatmul.mubr.bf16.gmra.mrb[0].mxu0 %v6961
        %v7066 = vpop.f32.mrb[0].mxu0
        %v7067 = vadd.f32 0.0, %v7066
        %v7068 = vpop.f32.mrb[0].mxu0
        %v7069 = vpop.f32.mrb[0].mxu0
        %v7070 = vadd.f32 0.0, %v7069
        %v7071 = vpop.f32.mrb[0].mxu0
        %7072 = vmatprep.mubr.bf16.mxu0 0
        %7073 = vmatmul.mubr.bf16.gmra.mrb[0].mxu0 %v6962
        %v7074 = vpop.f32.mrb[0].mxu0
        %v7075 = vadd.f32 0.0, %v7074
        %v7076 = vpop.f32.mrb[0].mxu0
        %v7077 = vpop.f32.mrb[0].mxu0
        %v7078 = vadd.f32 0.0, %v7077
        %v7079 = vpop.f32.mrb[0].mxu0
        %7080 = vmatprep.mubr.bf16.mxu0 0
        %7081 = vmatmul.mubr.bf16.gmra.mrb[0].mxu0 %v6963
        %v7082 = vpop.f32.mrb[0].mxu0
        %v7083 = vadd.f32 0.0, %v7082
        %v7084 = vpop.f32.mrb[0].mxu0
        %v7085 = vpop.f32.mrb[0].mxu0
        %v7086 = vadd.f32 0.0, %v7085
        %v7087 = vpop.f32.mrb[0].mxu0
        %7088 = vmatprep.mubr.bf16.mxu0 0
        %7089 = vmatmul.mubr.bf16.gmra.mrb[0].mxu0 %v6964
        %v7090 = vpop.f32.mrb[0].mxu0
        %v7091 = vadd.f32 0.0, %v7090
        %v7092 = vpop.f32.mrb[0].mxu0
        %v7093 = vpop.f32.mrb[0].mxu0
        %v7094 = vadd.f32 0.0, %v7093
        %v7095 = vpop.f32.mrb[0].mxu0
        %7096 = vmatprep.mubr.bf16.mxu0 0
        %7097 = vmatmul.mubr.bf16.gmra.mrb[0].mxu0 %v6965
        %v7098 = vpop.f32.mrb[0].mxu0
        %v7099 = vadd.f32 0.0, %v7098
        %v7100 = vpop.f32.mrb[0].mxu0
        %v7101 = vpop.f32.mrb[0].mxu0
        %v7102 = vadd.f32 0.0, %v7101
        %v7103 = vpop.f32.mrb[0].mxu0
        %7104 = vmatprep.mubr.bf16.mxu0 0
        %7105 = vmatmul.mubr.bf16.gmra.mrb[0].mxu0 %v6966
        %v7106 = vpop.f32.mrb[0].mxu0
        %v7107 = vadd.f32 0.0, %v7106
        %v7108 = vpop.f32.mrb[0].mxu0
        %v7109 = vpop.f32.mrb[0].mxu0
        %v7110 = vadd.f32 0.0, %v7109
        %v7111 = vpop.f32.mrb[0].mxu0
        %7112 = vmatprep.mubr.bf16.mxu0 0
        %7113 = vmatmul.mubr.bf16.gmra.mrb[0].mxu0 %v6967
        %v7114 = vpop.f32.mrb[0].mxu0
        %v7115 = vadd.f32 0.0, %v7114
        %v7116 = vpop.f32.mrb[0].mxu0
        %v7117 = vpop.f32.mrb[0].mxu0
        %v7118 = vadd.f32 0.0, %v7117
        %v7119 = vpop.f32.mrb[0].mxu0
        %7120 = vdwg.mxu0
        %v7121 = vadd.f32 %v6791, %v7059
        %v7122 = vadd.f32 %v6792, %v7062
        %v7123 = vadd.f32 %v6793, %v7067
        %v7124 = vadd.f32 %v6794, %v7070
        %v7125 = vadd.f32 %v6795, %v7075
        %v7126 = vadd.f32 %v6796, %v7078
        %v7127 = vadd.f32 %v6797, %v7083
        %v7128 = vadd.f32 %v6798, %v7086
        %v7129 = vadd.f32 %v6799, %v7091
        %v7130 = vadd.f32 %v6800, %v7094
        %v7131 = vadd.f32 %v6801, %v7099
        %v7132 = vadd.f32 %v6802, %v7102
        %v7133 = vadd.f32 %v6803, %v7107
        %v7134 = vadd.f32 %v6804, %v7110
        %v7135 = vadd.f32 %v6805, %v7115
        %v7136 = vadd.f32 %v6806, %v7118
        %v7137 = vrot.slane %v6406, 6
        %v7138 = vrot.slane %v6409, 7
        %v7139 = vor.u32 %v7137, %v7138
        %v7140 = vrot.slane %v7139, 4
        %v7141 = vrot.slane %v6419, 6
        %v7142 = vrot.slane %v6415, 7
        %v7143 = vor.u32 %v7141, %v7142
        %v7144 = vsel %vm1914, %v7140, %v7143
        %v7145 = vrot.slane %v7143, 4
        %v7146 = vrot.slane %v6816, 6
        %v7147 = vrot.slane %v6425, 7
        %v7148 = vor.u32 %v7146, %v7147
        %v7149 = vsel %vm1914, %v7145, %v7148
        %v7150 = vrot.slane %v6430, 6
        %v7151 = vrot.slane %v6433, 7
        %v7152 = vor.u32 %v7150, %v7151
        %v7153 = vrot.slane %v7152, 4
        %v7154 = vrot.slane %v6443, 6
        %v7155 = vrot.slane %v6439, 7
        %v7156 = vor.u32 %v7154, %v7155
        %v7157 = vsel %vm1914, %v7153, %v7156
        %v7158 = vrot.slane %v7156, 4
        %v7159 = vrot.slane %v6831, 6
        %v7160 = vrot.slane %v6449, 7
        %v7161 = vor.u32 %v7159, %v7160
        %v7162 = vsel %vm1914, %v7158, %v7161
        %v7163 = vrot.slane %v6454, 6
        %v7164 = vrot.slane %v6457, 7
        %v7165 = vor.u32 %v7163, %v7164
        %v7166 = vrot.slane %v7165, 4
        %v7167 = vrot.slane %v6467, 6
        %v7168 = vrot.slane %v6463, 7
        %v7169 = vor.u32 %v7167, %v7168
        %v7170 = vsel %vm1914, %v7166, %v7169
        %v7171 = vrot.slane %v7169, 4
        %v7172 = vrot.slane %v6846, 6
        %v7173 = vrot.slane %v6473, 7
        %v7174 = vor.u32 %v7172, %v7173
        %v7175 = vsel %vm1914, %v7171, %v7174
        %v7176 = vrot.slane %v6478, 6
        %v7177 = vrot.slane %v6481, 7
        %v7178 = vor.u32 %v7176, %v7177
        %v7179 = vrot.slane %v7178, 4
        %v7180 = vrot.slane %v6491, 6
        %v7181 = vrot.slane %v6487, 7
        %v7182 = vor.u32 %v7180, %v7181
        %v7183 = vsel %vm1914, %v7179, %v7182
        %v7184 = vrot.slane %v7182, 4
        %v7185 = vrot.slane %v6861, 6
        %v7186 = vrot.slane %v6497, 7
        %v7187 = vor.u32 %v7185, %v7186
        %v7188 = vsel %vm1914, %v7184, %v7187
        %v7189 = vrot.slane %v6502, 6
        %v7190 = vrot.slane %v6505, 7
        %v7191 = vor.u32 %v7189, %v7190
        %v7192 = vrot.slane %v7191, 4
        %v7193 = vrot.slane %v6515, 6
        %v7194 = vrot.slane %v6511, 7
        %v7195 = vor.u32 %v7193, %v7194
        %v7196 = vsel %vm1914, %v7192, %v7195
        %v7197 = vrot.slane %v7195, 4
        %v7198 = vrot.slane %v6876, 6
        %v7199 = vrot.slane %v6521, 7
        %v7200 = vor.u32 %v7198, %v7199
        %v7201 = vsel %vm1914, %v7197, %v7200
        %v7202 = vrot.slane %v6526, 6
        %v7203 = vrot.slane %v6529, 7
        %v7204 = vor.u32 %v7202, %v7203
        %v7205 = vrot.slane %v7204, 4
        %v7206 = vrot.slane %v6539, 6
        %v7207 = vrot.slane %v6535, 7
        %v7208 = vor.u32 %v7206, %v7207
        %v7209 = vsel %vm1914, %v7205, %v7208
        %v7210 = vrot.slane %v7208, 4
        %v7211 = vrot.slane %v6891, 6
        %v7212 = vrot.slane %v6545, 7
        %v7213 = vor.u32 %v7211, %v7212
        %v7214 = vsel %vm1914, %v7210, %v7213
        %v7215 = vrot.slane %v6550, 6
        %v7216 = vrot.slane %v6553, 7
        %v7217 = vor.u32 %v7215, %v7216
        %v7218 = vrot.slane %v7217, 4
        %v7219 = vrot.slane %v6563, 6
        %v7220 = vrot.slane %v6559, 7
        %v7221 = vor.u32 %v7219, %v7220
        %v7222 = vsel %vm1914, %v7218, %v7221
        %v7223 = vrot.slane %v7221, 4
        %v7224 = vrot.slane %v6906, 6
        %v7225 = vrot.slane %v6569, 7
        %v7226 = vor.u32 %v7224, %v7225
        %v7227 = vsel %vm1914, %v7223, %v7226
        %v7228 = vrot.slane %v6574, 6
        %v7229 = vrot.slane %v6577, 7
        %v7230 = vor.u32 %v7228, %v7229
        %v7231 = vrot.slane %v7230, 4
        %v7232 = vrot.slane %v6587, 6
        %v7233 = vrot.slane %v6583, 7
        %v7234 = vor.u32 %v7232, %v7233
        %v7235 = vsel %vm1914, %v7231, %v7234
        %v7236 = vrot.slane %v7234, 4
        %v7237 = vrot.slane %v6921, 6
        %v7238 = vrot.slane %v6593, 7
        %v7239 = vor.u32 %v7237, %v7238
        %v7240 = vsel %vm1914, %v7236, %v7239
        %s7241 = scalar_lea.vmem [#allocation2], 1344
        %v7242 = vld [vmem:[%s7241] sm:$0xf]
        %v7243 = vld [vmem:[%s7241 + $0x4] sm:$0xf]
        %v7244 = vld [vmem:[%s7241 + $0x8] sm:$0xf]
        %v7245 = vld [vmem:[%s7241 + $0xc] sm:$0xf]
        %v7246 = vld [vmem:[%s7241 + $0x10] sm:$0xf]
        %v7247 = vld [vmem:[%s7241 + $0x14] sm:$0xf]
        %v7248 = vld [vmem:[%s7241 + $0x18] sm:$0xf]
        %v7249 = vld [vmem:[%s7241 + $0x1c] sm:$0xf]
        %v7250 = vld [vmem:[%s7241 + $0x20] sm:$0xf]
        %v7251 = vld [vmem:[%s7241 + $0x24] sm:$0xf]
        %v7252 = vld [vmem:[%s7241 + $0x28] sm:$0xf]
        %v7253 = vld [vmem:[%s7241 + $0x2c] sm:$0xf]
        %v7254 = vld [vmem:[%s7241 + $0x30] sm:$0xf]
        %v7255 = vld [vmem:[%s7241 + $0x34] sm:$0xf]
        %v7256 = vld [vmem:[%s7241 + $0x38] sm:$0xf]
        %v7257 = vld [vmem:[%s7241 + $0x3c] sm:$0xf]
        %v7258 = vunpack.c.l.b16 %v7144
        %v7259 = vunpack.c.l.b16 %v7149
        %v7260 = vunpack.c.l.b16 %v7157
        %v7261 = vunpack.c.l.b16 %v7162
        %v7262 = vunpack.c.l.b16 %v7170
        %v7263 = vunpack.c.l.b16 %v7175
        %v7264 = vunpack.c.l.b16 %v7183
        %v7265 = vunpack.c.l.b16 %v7188
        %v7266 = vunpack.c.l.b16 %v7196
        %v7267 = vunpack.c.l.b16 %v7201
        %v7268 = vunpack.c.l.b16 %v7209
        %v7269 = vunpack.c.l.b16 %v7214
        %v7270 = vunpack.c.l.b16 %v7222
        %v7271 = vunpack.c.l.b16 %v7227
        %v7272 = vunpack.c.l.b16 %v7235
        %v7273 = vunpack.c.l.b16 %v7240
        %v7274 = vpack.c.b16 %v7259, %v7258
        %v7275 = vpack.c.b16 %v7261, %v7260
        %v7276 = vpack.c.b16 %v7263, %v7262
        %v7277 = vpack.c.b16 %v7265, %v7264
        %v7278 = vpack.c.b16 %v7267, %v7266
        %v7279 = vpack.c.b16 %v7269, %v7268
        %v7280 = vpack.c.b16 %v7271, %v7270
        %v7281 = vpack.c.b16 %v7273, %v7272
        %v7306 = vunpack.c.l.b16 %v7242
        %v7307 = vunpack.c.l.b16 %v7243
        %v7308 = vunpack.c.l.b16 %v7244
        %v7309 = vunpack.c.l.b16 %v7245
        %v7310 = vunpack.c.l.b16 %v7246
        %v7311 = vunpack.c.l.b16 %v7247
        %v7312 = vunpack.c.l.b16 %v7248
        %v7313 = vunpack.c.l.b16 %v7249
        %v7314 = vunpack.c.l.b16 %v7250
        %v7315 = vunpack.c.l.b16 %v7251
        %v7316 = vunpack.c.l.b16 %v7252
        %v7317 = vunpack.c.l.b16 %v7253
        %v7318 = vunpack.c.l.b16 %v7254
        %v7319 = vunpack.c.l.b16 %v7255
        %v7320 = vunpack.c.l.b16 %v7256
        %v7321 = vunpack.c.l.b16 %v7257
        %v7322 = vpack.c.b16 %v7307, %v7306
        %v7323 = vpack.c.b16 %v7309, %v7308
        %v7324 = vpack.c.b16 %v7311, %v7310
        %v7325 = vpack.c.b16 %v7313, %v7312
        %v7326 = vpack.c.b16 %v7315, %v7314
        %v7327 = vpack.c.b16 %v7317, %v7316
        %v7328 = vpack.c.b16 %v7319, %v7318
        %v7329 = vpack.c.b16 %v7321, %v7320
        %7338 = vmatprep.subr.bf16.mxu0 0
        %7339 = vmatpush1.bf16.msra.mxu0 %v7322
        %7340 = vmatprep.subr.bf16.mxu0 0
        %7341 = vmatpush1.bf16.msra.mxu0 %v7323
        %7342 = vmatprep.subr.bf16.mxu0 0
        %7343 = vmatpush1.bf16.msra.mxu0 %v7324
        %7344 = vmatprep.subr.bf16.mxu0 0
        %7345 = vmatpush1.bf16.msra.mxu0 %v7325
        %7346 = vmatprep.subr.bf16.mxu0 0
        %7347 = vmatpush1.bf16.msra.mxu0 %v7326
        %7348 = vmatprep.subr.bf16.mxu0 0
        %7349 = vmatpush1.bf16.msra.mxu0 %v7327
        %7350 = vmatprep.subr.bf16.mxu0 0
        %7351 = vmatpush1.bf16.msra.mxu0 %v7328
        %7352 = vmatprep.subr.bf16.mxu0 0
        %7353 = vmatpush1.bf16.msra.mxu0 %v7329
        %7354 = vmatprep.subr.bf16.mxu0 0
        %7355 = vmatpush1.bf16.msra.mxu0 0
        %7356 = vmatprep.subr.bf16.mxu0 0
        %7357 = vmatpush1.bf16.msra.mxu0 0
        %7358 = vmatprep.subr.bf16.mxu0 0
        %7359 = vmatpush1.bf16.msra.mxu0 0
        %7360 = vmatprep.subr.bf16.mxu0 0
        %7361 = vmatpush1.bf16.msra.mxu0 0
        %7362 = vmatprep.subr.bf16.mxu0 0
        %7363 = vmatpush1.bf16.msra.mxu0 0
        %7364 = vmatprep.subr.bf16.mxu0 0
        %7365 = vmatpush1.bf16.msra.mxu0 0
        %7366 = vmatprep.subr.bf16.mxu0 0
        %7367 = vmatpush1.bf16.msra.mxu0 0
        %7368 = vmatprep.subr.bf16.mxu0 0
        %7369 = vmatpush1.bf16.msra.mxu0 0
        %7370 = vmatprep.mubr.bf16.mxu0 0
        %7371 = vmatmul.mubr.bf16.gmra.mrb[0].mxu0 %v7274
        %v7372 = vpop.f32.mrb[0].mxu0
        %v7373 = vadd.f32 0.0, %v7372
        %v7374 = vpop.f32.mrb[0].mxu0
        %v7375 = vpop.f32.mrb[0].mxu0
        %v7376 = vadd.f32 0.0, %v7375
        %v7377 = vpop.f32.mrb[0].mxu0
        %7378 = vmatprep.mubr.bf16.mxu0 0
        %7379 = vmatmul.mubr.bf16.gmra.mrb[0].mxu0 %v7275
        %v7380 = vpop.f32.mrb[0].mxu0
        %v7381 = vadd.f32 0.0, %v7380
        %v7382 = vpop.f32.mrb[0].mxu0
        %v7383 = vpop.f32.mrb[0].mxu0
        %v7384 = vadd.f32 0.0, %v7383
        %v7385 = vpop.f32.mrb[0].mxu0
        %7386 = vmatprep.mubr.bf16.mxu0 0
        %7387 = vmatmul.mubr.bf16.gmra.mrb[0].mxu0 %v7276
        %v7388 = vpop.f32.mrb[0].mxu0
        %v7389 = vadd.f32 0.0, %v7388
        %v7390 = vpop.f32.mrb[0].mxu0
        %v7391 = vpop.f32.mrb[0].mxu0
        %v7392 = vadd.f32 0.0, %v7391
        %v7393 = vpop.f32.mrb[0].mxu0
        %7394 = vmatprep.mubr.bf16.mxu0 0
        %7395 = vmatmul.mubr.bf16.gmra.mrb[0].mxu0 %v7277
        %v7396 = vpop.f32.mrb[0].mxu0
        %v7397 = vadd.f32 0.0, %v7396
        %v7398 = vpop.f32.mrb[0].mxu0
        %v7399 = vpop.f32.mrb[0].mxu0
        %v7400 = vadd.f32 0.0, %v7399
        %v7401 = vpop.f32.mrb[0].mxu0
        %7402 = vmatprep.mubr.bf16.mxu0 0
        %7403 = vmatmul.mubr.bf16.gmra.mrb[0].mxu0 %v7278
        %v7404 = vpop.f32.mrb[0].mxu0
        %v7405 = vadd.f32 0.0, %v7404
        %v7406 = vpop.f32.mrb[0].mxu0
        %v7407 = vpop.f32.mrb[0].mxu0
        %v7408 = vadd.f32 0.0, %v7407
        %v7409 = vpop.f32.mrb[0].mxu0
        %7410 = vmatprep.mubr.bf16.mxu0 0
        %7411 = vmatmul.mubr.bf16.gmra.mrb[0].mxu0 %v7279
        %v7412 = vpop.f32.mrb[0].mxu0
        %v7413 = vadd.f32 0.0, %v7412
        %v7414 = vpop.f32.mrb[0].mxu0
        %v7415 = vpop.f32.mrb[0].mxu0
        %v7416 = vadd.f32 0.0, %v7415
        %v7417 = vpop.f32.mrb[0].mxu0
        %7418 = vmatprep.mubr.bf16.mxu0 0
        %7419 = vmatmul.mubr.bf16.gmra.mrb[0].mxu0 %v7280
        %v7420 = vpop.f32.mrb[0].mxu0
        %v7421 = vadd.f32 0.0, %v7420
        %v7422 = vpop.f32.mrb[0].mxu0
        %v7423 = vpop.f32.mrb[0].mxu0
        %v7424 = vadd.f32 0.0, %v7423
        %v7425 = vpop.f32.mrb[0].mxu0
        %7426 = vmatprep.mubr.bf16.mxu0 0
        %7427 = vmatmul.mubr.bf16.gmra.mrb[0].mxu0 %v7281
        %v7428 = vpop.f32.mrb[0].mxu0
        %v7429 = vadd.f32 0.0, %v7428
        %v7430 = vpop.f32.mrb[0].mxu0
        %v7431 = vpop.f32.mrb[0].mxu0
        %v7432 = vadd.f32 0.0, %v7431
        %v7433 = vpop.f32.mrb[0].mxu0
        %7434 = vdwg.mxu0
        %v7435 = vadd.f32 %v7121, %v7373
        %v7436 = vadd.f32 %v7122, %v7376
        %v7437 = vadd.f32 %v7123, %v7381
        %v7438 = vadd.f32 %v7124, %v7384
        %v7439 = vadd.f32 %v7125, %v7389
        %v7440 = vadd.f32 %v7126, %v7392
        %v7441 = vadd.f32 %v7127, %v7397
        %v7442 = vadd.f32 %v7128, %v7400
        %v7443 = vadd.f32 %v7129, %v7405
        %v7444 = vadd.f32 %v7130, %v7408
        %v7445 = vadd.f32 %v7131, %v7413
        %v7446 = vadd.f32 %v7132, %v7416
        %v7447 = vadd.f32 %v7133, %v7421
        %v7448 = vadd.f32 %v7134, %v7424
        %v7449 = vadd.f32 %v7135, %v7429
        %v7450 = vadd.f32 %v7136, %v7432
        %s7451 = sadd.s32 %s214, 6
        %s7452 = smul.u32 %s7451, 3
        %s7453 = smul.addr %s7452, 4
        %s7454 = scalar_lea.vmem %s208, %s7453
        %v7455 = vld [vmem:[%s7454] sm:$0xf]
        %v7456 = vld [vmem:[%s7454 + $0x4] sm:$0xf]
        %v7457 = vld [vmem:[%s7454 + $0x8] sm:$0x7]
        %v7458 = vld [vmem:[%s7454 + $0xc] sm:$0xf]
        %v7459 = vld [vmem:[%s7454 + $0x10] sm:$0xf]
        %v7460 = vld [vmem:[%s7454 + $0x14] sm:$0x7]
        %v7461 = vld [vmem:[%s7454 + $0x18] sm:$0xf]
        %v7462 = vld [vmem:[%s7454 + $0x1c] sm:$0xf]
        %v7463 = vld [vmem:[%s7454 + $0x20] sm:$0x7]
        %v7464 = vld [vmem:[%s7454 + $0x24] sm:$0xf]
        %v7465 = vld [vmem:[%s7454 + $0x28] sm:$0xf]
        %v7466 = vld [vmem:[%s7454 + $0x2c] sm:$0x7]
        %v7467 = vld [vmem:[%s7454 + $0x30] sm:$0xf]
        %v7468 = vld [vmem:[%s7454 + $0x34] sm:$0xf]
        %v7469 = vld [vmem:[%s7454 + $0x38] sm:$0x7]
        %v7470 = vld [vmem:[%s7454 + $0x3c] sm:$0xf]
        %v7471 = vld [vmem:[%s7454 + $0x40] sm:$0xf]
        %v7472 = vld [vmem:[%s7454 + $0x44] sm:$0x7]
        %v7473 = vld [vmem:[%s7454 + $0x48] sm:$0xf]
        %v7474 = vld [vmem:[%s7454 + $0x4c] sm:$0xf]
        %v7475 = vld [vmem:[%s7454 + $0x50] sm:$0x7]
        %v7476 = vld [vmem:[%s7454 + $0x54] sm:$0xf]
        %v7477 = vld [vmem:[%s7454 + $0x58] sm:$0xf]
        %v7478 = vld [vmem:[%s7454 + $0x5c] sm:$0x7]
        %s7479 = scalar_lea.vmem [#allocation2], 1408
        %v7480 = vld [vmem:[%s7479] sm:$0xf]
        %v7481 = vld [vmem:[%s7479 + $0x4] sm:$0xf]
        %v7482 = vld [vmem:[%s7479 + $0x8] sm:$0xf]
        %v7483 = vld [vmem:[%s7479 + $0xc] sm:$0xf]
        %v7484 = vld [vmem:[%s7479 + $0x10] sm:$0xf]
        %v7485 = vld [vmem:[%s7479 + $0x14] sm:$0xf]
        %v7486 = vld [vmem:[%s7479 + $0x18] sm:$0xf]
        %v7487 = vld [vmem:[%s7479 + $0x1c] sm:$0xf]
        %v7488 = vld [vmem:[%s7479 + $0x20] sm:$0xf]
        %v7489 = vld [vmem:[%s7479 + $0x24] sm:$0xf]
        %v7490 = vld [vmem:[%s7479 + $0x28] sm:$0xf]
        %v7491 = vld [vmem:[%s7479 + $0x2c] sm:$0xf]
        %v7492 = vld [vmem:[%s7479 + $0x30] sm:$0xf]
        %v7493 = vld [vmem:[%s7479 + $0x34] sm:$0xf]
        %v7494 = vld [vmem:[%s7479 + $0x38] sm:$0xf]
        %v7495 = vld [vmem:[%s7479 + $0x3c] sm:$0xf]
        %v7512 = vunpack.c.l.b16 %v7455
        %v7513 = vunpack.c.l.b16 %v7456
        %v7514 = vunpack.c.l.b16 %v7458
        %v7515 = vunpack.c.l.b16 %v7459
        %v7516 = vunpack.c.l.b16 %v7461
        %v7517 = vunpack.c.l.b16 %v7462
        %v7518 = vunpack.c.l.b16 %v7464
        %v7519 = vunpack.c.l.b16 %v7465
        %v7520 = vunpack.c.l.b16 %v7467
        %v7521 = vunpack.c.l.b16 %v7468
        %v7522 = vunpack.c.l.b16 %v7470
        %v7523 = vunpack.c.l.b16 %v7471
        %v7524 = vunpack.c.l.b16 %v7473
        %v7525 = vunpack.c.l.b16 %v7474
        %v7526 = vunpack.c.l.b16 %v7476
        %v7527 = vunpack.c.l.b16 %v7477
        %v7528 = vpack.c.b16 %v7513, %v7512
        %v7529 = vpack.c.b16 %v7515, %v7514
        %v7530 = vpack.c.b16 %v7517, %v7516
        %v7531 = vpack.c.b16 %v7519, %v7518
        %v7532 = vpack.c.b16 %v7521, %v7520
        %v7533 = vpack.c.b16 %v7523, %v7522
        %v7534 = vpack.c.b16 %v7525, %v7524
        %v7535 = vpack.c.b16 %v7527, %v7526
        %v7560 = vunpack.c.l.b16 %v7480
        %v7561 = vunpack.c.l.b16 %v7481
        %v7562 = vunpack.c.l.b16 %v7482
        %v7563 = vunpack.c.l.b16 %v7483
        %v7564 = vunpack.c.l.b16 %v7484
        %v7565 = vunpack.c.l.b16 %v7485
        %v7566 = vunpack.c.l.b16 %v7486
        %v7567 = vunpack.c.l.b16 %v7487
        %v7568 = vunpack.c.l.b16 %v7488
        %v7569 = vunpack.c.l.b16 %v7489
        %v7570 = vunpack.c.l.b16 %v7490
        %v7571 = vunpack.c.l.b16 %v7491
        %v7572 = vunpack.c.l.b16 %v7492
        %v7573 = vunpack.c.l.b16 %v7493
        %v7574 = vunpack.c.l.b16 %v7494
        %v7575 = vunpack.c.l.b16 %v7495
        %v7576 = vpack.c.b16 %v7561, %v7560
        %v7577 = vpack.c.b16 %v7563, %v7562
        %v7578 = vpack.c.b16 %v7565, %v7564
        %v7579 = vpack.c.b16 %v7567, %v7566
        %v7580 = vpack.c.b16 %v7569, %v7568
        %v7581 = vpack.c.b16 %v7571, %v7570
        %v7582 = vpack.c.b16 %v7573, %v7572
        %v7583 = vpack.c.b16 %v7575, %v7574
        %7592 = vmatprep.subr.bf16.mxu0 0
        %7593 = vmatpush1.bf16.msra.mxu0 %v7576
        %7594 = vmatprep.subr.bf16.mxu0 0
        %7595 = vmatpush1.bf16.msra.mxu0 %v7577
        %7596 = vmatprep.subr.bf16.mxu0 0
        %7597 = vmatpush1.bf16.msra.mxu0 %v7578
        %7598 = vmatprep.subr.bf16.mxu0 0
        %7599 = vmatpush1.bf16.msra.mxu0 %v7579
        %7600 = vmatprep.subr.bf16.mxu0 0
        %7601 = vmatpush1.bf16.msra.mxu0 %v7580
        %7602 = vmatprep.subr.bf16.mxu0 0
        %7603 = vmatpush1.bf16.msra.mxu0 %v7581
        %7604 = vmatprep.subr.bf16.mxu0 0
        %7605 = vmatpush1.bf16.msra.mxu0 %v7582
        %7606 = vmatprep.subr.bf16.mxu0 0
        %7607 = vmatpush1.bf16.msra.mxu0 %v7583
        %7608 = vmatprep.subr.bf16.mxu0 0
        %7609 = vmatpush1.bf16.msra.mxu0 0
        %7610 = vmatprep.subr.bf16.mxu0 0
        %7611 = vmatpush1.bf16.msra.mxu0 0
        %7612 = vmatprep.subr.bf16.mxu0 0
        %7613 = vmatpush1.bf16.msra.mxu0 0
        %7614 = vmatprep.subr.bf16.mxu0 0
        %7615 = vmatpush1.bf16.msra.mxu0 0
        %7616 = vmatprep.subr.bf16.mxu0 0
        %7617 = vmatpush1.bf16.msra.mxu0 0
        %7618 = vmatprep.subr.bf16.mxu0 0
        %7619 = vmatpush1.bf16.msra.mxu0 0
        %7620 = vmatprep.subr.bf16.mxu0 0
        %7621 = vmatpush1.bf16.msra.mxu0 0
        %7622 = vmatprep.subr.bf16.mxu0 0
        %7623 = vmatpush1.bf16.msra.mxu0 0
        %7624 = vmatprep.mubr.bf16.mxu0 0
        %7625 = vmatmul.mubr.bf16.gmra.mrb[0].mxu0 %v7528
        %v7626 = vpop.f32.mrb[0].mxu0
        %v7627 = vadd.f32 0.0, %v7626
        %v7628 = vpop.f32.mrb[0].mxu0
        %v7629 = vpop.f32.mrb[0].mxu0
        %v7630 = vadd.f32 0.0, %v7629
        %v7631 = vpop.f32.mrb[0].mxu0
        %7632 = vmatprep.mubr.bf16.mxu0 0
        %7633 = vmatmul.mubr.bf16.gmra.mrb[0].mxu0 %v7529
        %v7634 = vpop.f32.mrb[0].mxu0
        %v7635 = vadd.f32 0.0, %v7634
        %v7636 = vpop.f32.mrb[0].mxu0
        %v7637 = vpop.f32.mrb[0].mxu0
        %v7638 = vadd.f32 0.0, %v7637
        %v7639 = vpop.f32.mrb[0].mxu0
        %7640 = vmatprep.mubr.bf16.mxu0 0
        %7641 = vmatmul.mubr.bf16.gmra.mrb[0].mxu0 %v7530
        %v7642 = vpop.f32.mrb[0].mxu0
        %v7643 = vadd.f32 0.0, %v7642
        %v7644 = vpop.f32.mrb[0].mxu0
        %v7645 = vpop.f32.mrb[0].mxu0
        %v7646 = vadd.f32 0.0, %v7645
        %v7647 = vpop.f32.mrb[0].mxu0
        %7648 = vmatprep.mubr.bf16.mxu0 0
        %7649 = vmatmul.mubr.bf16.gmra.mrb[0].mxu0 %v7531
        %v7650 = vpop.f32.mrb[0].mxu0
        %v7651 = vadd.f32 0.0, %v7650
        %v7652 = vpop.f32.mrb[0].mxu0
        %v7653 = vpop.f32.mrb[0].mxu0
        %v7654 = vadd.f32 0.0, %v7653
        %v7655 = vpop.f32.mrb[0].mxu0
        %7656 = vmatprep.mubr.bf16.mxu0 0
        %7657 = vmatmul.mubr.bf16.gmra.mrb[0].mxu0 %v7532
        %v7658 = vpop.f32.mrb[0].mxu0
        %v7659 = vadd.f32 0.0, %v7658
        %v7660 = vpop.f32.mrb[0].mxu0
        %v7661 = vpop.f32.mrb[0].mxu0
        %v7662 = vadd.f32 0.0, %v7661
        %v7663 = vpop.f32.mrb[0].mxu0
        %7664 = vmatprep.mubr.bf16.mxu0 0
        %7665 = vmatmul.mubr.bf16.gmra.mrb[0].mxu0 %v7533
        %v7666 = vpop.f32.mrb[0].mxu0
        %v7667 = vadd.f32 0.0, %v7666
        %v7668 = vpop.f32.mrb[0].mxu0
        %v7669 = vpop.f32.mrb[0].mxu0
        %v7670 = vadd.f32 0.0, %v7669
        %v7671 = vpop.f32.mrb[0].mxu0
        %7672 = vmatprep.mubr.bf16.mxu0 0
        %7673 = vmatmul.mubr.bf16.gmra.mrb[0].mxu0 %v7534
        %v7674 = vpop.f32.mrb[0].mxu0
        %v7675 = vadd.f32 0.0, %v7674
        %v7676 = vpop.f32.mrb[0].mxu0
        %v7677 = vpop.f32.mrb[0].mxu0
        %v7678 = vadd.f32 0.0, %v7677
        %v7679 = vpop.f32.mrb[0].mxu0
        %7680 = vmatprep.mubr.bf16.mxu0 0
        %7681 = vmatmul.mubr.bf16.gmra.mrb[0].mxu0 %v7535
        %v7682 = vpop.f32.mrb[0].mxu0
        %v7683 = vadd.f32 0.0, %v7682
        %v7684 = vpop.f32.mrb[0].mxu0
        %v7685 = vpop.f32.mrb[0].mxu0
        %v7686 = vadd.f32 0.0, %v7685
        %v7687 = vpop.f32.mrb[0].mxu0
        %7688 = vdwg.mxu0
        %v7689 = vadd.f32 %v7435, %v7627
        %v7690 = vadd.f32 %v7436, %v7630
        %v7691 = vadd.f32 %v7437, %v7635
        %v7692 = vadd.f32 %v7438, %v7638
        %v7693 = vadd.f32 %v7439, %v7643
        %v7694 = vadd.f32 %v7440, %v7646
        %v7695 = vadd.f32 %v7441, %v7651
        %v7696 = vadd.f32 %v7442, %v7654
        %v7697 = vadd.f32 %v7443, %v7659
        %v7698 = vadd.f32 %v7444, %v7662
        %v7699 = vadd.f32 %v7445, %v7667
        %v7700 = vadd.f32 %v7446, %v7670
        %v7701 = vadd.f32 %v7447, %v7675
        %v7702 = vadd.f32 %v7448, %v7678
        %v7703 = vadd.f32 %v7449, %v7683
        %v7704 = vadd.f32 %v7450, %v7686
        %v7706 = vshrl.u32 %v7455, 16
        %v7708 = vrot.slane %v7706, 5
        %v7709 = vshll.u32 %v7455, 16
        %v7711 = vrot.slane %v7709, 6
        %v7712 = vor.u32 %v7708, %v7711
        %v7713 = vrot.slane %v7712, 4
        %v7715 = vshrl.u32 %v7456, 16
        %v7717 = vrot.slane %v7715, 5
        %v7718 = vshll.u32 %v7456, 16
        %v7720 = vrot.slane %v7718, 6
        %v7721 = vor.u32 %v7717, %v7720
        %v7722 = vsel %vm260, %v7713, %v7721
        %v7723 = vrot.slane %v7721, 4
        %v7725 = vshrl.u32 %v7457, 16
        %v7727 = vrot.slane %v7725, 5
        %v7728 = vshll.u32 %v7457, 16
        %v7730 = vrot.slane %v7728, 6
        %v7731 = vor.u32 %v7727, %v7730
        %v7732 = vsel %vm260, %v7723, %v7731
        %v7734 = vshrl.u32 %v7458, 16
        %v7736 = vrot.slane %v7734, 5
        %v7737 = vshll.u32 %v7458, 16
        %v7739 = vrot.slane %v7737, 6
        %v7740 = vor.u32 %v7736, %v7739
        %v7741 = vrot.slane %v7740, 4
        %v7743 = vshrl.u32 %v7459, 16
        %v7745 = vrot.slane %v7743, 5
        %v7746 = vshll.u32 %v7459, 16
        %v7748 = vrot.slane %v7746, 6
        %v7749 = vor.u32 %v7745, %v7748
        %v7750 = vsel %vm260, %v7741, %v7749
        %v7751 = vrot.slane %v7749, 4
        %v7753 = vshrl.u32 %v7460, 16
        %v7755 = vrot.slane %v7753, 5
        %v7756 = vshll.u32 %v7460, 16
        %v7758 = vrot.slane %v7756, 6
        %v7759 = vor.u32 %v7755, %v7758
        %v7760 = vsel %vm260, %v7751, %v7759
        %v7762 = vshrl.u32 %v7461, 16
        %v7764 = vrot.slane %v7762, 5
        %v7765 = vshll.u32 %v7461, 16
        %v7767 = vrot.slane %v7765, 6
        %v7768 = vor.u32 %v7764, %v7767
        %v7769 = vrot.slane %v7768, 4
        %v7771 = vshrl.u32 %v7462, 16
        %v7773 = vrot.slane %v7771, 5
        %v7774 = vshll.u32 %v7462, 16
        %v7776 = vrot.slane %v7774, 6
        %v7777 = vor.u32 %v7773, %v7776
        %v7778 = vsel %vm260, %v7769, %v7777
        %v7779 = vrot.slane %v7777, 4
        %v7781 = vshrl.u32 %v7463, 16
        %v7783 = vrot.slane %v7781, 5
        %v7784 = vshll.u32 %v7463, 16
        %v7786 = vrot.slane %v7784, 6
        %v7787 = vor.u32 %v7783, %v7786
        %v7788 = vsel %vm260, %v7779, %v7787
        %v7790 = vshrl.u32 %v7464, 16
        %v7792 = vrot.slane %v7790, 5
        %v7793 = vshll.u32 %v7464, 16
        %v7795 = vrot.slane %v7793, 6
        %v7796 = vor.u32 %v7792, %v7795
        %v7797 = vrot.slane %v7796, 4
        %v7799 = vshrl.u32 %v7465, 16
        %v7801 = vrot.slane %v7799, 5
        %v7802 = vshll.u32 %v7465, 16
        %v7804 = vrot.slane %v7802, 6
        %v7805 = vor.u32 %v7801, %v7804
        %v7806 = vsel %vm260, %v7797, %v7805
        %v7807 = vrot.slane %v7805, 4
        %v7809 = vshrl.u32 %v7466, 16
        %v7811 = vrot.slane %v7809, 5
        %v7812 = vshll.u32 %v7466, 16
        %v7814 = vrot.slane %v7812, 6
        %v7815 = vor.u32 %v7811, %v7814
        %v7816 = vsel %vm260, %v7807, %v7815
        %v7818 = vshrl.u32 %v7467, 16
        %v7820 = vrot.slane %v7818, 5
        %v7821 = vshll.u32 %v7467, 16
        %v7823 = vrot.slane %v7821, 6
        %v7824 = vor.u32 %v7820, %v7823
        %v7825 = vrot.slane %v7824, 4
        %v7827 = vshrl.u32 %v7468, 16
        %v7829 = vrot.slane %v7827, 5
        %v7830 = vshll.u32 %v7468, 16
        %v7832 = vrot.slane %v7830, 6
        %v7833 = vor.u32 %v7829, %v7832
        %v7834 = vsel %vm260, %v7825, %v7833
        %v7835 = vrot.slane %v7833, 4
        %v7837 = vshrl.u32 %v7469, 16
        %v7839 = vrot.slane %v7837, 5
        %v7840 = vshll.u32 %v7469, 16
        %v7842 = vrot.slane %v7840, 6
        %v7843 = vor.u32 %v7839, %v7842
        %v7844 = vsel %vm260, %v7835, %v7843
        %v7846 = vshrl.u32 %v7470, 16
        %v7848 = vrot.slane %v7846, 5
        %v7849 = vshll.u32 %v7470, 16
        %v7851 = vrot.slane %v7849, 6
        %v7852 = vor.u32 %v7848, %v7851
        %v7853 = vrot.slane %v7852, 4
        %v7855 = vshrl.u32 %v7471, 16
        %v7857 = vrot.slane %v7855, 5
        %v7858 = vshll.u32 %v7471, 16
        %v7860 = vrot.slane %v7858, 6
        %v7861 = vor.u32 %v7857, %v7860
        %v7862 = vsel %vm260, %v7853, %v7861
        %v7863 = vrot.slane %v7861, 4
        %v7865 = vshrl.u32 %v7472, 16
        %v7867 = vrot.slane %v7865, 5
        %v7868 = vshll.u32 %v7472, 16
        %v7870 = vrot.slane %v7868, 6
        %v7871 = vor.u32 %v7867, %v7870
        %v7872 = vsel %vm260, %v7863, %v7871
        %v7874 = vshrl.u32 %v7473, 16
        %v7876 = vrot.slane %v7874, 5
        %v7877 = vshll.u32 %v7473, 16
        %v7879 = vrot.slane %v7877, 6
        %v7880 = vor.u32 %v7876, %v7879
        %v7881 = vrot.slane %v7880, 4
        %v7883 = vshrl.u32 %v7474, 16
        %v7885 = vrot.slane %v7883, 5
        %v7886 = vshll.u32 %v7474, 16
        %v7888 = vrot.slane %v7886, 6
        %v7889 = vor.u32 %v7885, %v7888
        %v7890 = vsel %vm260, %v7881, %v7889
        %v7891 = vrot.slane %v7889, 4
        %v7893 = vshrl.u32 %v7475, 16
        %v7895 = vrot.slane %v7893, 5
        %v7896 = vshll.u32 %v7475, 16
        %v7898 = vrot.slane %v7896, 6
        %v7899 = vor.u32 %v7895, %v7898
        %v7900 = vsel %vm260, %v7891, %v7899
        %v7902 = vshrl.u32 %v7476, 16
        %v7904 = vrot.slane %v7902, 5
        %v7905 = vshll.u32 %v7476, 16
        %v7907 = vrot.slane %v7905, 6
        %v7908 = vor.u32 %v7904, %v7907
        %v7909 = vrot.slane %v7908, 4
        %v7911 = vshrl.u32 %v7477, 16
        %v7913 = vrot.slane %v7911, 5
        %v7914 = vshll.u32 %v7477, 16
        %v7916 = vrot.slane %v7914, 6
        %v7917 = vor.u32 %v7913, %v7916
        %v7918 = vsel %vm260, %v7909, %v7917
        %v7919 = vrot.slane %v7917, 4
        %v7921 = vshrl.u32 %v7478, 16
        %v7923 = vrot.slane %v7921, 5
        %v7924 = vshll.u32 %v7478, 16
        %v7926 = vrot.slane %v7924, 6
        %v7927 = vor.u32 %v7923, %v7926
        %v7928 = vsel %vm260, %v7919, %v7927
        %s7929 = scalar_lea.vmem [#allocation2], 1472
        %v7930 = vld [vmem:[%s7929] sm:$0xf]
        %v7931 = vld [vmem:[%s7929 + $0x4] sm:$0xf]
        %v7932 = vld [vmem:[%s7929 + $0x8] sm:$0xf]
        %v7933 = vld [vmem:[%s7929 + $0xc] sm:$0xf]
        %v7934 = vld [vmem:[%s7929 + $0x10] sm:$0xf]
        %v7935 = vld [vmem:[%s7929 + $0x14] sm:$0xf]
        %v7936 = vld [vmem:[%s7929 + $0x18] sm:$0xf]
        %v7937 = vld [vmem:[%s7929 + $0x1c] sm:$0xf]
        %v7938 = vld [vmem:[%s7929 + $0x20] sm:$0xf]
        %v7939 = vld [vmem:[%s7929 + $0x24] sm:$0xf]
        %v7940 = vld [vmem:[%s7929 + $0x28] sm:$0xf]
        %v7941 = vld [vmem:[%s7929 + $0x2c] sm:$0xf]
        %v7942 = vld [vmem:[%s7929 + $0x30] sm:$0xf]
        %v7943 = vld [vmem:[%s7929 + $0x34] sm:$0xf]
        %v7944 = vld [vmem:[%s7929 + $0x38] sm:$0xf]
        %v7945 = vld [vmem:[%s7929 + $0x3c] sm:$0xf]
        %v7946 = vunpack.c.l.b16 %v7722
        %v7947 = vunpack.c.l.b16 %v7732
        %v7948 = vunpack.c.l.b16 %v7750
        %v7949 = vunpack.c.l.b16 %v7760
        %v7950 = vunpack.c.l.b16 %v7778
        %v7951 = vunpack.c.l.b16 %v7788
        %v7952 = vunpack.c.l.b16 %v7806
        %v7953 = vunpack.c.l.b16 %v7816
        %v7954 = vunpack.c.l.b16 %v7834
        %v7955 = vunpack.c.l.b16 %v7844
        %v7956 = vunpack.c.l.b16 %v7862
        %v7957 = vunpack.c.l.b16 %v7872
        %v7958 = vunpack.c.l.b16 %v7890
        %v7959 = vunpack.c.l.b16 %v7900
        %v7960 = vunpack.c.l.b16 %v7918
        %v7961 = vunpack.c.l.b16 %v7928
        %v7962 = vpack.c.b16 %v7947, %v7946
        %v7963 = vpack.c.b16 %v7949, %v7948
        %v7964 = vpack.c.b16 %v7951, %v7950
        %v7965 = vpack.c.b16 %v7953, %v7952
        %v7966 = vpack.c.b16 %v7955, %v7954
        %v7967 = vpack.c.b16 %v7957, %v7956
        %v7968 = vpack.c.b16 %v7959, %v7958
        %v7969 = vpack.c.b16 %v7961, %v7960
        %v7994 = vunpack.c.l.b16 %v7930
        %v7995 = vunpack.c.l.b16 %v7931
        %v7996 = vunpack.c.l.b16 %v7932
        %v7997 = vunpack.c.l.b16 %v7933
        %v7998 = vunpack.c.l.b16 %v7934
        %v7999 = vunpack.c.l.b16 %v7935
        %v8000 = vunpack.c.l.b16 %v7936
        %v8001 = vunpack.c.l.b16 %v7937
        %v8002 = vunpack.c.l.b16 %v7938
        %v8003 = vunpack.c.l.b16 %v7939
        %v8004 = vunpack.c.l.b16 %v7940
        %v8005 = vunpack.c.l.b16 %v7941
        %v8006 = vunpack.c.l.b16 %v7942
        %v8007 = vunpack.c.l.b16 %v7943
        %v8008 = vunpack.c.l.b16 %v7944
        %v8009 = vunpack.c.l.b16 %v7945
        %v8010 = vpack.c.b16 %v7995, %v7994
        %v8011 = vpack.c.b16 %v7997, %v7996
        %v8012 = vpack.c.b16 %v7999, %v7998
        %v8013 = vpack.c.b16 %v8001, %v8000
        %v8014 = vpack.c.b16 %v8003, %v8002
        %v8015 = vpack.c.b16 %v8005, %v8004
        %v8016 = vpack.c.b16 %v8007, %v8006
        %v8017 = vpack.c.b16 %v8009, %v8008
        %8026 = vmatprep.subr.bf16.mxu0 0
        %8027 = vmatpush1.bf16.msra.mxu0 %v8010
        %8028 = vmatprep.subr.bf16.mxu0 0
        %8029 = vmatpush1.bf16.msra.mxu0 %v8011
        %8030 = vmatprep.subr.bf16.mxu0 0
        %8031 = vmatpush1.bf16.msra.mxu0 %v8012
        %8032 = vmatprep.subr.bf16.mxu0 0
        %8033 = vmatpush1.bf16.msra.mxu0 %v8013
        %8034 = vmatprep.subr.bf16.mxu0 0
        %8035 = vmatpush1.bf16.msra.mxu0 %v8014
        %8036 = vmatprep.subr.bf16.mxu0 0
        %8037 = vmatpush1.bf16.msra.mxu0 %v8015
        %8038 = vmatprep.subr.bf16.mxu0 0
        %8039 = vmatpush1.bf16.msra.mxu0 %v8016
        %8040 = vmatprep.subr.bf16.mxu0 0
        %8041 = vmatpush1.bf16.msra.mxu0 %v8017
        %8042 = vmatprep.subr.bf16.mxu0 0
        %8043 = vmatpush1.bf16.msra.mxu0 0
        %8044 = vmatprep.subr.bf16.mxu0 0
        %8045 = vmatpush1.bf16.msra.mxu0 0
        %8046 = vmatprep.subr.bf16.mxu0 0
        %8047 = vmatpush1.bf16.msra.mxu0 0
        %8048 = vmatprep.subr.bf16.mxu0 0
        %8049 = vmatpush1.bf16.msra.mxu0 0
        %8050 = vmatprep.subr.bf16.mxu0 0
        %8051 = vmatpush1.bf16.msra.mxu0 0
        %8052 = vmatprep.subr.bf16.mxu0 0
        %8053 = vmatpush1.bf16.msra.mxu0 0
        %8054 = vmatprep.subr.bf16.mxu0 0
        %8055 = vmatpush1.bf16.msra.mxu0 0
        %8056 = vmatprep.subr.bf16.mxu0 0
        %8057 = vmatpush1.bf16.msra.mxu0 0
        %8058 = vmatprep.mubr.bf16.mxu0 0
        %8059 = vmatmul.mubr.bf16.gmra.mrb[0].mxu0 %v7962
        %v8060 = vpop.f32.mrb[0].mxu0
        %v8061 = vadd.f32 0.0, %v8060
        %v8062 = vpop.f32.mrb[0].mxu0
        %v8063 = vpop.f32.mrb[0].mxu0
        %v8064 = vadd.f32 0.0, %v8063
        %v8065 = vpop.f32.mrb[0].mxu0
        %8066 = vmatprep.mubr.bf16.mxu0 0
        %8067 = vmatmul.mubr.bf16.gmra.mrb[0].mxu0 %v7963
        %v8068 = vpop.f32.mrb[0].mxu0
        %v8069 = vadd.f32 0.0, %v8068
        %v8070 = vpop.f32.mrb[0].mxu0
        %v8071 = vpop.f32.mrb[0].mxu0
        %v8072 = vadd.f32 0.0, %v8071
        %v8073 = vpop.f32.mrb[0].mxu0
        %8074 = vmatprep.mubr.bf16.mxu0 0
        %8075 = vmatmul.mubr.bf16.gmra.mrb[0].mxu0 %v7964
        %v8076 = vpop.f32.mrb[0].mxu0
        %v8077 = vadd.f32 0.0, %v8076
        %v8078 = vpop.f32.mrb[0].mxu0
        %v8079 = vpop.f32.mrb[0].mxu0
        %v8080 = vadd.f32 0.0, %v8079
        %v8081 = vpop.f32.mrb[0].mxu0
        %8082 = vmatprep.mubr.bf16.mxu0 0
        %8083 = vmatmul.mubr.bf16.gmra.mrb[0].mxu0 %v7965
        %v8084 = vpop.f32.mrb[0].mxu0
        %v8085 = vadd.f32 0.0, %v8084
        %v8086 = vpop.f32.mrb[0].mxu0
        %v8087 = vpop.f32.mrb[0].mxu0
        %v8088 = vadd.f32 0.0, %v8087
        %v8089 = vpop.f32.mrb[0].mxu0
        %8090 = vmatprep.mubr.bf16.mxu0 0
        %8091 = vmatmul.mubr.bf16.gmra.mrb[0].mxu0 %v7966
        %v8092 = vpop.f32.mrb[0].mxu0
        %v8093 = vadd.f32 0.0, %v8092
        %v8094 = vpop.f32.mrb[0].mxu0
        %v8095 = vpop.f32.mrb[0].mxu0
        %v8096 = vadd.f32 0.0, %v8095
        %v8097 = vpop.f32.mrb[0].mxu0
        %8098 = vmatprep.mubr.bf16.mxu0 0
        %8099 = vmatmul.mubr.bf16.gmra.mrb[0].mxu0 %v7967
        %v8100 = vpop.f32.mrb[0].mxu0
        %v8101 = vadd.f32 0.0, %v8100
        %v8102 = vpop.f32.mrb[0].mxu0
        %v8103 = vpop.f32.mrb[0].mxu0
        %v8104 = vadd.f32 0.0, %v8103
        %v8105 = vpop.f32.mrb[0].mxu0
        %8106 = vmatprep.mubr.bf16.mxu0 0
        %8107 = vmatmul.mubr.bf16.gmra.mrb[0].mxu0 %v7968
        %v8108 = vpop.f32.mrb[0].mxu0
        %v8109 = vadd.f32 0.0, %v8108
        %v8110 = vpop.f32.mrb[0].mxu0
        %v8111 = vpop.f32.mrb[0].mxu0
        %v8112 = vadd.f32 0.0, %v8111
        %v8113 = vpop.f32.mrb[0].mxu0
        %8114 = vmatprep.mubr.bf16.mxu0 0
        %8115 = vmatmul.mubr.bf16.gmra.mrb[0].mxu0 %v7969
        %v8116 = vpop.f32.mrb[0].mxu0
        %v8117 = vadd.f32 0.0, %v8116
        %v8118 = vpop.f32.mrb[0].mxu0
        %v8119 = vpop.f32.mrb[0].mxu0
        %v8120 = vadd.f32 0.0, %v8119
        %v8121 = vpop.f32.mrb[0].mxu0
        %8122 = vdwg.mxu0
        %v8123 = vadd.f32 %v7689, %v8061
        %v8124 = vadd.f32 %v7690, %v8064
        %v8125 = vadd.f32 %v7691, %v8069
        %v8126 = vadd.f32 %v7692, %v8072
        %v8127 = vadd.f32 %v7693, %v8077
        %v8128 = vadd.f32 %v7694, %v8080
        %v8129 = vadd.f32 %v7695, %v8085
        %v8130 = vadd.f32 %v7696, %v8088
        %v8131 = vadd.f32 %v7697, %v8093
        %v8132 = vadd.f32 %v7698, %v8096
        %v8133 = vadd.f32 %v7699, %v8101
        %v8134 = vadd.f32 %v7700, %v8104
        %v8135 = vadd.f32 %v7701, %v8109
        %v8136 = vadd.f32 %v7702, %v8112
        %v8137 = vadd.f32 %v7703, %v8117
        %v8138 = vadd.f32 %v7704, %v8120
        %v8147 = vrot.slane %v7455, 7
        %v8148 = vrot.slane %v8147, 4
        %v8149 = vrot.slane %v7456, 7
        %v8150 = vsel %vm882, %v8148, %v8149
        %v8151 = vrot.slane %v8149, 4
        %v8152 = vrot.slane %v7457, 7
        %v8153 = vsel %vm882, %v8151, %v8152
        %v8154 = vrot.slane %v7458, 7
        %v8155 = vrot.slane %v8154, 4
        %v8156 = vrot.slane %v7459, 7
        %v8157 = vsel %vm882, %v8155, %v8156
        %v8158 = vrot.slane %v8156, 4
        %v8159 = vrot.slane %v7460, 7
        %v8160 = vsel %vm882, %v8158, %v8159
        %v8161 = vrot.slane %v7461, 7
        %v8162 = vrot.slane %v8161, 4
        %v8163 = vrot.slane %v7462, 7
        %v8164 = vsel %vm882, %v8162, %v8163
        %v8165 = vrot.slane %v8163, 4
        %v8166 = vrot.slane %v7463, 7
        %v8167 = vsel %vm882, %v8165, %v8166
        %v8168 = vrot.slane %v7464, 7
        %v8169 = vrot.slane %v8168, 4
        %v8170 = vrot.slane %v7465, 7
        %v8171 = vsel %vm882, %v8169, %v8170
        %v8172 = vrot.slane %v8170, 4
        %v8173 = vrot.slane %v7466, 7
        %v8174 = vsel %vm882, %v8172, %v8173
        %v8175 = vrot.slane %v7467, 7
        %v8176 = vrot.slane %v8175, 4
        %v8177 = vrot.slane %v7468, 7
        %v8178 = vsel %vm882, %v8176, %v8177
        %v8179 = vrot.slane %v8177, 4
        %v8180 = vrot.slane %v7469, 7
        %v8181 = vsel %vm882, %v8179, %v8180
        %v8182 = vrot.slane %v7470, 7
        %v8183 = vrot.slane %v8182, 4
        %v8184 = vrot.slane %v7471, 7
        %v8185 = vsel %vm882, %v8183, %v8184
        %v8186 = vrot.slane %v8184, 4
        %v8187 = vrot.slane %v7472, 7
        %v8188 = vsel %vm882, %v8186, %v8187
        %v8189 = vrot.slane %v7473, 7
        %v8190 = vrot.slane %v8189, 4
        %v8191 = vrot.slane %v7474, 7
        %v8192 = vsel %vm882, %v8190, %v8191
        %v8193 = vrot.slane %v8191, 4
        %v8194 = vrot.slane %v7475, 7
        %v8195 = vsel %vm882, %v8193, %v8194
        %v8196 = vrot.slane %v7476, 7
        %v8197 = vrot.slane %v8196, 4
        %v8198 = vrot.slane %v7477, 7
        %v8199 = vsel %vm882, %v8197, %v8198
        %v8200 = vrot.slane %v8198, 4
        %v8201 = vrot.slane %v7478, 7
        %v8202 = vsel %vm882, %v8200, %v8201
        %s8203 = scalar_lea.vmem [#allocation2], 1536
        %v8204 = vld [vmem:[%s8203] sm:$0xf]
        %v8205 = vld [vmem:[%s8203 + $0x4] sm:$0xf]
        %v8206 = vld [vmem:[%s8203 + $0x8] sm:$0xf]
        %v8207 = vld [vmem:[%s8203 + $0xc] sm:$0xf]
        %v8208 = vld [vmem:[%s8203 + $0x10] sm:$0xf]
        %v8209 = vld [vmem:[%s8203 + $0x14] sm:$0xf]
        %v8210 = vld [vmem:[%s8203 + $0x18] sm:$0xf]
        %v8211 = vld [vmem:[%s8203 + $0x1c] sm:$0xf]
        %v8212 = vld [vmem:[%s8203 + $0x20] sm:$0xf]
        %v8213 = vld [vmem:[%s8203 + $0x24] sm:$0xf]
        %v8214 = vld [vmem:[%s8203 + $0x28] sm:$0xf]
        %v8215 = vld [vmem:[%s8203 + $0x2c] sm:$0xf]
        %v8216 = vld [vmem:[%s8203 + $0x30] sm:$0xf]
        %v8217 = vld [vmem:[%s8203 + $0x34] sm:$0xf]
        %v8218 = vld [vmem:[%s8203 + $0x38] sm:$0xf]
        %v8219 = vld [vmem:[%s8203 + $0x3c] sm:$0xf]
        %v8220 = vunpack.c.l.b16 %v8150
        %v8221 = vunpack.c.l.b16 %v8153
        %v8222 = vunpack.c.l.b16 %v8157
        %v8223 = vunpack.c.l.b16 %v8160
        %v8224 = vunpack.c.l.b16 %v8164
        %v8225 = vunpack.c.l.b16 %v8167
        %v8226 = vunpack.c.l.b16 %v8171
        %v8227 = vunpack.c.l.b16 %v8174
        %v8228 = vunpack.c.l.b16 %v8178
        %v8229 = vunpack.c.l.b16 %v8181
        %v8230 = vunpack.c.l.b16 %v8185
        %v8231 = vunpack.c.l.b16 %v8188
        %v8232 = vunpack.c.l.b16 %v8192
        %v8233 = vunpack.c.l.b16 %v8195
        %v8234 = vunpack.c.l.b16 %v8199
        %v8235 = vunpack.c.l.b16 %v8202
        %v8236 = vpack.c.b16 %v8221, %v8220
        %v8237 = vpack.c.b16 %v8223, %v8222
        %v8238 = vpack.c.b16 %v8225, %v8224
        %v8239 = vpack.c.b16 %v8227, %v8226
        %v8240 = vpack.c.b16 %v8229, %v8228
        %v8241 = vpack.c.b16 %v8231, %v8230
        %v8242 = vpack.c.b16 %v8233, %v8232
        %v8243 = vpack.c.b16 %v8235, %v8234
        %v8268 = vunpack.c.l.b16 %v8204
        %v8269 = vunpack.c.l.b16 %v8205
        %v8270 = vunpack.c.l.b16 %v8206
        %v8271 = vunpack.c.l.b16 %v8207
        %v8272 = vunpack.c.l.b16 %v8208
        %v8273 = vunpack.c.l.b16 %v8209
        %v8274 = vunpack.c.l.b16 %v8210
        %v8275 = vunpack.c.l.b16 %v8211
        %v8276 = vunpack.c.l.b16 %v8212
        %v8277 = vunpack.c.l.b16 %v8213
        %v8278 = vunpack.c.l.b16 %v8214
        %v8279 = vunpack.c.l.b16 %v8215
        %v8280 = vunpack.c.l.b16 %v8216
        %v8281 = vunpack.c.l.b16 %v8217
        %v8282 = vunpack.c.l.b16 %v8218
        %v8283 = vunpack.c.l.b16 %v8219
        %v8284 = vpack.c.b16 %v8269, %v8268
        %v8285 = vpack.c.b16 %v8271, %v8270
        %v8286 = vpack.c.b16 %v8273, %v8272
        %v8287 = vpack.c.b16 %v8275, %v8274
        %v8288 = vpack.c.b16 %v8277, %v8276
        %v8289 = vpack.c.b16 %v8279, %v8278
        %v8290 = vpack.c.b16 %v8281, %v8280
        %v8291 = vpack.c.b16 %v8283, %v8282
        %8300 = vmatprep.subr.bf16.mxu0 0
        %8301 = vmatpush1.bf16.msra.mxu0 %v8284
        %8302 = vmatprep.subr.bf16.mxu0 0
        %8303 = vmatpush1.bf16.msra.mxu0 %v8285
        %8304 = vmatprep.subr.bf16.mxu0 0
        %8305 = vmatpush1.bf16.msra.mxu0 %v8286
        %8306 = vmatprep.subr.bf16.mxu0 0
        %8307 = vmatpush1.bf16.msra.mxu0 %v8287
        %8308 = vmatprep.subr.bf16.mxu0 0
        %8309 = vmatpush1.bf16.msra.mxu0 %v8288
        %8310 = vmatprep.subr.bf16.mxu0 0
        %8311 = vmatpush1.bf16.msra.mxu0 %v8289
        %8312 = vmatprep.subr.bf16.mxu0 0
        %8313 = vmatpush1.bf16.msra.mxu0 %v8290
        %8314 = vmatprep.subr.bf16.mxu0 0
        %8315 = vmatpush1.bf16.msra.mxu0 %v8291
        %8316 = vmatprep.subr.bf16.mxu0 0
        %8317 = vmatpush1.bf16.msra.mxu0 0
        %8318 = vmatprep.subr.bf16.mxu0 0
        %8319 = vmatpush1.bf16.msra.mxu0 0
        %8320 = vmatprep.subr.bf16.mxu0 0
        %8321 = vmatpush1.bf16.msra.mxu0 0
        %8322 = vmatprep.subr.bf16.mxu0 0
        %8323 = vmatpush1.bf16.msra.mxu0 0
        %8324 = vmatprep.subr.bf16.mxu0 0
        %8325 = vmatpush1.bf16.msra.mxu0 0
        %8326 = vmatprep.subr.bf16.mxu0 0
        %8327 = vmatpush1.bf16.msra.mxu0 0
        %8328 = vmatprep.subr.bf16.mxu0 0
        %8329 = vmatpush1.bf16.msra.mxu0 0
        %8330 = vmatprep.subr.bf16.mxu0 0
        %8331 = vmatpush1.bf16.msra.mxu0 0
        %8332 = vmatprep.mubr.bf16.mxu0 0
        %8333 = vmatmul.mubr.bf16.gmra.mrb[0].mxu0 %v8236
        %v8334 = vpop.f32.mrb[0].mxu0
        %v8335 = vadd.f32 0.0, %v8334
        %v8336 = vpop.f32.mrb[0].mxu0
        %v8337 = vpop.f32.mrb[0].mxu0
        %v8338 = vadd.f32 0.0, %v8337
        %v8339 = vpop.f32.mrb[0].mxu0
        %8340 = vmatprep.mubr.bf16.mxu0 0
        %8341 = vmatmul.mubr.bf16.gmra.mrb[0].mxu0 %v8237
        %v8342 = vpop.f32.mrb[0].mxu0
        %v8343 = vadd.f32 0.0, %v8342
        %v8344 = vpop.f32.mrb[0].mxu0
        %v8345 = vpop.f32.mrb[0].mxu0
        %v8346 = vadd.f32 0.0, %v8345
        %v8347 = vpop.f32.mrb[0].mxu0
        %8348 = vmatprep.mubr.bf16.mxu0 0
        %8349 = vmatmul.mubr.bf16.gmra.mrb[0].mxu0 %v8238
        %v8350 = vpop.f32.mrb[0].mxu0
        %v8351 = vadd.f32 0.0, %v8350
        %v8352 = vpop.f32.mrb[0].mxu0
        %v8353 = vpop.f32.mrb[0].mxu0
        %v8354 = vadd.f32 0.0, %v8353
        %v8355 = vpop.f32.mrb[0].mxu0
        %8356 = vmatprep.mubr.bf16.mxu0 0
        %8357 = vmatmul.mubr.bf16.gmra.mrb[0].mxu0 %v8239
        %v8358 = vpop.f32.mrb[0].mxu0
        %v8359 = vadd.f32 0.0, %v8358
        %v8360 = vpop.f32.mrb[0].mxu0
        %v8361 = vpop.f32.mrb[0].mxu0
        %v8362 = vadd.f32 0.0, %v8361
        %v8363 = vpop.f32.mrb[0].mxu0
        %8364 = vmatprep.mubr.bf16.mxu0 0
        %8365 = vmatmul.mubr.bf16.gmra.mrb[0].mxu0 %v8240
        %v8366 = vpop.f32.mrb[0].mxu0
        %v8367 = vadd.f32 0.0, %v8366
        %v8368 = vpop.f32.mrb[0].mxu0
        %v8369 = vpop.f32.mrb[0].mxu0
        %v8370 = vadd.f32 0.0, %v8369
        %v8371 = vpop.f32.mrb[0].mxu0
        %8372 = vmatprep.mubr.bf16.mxu0 0
        %8373 = vmatmul.mubr.bf16.gmra.mrb[0].mxu0 %v8241
        %v8374 = vpop.f32.mrb[0].mxu0
        %v8375 = vadd.f32 0.0, %v8374
        %v8376 = vpop.f32.mrb[0].mxu0
        %v8377 = vpop.f32.mrb[0].mxu0
        %v8378 = vadd.f32 0.0, %v8377
        %v8379 = vpop.f32.mrb[0].mxu0
        %8380 = vmatprep.mubr.bf16.mxu0 0
        %8381 = vmatmul.mubr.bf16.gmra.mrb[0].mxu0 %v8242
        %v8382 = vpop.f32.mrb[0].mxu0
        %v8383 = vadd.f32 0.0, %v8382
        %v8384 = vpop.f32.mrb[0].mxu0
        %v8385 = vpop.f32.mrb[0].mxu0
        %v8386 = vadd.f32 0.0, %v8385
        %v8387 = vpop.f32.mrb[0].mxu0
        %8388 = vmatprep.mubr.bf16.mxu0 0
        %8389 = vmatmul.mubr.bf16.gmra.mrb[0].mxu0 %v8243
        %v8390 = vpop.f32.mrb[0].mxu0
        %v8391 = vadd.f32 0.0, %v8390
        %v8392 = vpop.f32.mrb[0].mxu0
        %v8393 = vpop.f32.mrb[0].mxu0
        %v8394 = vadd.f32 0.0, %v8393
        %v8395 = vpop.f32.mrb[0].mxu0
        %8396 = vdwg.mxu0
        %v8397 = vadd.f32 %v8123, %v8335
        %v8398 = vadd.f32 %v8124, %v8338
        %v8399 = vadd.f32 %v8125, %v8343
        %v8400 = vadd.f32 %v8126, %v8346
        %v8401 = vadd.f32 %v8127, %v8351
        %v8402 = vadd.f32 %v8128, %v8354
        %v8403 = vadd.f32 %v8129, %v8359
        %v8404 = vadd.f32 %v8130, %v8362
        %v8405 = vadd.f32 %v8131, %v8367
        %v8406 = vadd.f32 %v8132, %v8370
        %v8407 = vadd.f32 %v8133, %v8375
        %v8408 = vadd.f32 %v8134, %v8378
        %v8409 = vadd.f32 %v8135, %v8383
        %v8410 = vadd.f32 %v8136, %v8386
        %v8411 = vadd.f32 %v8137, %v8391
        %v8412 = vadd.f32 %v8138, %v8394
        %v8413 = vld [vmem:[%s211] sm:$0x1]
        %v8415 = vlaneseq
        %v8416 = vshrl.u32 %v8415, 7
        %v8417 = vsub.s32 0, %v8416
        %v8418 = vrot.slane %v8413, %v8417
        %v8420 = vadd.f32 %v8397, %v8418
        %v8421 = vadd.f32 %v8398, %v8418
        %v8422 = vadd.f32 %v8399, %v8418
        %v8423 = vadd.f32 %v8400, %v8418
        %v8424 = vadd.f32 %v8401, %v8418
        %v8425 = vadd.f32 %v8402, %v8418
        %v8426 = vadd.f32 %v8403, %v8418
        %v8427 = vadd.f32 %v8404, %v8418
        %v8428 = vadd.f32 %v8405, %v8418
        %v8429 = vadd.f32 %v8406, %v8418
        %v8430 = vadd.f32 %v8407, %v8418
        %v8431 = vadd.f32 %v8408, %v8418
        %v8432 = vadd.f32 %v8409, %v8418
        %v8433 = vadd.f32 %v8410, %v8418
        %v8434 = vadd.f32 %v8411, %v8418
        %v8435 = vadd.f32 %v8412, %v8418
        %8436 = vst [vmem:[%s203] sm:$0xff] %v8420
        %8437 = vst [vmem:[%s203 + $0x8] sm:$0xff] %v8421
        %8438 = vst [vmem:[%s203 + $0x10] sm:$0xff] %v8422
        %8439 = vst [vmem:[%s203 + $0x18] sm:$0xff] %v8423
        %8440 = vst [vmem:[%s203 + $0x20] sm:$0xff] %v8424
        %8441 = vst [vmem:[%s203 + $0x28] sm:$0xff] %v8425
        %8442 = vst [vmem:[%s203 + $0x30] sm:$0xff] %v8426
        %8443 = vst [vmem:[%s203 + $0x38] sm:$0xff] %v8427
        %8444 = vst [vmem:[%s203 + $0x40] sm:$0xff] %v8428
        %8445 = vst [vmem:[%s203 + $0x48] sm:$0xff] %v8429
        %8446 = vst [vmem:[%s203 + $0x50] sm:$0xff] %v8430
        %8447 = vst [vmem:[%s203 + $0x58] sm:$0xff] %v8431
        %8448 = vst [vmem:[%s203 + $0x60] sm:$0xff] %v8432
        %8449 = vst [vmem:[%s203 + $0x68] sm:$0xff] %v8433
        %8450 = vst [vmem:[%s203 + $0x70] sm:$0xff] %v8434
        %8451 = vst [vmem:[%s203 + $0x78] sm:$0xff] %v8435
        %s8452 = sand.u32 %s113, 1
        %s8453 = scalar_lea.sflag [#allocation4], %s8452
        %s8454 = sand.u32 %s113, 1
        %s8455 = smul.addr %s8454, 128
        %s8456 = scalar_lea.vmem [#allocation5], %s8455
        // Predicated region
        $region37: #{aspp_forward.1} parent=31 // pred_check
          %p8457 = pneg %p123
        $region38: #{aspp_forward.1} parent=31 // pred_check_branch
          %8459 = sbr.rel (%p8457) target = $region40
        $region39: #{aspp_forward.1} parent=31 // pred_region
          %s8460 = smul.u32 8, %s23
          %s8462 = ssub.s32 2048, 2048
          %8463 = vsyncadd %s8453, %s8462
          %s8464 = smul.addr %s8460, 2
          %s8465 = smul.addr %s22, 32
          %s8466 = sadd.s32 %s8464, %s8465
          %s8467 = smul.addr %s8466, 128
          %s8468 = scalar_lea.hbm %s3, %s8467
          %s8469 = sshll.u32 %s8456, 4
          %s8470 = int_to_ptr.vmem [resolvable:$true] %s8469
          %8475 = dma.vmem_to_hbm [thread:$0]  %s8470, 2048, %s8468, %s8453, 128, 128, 8
        $region40: #{aspp_forward.1} parent=31 // pred_fallthru
          _
      $region32: #{aspp_forward.1} parent=5 // pred_fallthru
        _
      %p8476 = scmp.le.s32.totalorder 2, %s13
      // Predicated region
      $region41: #{aspp_forward.1} parent=5 // pred_check
        %p8477 = pneg %p8476
      $region42: #{aspp_forward.1} parent=5 // pred_check_branch
        %8479 = sbr.rel (%p8477) target = $region44
      $region43: #{aspp_forward.1} parent=5 // pred_region
        %s8480 = ssub.s32 %s13, 2
        // Predicated region
        $region45: #{aspp_forward.1} parent=43 // pred_check
          %p8481 = pneg %p129
        $region46: #{aspp_forward.1} parent=43 // pred_check_branch
          %8483 = sbr.rel (%p8481) target = $region48
        $region47: #{aspp_forward.1} parent=43 // pred_region
          %s8484 = sand.u32 %s114, 1
          %s8485 = scalar_lea.sflag [#allocation4], %s8484
          %s8486 = sand.u32 %s114, 1
          %s8487 = smul.addr %s8486, 128
          %s8488 = scalar_lea.vmem [#allocation5], %s8487
          %8489 = dma.done %s8485, 2048
        $region48: #{aspp_forward.1} parent=43 // pred_fallthru
          _
      $region44: #{aspp_forward.1} parent=5 // pred_fallthru
        _
    $region6: #{aspp_forward.1} parent=1 // loop_footer
      %s17 = sadd.s32 1, %s13
    $region7: #{aspp_forward.1} parent=1 // loop_footer_branch
      %12 = sbr.rel target = $region3
    $region8: #{aspp_forward.1} parent=1 // loop_exit
      _
    %8490 = vsyncpa [#allocation3], 1
    %s8491 = scalar_lea.sflag [#allocation3], 1
    %8492 = vsyncpa %s8491, 1
    %8493 = vsyncpa [#allocation4], 1
    %s8494 = scalar_lea.sflag [#allocation4], 1
    %8495 = vsyncpa %s8494, 1

</llo_original>
